<compile_context>
chip_gen: v5e
topology: v5e:2x2
jax: 0.10.0
libtpu: 0.0.40
codegen_flags: <defaults>
</compile_context>

<pallas_src>
import functools

import jax
import jax.numpy as jnp
from jax import lax
from jax.experimental import pallas as pl
from jax.experimental.pallas import tpu as pltpu
import numpy as np

B_IMG = 8                       # images per conv grid step (sized for v5e scoped VMEM)
_VMEM_LIMIT = 32 * 1024 * 1024  # bytes; >= default on v6e/v7x, raises v5e's 16 MiB


# ----------------------------------------------------------------------------
# Kernel 1: fused conv3x3(pad=1) + bias + ReLU + 2x2 max-pool for B_IMG images.
#   p_ref : (4*m, F) bf16   im2col patches, rows ordered (corner d, image b, pixel q)
#                           m = B_IMG * Q,  Q = (H//2)*(W//2),  F = 9*Cin
#   w_ref : (F, Cout) bf16  conv weight, row order = (kh, kw, cin)
#   b_ref : (1, Cout) f32
#   o_ref : (m, Cout) bf16  rows ordered (image b, pixel q), pixel order (hh, ww)
# Single MXU matmul of M = 4*m (f32 accumulation), then max over the 4 corner
# row-slices on the VPU.  bias + ReLU are applied after the max (commutes exactly).
# ----------------------------------------------------------------------------
def conv_relu_pool_kernel(p_ref, w_ref, b_ref, o_ref, *, m):
    acc = jnp.dot(p_ref[...], w_ref[...],
                  preferred_element_type=jnp.float32)            # (4m, Cout) f32
    pooled = jnp.maximum(jnp.maximum(acc[0 * m:1 * m], acc[1 * m:2 * m]),
                         jnp.maximum(acc[2 * m:3 * m], acc[3 * m:4 * m]))
    o_ref[...] = jnp.maximum(pooled + b_ref[...], 0.0).astype(o_ref.dtype)


def conv_relu_pool(patches_2d, w_mat, b_row, *, b_img, q):
    rows, feat = patches_2d.shape
    cout = w_mat.shape[1]
    m = b_img * q                       # output rows per grid step (multiple of 8)
    n_tiles = rows // (4 * m)
    return pl.pallas_call(
        functools.partial(conv_relu_pool_kernel, m=m),
        out_shape=jax.ShapeDtypeStruct((n_tiles * m, cout), jnp.bfloat16),
        grid=(n_tiles,),
        in_specs=[
            pl.BlockSpec((4 * m, feat), lambda t: (t, 0)),
            pl.BlockSpec((feat, cout), lambda t: (0, 0)),
            pl.BlockSpec((1, cout), lambda t: (0, 0)),
        ],
        out_specs=pl.BlockSpec((m, cout), lambda t: (t, 0)),
        compiler_params=pltpu.CompilerParams(
            dimension_semantics=("parallel",),
            vmem_limit_bytes=_VMEM_LIMIT),
    )(patches_2d, w_mat, b_row)


# ----------------------------------------------------------------------------
# Kernel 2: FC head.  relu(x @ W1 + b1) @ W2 + b2, then log_softmax(dim=-1).
# bf16 MXU operands, f32 accumulation / epilogue.  Gridded over the batch rows.
# ----------------------------------------------------------------------------
def mlp_logsoftmax_kernel(x_ref, w1_ref, b1_ref, w2_ref, b2_ref, o_ref):
    h = jnp.dot(x_ref[...], w1_ref[...],
                preferred_element_type=jnp.float32) + b1_ref[...]
    h = jnp.maximum(h, 0.0)
    z = jnp.dot(h.astype(jnp.bfloat16), w2_ref[...],
                preferred_element_type=jnp.float32) + b2_ref[...]
    m = jnp.max(z, axis=-1, keepdims=True)
    lse = m + jnp.log(jnp.sum(jnp.exp(z - m), axis=-1, keepdims=True))
    o_ref[...] = (z - lse).astype(o_ref.dtype)


def mlp_head(x_bf16, w1, b1, w2, b2, *, bm):
    n_rows, d = x_bf16.shape
    hdim = w1.shape[1]
    k = w2.shape[1]
    return pl.pallas_call(
        mlp_logsoftmax_kernel,
        out_shape=jax.ShapeDtypeStruct((n_rows, k), jnp.float32),
        grid=(n_rows // bm,),
        in_specs=[
            pl.BlockSpec((bm, d), lambda i: (i, 0)),
            pl.BlockSpec((d, hdim), lambda i: (0, 0)),
            pl.BlockSpec((1, hdim), lambda i: (0, 0)),
            pl.BlockSpec((hdim, k), lambda i: (0, 0)),
            pl.BlockSpec((1, k), lambda i: (0, 0)),
        ],
        out_specs=pl.BlockSpec((bm, k), lambda i: (i, 0)),
        compiler_params=pltpu.CompilerParams(
            dimension_semantics=("parallel",),
            vmem_limit_bytes=_VMEM_LIMIT),
    )(x_bf16, w1, b1, w2, b2)


# ----------------------------------------------------------------------------
# Glue: im2col with rows grouped so a single matmul per tile covers all 4 pool
# corners of B_IMG images.
#   (Np, H, W, C) -> (Np*4*(H//2)*(W//2), 9*C)
#   row order = (tile t, corner d=(dh,dw), image b within tile, pixel q=(hh,ww))
#   feature order = (kh, kw, c)
# ----------------------------------------------------------------------------
def im2col_pool_grouped_2d(x_nhwc, b_img):
    n, h, w, c = x_nhwc.shape
    xp = jnp.pad(x_nhwc, ((0, 0), (1, 1), (1, 1), (0, 0)))
    taps = [xp[:, kh:kh + h, kw:kw + w, :] for kh in range(3) for kw in range(3)]
    p = jnp.concatenate(taps, axis=-1)                    # (N, H, W, 9C)
    hh, wh = h // 2, w // 2
    p = p.reshape(n, hh, 2, wh, 2, 9 * c)
    p = p.transpose(0, 2, 4, 1, 3, 5)                     # (N, dh, dw, hh, wh, 9C)
    p = p.reshape(n // b_img, b_img, 4, hh * wh, 9 * c)
    p = p.transpose(0, 2, 1, 3, 4)                        # (T, 4, B, Q, F)
    return p.reshape(n * 4 * hh * wh, 9 * c)


def _pick_fc_block(n, cap=128):
    """Largest multiple-of-8 divisor of n that is <= cap (n is a multiple of 8)."""
    b = min(n, cap)
    while n % b:
        b -= 8
    return b


# ----------------------------------------------------------------------------
# One-time weight repacking (init/setup cost, not per-forward):
#   * conv kernels flattened to (9*Cin, Cout) matmul form (bf16)
#   * fc1 rows permuted from torch's NCHW .view order to the NHWC flatten order
#     produced by the conv kernels (removes the per-forward activation transpose)
#   * all MXU operands cast to bf16, biases kept f32
# ----------------------------------------------------------------------------
def prepare_params(w1_hwio, b1, w2_hwio, b2, wf1, bf1, wf2, bf2):
    cin1, cout1 = w1_hwio.shape[2], w1_hwio.shape[3]
    cin2, cout2 = w2_hwio.shape[2], w2_hwio.shape[3]
    wf1_nhwc = (wf1.reshape(cout2, 7, 7, wf1.shape[1])
                   .transpose(1, 2, 0, 3).reshape(wf1.shape[0], wf1.shape[1]))
    return dict(
        w1=w1_hwio.reshape(9 * cin1, cout1).astype(jnp.bfloat16),
        b1=b1.reshape(1, -1).astype(jnp.float32),
        w2=w2_hwio.reshape(9 * cin2, cout2).astype(jnp.bfloat16),
        b2=b2.reshape(1, -1).astype(jnp.float32),
        wf1=wf1_nhwc.astype(jnp.bfloat16),
        bf1=bf1.reshape(1, -1).astype(jnp.float32),
        wf2=wf2.astype(jnp.bfloat16),
        bf2=bf2.reshape(1, -1).astype(jnp.float32),
    )


# ----------------------------------------------------------------------------
# Full forward pass (eval mode).
# ----------------------------------------------------------------------------
def convnet_dropout_forward(x_nchw, params, *, b_img=B_IMG):
    n = x_nchw.shape[0]
    n_pad = ((n + b_img - 1) // b_img) * b_img
    x = jnp.transpose(x_nchw, (0, 2, 3, 1)).astype(jnp.bfloat16)  # NCHW -> NHWC bf16
    if n_pad != n:
        x = jnp.pad(x, ((0, n_pad - n), (0, 0), (0, 0), (0, 0)))

    # conv1 + ReLU + (Dropout2d = identity in eval) + maxpool2 : 28x28x1 -> 14x14x8
    p1 = im2col_pool_grouped_2d(x, b_img)                       # (n_pad*4*196, 9) bf16
    h1 = conv_relu_pool(p1, params["w1"], params["b1"], b_img=b_img, q=196)
    # TODO(synk): nn.Dropout2d(p=0.2) is identity in eval mode; train-mode per-channel
    # masking (pltpu.prng_seed / prng_random_bits) is not implemented here.
    h1 = h1.reshape(n_pad, 14, 14, 8)

    # conv2 + ReLU + dropout + maxpool2 : 14x14x8 -> 7x7x16
    p2 = im2col_pool_grouped_2d(h1, b_img)                      # (n_pad*4*49, 72) bf16
    h2 = conv_relu_pool(p2, params["w2"], params["b2"], b_img=b_img, q=49)

    # NHWC flatten; fc1 rows were pre-permuted to this order, so no transpose here.
    flat = h2.reshape(n_pad, 784)
    out = mlp_head(flat, params["wf1"], params["bf1"], params["wf2"], params["bf2"],
                   bm=_pick_fc_block(n_pad))
    return out[:n]


# ----------------------------------------------------------------------------
# Pure-JAX reference with matched bf16-operand / f32-accumulation precision.
# ----------------------------------------------------------------------------
def ref_forward(x, w1_hwio, b1, w2_hwio, b2, wf1, bf1, wf2, bf2):
    q = lambda a: a.astype(jnp.bfloat16).astype(jnp.float32)   # bf16 operand rounding

    def conv(a, w):
        dn = lax.conv_dimension_numbers(a.shape, w.shape, ('NCHW', 'HWIO', 'NCHW'))
        return lax.conv_general_dilated(q(a), q(w), (1, 1), 'SAME',
                                        dimension_numbers=dn,
                                        precision=lax.Precision.HIGHEST)

    def maxpool2(a):
        return lax.reduce_window(a, -jnp.inf, lax.max,
                                 (1, 1, 2, 2), (1, 1, 2, 2), 'VALID')

    a = jax.nn.relu(conv(x, w1_hwio) + b1.reshape(1, -1, 1, 1))
    a = maxpool2(a)
    a = jax.nn.relu(conv(a, w2_hwio) + b2.reshape(1, -1, 1, 1))
    a = maxpool2(a)
    f = a.reshape(a.shape[0], -1)                 # torch .view(-1, 784) on NCHW
    h = jax.nn.relu(jnp.dot(q(f), q(wf1), precision=lax.Precision.HIGHEST) + bf1)
    z = jnp.dot(q(h), q(wf2), precision=lax.Precision.HIGHEST) + bf2
    return jax.nn.log_softmax(z, axis=-1)


if __name__ == "__main__":
    key = jax.random.PRNGKey(0)
    ks = jax.random.split(key, 9)
    N = 12  # fc1 expects 784 = 16*7*7 -> spatial must be 28x28 with 1 input channel
    x = jax.random.normal(ks[0], (N, 1, 28, 28), jnp.float32)

    # deterministic synthetic parameters (shapes from the module's __init__)
    w1_hwio = jax.random.normal(ks[1], (3, 3, 1, 8), jnp.float32) * 0.2    # conv1
    b1 = jax.random.normal(ks[2], (8,), jnp.float32) * 0.1
    w2_hwio = jax.random.normal(ks[3], (3, 3, 8, 16), jnp.float32) * 0.1   # conv2
    b2 = jax.random.normal(ks[4], (16,), jnp.float32) * 0.1
    wf1 = jax.random.normal(ks[5], (784, 128), jnp.float32) * 0.05         # fc1 (in, out)
    bf1 = jax.random.normal(ks[6], (128,), jnp.float32) * 0.1
    wf2 = jax.random.normal(ks[7], (128, 10), jnp.float32) * 0.1           # fc2 (in, out)
    bf2 = jax.random.normal(ks[8], (10,), jnp.float32) * 0.1

    params = prepare_params(w1_hwio, b1, w2_hwio, b2, wf1, bf1, wf2, bf2)

    fwd = jax.jit(convnet_dropout_forward)
    out = jax.block_until_ready(fwd(x, params))

    ref = jax.block_until_ready(
        ref_forward(x, w1_hwio, b1, w2_hwio, b2, wf1, bf1, wf2, bf2))

    assert out.shape == (N, 10), out.shape
    np.testing.assert_allclose(np.asarray(out), np.asarray(ref), rtol=2e-3, atol=2e-3)
    print("KERNEL_OK")
</pallas_src>

<mosaic_0001>
module attributes {stable_mosaic.version = 11 : i64} {
  func.func @conv_relu_pool_kernel(%arg0: i32, %arg1: memref<6272x9xbf16, #tpu.memory_space<vmem>>, %arg2: memref<9x8xbf16, #tpu.memory_space<vmem>>, %arg3: memref<1x8xf32, #tpu.memory_space<vmem>>, %arg4: memref<1568x8xbf16, #tpu.memory_space<vmem>>) attributes {dimension_semantics = [#tpu.dimension_semantics<parallel>], iteration_bounds = array<i64: 2>, scalar_prefetch = 0 : i64, scratch_operands = 0 : i64, tpu.core_type = #tpu.core_type<tc>, window_params = [{transform_indices = @transform_0, window_bounds = array<i64: 6272, 9>}, {pipeline_mode = #tpu.pipeline_mode<synchronous>, transform_indices = @transform_1, window_bounds = array<i64: 9, 8>}, {pipeline_mode = #tpu.pipeline_mode<synchronous>, transform_indices = @transform_2, window_bounds = array<i64: 1, 8>}, {transform_indices = @transform_3, window_bounds = array<i64: 1568, 8>}]} {
    %c0 = arith.constant 0 : index
    %c0_0 = arith.constant 0 : index
    %0 = vector.load %arg1[%c0, %c0_0] : memref<6272x9xbf16, #tpu.memory_space<vmem>>, vector<6272x9xbf16>
    %c0_1 = arith.constant 0 : index
    %c0_2 = arith.constant 0 : index
    %1 = vector.load %arg2[%c0_1, %c0_2] : memref<9x8xbf16, #tpu.memory_space<vmem>>, vector<9x8xbf16>
    %cst = arith.constant dense<0.000000e+00> : vector<6272x8xf32>
    %2 = tpu.matmul %0, %1, %cst {dimension_numbers = #tpu.dot_dimension_numbers<[1], [0], [0], [1], [0, 0, 1, 1], [], []>} : vector<6272x9xbf16>, vector<9x8xbf16>, vector<6272x8xf32> -> vector<6272x8xf32>
    %3 = vector.extract_strided_slice %2 {offsets = [0, 0], sizes = [1568, 8], strides = [1, 1]} : vector<6272x8xf32> to vector<1568x8xf32>
    %4 = vector.extract_strided_slice %2 {offsets = [1568, 0], sizes = [1568, 8], strides = [1, 1]} : vector<6272x8xf32> to vector<1568x8xf32>
    %5 = arith.maximumf %3, %4 : vector<1568x8xf32>
    %6 = vector.extract_strided_slice %2 {offsets = [3136, 0], sizes = [1568, 8], strides = [1, 1]} : vector<6272x8xf32> to vector<1568x8xf32>
    %7 = vector.extract_strided_slice %2 {offsets = [4704, 0], sizes = [1568, 8], strides = [1, 1]} : vector<6272x8xf32> to vector<1568x8xf32>
    %8 = arith.maximumf %6, %7 : vector<1568x8xf32>
    %9 = arith.maximumf %5, %8 : vector<1568x8xf32>
    %c0_3 = arith.constant 0 : index
    %c0_4 = arith.constant 0 : index
    %10 = vector.load %arg3[%c0_3, %c0_4] : memref<1x8xf32, #tpu.memory_space<vmem>>, vector<1x8xf32>
    %11 = vector.broadcast %10 : vector<1x8xf32> to vector<1568x8xf32>
    %12 = arith.addf %9, %11 : vector<1568x8xf32>
    %cst_5 = arith.constant 0.000000e+00 : f32
    %13 = vector.broadcast %cst_5 : f32 to vector<1568x8xf32>
    %14 = arith.maximumf %12, %13 : vector<1568x8xf32>
    %15 = arith.truncf %14 : vector<1568x8xf32> to vector<1568x8xbf16>
    %c0_6 = arith.constant 0 : index
    %c0_7 = arith.constant 0 : index
    %16 = vector.load %arg4[%c0_6, %c0_7] : memref<1568x8xbf16, #tpu.memory_space<vmem>>, vector<1568x8xbf16>
    tpu.vector_store %arg4[%c0_6, %c0_7], %15 {strides = array<i32>} : memref<1568x8xbf16, #tpu.memory_space<vmem>>, vector<1568x8xbf16>,
    return
  }
  func.func @transform_0(%arg0: i32) -> (i32, i32) {
    %c0_i32 = arith.constant 0 : i32
    %c0_i32_0 = arith.constant 0 : i32
    return %arg0, %c0_i32 : i32, i32
  }
  func.func @transform_1(%arg0: i32) -> (i32, i32) {
    %c0_i32 = arith.constant 0 : i32
    %c0_i32_0 = arith.constant 0 : i32
    %c0_i32_1 = arith.constant 0 : i32
    return %c0_i32, %c0_i32_0 : i32, i32
  }
  func.func @transform_2(%arg0: i32) -> (i32, i32) {
    %c0_i32 = arith.constant 0 : i32
    %c0_i32_0 = arith.constant 0 : i32
    %c0_i32_1 = arith.constant 0 : i32
    return %c0_i32, %c0_i32_0 : i32, i32
  }
  func.func @transform_3(%arg0: i32) -> (i32, i32) {
    %c0_i32 = arith.constant 0 : i32
    %c0_i32_0 = arith.constant 0 : i32
    return %arg0, %c0_i32 : i32, i32
  }
}

module attributes {stable_mosaic.version = 11 : i64} {
  func.func @conv_relu_pool_kernel(%arg0: i32, %arg1: memref<1568x72xbf16, #tpu.memory_space<vmem>>, %arg2: memref<72x16xbf16, #tpu.memory_space<vmem>>, %arg3: memref<1x16xf32, #tpu.memory_space<vmem>>, %arg4: memref<392x16xbf16, #tpu.memory_space<vmem>>) attributes {dimension_semantics = [#tpu.dimension_semantics<parallel>], iteration_bounds = array<i64: 2>, scalar_prefetch = 0 : i64, scratch_operands = 0 : i64, tpu.core_type = #tpu.core_type<tc>, window_params = [{transform_indices = @transform_0, window_bounds = array<i64: 1568, 72>}, {pipeline_mode = #tpu.pipeline_mode<synchronous>, transform_indices = @transform_1, window_bounds = array<i64: 72, 16>}, {pipeline_mode = #tpu.pipeline_mode<synchronous>, transform_indices = @transform_2, window_bounds = array<i64: 1, 16>}, {transform_indices = @transform_3, window_bounds = array<i64: 392, 16>}]} {
    %c0 = arith.constant 0 : index
    %c0_0 = arith.constant 0 : index
    %0 = vector.load %arg1[%c0, %c0_0] : memref<1568x72xbf16, #tpu.memory_space<vmem>>, vector<1568x72xbf16>
    %c0_1 = arith.constant 0 : index
    %c0_2 = arith.constant 0 : index
    %1 = vector.load %arg2[%c0_1, %c0_2] : memref<72x16xbf16, #tpu.memory_space<vmem>>, vector<72x16xbf16>
    %cst = arith.constant dense<0.000000e+00> : vector<1568x16xf32>
    %2 = tpu.matmul %0, %1, %cst {dimension_numbers = #tpu.dot_dimension_numbers<[1], [0], [0], [1], [0, 0, 1, 1], [], []>} : vector<1568x72xbf16>, vector<72x16xbf16>, vector<1568x16xf32> -> vector<1568x16xf32>
    %3 = vector.extract_strided_slice %2 {offsets = [0, 0], sizes = [392, 16], strides = [1, 1]} : vector<1568x16xf32> to vector<392x16xf32>
    %4 = vector.extract_strided_slice %2 {offsets = [392, 0], sizes = [392, 16], strides = [1, 1]} : vector<1568x16xf32> to vector<392x16xf32>
    %5 = arith.maximumf %3, %4 : vector<392x16xf32>
    %6 = vector.extract_strided_slice %2 {offsets = [784, 0], sizes = [392, 16], strides = [1, 1]} : vector<1568x16xf32> to vector<392x16xf32>
    %7 = vector.extract_strided_slice %2 {offsets = [1176, 0], sizes = [392, 16], strides = [1, 1]} : vector<1568x16xf32> to vector<392x16xf32>
    %8 = arith.maximumf %6, %7 : vector<392x16xf32>
    %9 = arith.maximumf %5, %8 : vector<392x16xf32>
    %c0_3 = arith.constant 0 : index
    %c0_4 = arith.constant 0 : index
    %10 = vector.load %arg3[%c0_3, %c0_4] : memref<1x16xf32, #tpu.memory_space<vmem>>, vector<1x16xf32>
    %11 = vector.broadcast %10 : vector<1x16xf32> to vector<392x16xf32>
    %12 = arith.addf %9, %11 : vector<392x16xf32>
    %cst_5 = arith.constant 0.000000e+00 : f32
    %13 = vector.broadcast %cst_5 : f32 to vector<392x16xf32>
    %14 = arith.maximumf %12, %13 : vector<392x16xf32>
    %15 = arith.truncf %14 : vector<392x16xf32> to vector<392x16xbf16>
    %c0_6 = arith.constant 0 : index
    %c0_7 = arith.constant 0 : index
    %16 = vector.load %arg4[%c0_6, %c0_7] : memref<392x16xbf16, #tpu.memory_space<vmem>>, vector<392x16xbf16>
    tpu.vector_store %arg4[%c0_6, %c0_7], %15 {strides = array<i32>} : memref<392x16xbf16, #tpu.memory_space<vmem>>, vector<392x16xbf16>,
    return
  }
  func.func @transform_0(%arg0: i32) -> (i32, i32) {
    %c0_i32 = arith.constant 0 : i32
    %c0_i32_0 = arith.constant 0 : i32
    return %arg0, %c0_i32 : i32, i32
  }
  func.func @transform_1(%arg0: i32) -> (i32, i32) {
    %c0_i32 = arith.constant 0 : i32
    %c0_i32_0 = arith.constant 0 : i32
    %c0_i32_1 = arith.constant 0 : i32
    return %c0_i32, %c0_i32_0 : i32, i32
  }
  func.func @transform_2(%arg0: i32) -> (i32, i32) {
    %c0_i32 = arith.constant 0 : i32
    %c0_i32_0 = arith.constant 0 : i32
    %c0_i32_1 = arith.constant 0 : i32
    return %c0_i32, %c0_i32_0 : i32, i32
  }
  func.func @transform_3(%arg0: i32) -> (i32, i32) {
    %c0_i32 = arith.constant 0 : i32
    %c0_i32_0 = arith.constant 0 : i32
    return %arg0, %c0_i32 : i32, i32
  }
}

module attributes {stable_mosaic.version = 11 : i64} {
  func.func @mlp_logsoftmax_kernel(%arg0: i32, %arg1: memref<16x784xbf16, #tpu.memory_space<vmem>>, %arg2: memref<784x128xbf16, #tpu.memory_space<vmem>>, %arg3: memref<1x128xf32, #tpu.memory_space<vmem>>, %arg4: memref<128x10xbf16, #tpu.memory_space<vmem>>, %arg5: memref<1x10xf32, #tpu.memory_space<vmem>>, %arg6: memref<16x10xf32, #tpu.memory_space<vmem>>) attributes {dimension_semantics = [#tpu.dimension_semantics<parallel>], iteration_bounds = array<i64: 1>, scalar_prefetch = 0 : i64, scratch_operands = 0 : i64, tpu.core_type = #tpu.core_type<tc>, window_params = [{transform_indices = @transform_0, window_bounds = array<i64: 16, 784>}, {pipeline_mode = #tpu.pipeline_mode<synchronous>, transform_indices = @transform_1, window_bounds = array<i64: 784, 128>}, {pipeline_mode = #tpu.pipeline_mode<synchronous>, transform_indices = @transform_2, window_bounds = array<i64: 1, 128>}, {pipeline_mode = #tpu.pipeline_mode<synchronous>, transform_indices = @transform_3, window_bounds = array<i64: 128, 10>}, {pipeline_mode = #tpu.pipeline_mode<synchronous>, transform_indices = @transform_4, window_bounds = array<i64: 1, 10>}, {transform_indices = @transform_5, window_bounds = array<i64: 16, 10>}]} {
    %c0 = arith.constant 0 : index
    %c0_0 = arith.constant 0 : index
    %0 = vector.load %arg1[%c0, %c0_0] : memref<16x784xbf16, #tpu.memory_space<vmem>>, vector<16x784xbf16>
    %c0_1 = arith.constant 0 : index
    %c0_2 = arith.constant 0 : index
    %1 = vector.load %arg2[%c0_1, %c0_2] : memref<784x128xbf16, #tpu.memory_space<vmem>>, vector<784x128xbf16>
    %cst = arith.constant dense<0.000000e+00> : vector<16x128xf32>
    %2 = tpu.matmul %0, %1, %cst {dimension_numbers = #tpu.dot_dimension_numbers<[1], [0], [0], [1], [0, 0, 1, 1], [], []>} : vector<16x784xbf16>, vector<784x128xbf16>, vector<16x128xf32> -> vector<16x128xf32>
    %c0_3 = arith.constant 0 : index
    %c0_4 = arith.constant 0 : index
    %3 = vector.load %arg3[%c0_3, %c0_4] : memref<1x128xf32, #tpu.memory_space<vmem>>, vector<1x128xf32>
    %4 = vector.broadcast %3 : vector<1x128xf32> to vector<16x128xf32>
    %5 = arith.addf %2, %4 : vector<16x128xf32>
    %cst_5 = arith.constant 0.000000e+00 : f32
    %6 = vector.broadcast %cst_5 : f32 to vector<16x128xf32>
    %7 = arith.maximumf %5, %6 : vector<16x128xf32>
    %8 = arith.truncf %7 : vector<16x128xf32> to vector<16x128xbf16>
    %c0_6 = arith.constant 0 : index
    %c0_7 = arith.constant 0 : index
    %9 = vector.load %arg4[%c0_6, %c0_7] : memref<128x10xbf16, #tpu.memory_space<vmem>>, vector<128x10xbf16>
    %cst_8 = arith.constant dense<0.000000e+00> : vector<16x10xf32>
    %10 = tpu.matmul %8, %9, %cst_8 {dimension_numbers = #tpu.dot_dimension_numbers<[1], [0], [0], [1], [0, 0, 1, 1], [], []>} : vector<16x128xbf16>, vector<128x10xbf16>, vector<16x10xf32> -> vector<16x10xf32>
    %c0_9 = arith.constant 0 : index
    %c0_10 = arith.constant 0 : index
    %11 = vector.load %arg5[%c0_9, %c0_10] : memref<1x10xf32, #tpu.memory_space<vmem>>, vector<1x10xf32>
    %12 = vector.broadcast %11 : vector<1x10xf32> to vector<16x10xf32>
    %13 = arith.addf %10, %12 : vector<16x10xf32>
    %cst_11 = arith.constant dense<0xFF800000> : vector<16xf32>
    %14 = vector.multi_reduction <maximumf>, %13, %cst_11 [1] : vector<16x10xf32> to vector<16xf32>
    %15 = vector.shape_cast %14 : vector<16xf32> to vector<16x1xf32>
    %16 = vector.broadcast %15 : vector<16x1xf32> to vector<16x10xf32>
    %17 = arith.subf %13, %16 : vector<16x10xf32>
    %18 = math.exp %17 : vector<16x10xf32>
    %cst_12 = arith.constant dense<0.000000e+00> : vector<16xf32>
    %19 = vector.multi_reduction <add>, %18, %cst_12 [1] : vector<16x10xf32> to vector<16xf32>
    %20 = vector.shape_cast %19 : vector<16xf32> to vector<16x1xf32>
    %21 = math.log %20 : vector<16x1xf32>
    %22 = arith.addf %15, %21 : vector<16x1xf32>
    %23 = vector.broadcast %22 : vector<16x1xf32> to vector<16x10xf32>
    %24 = arith.subf %13, %23 : vector<16x10xf32>
    %c0_13 = arith.constant 0 : index
    %c0_14 = arith.constant 0 : index
    %25 = vector.load %arg6[%c0_13, %c0_14] : memref<16x10xf32, #tpu.memory_space<vmem>>, vector<16x10xf32>
    tpu.vector_store %arg6[%c0_13, %c0_14], %24 {strides = array<i32>} : memref<16x10xf32, #tpu.memory_space<vmem>>, vector<16x10xf32>,
    return
  }
  func.func @transform_0(%arg0: i32) -> (i32, i32) {
    %c0_i32 = arith.constant 0 : i32
    %c0_i32_0 = arith.constant 0 : i32
    return %arg0, %c0_i32 : i32, i32
  }
  func.func @transform_1(%arg0: i32) -> (i32, i32) {
    %c0_i32 = arith.constant 0 : i32
    %c0_i32_0 = arith.constant 0 : i32
    %c0_i32_1 = arith.constant 0 : i32
    return %c0_i32, %c0_i32_0 : i32, i32
  }
  func.func @transform_2(%arg0: i32) -> (i32, i32) {
    %c0_i32 = arith.constant 0 : i32
    %c0_i32_0 = arith.constant 0 : i32
    %c0_i32_1 = arith.constant 0 : i32
    return %c0_i32, %c0_i32_0 : i32, i32
  }
  func.func @transform_3(%arg0: i32) -> (i32, i32) {
    %c0_i32 = arith.constant 0 : i32
    %c0_i32_0 = arith.constant 0 : i32
    %c0_i32_1 = arith.constant 0 : i32
    return %c0_i32, %c0_i32_0 : i32, i32
  }
  func.func @transform_4(%arg0: i32) -> (i32, i32) {
    %c0_i32 = arith.constant 0 : i32
    %c0_i32_0 = arith.constant 0 : i32
    %c0_i32_1 = arith.constant 0 : i32
    return %c0_i32, %c0_i32_0 : i32, i32
  }
  func.func @transform_5(%arg0: i32) -> (i32, i32) {
    %c0_i32 = arith.constant 0 : i32
    %c0_i32_0 = arith.constant 0 : i32
    return %arg0, %c0_i32 : i32, i32
  }
}

</mosaic_0001>

<llo_original>
// kernel: convnet_dropout_forward.3
$region0: #{convnet_dropout_forward.3}
  #allocation0 [shape = 'u32[]', space=smem, size = 0x4, offset = 0x4, fixed_abs, tag = 'smem constant byte address 0x4 - core index']
  #allocation1 [shape = 'u32[72,128]{1,0:T(1,128)}', space=vmem, size = 0x9000, scoped, tag = 'internal scratch']
  %s0 = inlined_call_operand.vmem [shape: bf16[12544,9], index: 0, kind: input, shape index: {}]
  %s1 = inlined_call_operand.vmem [shape: bf16[9,8], index: 1, kind: input, shape index: {}]
  %s2 = inlined_call_operand.vmem [shape: f32[1,8], index: 2, kind: input, shape index: {}]
  %s3 = inlined_call_operand.vmem [shape: bf16[3136,8], index: 3, kind: output, shape index: {}]
  %s4 = sld [smem:[#allocation0]]
  $region45: #{convnet_dropout_forward.3} parent=0
    _
  %s6 = ssub.s32 1, %s4
  %s7 = scalar_select 0, %s6, %s4
  loop: start=0, step=1, limit=4
  $region2: #{convnet_dropout_forward.3} parent=0 // loop_pre_header
    _
  $region3: #{convnet_dropout_forward.3} parent=0 // loop_header
    %s9 = sphi 0, %s13
    %p10 = scmp.ge.s32.totalorder %s9, 4
    %s19 = sphi 0, %s21
    %s22 = sphi 0, %s19
    %s23 = sphi 0, %s22
    %s39 = sphi 0, %s23
    %s43 = sphi 0, %s43
    %s45 = sphi 0, %s43
    %s46 = sphi 0, %s45
    %s60 = sphi 0, %s46
    %s64 = sphi 0, %s64
    %s66 = sphi 0, %s64
    %s67 = sphi 0, %s66
    %s81 = sphi 0, %s67
    %s87 = sphi 0, %s89
    %s90 = sphi 0, %s87
    %s91 = sphi 0, %s90
    %s107 = sphi 0, %s91
  $region4: #{convnet_dropout_forward.3} parent=0 // loop_header_branch
    %12 = sbr.rel (%p10) target = $region8
  $region5: #{convnet_dropout_forward.3} parent=0 // loop_body
    %s14 = ssub.s32 %s9, 1
    %s15 = ssub.s32 %s9, 2
    %s16 = sadd.s32 %s9, 1
    %s17 = ssub.s32 %s9, %s16
    %p18 = scmp.eq.s32.totalorder %s17, 0
    %s20 = sadd.s32 %s19, 1
    %s21 = scalar_select %p18, %s19, %s20
    %p24 = pneg %p18
    %p25 = scmp.eq.s32.totalorder %s9, 1
    %p26 = por %p24, %p25
    %p27 = scmp.ne.s32.totalorder %s19, %s22
    %p28 = scmp.eq.s32.totalorder %s9, 0
    %p29 = por %p27, %p28
    %p30 = scmp.ne.s32.totalorder %s19, %s22
    %p31 = scmp.eq.s32.totalorder %s14, 1
    %p32 = por %p30, %p31
    %p33 = scmp.ne.s32.totalorder %s22, %s23
    %p34 = scmp.eq.s32.totalorder %s14, 0
    %p35 = por %p33, %p34
    %p36 = scmp.ne.s32.totalorder %s22, %s23
    %p37 = scmp.eq.s32.totalorder %s15, 1
    %p38 = por %p36, %p37
    %p40 = scmp.ne.s32.totalorder %s23, %s39
    %p41 = scmp.eq.s32.totalorder %s15, 0
    %p42 = por %p40, %p41
    %s44 = sadd.s32 %s43, 1
    %p47 = scmp.eq.s32.totalorder %s9, 1
    %p48 = scmp.ne.s32.totalorder %s43, %s45
    %p49 = scmp.eq.s32.totalorder %s9, 0
    %p50 = por %p48, %p49
    %p51 = scmp.ne.s32.totalorder %s43, %s45
    %p52 = scmp.eq.s32.totalorder %s14, 1
    %p53 = por %p51, %p52
    %p54 = scmp.ne.s32.totalorder %s45, %s46
    %p55 = scmp.eq.s32.totalorder %s14, 0
    %p56 = por %p54, %p55
    %p57 = scmp.ne.s32.totalorder %s45, %s46
    %p58 = scmp.eq.s32.totalorder %s15, 1
    %p59 = por %p57, %p58
    %p61 = scmp.ne.s32.totalorder %s46, %s60
    %p62 = scmp.eq.s32.totalorder %s15, 0
    %p63 = por %p61, %p62
    %s65 = sadd.s32 %s64, 1
    %p68 = scmp.eq.s32.totalorder %s9, 1
    %p69 = scmp.ne.s32.totalorder %s64, %s66
    %p70 = scmp.eq.s32.totalorder %s9, 0
    %p71 = por %p69, %p70
    %p72 = scmp.ne.s32.totalorder %s64, %s66
    %p73 = scmp.eq.s32.totalorder %s14, 1
    %p74 = por %p72, %p73
    %p75 = scmp.ne.s32.totalorder %s66, %s67
    %p76 = scmp.eq.s32.totalorder %s14, 0
    %p77 = por %p75, %p76
    %p78 = scmp.ne.s32.totalorder %s66, %s67
    %p79 = scmp.eq.s32.totalorder %s15, 1
    %p80 = por %p78, %p79
    %p82 = scmp.ne.s32.totalorder %s67, %s81
    %p83 = scmp.eq.s32.totalorder %s15, 0
    %p84 = por %p82, %p83
    %s85 = ssub.s32 %s9, %s16
    %p86 = scmp.eq.s32.totalorder %s85, 0
    %s88 = sadd.s32 %s87, 1
    %s89 = scalar_select %p86, %s87, %s88
    %p92 = pneg %p86
    %p93 = scmp.eq.s32.totalorder %s9, 1
    %p94 = por %p92, %p93
    %p95 = scmp.ne.s32.totalorder %s87, %s90
    %p96 = scmp.eq.s32.totalorder %s9, 0
    %p97 = por %p95, %p96
    %p98 = scmp.ne.s32.totalorder %s87, %s90
    %p99 = scmp.eq.s32.totalorder %s14, 1
    %p100 = por %p98, %p99
    %p101 = scmp.ne.s32.totalorder %s90, %s91
    %p102 = scmp.eq.s32.totalorder %s14, 0
    %p103 = por %p101, %p102
    %p104 = scmp.ne.s32.totalorder %s90, %s91
    %p105 = scmp.eq.s32.totalorder %s15, 1
    %p106 = por %p104, %p105
    %p108 = scmp.ne.s32.totalorder %s91, %s107
    %p109 = scmp.eq.s32.totalorder %s15, 0
    %p110 = por %p108, %p109
    %p111 = scmp.le.s32.totalorder 1, %s9
    %p112 = scmp.lt.s32.totalorder %s9, 3
    %p113 = pnand %p111, %p112
    %p114 = pneg %p113
    // Predicated region
    $region9: #{convnet_dropout_forward.3} parent=5 // pred_check
      _
    $region10: #{convnet_dropout_forward.3} parent=5 // pred_check_branch
      %116 = sbr.rel (%p113) target = $region12
    $region11: #{convnet_dropout_forward.3} parent=5 // pred_region
      %s117 = ssub.s32 %s9, 1
      // Predicated region
      $region13: #{convnet_dropout_forward.3} parent=11 // pred_check
        %p118 = pneg %p56
      $region14: #{convnet_dropout_forward.3} parent=11 // pred_check_branch
        %120 = sbr.rel (%p118) target = $region16
      $region15: #{convnet_dropout_forward.3} parent=11 // pred_region
        _
      $region16: #{convnet_dropout_forward.3} parent=11 // pred_fallthru
        _
      // Predicated region
      $region17: #{convnet_dropout_forward.3} parent=11 // pred_check
        %p121 = pneg %p77
      $region18: #{convnet_dropout_forward.3} parent=11 // pred_check_branch
        %123 = sbr.rel (%p121) target = $region20
      $region19: #{convnet_dropout_forward.3} parent=11 // pred_region
        _
      $region20: #{convnet_dropout_forward.3} parent=11 // pred_fallthru
        _
    $region12: #{convnet_dropout_forward.3} parent=5 // pred_fallthru
      _
    %p124 = scmp.lt.s32.totalorder %s9, 2
    // Predicated region
    $region21: #{convnet_dropout_forward.3} parent=5 // pred_check
      %p125 = pneg %p124
    $region22: #{convnet_dropout_forward.3} parent=5 // pred_check_branch
      %127 = sbr.rel (%p125) target = $region24
    $region23: #{convnet_dropout_forward.3} parent=5 // pred_region
      // Predicated region
      $region25: #{convnet_dropout_forward.3} parent=23 // pred_check
        %p128 = pneg %p29
      $region26: #{convnet_dropout_forward.3} parent=23 // pred_check_branch
        %130 = sbr.rel (%p128) target = $region28
      $region27: #{convnet_dropout_forward.3} parent=23 // pred_region
        %s131 = smul.u32 784, %s9
        %p132 = scmp.lt.s32.totalorder %s131, 1567
        %s133 = scalar_select %p132, %s131, 1567
        %s134 = smul.addr %s133, 4
        %s135 = scalar_lea.vmem %s0, %s134
        %s136 = smul.u32 784, %s9
      $region28: #{convnet_dropout_forward.3} parent=23 // pred_fallthru
        _
    $region24: #{convnet_dropout_forward.3} parent=5 // pred_fallthru
      _
    %p137 = scmp.le.s32.totalorder 1, %s9
    %p138 = scmp.lt.s32.totalorder %s9, 3
    %p139 = pnand %p137, %p138
    %p140 = pneg %p139
    // Predicated region
    $region29: #{convnet_dropout_forward.3} parent=5 // pred_check
      _
    $region30: #{convnet_dropout_forward.3} parent=5 // pred_check_branch
      %142 = sbr.rel (%p139) target = $region32
    $region31: #{convnet_dropout_forward.3} parent=5 // pred_region
      %s143 = ssub.s32 %s9, 1
      %s144 = smul.u32 784, %s14
      %p145 = scmp.lt.s32.totalorder %s144, 1567
      %s146 = scalar_select %p145, %s144, 1567
      %s147 = smul.addr %s146, 4
      %s148 = scalar_lea.vmem %s0, %s147
      %p149 = pneg %p35
      %p150 = pneg %p32
      %p151 = pneg %p56
      %p152 = pneg %p53
      %p153 = pneg %p77
      %p154 = pneg %p74
      %p155 = pneg %p103
      %p156 = pneg %p100
      %s157 = smul.u32 196, %s14
      %p158 = scmp.lt.s32.totalorder %s157, 391
      %s159 = scalar_select %p158, %s157, 391
      %s160 = smul.addr %s159, 4
      %s161 = scalar_lea.vmem %s3, %s160
      %s162 = smul.u32 784, %s14
      %p163 = scmp.lt.s32.totalorder %s162, 1567
      %s164 = scalar_select %p163, %s162, 1567
      %s165 = smul.addr %s164, 4
      %s166 = scalar_lea.vmem %s0, %s165
      %s167 = smul.u32 784, %s14
      %s168 = smul.u32 196, %s14
      %p169 = scmp.lt.s32.totalorder %s168, 391
      %s170 = scalar_select %p169, %s168, 391
      %s171 = smul.addr %s170, 4
      %s172 = scalar_lea.vmem %s3, %s171
      %s173 = smul.u32 196, %s14
      %v175 = vld [vmem:[%s166] sm:$0xf]
      %v176 = vld [vmem:[%s166 + $0x4] sm:$0xf]
      %v177 = vld [vmem:[%s166 + $0x8] sm:$0xf]
      %v178 = vld [vmem:[%s166 + $0xc] sm:$0xf]
      %v179 = vld [vmem:[%s166 + $0x10] sm:$0xf]
      %v180 = vld [vmem:[%s166 + $0x14] sm:$0xf]
      %v181 = vld [vmem:[%s166 + $0x18] sm:$0xf]
      %v182 = vld [vmem:[%s166 + $0x1c] sm:$0xf]
      %v183 = vld [vmem:[%s166 + $0x20] sm:$0xf]
      %v184 = vld [vmem:[%s166 + $0x24] sm:$0xf]
      %v185 = vld [vmem:[%s166 + $0x28] sm:$0xf]
      %v186 = vld [vmem:[%s166 + $0x2c] sm:$0xf]
      %v187 = vld [vmem:[%s166 + $0x30] sm:$0xf]
      %v188 = vld [vmem:[%s166 + $0x34] sm:$0xf]
      %v189 = vld [vmem:[%s166 + $0x38] sm:$0xf]
      %v190 = vld [vmem:[%s166 + $0x3c] sm:$0xf]
      %v191 = vld [vmem:[%s166 + $0x40] sm:$0xf]
      %v192 = vld [vmem:[%s166 + $0x44] sm:$0xf]
      %v193 = vld [vmem:[%s166 + $0x48] sm:$0xf]
      %v194 = vld [vmem:[%s166 + $0x4c] sm:$0xf]
      %v195 = vld [vmem:[%s166 + $0x50] sm:$0xf]
      %v196 = vld [vmem:[%s166 + $0x54] sm:$0xf]
      %v197 = vld [vmem:[%s166 + $0x58] sm:$0xf]
      %v198 = vld [vmem:[%s166 + $0x5c] sm:$0xf]
      %v199 = vld [vmem:[%s166 + $0x60] sm:$0xf]
      %v200 = vld [vmem:[%s166 + $0x64] sm:$0xf]
      %v201 = vld [vmem:[%s166 + $0x68] sm:$0xf]
      %v202 = vld [vmem:[%s166 + $0x6c] sm:$0xf]
      %v203 = vld [vmem:[%s166 + $0x70] sm:$0xf]
      %v204 = vld [vmem:[%s166 + $0x74] sm:$0xf]
      %v205 = vld [vmem:[%s166 + $0x78] sm:$0xf]
      %v206 = vld [vmem:[%s166 + $0x7c] sm:$0xf]
      %v207 = vld [vmem:[%s166 + $0x80] sm:$0xf]
      %v208 = vld [vmem:[%s166 + $0x84] sm:$0xf]
      %v209 = vld [vmem:[%s166 + $0x88] sm:$0xf]
      %v210 = vld [vmem:[%s166 + $0x8c] sm:$0xf]
      %v211 = vld [vmem:[%s166 + $0x90] sm:$0xf]
      %v212 = vld [vmem:[%s166 + $0x94] sm:$0xf]
      %v213 = vld [vmem:[%s166 + $0x98] sm:$0xf]
      %v214 = vld [vmem:[%s166 + $0x9c] sm:$0xf]
      %v215 = vld [vmem:[%s166 + $0xa0] sm:$0xf]
      %v216 = vld [vmem:[%s166 + $0xa4] sm:$0xf]
      %v217 = vld [vmem:[%s166 + $0xa8] sm:$0xf]
      %v218 = vld [vmem:[%s166 + $0xac] sm:$0xf]
      %v219 = vld [vmem:[%s166 + $0xb0] sm:$0xf]
      %v220 = vld [vmem:[%s166 + $0xb4] sm:$0xf]
      %v221 = vld [vmem:[%s166 + $0xb8] sm:$0xf]
      %v222 = vld [vmem:[%s166 + $0xbc] sm:$0xf]
      %v223 = vld [vmem:[%s166 + $0xc0] sm:$0xf]
      %v224 = vld [vmem:[%s166 + $0xc4] sm:$0xf]
      %v225 = vld [vmem:[%s166 + $0xc8] sm:$0xf]
      %v226 = vld [vmem:[%s166 + $0xcc] sm:$0xf]
      %v227 = vld [vmem:[%s166 + $0xd0] sm:$0xf]
      %v228 = vld [vmem:[%s166 + $0xd4] sm:$0xf]
      %v229 = vld [vmem:[%s166 + $0xd8] sm:$0xf]
      %v230 = vld [vmem:[%s166 + $0xdc] sm:$0xf]
      %v231 = vld [vmem:[%s166 + $0xe0] sm:$0xf]
      %v232 = vld [vmem:[%s166 + $0xe4] sm:$0xf]
      %v233 = vld [vmem:[%s166 + $0xe8] sm:$0xf]
      %v234 = vld [vmem:[%s166 + $0xec] sm:$0xf]
      %v235 = vld [vmem:[%s166 + $0xf0] sm:$0xf]
      %v236 = vld [vmem:[%s166 + $0xf4] sm:$0xf]
      %v237 = vld [vmem:[%s166 + $0xf8] sm:$0xf]
      %v238 = vld [vmem:[%s166 + $0xfc] sm:$0xf]
      %v239 = vld [vmem:[%s166 + $0x100] sm:$0xf]
      %v240 = vld [vmem:[%s166 + $0x104] sm:$0xf]
      %v241 = vld [vmem:[%s166 + $0x108] sm:$0xf]
      %v242 = vld [vmem:[%s166 + $0x10c] sm:$0xf]
      %v243 = vld [vmem:[%s166 + $0x110] sm:$0xf]
      %v244 = vld [vmem:[%s166 + $0x114] sm:$0xf]
      %v245 = vld [vmem:[%s166 + $0x118] sm:$0xf]
      %v246 = vld [vmem:[%s166 + $0x11c] sm:$0xf]
      %v247 = vld [vmem:[%s166 + $0x120] sm:$0xf]
      %v248 = vld [vmem:[%s166 + $0x124] sm:$0xf]
      %v249 = vld [vmem:[%s166 + $0x128] sm:$0xf]
      %v250 = vld [vmem:[%s166 + $0x12c] sm:$0xf]
      %v251 = vld [vmem:[%s166 + $0x130] sm:$0xf]
      %v252 = vld [vmem:[%s166 + $0x134] sm:$0xf]
      %v253 = vld [vmem:[%s166 + $0x138] sm:$0xf]
      %v254 = vld [vmem:[%s166 + $0x13c] sm:$0xf]
      %v255 = vld [vmem:[%s166 + $0x140] sm:$0xf]
      %v256 = vld [vmem:[%s166 + $0x144] sm:$0xf]
      %v257 = vld [vmem:[%s166 + $0x148] sm:$0xf]
      %v258 = vld [vmem:[%s166 + $0x14c] sm:$0xf]
      %v259 = vld [vmem:[%s166 + $0x150] sm:$0xf]
      %v260 = vld [vmem:[%s166 + $0x154] sm:$0xf]
      %v261 = vld [vmem:[%s166 + $0x158] sm:$0xf]
      %v262 = vld [vmem:[%s166 + $0x15c] sm:$0xf]
      %v263 = vld [vmem:[%s166 + $0x160] sm:$0xf]
      %v264 = vld [vmem:[%s166 + $0x164] sm:$0xf]
      %v265 = vld [vmem:[%s166 + $0x168] sm:$0xf]
      %v266 = vld [vmem:[%s166 + $0x16c] sm:$0xf]
      %v267 = vld [vmem:[%s166 + $0x170] sm:$0xf]
      %v268 = vld [vmem:[%s166 + $0x174] sm:$0xf]
      %v269 = vld [vmem:[%s166 + $0x178] sm:$0xf]
      %v270 = vld [vmem:[%s166 + $0x17c] sm:$0xf]
      %v271 = vld [vmem:[%s166 + $0x180] sm:$0xf]
      %v272 = vld [vmem:[%s166 + $0x184] sm:$0xf]
      %v273 = vld [vmem:[%s166 + $0x188] sm:$0xf]
      %v274 = vld [vmem:[%s166 + $0x18c] sm:$0xf]
      %v275 = vld [vmem:[%s166 + $0x190] sm:$0xf]
      %v276 = vld [vmem:[%s166 + $0x194] sm:$0xf]
      %v277 = vld [vmem:[%s166 + $0x198] sm:$0xf]
      %v278 = vld [vmem:[%s166 + $0x19c] sm:$0xf]
      %v279 = vld [vmem:[%s166 + $0x1a0] sm:$0xf]
      %v280 = vld [vmem:[%s166 + $0x1a4] sm:$0xf]
      %v281 = vld [vmem:[%s166 + $0x1a8] sm:$0xf]
      %v282 = vld [vmem:[%s166 + $0x1ac] sm:$0xf]
      %v283 = vld [vmem:[%s166 + $0x1b0] sm:$0xf]
      %v284 = vld [vmem:[%s166 + $0x1b4] sm:$0xf]
      %v285 = vld [vmem:[%s166 + $0x1b8] sm:$0xf]
      %v286 = vld [vmem:[%s166 + $0x1bc] sm:$0xf]
      %v287 = vld [vmem:[%s166 + $0x1c0] sm:$0xf]
      %v288 = vld [vmem:[%s166 + $0x1c4] sm:$0xf]
      %v289 = vld [vmem:[%s166 + $0x1c8] sm:$0xf]
      %v290 = vld [vmem:[%s166 + $0x1cc] sm:$0xf]
      %v291 = vld [vmem:[%s166 + $0x1d0] sm:$0xf]
      %v292 = vld [vmem:[%s166 + $0x1d4] sm:$0xf]
      %v293 = vld [vmem:[%s166 + $0x1d8] sm:$0xf]
      %v294 = vld [vmem:[%s166 + $0x1dc] sm:$0xf]
      %v295 = vld [vmem:[%s166 + $0x1e0] sm:$0xf]
      %v296 = vld [vmem:[%s166 + $0x1e4] sm:$0xf]
      %v297 = vld [vmem:[%s166 + $0x1e8] sm:$0xf]
      %v298 = vld [vmem:[%s166 + $0x1ec] sm:$0xf]
      %v299 = vld [vmem:[%s166 + $0x1f0] sm:$0xf]
      %v300 = vld [vmem:[%s166 + $0x1f4] sm:$0xf]
      %v301 = vld [vmem:[%s166 + $0x1f8] sm:$0xf]
      %v302 = vld [vmem:[%s166 + $0x1fc] sm:$0xf]
      %v303 = vld [vmem:[%s166 + $0x200] sm:$0xf]
      %v304 = vld [vmem:[%s166 + $0x204] sm:$0xf]
      %v305 = vld [vmem:[%s166 + $0x208] sm:$0xf]
      %v306 = vld [vmem:[%s166 + $0x20c] sm:$0xf]
      %v307 = vld [vmem:[%s166 + $0x210] sm:$0xf]
      %v308 = vld [vmem:[%s166 + $0x214] sm:$0xf]
      %v309 = vld [vmem:[%s166 + $0x218] sm:$0xf]
      %v310 = vld [vmem:[%s166 + $0x21c] sm:$0xf]
      %v311 = vld [vmem:[%s166 + $0x220] sm:$0xf]
      %v312 = vld [vmem:[%s166 + $0x224] sm:$0xf]
      %v313 = vld [vmem:[%s166 + $0x228] sm:$0xf]
      %v314 = vld [vmem:[%s166 + $0x22c] sm:$0xf]
      %v315 = vld [vmem:[%s166 + $0x230] sm:$0xf]
      %v316 = vld [vmem:[%s166 + $0x234] sm:$0xf]
      %v317 = vld [vmem:[%s166 + $0x238] sm:$0xf]
      %v318 = vld [vmem:[%s166 + $0x23c] sm:$0xf]
      %v319 = vld [vmem:[%s166 + $0x240] sm:$0xf]
      %v320 = vld [vmem:[%s166 + $0x244] sm:$0xf]
      %v321 = vld [vmem:[%s166 + $0x248] sm:$0xf]
      %v322 = vld [vmem:[%s166 + $0x24c] sm:$0xf]
      %v323 = vld [vmem:[%s166 + $0x250] sm:$0xf]
      %v324 = vld [vmem:[%s166 + $0x254] sm:$0xf]
      %v325 = vld [vmem:[%s166 + $0x258] sm:$0xf]
      %v326 = vld [vmem:[%s166 + $0x25c] sm:$0xf]
      %v327 = vld [vmem:[%s166 + $0x260] sm:$0xf]
      %v328 = vld [vmem:[%s166 + $0x264] sm:$0xf]
      %v329 = vld [vmem:[%s166 + $0x268] sm:$0xf]
      %v330 = vld [vmem:[%s166 + $0x26c] sm:$0xf]
      %v331 = vld [vmem:[%s166 + $0x270] sm:$0xf]
      %v332 = vld [vmem:[%s166 + $0x274] sm:$0xf]
      %v333 = vld [vmem:[%s166 + $0x278] sm:$0xf]
      %v334 = vld [vmem:[%s166 + $0x27c] sm:$0xf]
      %v335 = vld [vmem:[%s166 + $0x280] sm:$0xf]
      %v336 = vld [vmem:[%s166 + $0x284] sm:$0xf]
      %v337 = vld [vmem:[%s166 + $0x288] sm:$0xf]
      %v338 = vld [vmem:[%s166 + $0x28c] sm:$0xf]
      %v339 = vld [vmem:[%s166 + $0x290] sm:$0xf]
      %v340 = vld [vmem:[%s166 + $0x294] sm:$0xf]
      %v341 = vld [vmem:[%s166 + $0x298] sm:$0xf]
      %v342 = vld [vmem:[%s166 + $0x29c] sm:$0xf]
      %v343 = vld [vmem:[%s166 + $0x2a0] sm:$0xf]
      %v344 = vld [vmem:[%s166 + $0x2a4] sm:$0xf]
      %v345 = vld [vmem:[%s166 + $0x2a8] sm:$0xf]
      %v346 = vld [vmem:[%s166 + $0x2ac] sm:$0xf]
      %v347 = vld [vmem:[%s166 + $0x2b0] sm:$0xf]
      %v348 = vld [vmem:[%s166 + $0x2b4] sm:$0xf]
      %v349 = vld [vmem:[%s166 + $0x2b8] sm:$0xf]
      %v350 = vld [vmem:[%s166 + $0x2bc] sm:$0xf]
      %v351 = vld [vmem:[%s166 + $0x2c0] sm:$0xf]
      %v352 = vld [vmem:[%s166 + $0x2c4] sm:$0xf]
      %v353 = vld [vmem:[%s166 + $0x2c8] sm:$0xf]
      %v354 = vld [vmem:[%s166 + $0x2cc] sm:$0xf]
      %v355 = vld [vmem:[%s166 + $0x2d0] sm:$0xf]
      %v356 = vld [vmem:[%s166 + $0x2d4] sm:$0xf]
      %v357 = vld [vmem:[%s166 + $0x2d8] sm:$0xf]
      %v358 = vld [vmem:[%s166 + $0x2dc] sm:$0xf]
      %v359 = vld [vmem:[%s166 + $0x2e0] sm:$0xf]
      %v360 = vld [vmem:[%s166 + $0x2e4] sm:$0xf]
      %v361 = vld [vmem:[%s166 + $0x2e8] sm:$0xf]
      %v362 = vld [vmem:[%s166 + $0x2ec] sm:$0xf]
      %v363 = vld [vmem:[%s166 + $0x2f0] sm:$0xf]
      %v364 = vld [vmem:[%s166 + $0x2f4] sm:$0xf]
      %v365 = vld [vmem:[%s166 + $0x2f8] sm:$0xf]
      %v366 = vld [vmem:[%s166 + $0x2fc] sm:$0xf]
      %v367 = vld [vmem:[%s166 + $0x300] sm:$0xf]
      %v368 = vld [vmem:[%s166 + $0x304] sm:$0xf]
      %v369 = vld [vmem:[%s166 + $0x308] sm:$0xf]
      %v370 = vld [vmem:[%s166 + $0x30c] sm:$0xf]
      %v371 = vld [vmem:[%s166 + $0x310] sm:$0xf]
      %v372 = vld [vmem:[%s166 + $0x314] sm:$0xf]
      %v373 = vld [vmem:[%s166 + $0x318] sm:$0xf]
      %v374 = vld [vmem:[%s166 + $0x31c] sm:$0xf]
      %v375 = vld [vmem:[%s166 + $0x320] sm:$0xf]
      %v376 = vld [vmem:[%s166 + $0x324] sm:$0xf]
      %v377 = vld [vmem:[%s166 + $0x328] sm:$0xf]
      %v378 = vld [vmem:[%s166 + $0x32c] sm:$0xf]
      %v379 = vld [vmem:[%s166 + $0x330] sm:$0xf]
      %v380 = vld [vmem:[%s166 + $0x334] sm:$0xf]
      %v381 = vld [vmem:[%s166 + $0x338] sm:$0xf]
      %v382 = vld [vmem:[%s166 + $0x33c] sm:$0xf]
      %v383 = vld [vmem:[%s166 + $0x340] sm:$0xf]
      %v384 = vld [vmem:[%s166 + $0x344] sm:$0xf]
      %v385 = vld [vmem:[%s166 + $0x348] sm:$0xf]
      %v386 = vld [vmem:[%s166 + $0x34c] sm:$0xf]
      %v387 = vld [vmem:[%s166 + $0x350] sm:$0xf]
      %v388 = vld [vmem:[%s166 + $0x354] sm:$0xf]
      %v389 = vld [vmem:[%s166 + $0x358] sm:$0xf]
      %v390 = vld [vmem:[%s166 + $0x35c] sm:$0xf]
      %v391 = vld [vmem:[%s166 + $0x360] sm:$0xf]
      %v392 = vld [vmem:[%s166 + $0x364] sm:$0xf]
      %v393 = vld [vmem:[%s166 + $0x368] sm:$0xf]
      %v394 = vld [vmem:[%s166 + $0x36c] sm:$0xf]
      %v395 = vld [vmem:[%s166 + $0x370] sm:$0xf]
      %v396 = vld [vmem:[%s166 + $0x374] sm:$0xf]
      %v397 = vld [vmem:[%s166 + $0x378] sm:$0xf]
      %v398 = vld [vmem:[%s166 + $0x37c] sm:$0xf]
      %v399 = vld [vmem:[%s166 + $0x380] sm:$0xf]
      %v400 = vld [vmem:[%s166 + $0x384] sm:$0xf]
      %v401 = vld [vmem:[%s166 + $0x388] sm:$0xf]
      %v402 = vld [vmem:[%s166 + $0x38c] sm:$0xf]
      %v403 = vld [vmem:[%s166 + $0x390] sm:$0xf]
      %v404 = vld [vmem:[%s166 + $0x394] sm:$0xf]
      %v405 = vld [vmem:[%s166 + $0x398] sm:$0xf]
      %v406 = vld [vmem:[%s166 + $0x39c] sm:$0xf]
      %v407 = vld [vmem:[%s166 + $0x3a0] sm:$0xf]
      %v408 = vld [vmem:[%s166 + $0x3a4] sm:$0xf]
      %v409 = vld [vmem:[%s166 + $0x3a8] sm:$0xf]
      %v410 = vld [vmem:[%s166 + $0x3ac] sm:$0xf]
      %v411 = vld [vmem:[%s166 + $0x3b0] sm:$0xf]
      %v412 = vld [vmem:[%s166 + $0x3b4] sm:$0xf]
      %v413 = vld [vmem:[%s166 + $0x3b8] sm:$0xf]
      %v414 = vld [vmem:[%s166 + $0x3bc] sm:$0xf]
      %v415 = vld [vmem:[%s166 + $0x3c0] sm:$0xf]
      %v416 = vld [vmem:[%s166 + $0x3c4] sm:$0xf]
      %v417 = vld [vmem:[%s166 + $0x3c8] sm:$0xf]
      %v418 = vld [vmem:[%s166 + $0x3cc] sm:$0xf]
      %v419 = vld [vmem:[%s166 + $0x3d0] sm:$0xf]
      %v420 = vld [vmem:[%s166 + $0x3d4] sm:$0xf]
      %v421 = vld [vmem:[%s166 + $0x3d8] sm:$0xf]
      %v422 = vld [vmem:[%s166 + $0x3dc] sm:$0xf]
      %v423 = vld [vmem:[%s166 + $0x3e0] sm:$0xf]
      %v424 = vld [vmem:[%s166 + $0x3e4] sm:$0xf]
      %v425 = vld [vmem:[%s166 + $0x3e8] sm:$0xf]
      %v426 = vld [vmem:[%s166 + $0x3ec] sm:$0xf]
      %v427 = vld [vmem:[%s166 + $0x3f0] sm:$0xf]
      %v428 = vld [vmem:[%s166 + $0x3f4] sm:$0xf]
      %v429 = vld [vmem:[%s166 + $0x3f8] sm:$0xf]
      %v430 = vld [vmem:[%s166 + $0x3fc] sm:$0xf]
      %v431 = vld [vmem:[%s166 + $0x400] sm:$0xf]
      %v432 = vld [vmem:[%s166 + $0x404] sm:$0xf]
      %v433 = vld [vmem:[%s166 + $0x408] sm:$0xf]
      %v434 = vld [vmem:[%s166 + $0x40c] sm:$0xf]
      %v435 = vld [vmem:[%s166 + $0x410] sm:$0xf]
      %v436 = vld [vmem:[%s166 + $0x414] sm:$0xf]
      %v437 = vld [vmem:[%s166 + $0x418] sm:$0xf]
      %v438 = vld [vmem:[%s166 + $0x41c] sm:$0xf]
      %v439 = vld [vmem:[%s166 + $0x420] sm:$0xf]
      %v440 = vld [vmem:[%s166 + $0x424] sm:$0xf]
      %v441 = vld [vmem:[%s166 + $0x428] sm:$0xf]
      %v442 = vld [vmem:[%s166 + $0x42c] sm:$0xf]
      %v443 = vld [vmem:[%s166 + $0x430] sm:$0xf]
      %v444 = vld [vmem:[%s166 + $0x434] sm:$0xf]
      %v445 = vld [vmem:[%s166 + $0x438] sm:$0xf]
      %v446 = vld [vmem:[%s166 + $0x43c] sm:$0xf]
      %v447 = vld [vmem:[%s166 + $0x440] sm:$0xf]
      %v448 = vld [vmem:[%s166 + $0x444] sm:$0xf]
      %v449 = vld [vmem:[%s166 + $0x448] sm:$0xf]
      %v450 = vld [vmem:[%s166 + $0x44c] sm:$0xf]
      %v451 = vld [vmem:[%s166 + $0x450] sm:$0xf]
      %v452 = vld [vmem:[%s166 + $0x454] sm:$0xf]
      %v453 = vld [vmem:[%s166 + $0x458] sm:$0xf]
      %v454 = vld [vmem:[%s166 + $0x45c] sm:$0xf]
      %v455 = vld [vmem:[%s166 + $0x460] sm:$0xf]
      %v456 = vld [vmem:[%s166 + $0x464] sm:$0xf]
      %v457 = vld [vmem:[%s166 + $0x468] sm:$0xf]
      %v458 = vld [vmem:[%s166 + $0x46c] sm:$0xf]
      %v459 = vld [vmem:[%s166 + $0x470] sm:$0xf]
      %v460 = vld [vmem:[%s166 + $0x474] sm:$0xf]
      %v461 = vld [vmem:[%s166 + $0x478] sm:$0xf]
      %v462 = vld [vmem:[%s166 + $0x47c] sm:$0xf]
      %v463 = vld [vmem:[%s166 + $0x480] sm:$0xf]
      %v464 = vld [vmem:[%s166 + $0x484] sm:$0xf]
      %v465 = vld [vmem:[%s166 + $0x488] sm:$0xf]
      %v466 = vld [vmem:[%s166 + $0x48c] sm:$0xf]
      %v467 = vld [vmem:[%s166 + $0x490] sm:$0xf]
      %v468 = vld [vmem:[%s166 + $0x494] sm:$0xf]
      %v469 = vld [vmem:[%s166 + $0x498] sm:$0xf]
      %v470 = vld [vmem:[%s166 + $0x49c] sm:$0xf]
      %v471 = vld [vmem:[%s166 + $0x4a0] sm:$0xf]
      %v472 = vld [vmem:[%s166 + $0x4a4] sm:$0xf]
      %v473 = vld [vmem:[%s166 + $0x4a8] sm:$0xf]
      %v474 = vld [vmem:[%s166 + $0x4ac] sm:$0xf]
      %v475 = vld [vmem:[%s166 + $0x4b0] sm:$0xf]
      %v476 = vld [vmem:[%s166 + $0x4b4] sm:$0xf]
      %v477 = vld [vmem:[%s166 + $0x4b8] sm:$0xf]
      %v478 = vld [vmem:[%s166 + $0x4bc] sm:$0xf]
      %v479 = vld [vmem:[%s166 + $0x4c0] sm:$0xf]
      %v480 = vld [vmem:[%s166 + $0x4c4] sm:$0xf]
      %v481 = vld [vmem:[%s166 + $0x4c8] sm:$0xf]
      %v482 = vld [vmem:[%s166 + $0x4cc] sm:$0xf]
      %v483 = vld [vmem:[%s166 + $0x4d0] sm:$0xf]
      %v484 = vld [vmem:[%s166 + $0x4d4] sm:$0xf]
      %v485 = vld [vmem:[%s166 + $0x4d8] sm:$0xf]
      %v486 = vld [vmem:[%s166 + $0x4dc] sm:$0xf]
      %v487 = vld [vmem:[%s166 + $0x4e0] sm:$0xf]
      %v488 = vld [vmem:[%s166 + $0x4e4] sm:$0xf]
      %v489 = vld [vmem:[%s166 + $0x4e8] sm:$0xf]
      %v490 = vld [vmem:[%s166 + $0x4ec] sm:$0xf]
      %v491 = vld [vmem:[%s166 + $0x4f0] sm:$0xf]
      %v492 = vld [vmem:[%s166 + $0x4f4] sm:$0xf]
      %v493 = vld [vmem:[%s166 + $0x4f8] sm:$0xf]
      %v494 = vld [vmem:[%s166 + $0x4fc] sm:$0xf]
      %v495 = vld [vmem:[%s166 + $0x500] sm:$0xf]
      %v496 = vld [vmem:[%s166 + $0x504] sm:$0xf]
      %v497 = vld [vmem:[%s166 + $0x508] sm:$0xf]
      %v498 = vld [vmem:[%s166 + $0x50c] sm:$0xf]
      %v499 = vld [vmem:[%s166 + $0x510] sm:$0xf]
      %v500 = vld [vmem:[%s166 + $0x514] sm:$0xf]
      %v501 = vld [vmem:[%s166 + $0x518] sm:$0xf]
      %v502 = vld [vmem:[%s166 + $0x51c] sm:$0xf]
      %v503 = vld [vmem:[%s166 + $0x520] sm:$0xf]
      %v504 = vld [vmem:[%s166 + $0x524] sm:$0xf]
      %v505 = vld [vmem:[%s166 + $0x528] sm:$0xf]
      %v506 = vld [vmem:[%s166 + $0x52c] sm:$0xf]
      %v507 = vld [vmem:[%s166 + $0x530] sm:$0xf]
      %v508 = vld [vmem:[%s166 + $0x534] sm:$0xf]
      %v509 = vld [vmem:[%s166 + $0x538] sm:$0xf]
      %v510 = vld [vmem:[%s166 + $0x53c] sm:$0xf]
      %v511 = vld [vmem:[%s166 + $0x540] sm:$0xf]
      %v512 = vld [vmem:[%s166 + $0x544] sm:$0xf]
      %v513 = vld [vmem:[%s166 + $0x548] sm:$0xf]
      %v514 = vld [vmem:[%s166 + $0x54c] sm:$0xf]
      %v515 = vld [vmem:[%s166 + $0x550] sm:$0xf]
      %v516 = vld [vmem:[%s166 + $0x554] sm:$0xf]
      %v517 = vld [vmem:[%s166 + $0x558] sm:$0xf]
      %v518 = vld [vmem:[%s166 + $0x55c] sm:$0xf]
      %v519 = vld [vmem:[%s166 + $0x560] sm:$0xf]
      %v520 = vld [vmem:[%s166 + $0x564] sm:$0xf]
      %v521 = vld [vmem:[%s166 + $0x568] sm:$0xf]
      %v522 = vld [vmem:[%s166 + $0x56c] sm:$0xf]
      %v523 = vld [vmem:[%s166 + $0x570] sm:$0xf]
      %v524 = vld [vmem:[%s166 + $0x574] sm:$0xf]
      %v525 = vld [vmem:[%s166 + $0x578] sm:$0xf]
      %v526 = vld [vmem:[%s166 + $0x57c] sm:$0xf]
      %v527 = vld [vmem:[%s166 + $0x580] sm:$0xf]
      %v528 = vld [vmem:[%s166 + $0x584] sm:$0xf]
      %v529 = vld [vmem:[%s166 + $0x588] sm:$0xf]
      %v530 = vld [vmem:[%s166 + $0x58c] sm:$0xf]
      %v531 = vld [vmem:[%s166 + $0x590] sm:$0xf]
      %v532 = vld [vmem:[%s166 + $0x594] sm:$0xf]
      %v533 = vld [vmem:[%s166 + $0x598] sm:$0xf]
      %v534 = vld [vmem:[%s166 + $0x59c] sm:$0xf]
      %v535 = vld [vmem:[%s166 + $0x5a0] sm:$0xf]
      %v536 = vld [vmem:[%s166 + $0x5a4] sm:$0xf]
      %v537 = vld [vmem:[%s166 + $0x5a8] sm:$0xf]
      %v538 = vld [vmem:[%s166 + $0x5ac] sm:$0xf]
      %v539 = vld [vmem:[%s166 + $0x5b0] sm:$0xf]
      %v540 = vld [vmem:[%s166 + $0x5b4] sm:$0xf]
      %v541 = vld [vmem:[%s166 + $0x5b8] sm:$0xf]
      %v542 = vld [vmem:[%s166 + $0x5bc] sm:$0xf]
      %v543 = vld [vmem:[%s166 + $0x5c0] sm:$0xf]
      %v544 = vld [vmem:[%s166 + $0x5c4] sm:$0xf]
      %v545 = vld [vmem:[%s166 + $0x5c8] sm:$0xf]
      %v546 = vld [vmem:[%s166 + $0x5cc] sm:$0xf]
      %v547 = vld [vmem:[%s166 + $0x5d0] sm:$0xf]
      %v548 = vld [vmem:[%s166 + $0x5d4] sm:$0xf]
      %v549 = vld [vmem:[%s166 + $0x5d8] sm:$0xf]
      %v550 = vld [vmem:[%s166 + $0x5dc] sm:$0xf]
      %v551 = vld [vmem:[%s166 + $0x5e0] sm:$0xf]
      %v552 = vld [vmem:[%s166 + $0x5e4] sm:$0xf]
      %v553 = vld [vmem:[%s166 + $0x5e8] sm:$0xf]
      %v554 = vld [vmem:[%s166 + $0x5ec] sm:$0xf]
      %v555 = vld [vmem:[%s166 + $0x5f0] sm:$0xf]
      %v556 = vld [vmem:[%s166 + $0x5f4] sm:$0xf]
      %v557 = vld [vmem:[%s166 + $0x5f8] sm:$0xf]
      %v558 = vld [vmem:[%s166 + $0x5fc] sm:$0xf]
      %v559 = vld [vmem:[%s166 + $0x600] sm:$0xf]
      %v560 = vld [vmem:[%s166 + $0x604] sm:$0xf]
      %v561 = vld [vmem:[%s166 + $0x608] sm:$0xf]
      %v562 = vld [vmem:[%s166 + $0x60c] sm:$0xf]
      %v563 = vld [vmem:[%s166 + $0x610] sm:$0xf]
      %v564 = vld [vmem:[%s166 + $0x614] sm:$0xf]
      %v565 = vld [vmem:[%s166 + $0x618] sm:$0xf]
      %v566 = vld [vmem:[%s166 + $0x61c] sm:$0xf]
      %v567 = vld [vmem:[%s166 + $0x620] sm:$0xf]
      %v568 = vld [vmem:[%s166 + $0x624] sm:$0xf]
      %v569 = vld [vmem:[%s166 + $0x628] sm:$0xf]
      %v570 = vld [vmem:[%s166 + $0x62c] sm:$0xf]
      %v571 = vld [vmem:[%s166 + $0x630] sm:$0xf]
      %v572 = vld [vmem:[%s166 + $0x634] sm:$0xf]
      %v573 = vld [vmem:[%s166 + $0x638] sm:$0xf]
      %v574 = vld [vmem:[%s166 + $0x63c] sm:$0xf]
      %v575 = vld [vmem:[%s166 + $0x640] sm:$0xf]
      %v576 = vld [vmem:[%s166 + $0x644] sm:$0xf]
      %v577 = vld [vmem:[%s166 + $0x648] sm:$0xf]
      %v578 = vld [vmem:[%s166 + $0x64c] sm:$0xf]
      %v579 = vld [vmem:[%s166 + $0x650] sm:$0xf]
      %v580 = vld [vmem:[%s166 + $0x654] sm:$0xf]
      %v581 = vld [vmem:[%s166 + $0x658] sm:$0xf]
      %v582 = vld [vmem:[%s166 + $0x65c] sm:$0xf]
      %v583 = vld [vmem:[%s166 + $0x660] sm:$0xf]
      %v584 = vld [vmem:[%s166 + $0x664] sm:$0xf]
      %v585 = vld [vmem:[%s166 + $0x668] sm:$0xf]
      %v586 = vld [vmem:[%s166 + $0x66c] sm:$0xf]
      %v587 = vld [vmem:[%s166 + $0x670] sm:$0xf]
      %v588 = vld [vmem:[%s166 + $0x674] sm:$0xf]
      %v589 = vld [vmem:[%s166 + $0x678] sm:$0xf]
      %v590 = vld [vmem:[%s166 + $0x67c] sm:$0xf]
      %v591 = vld [vmem:[%s166 + $0x680] sm:$0xf]
      %v592 = vld [vmem:[%s166 + $0x684] sm:$0xf]
      %v593 = vld [vmem:[%s166 + $0x688] sm:$0xf]
      %v594 = vld [vmem:[%s166 + $0x68c] sm:$0xf]
      %v595 = vld [vmem:[%s166 + $0x690] sm:$0xf]
      %v596 = vld [vmem:[%s166 + $0x694] sm:$0xf]
      %v597 = vld [vmem:[%s166 + $0x698] sm:$0xf]
      %v598 = vld [vmem:[%s166 + $0x69c] sm:$0xf]
      %v599 = vld [vmem:[%s166 + $0x6a0] sm:$0xf]
      %v600 = vld [vmem:[%s166 + $0x6a4] sm:$0xf]
      %v601 = vld [vmem:[%s166 + $0x6a8] sm:$0xf]
      %v602 = vld [vmem:[%s166 + $0x6ac] sm:$0xf]
      %v603 = vld [vmem:[%s166 + $0x6b0] sm:$0xf]
      %v604 = vld [vmem:[%s166 + $0x6b4] sm:$0xf]
      %v605 = vld [vmem:[%s166 + $0x6b8] sm:$0xf]
      %v606 = vld [vmem:[%s166 + $0x6bc] sm:$0xf]
      %v607 = vld [vmem:[%s166 + $0x6c0] sm:$0xf]
      %v608 = vld [vmem:[%s166 + $0x6c4] sm:$0xf]
      %v609 = vld [vmem:[%s166 + $0x6c8] sm:$0xf]
      %v610 = vld [vmem:[%s166 + $0x6cc] sm:$0xf]
      %v611 = vld [vmem:[%s166 + $0x6d0] sm:$0xf]
      %v612 = vld [vmem:[%s166 + $0x6d4] sm:$0xf]
      %v613 = vld [vmem:[%s166 + $0x6d8] sm:$0xf]
      %v614 = vld [vmem:[%s166 + $0x6dc] sm:$0xf]
      %v615 = vld [vmem:[%s166 + $0x6e0] sm:$0xf]
      %v616 = vld [vmem:[%s166 + $0x6e4] sm:$0xf]
      %v617 = vld [vmem:[%s166 + $0x6e8] sm:$0xf]
      %v618 = vld [vmem:[%s166 + $0x6ec] sm:$0xf]
      %v619 = vld [vmem:[%s166 + $0x6f0] sm:$0xf]
      %v620 = vld [vmem:[%s166 + $0x6f4] sm:$0xf]
      %v621 = vld [vmem:[%s166 + $0x6f8] sm:$0xf]
      %v622 = vld [vmem:[%s166 + $0x6fc] sm:$0xf]
      %v623 = vld [vmem:[%s166 + $0x700] sm:$0xf]
      %v624 = vld [vmem:[%s166 + $0x704] sm:$0xf]
      %v625 = vld [vmem:[%s166 + $0x708] sm:$0xf]
      %v626 = vld [vmem:[%s166 + $0x70c] sm:$0xf]
      %v627 = vld [vmem:[%s166 + $0x710] sm:$0xf]
      %v628 = vld [vmem:[%s166 + $0x714] sm:$0xf]
      %v629 = vld [vmem:[%s166 + $0x718] sm:$0xf]
      %v630 = vld [vmem:[%s166 + $0x71c] sm:$0xf]
      %v631 = vld [vmem:[%s166 + $0x720] sm:$0xf]
      %v632 = vld [vmem:[%s166 + $0x724] sm:$0xf]
      %v633 = vld [vmem:[%s166 + $0x728] sm:$0xf]
      %v634 = vld [vmem:[%s166 + $0x72c] sm:$0xf]
      %v635 = vld [vmem:[%s166 + $0x730] sm:$0xf]
      %v636 = vld [vmem:[%s166 + $0x734] sm:$0xf]
      %v637 = vld [vmem:[%s166 + $0x738] sm:$0xf]
      %v638 = vld [vmem:[%s166 + $0x73c] sm:$0xf]
      %v639 = vld [vmem:[%s166 + $0x740] sm:$0xf]
      %v640 = vld [vmem:[%s166 + $0x744] sm:$0xf]
      %v641 = vld [vmem:[%s166 + $0x748] sm:$0xf]
      %v642 = vld [vmem:[%s166 + $0x74c] sm:$0xf]
      %v643 = vld [vmem:[%s166 + $0x750] sm:$0xf]
      %v644 = vld [vmem:[%s166 + $0x754] sm:$0xf]
      %v645 = vld [vmem:[%s166 + $0x758] sm:$0xf]
      %v646 = vld [vmem:[%s166 + $0x75c] sm:$0xf]
      %v647 = vld [vmem:[%s166 + $0x760] sm:$0xf]
      %v648 = vld [vmem:[%s166 + $0x764] sm:$0xf]
      %v649 = vld [vmem:[%s166 + $0x768] sm:$0xf]
      %v650 = vld [vmem:[%s166 + $0x76c] sm:$0xf]
      %v651 = vld [vmem:[%s166 + $0x770] sm:$0xf]
      %v652 = vld [vmem:[%s166 + $0x774] sm:$0xf]
      %v653 = vld [vmem:[%s166 + $0x778] sm:$0xf]
      %v654 = vld [vmem:[%s166 + $0x77c] sm:$0xf]
      %v655 = vld [vmem:[%s166 + $0x780] sm:$0xf]
      %v656 = vld [vmem:[%s166 + $0x784] sm:$0xf]
      %v657 = vld [vmem:[%s166 + $0x788] sm:$0xf]
      %v658 = vld [vmem:[%s166 + $0x78c] sm:$0xf]
      %v659 = vld [vmem:[%s166 + $0x790] sm:$0xf]
      %v660 = vld [vmem:[%s166 + $0x794] sm:$0xf]
      %v661 = vld [vmem:[%s166 + $0x798] sm:$0xf]
      %v662 = vld [vmem:[%s166 + $0x79c] sm:$0xf]
      %v663 = vld [vmem:[%s166 + $0x7a0] sm:$0xf]
      %v664 = vld [vmem:[%s166 + $0x7a4] sm:$0xf]
      %v665 = vld [vmem:[%s166 + $0x7a8] sm:$0xf]
      %v666 = vld [vmem:[%s166 + $0x7ac] sm:$0xf]
      %v667 = vld [vmem:[%s166 + $0x7b0] sm:$0xf]
      %v668 = vld [vmem:[%s166 + $0x7b4] sm:$0xf]
      %v669 = vld [vmem:[%s166 + $0x7b8] sm:$0xf]
      %v670 = vld [vmem:[%s166 + $0x7bc] sm:$0xf]
      %v671 = vld [vmem:[%s166 + $0x7c0] sm:$0xf]
      %v672 = vld [vmem:[%s166 + $0x7c4] sm:$0xf]
      %v673 = vld [vmem:[%s166 + $0x7c8] sm:$0xf]
      %v674 = vld [vmem:[%s166 + $0x7cc] sm:$0xf]
      %v675 = vld [vmem:[%s166 + $0x7d0] sm:$0xf]
      %v676 = vld [vmem:[%s166 + $0x7d4] sm:$0xf]
      %v677 = vld [vmem:[%s166 + $0x7d8] sm:$0xf]
      %v678 = vld [vmem:[%s166 + $0x7dc] sm:$0xf]
      %v679 = vld [vmem:[%s166 + $0x7e0] sm:$0xf]
      %v680 = vld [vmem:[%s166 + $0x7e4] sm:$0xf]
      %v681 = vld [vmem:[%s166 + $0x7e8] sm:$0xf]
      %v682 = vld [vmem:[%s166 + $0x7ec] sm:$0xf]
      %v683 = vld [vmem:[%s166 + $0x7f0] sm:$0xf]
      %v684 = vld [vmem:[%s166 + $0x7f4] sm:$0xf]
      %v685 = vld [vmem:[%s166 + $0x7f8] sm:$0xf]
      %v686 = vld [vmem:[%s166 + $0x7fc] sm:$0xf]
      %v687 = vld [vmem:[%s166 + $0x800] sm:$0xf]
      %v688 = vld [vmem:[%s166 + $0x804] sm:$0xf]
      %v689 = vld [vmem:[%s166 + $0x808] sm:$0xf]
      %v690 = vld [vmem:[%s166 + $0x80c] sm:$0xf]
      %v691 = vld [vmem:[%s166 + $0x810] sm:$0xf]
      %v692 = vld [vmem:[%s166 + $0x814] sm:$0xf]
      %v693 = vld [vmem:[%s166 + $0x818] sm:$0xf]
      %v694 = vld [vmem:[%s166 + $0x81c] sm:$0xf]
      %v695 = vld [vmem:[%s166 + $0x820] sm:$0xf]
      %v696 = vld [vmem:[%s166 + $0x824] sm:$0xf]
      %v697 = vld [vmem:[%s166 + $0x828] sm:$0xf]
      %v698 = vld [vmem:[%s166 + $0x82c] sm:$0xf]
      %v699 = vld [vmem:[%s166 + $0x830] sm:$0xf]
      %v700 = vld [vmem:[%s166 + $0x834] sm:$0xf]
      %v701 = vld [vmem:[%s166 + $0x838] sm:$0xf]
      %v702 = vld [vmem:[%s166 + $0x83c] sm:$0xf]
      %v703 = vld [vmem:[%s166 + $0x840] sm:$0xf]
      %v704 = vld [vmem:[%s166 + $0x844] sm:$0xf]
      %v705 = vld [vmem:[%s166 + $0x848] sm:$0xf]
      %v706 = vld [vmem:[%s166 + $0x84c] sm:$0xf]
      %v707 = vld [vmem:[%s166 + $0x850] sm:$0xf]
      %v708 = vld [vmem:[%s166 + $0x854] sm:$0xf]
      %v709 = vld [vmem:[%s166 + $0x858] sm:$0xf]
      %v710 = vld [vmem:[%s166 + $0x85c] sm:$0xf]
      %v711 = vld [vmem:[%s166 + $0x860] sm:$0xf]
      %v712 = vld [vmem:[%s166 + $0x864] sm:$0xf]
      %v713 = vld [vmem:[%s166 + $0x868] sm:$0xf]
      %v714 = vld [vmem:[%s166 + $0x86c] sm:$0xf]
      %v715 = vld [vmem:[%s166 + $0x870] sm:$0xf]
      %v716 = vld [vmem:[%s166 + $0x874] sm:$0xf]
      %v717 = vld [vmem:[%s166 + $0x878] sm:$0xf]
      %v718 = vld [vmem:[%s166 + $0x87c] sm:$0xf]
      %v719 = vld [vmem:[%s166 + $0x880] sm:$0xf]
      %v720 = vld [vmem:[%s166 + $0x884] sm:$0xf]
      %v721 = vld [vmem:[%s166 + $0x888] sm:$0xf]
      %v722 = vld [vmem:[%s166 + $0x88c] sm:$0xf]
      %v723 = vld [vmem:[%s166 + $0x890] sm:$0xf]
      %v724 = vld [vmem:[%s166 + $0x894] sm:$0xf]
      %v725 = vld [vmem:[%s166 + $0x898] sm:$0xf]
      %v726 = vld [vmem:[%s166 + $0x89c] sm:$0xf]
      %v727 = vld [vmem:[%s166 + $0x8a0] sm:$0xf]
      %v728 = vld [vmem:[%s166 + $0x8a4] sm:$0xf]
      %v729 = vld [vmem:[%s166 + $0x8a8] sm:$0xf]
      %v730 = vld [vmem:[%s166 + $0x8ac] sm:$0xf]
      %v731 = vld [vmem:[%s166 + $0x8b0] sm:$0xf]
      %v732 = vld [vmem:[%s166 + $0x8b4] sm:$0xf]
      %v733 = vld [vmem:[%s166 + $0x8b8] sm:$0xf]
      %v734 = vld [vmem:[%s166 + $0x8bc] sm:$0xf]
      %v735 = vld [vmem:[%s166 + $0x8c0] sm:$0xf]
      %v736 = vld [vmem:[%s166 + $0x8c4] sm:$0xf]
      %v737 = vld [vmem:[%s166 + $0x8c8] sm:$0xf]
      %v738 = vld [vmem:[%s166 + $0x8cc] sm:$0xf]
      %v739 = vld [vmem:[%s166 + $0x8d0] sm:$0xf]
      %v740 = vld [vmem:[%s166 + $0x8d4] sm:$0xf]
      %v741 = vld [vmem:[%s166 + $0x8d8] sm:$0xf]
      %v742 = vld [vmem:[%s166 + $0x8dc] sm:$0xf]
      %v743 = vld [vmem:[%s166 + $0x8e0] sm:$0xf]
      %v744 = vld [vmem:[%s166 + $0x8e4] sm:$0xf]
      %v745 = vld [vmem:[%s166 + $0x8e8] sm:$0xf]
      %v746 = vld [vmem:[%s166 + $0x8ec] sm:$0xf]
      %v747 = vld [vmem:[%s166 + $0x8f0] sm:$0xf]
      %v748 = vld [vmem:[%s166 + $0x8f4] sm:$0xf]
      %v749 = vld [vmem:[%s166 + $0x8f8] sm:$0xf]
      %v750 = vld [vmem:[%s166 + $0x8fc] sm:$0xf]
      %v751 = vld [vmem:[%s166 + $0x900] sm:$0xf]
      %v752 = vld [vmem:[%s166 + $0x904] sm:$0xf]
      %v753 = vld [vmem:[%s166 + $0x908] sm:$0xf]
      %v754 = vld [vmem:[%s166 + $0x90c] sm:$0xf]
      %v755 = vld [vmem:[%s166 + $0x910] sm:$0xf]
      %v756 = vld [vmem:[%s166 + $0x914] sm:$0xf]
      %v757 = vld [vmem:[%s166 + $0x918] sm:$0xf]
      %v758 = vld [vmem:[%s166 + $0x91c] sm:$0xf]
      %v759 = vld [vmem:[%s166 + $0x920] sm:$0xf]
      %v760 = vld [vmem:[%s166 + $0x924] sm:$0xf]
      %v761 = vld [vmem:[%s166 + $0x928] sm:$0xf]
      %v762 = vld [vmem:[%s166 + $0x92c] sm:$0xf]
      %v763 = vld [vmem:[%s166 + $0x930] sm:$0xf]
      %v764 = vld [vmem:[%s166 + $0x934] sm:$0xf]
      %v765 = vld [vmem:[%s166 + $0x938] sm:$0xf]
      %v766 = vld [vmem:[%s166 + $0x93c] sm:$0xf]
      %v767 = vld [vmem:[%s166 + $0x940] sm:$0xf]
      %v768 = vld [vmem:[%s166 + $0x944] sm:$0xf]
      %v769 = vld [vmem:[%s166 + $0x948] sm:$0xf]
      %v770 = vld [vmem:[%s166 + $0x94c] sm:$0xf]
      %v771 = vld [vmem:[%s166 + $0x950] sm:$0xf]
      %v772 = vld [vmem:[%s166 + $0x954] sm:$0xf]
      %v773 = vld [vmem:[%s166 + $0x958] sm:$0xf]
      %v774 = vld [vmem:[%s166 + $0x95c] sm:$0xf]
      %v775 = vld [vmem:[%s166 + $0x960] sm:$0xf]
      %v776 = vld [vmem:[%s166 + $0x964] sm:$0xf]
      %v777 = vld [vmem:[%s166 + $0x968] sm:$0xf]
      %v778 = vld [vmem:[%s166 + $0x96c] sm:$0xf]
      %v779 = vld [vmem:[%s166 + $0x970] sm:$0xf]
      %v780 = vld [vmem:[%s166 + $0x974] sm:$0xf]
      %v781 = vld [vmem:[%s166 + $0x978] sm:$0xf]
      %v782 = vld [vmem:[%s166 + $0x97c] sm:$0xf]
      %v783 = vld [vmem:[%s166 + $0x980] sm:$0xf]
      %v784 = vld [vmem:[%s166 + $0x984] sm:$0xf]
      %v785 = vld [vmem:[%s166 + $0x988] sm:$0xf]
      %v786 = vld [vmem:[%s166 + $0x98c] sm:$0xf]
      %v787 = vld [vmem:[%s166 + $0x990] sm:$0xf]
      %v788 = vld [vmem:[%s166 + $0x994] sm:$0xf]
      %v789 = vld [vmem:[%s166 + $0x998] sm:$0xf]
      %v790 = vld [vmem:[%s166 + $0x99c] sm:$0xf]
      %v791 = vld [vmem:[%s166 + $0x9a0] sm:$0xf]
      %v792 = vld [vmem:[%s166 + $0x9a4] sm:$0xf]
      %v793 = vld [vmem:[%s166 + $0x9a8] sm:$0xf]
      %v794 = vld [vmem:[%s166 + $0x9ac] sm:$0xf]
      %v795 = vld [vmem:[%s166 + $0x9b0] sm:$0xf]
      %v796 = vld [vmem:[%s166 + $0x9b4] sm:$0xf]
      %v797 = vld [vmem:[%s166 + $0x9b8] sm:$0xf]
      %v798 = vld [vmem:[%s166 + $0x9bc] sm:$0xf]
      %v799 = vld [vmem:[%s166 + $0x9c0] sm:$0xf]
      %v800 = vld [vmem:[%s166 + $0x9c4] sm:$0xf]
      %v801 = vld [vmem:[%s166 + $0x9c8] sm:$0xf]
      %v802 = vld [vmem:[%s166 + $0x9cc] sm:$0xf]
      %v803 = vld [vmem:[%s166 + $0x9d0] sm:$0xf]
      %v804 = vld [vmem:[%s166 + $0x9d4] sm:$0xf]
      %v805 = vld [vmem:[%s166 + $0x9d8] sm:$0xf]
      %v806 = vld [vmem:[%s166 + $0x9dc] sm:$0xf]
      %v807 = vld [vmem:[%s166 + $0x9e0] sm:$0xf]
      %v808 = vld [vmem:[%s166 + $0x9e4] sm:$0xf]
      %v809 = vld [vmem:[%s166 + $0x9e8] sm:$0xf]
      %v810 = vld [vmem:[%s166 + $0x9ec] sm:$0xf]
      %v811 = vld [vmem:[%s166 + $0x9f0] sm:$0xf]
      %v812 = vld [vmem:[%s166 + $0x9f4] sm:$0xf]
      %v813 = vld [vmem:[%s166 + $0x9f8] sm:$0xf]
      %v814 = vld [vmem:[%s166 + $0x9fc] sm:$0xf]
      %v815 = vld [vmem:[%s166 + $0xa00] sm:$0xf]
      %v816 = vld [vmem:[%s166 + $0xa04] sm:$0xf]
      %v817 = vld [vmem:[%s166 + $0xa08] sm:$0xf]
      %v818 = vld [vmem:[%s166 + $0xa0c] sm:$0xf]
      %v819 = vld [vmem:[%s166 + $0xa10] sm:$0xf]
      %v820 = vld [vmem:[%s166 + $0xa14] sm:$0xf]
      %v821 = vld [vmem:[%s166 + $0xa18] sm:$0xf]
      %v822 = vld [vmem:[%s166 + $0xa1c] sm:$0xf]
      %v823 = vld [vmem:[%s166 + $0xa20] sm:$0xf]
      %v824 = vld [vmem:[%s166 + $0xa24] sm:$0xf]
      %v825 = vld [vmem:[%s166 + $0xa28] sm:$0xf]
      %v826 = vld [vmem:[%s166 + $0xa2c] sm:$0xf]
      %v827 = vld [vmem:[%s166 + $0xa30] sm:$0xf]
      %v828 = vld [vmem:[%s166 + $0xa34] sm:$0xf]
      %v829 = vld [vmem:[%s166 + $0xa38] sm:$0xf]
      %v830 = vld [vmem:[%s166 + $0xa3c] sm:$0xf]
      %v831 = vld [vmem:[%s166 + $0xa40] sm:$0xf]
      %v832 = vld [vmem:[%s166 + $0xa44] sm:$0xf]
      %v833 = vld [vmem:[%s166 + $0xa48] sm:$0xf]
      %v834 = vld [vmem:[%s166 + $0xa4c] sm:$0xf]
      %v835 = vld [vmem:[%s166 + $0xa50] sm:$0xf]
      %v836 = vld [vmem:[%s166 + $0xa54] sm:$0xf]
      %v837 = vld [vmem:[%s166 + $0xa58] sm:$0xf]
      %v838 = vld [vmem:[%s166 + $0xa5c] sm:$0xf]
      %v839 = vld [vmem:[%s166 + $0xa60] sm:$0xf]
      %v840 = vld [vmem:[%s166 + $0xa64] sm:$0xf]
      %v841 = vld [vmem:[%s166 + $0xa68] sm:$0xf]
      %v842 = vld [vmem:[%s166 + $0xa6c] sm:$0xf]
      %v843 = vld [vmem:[%s166 + $0xa70] sm:$0xf]
      %v844 = vld [vmem:[%s166 + $0xa74] sm:$0xf]
      %v845 = vld [vmem:[%s166 + $0xa78] sm:$0xf]
      %v846 = vld [vmem:[%s166 + $0xa7c] sm:$0xf]
      %v847 = vld [vmem:[%s166 + $0xa80] sm:$0xf]
      %v848 = vld [vmem:[%s166 + $0xa84] sm:$0xf]
      %v849 = vld [vmem:[%s166 + $0xa88] sm:$0xf]
      %v850 = vld [vmem:[%s166 + $0xa8c] sm:$0xf]
      %v851 = vld [vmem:[%s166 + $0xa90] sm:$0xf]
      %v852 = vld [vmem:[%s166 + $0xa94] sm:$0xf]
      %v853 = vld [vmem:[%s166 + $0xa98] sm:$0xf]
      %v854 = vld [vmem:[%s166 + $0xa9c] sm:$0xf]
      %v855 = vld [vmem:[%s166 + $0xaa0] sm:$0xf]
      %v856 = vld [vmem:[%s166 + $0xaa4] sm:$0xf]
      %v857 = vld [vmem:[%s166 + $0xaa8] sm:$0xf]
      %v858 = vld [vmem:[%s166 + $0xaac] sm:$0xf]
      %v859 = vld [vmem:[%s166 + $0xab0] sm:$0xf]
      %v860 = vld [vmem:[%s166 + $0xab4] sm:$0xf]
      %v861 = vld [vmem:[%s166 + $0xab8] sm:$0xf]
      %v862 = vld [vmem:[%s166 + $0xabc] sm:$0xf]
      %v863 = vld [vmem:[%s166 + $0xac0] sm:$0xf]
      %v864 = vld [vmem:[%s166 + $0xac4] sm:$0xf]
      %v865 = vld [vmem:[%s166 + $0xac8] sm:$0xf]
      %v866 = vld [vmem:[%s166 + $0xacc] sm:$0xf]
      %v867 = vld [vmem:[%s166 + $0xad0] sm:$0xf]
      %v868 = vld [vmem:[%s166 + $0xad4] sm:$0xf]
      %v869 = vld [vmem:[%s166 + $0xad8] sm:$0xf]
      %v870 = vld [vmem:[%s166 + $0xadc] sm:$0xf]
      %v871 = vld [vmem:[%s166 + $0xae0] sm:$0xf]
      %v872 = vld [vmem:[%s166 + $0xae4] sm:$0xf]
      %v873 = vld [vmem:[%s166 + $0xae8] sm:$0xf]
      %v874 = vld [vmem:[%s166 + $0xaec] sm:$0xf]
      %v875 = vld [vmem:[%s166 + $0xaf0] sm:$0xf]
      %v876 = vld [vmem:[%s166 + $0xaf4] sm:$0xf]
      %v877 = vld [vmem:[%s166 + $0xaf8] sm:$0xf]
      %v878 = vld [vmem:[%s166 + $0xafc] sm:$0xf]
      %v879 = vld [vmem:[%s166 + $0xb00] sm:$0xf]
      %v880 = vld [vmem:[%s166 + $0xb04] sm:$0xf]
      %v881 = vld [vmem:[%s166 + $0xb08] sm:$0xf]
      %v882 = vld [vmem:[%s166 + $0xb0c] sm:$0xf]
      %v883 = vld [vmem:[%s166 + $0xb10] sm:$0xf]
      %v884 = vld [vmem:[%s166 + $0xb14] sm:$0xf]
      %v885 = vld [vmem:[%s166 + $0xb18] sm:$0xf]
      %v886 = vld [vmem:[%s166 + $0xb1c] sm:$0xf]
      %v887 = vld [vmem:[%s166 + $0xb20] sm:$0xf]
      %v888 = vld [vmem:[%s166 + $0xb24] sm:$0xf]
      %v889 = vld [vmem:[%s166 + $0xb28] sm:$0xf]
      %v890 = vld [vmem:[%s166 + $0xb2c] sm:$0xf]
      %v891 = vld [vmem:[%s166 + $0xb30] sm:$0xf]
      %v892 = vld [vmem:[%s166 + $0xb34] sm:$0xf]
      %v893 = vld [vmem:[%s166 + $0xb38] sm:$0xf]
      %v894 = vld [vmem:[%s166 + $0xb3c] sm:$0xf]
      %v895 = vld [vmem:[%s166 + $0xb40] sm:$0xf]
      %v896 = vld [vmem:[%s166 + $0xb44] sm:$0xf]
      %v897 = vld [vmem:[%s166 + $0xb48] sm:$0xf]
      %v898 = vld [vmem:[%s166 + $0xb4c] sm:$0xf]
      %v899 = vld [vmem:[%s166 + $0xb50] sm:$0xf]
      %v900 = vld [vmem:[%s166 + $0xb54] sm:$0xf]
      %v901 = vld [vmem:[%s166 + $0xb58] sm:$0xf]
      %v902 = vld [vmem:[%s166 + $0xb5c] sm:$0xf]
      %v903 = vld [vmem:[%s166 + $0xb60] sm:$0xf]
      %v904 = vld [vmem:[%s166 + $0xb64] sm:$0xf]
      %v905 = vld [vmem:[%s166 + $0xb68] sm:$0xf]
      %v906 = vld [vmem:[%s166 + $0xb6c] sm:$0xf]
      %v907 = vld [vmem:[%s166 + $0xb70] sm:$0xf]
      %v908 = vld [vmem:[%s166 + $0xb74] sm:$0xf]
      %v909 = vld [vmem:[%s166 + $0xb78] sm:$0xf]
      %v910 = vld [vmem:[%s166 + $0xb7c] sm:$0xf]
      %v911 = vld [vmem:[%s166 + $0xb80] sm:$0xf]
      %v912 = vld [vmem:[%s166 + $0xb84] sm:$0xf]
      %v913 = vld [vmem:[%s166 + $0xb88] sm:$0xf]
      %v914 = vld [vmem:[%s166 + $0xb8c] sm:$0xf]
      %v915 = vld [vmem:[%s166 + $0xb90] sm:$0xf]
      %v916 = vld [vmem:[%s166 + $0xb94] sm:$0xf]
      %v917 = vld [vmem:[%s166 + $0xb98] sm:$0xf]
      %v918 = vld [vmem:[%s166 + $0xb9c] sm:$0xf]
      %v919 = vld [vmem:[%s166 + $0xba0] sm:$0xf]
      %v920 = vld [vmem:[%s166 + $0xba4] sm:$0xf]
      %v921 = vld [vmem:[%s166 + $0xba8] sm:$0xf]
      %v922 = vld [vmem:[%s166 + $0xbac] sm:$0xf]
      %v923 = vld [vmem:[%s166 + $0xbb0] sm:$0xf]
      %v924 = vld [vmem:[%s166 + $0xbb4] sm:$0xf]
      %v925 = vld [vmem:[%s166 + $0xbb8] sm:$0xf]
      %v926 = vld [vmem:[%s166 + $0xbbc] sm:$0xf]
      %v927 = vld [vmem:[%s166 + $0xbc0] sm:$0xf]
      %v928 = vld [vmem:[%s166 + $0xbc4] sm:$0xf]
      %v929 = vld [vmem:[%s166 + $0xbc8] sm:$0xf]
      %v930 = vld [vmem:[%s166 + $0xbcc] sm:$0xf]
      %v931 = vld [vmem:[%s166 + $0xbd0] sm:$0xf]
      %v932 = vld [vmem:[%s166 + $0xbd4] sm:$0xf]
      %v933 = vld [vmem:[%s166 + $0xbd8] sm:$0xf]
      %v934 = vld [vmem:[%s166 + $0xbdc] sm:$0xf]
      %v935 = vld [vmem:[%s166 + $0xbe0] sm:$0xf]
      %v936 = vld [vmem:[%s166 + $0xbe4] sm:$0xf]
      %v937 = vld [vmem:[%s166 + $0xbe8] sm:$0xf]
      %v938 = vld [vmem:[%s166 + $0xbec] sm:$0xf]
      %v939 = vld [vmem:[%s166 + $0xbf0] sm:$0xf]
      %v940 = vld [vmem:[%s166 + $0xbf4] sm:$0xf]
      %v941 = vld [vmem:[%s166 + $0xbf8] sm:$0xf]
      %v942 = vld [vmem:[%s166 + $0xbfc] sm:$0xf]
      %v943 = vld [vmem:[%s166 + $0xc00] sm:$0xf]
      %v944 = vld [vmem:[%s166 + $0xc04] sm:$0xf]
      %v945 = vld [vmem:[%s166 + $0xc08] sm:$0xf]
      %v946 = vld [vmem:[%s166 + $0xc0c] sm:$0xf]
      %v947 = vld [vmem:[%s166 + $0xc10] sm:$0xf]
      %v948 = vld [vmem:[%s166 + $0xc14] sm:$0xf]
      %v949 = vld [vmem:[%s166 + $0xc18] sm:$0xf]
      %v950 = vld [vmem:[%s166 + $0xc1c] sm:$0xf]
      %v951 = vld [vmem:[%s166 + $0xc20] sm:$0xf]
      %v952 = vld [vmem:[%s166 + $0xc24] sm:$0xf]
      %v953 = vld [vmem:[%s166 + $0xc28] sm:$0xf]
      %v954 = vld [vmem:[%s166 + $0xc2c] sm:$0xf]
      %v955 = vld [vmem:[%s166 + $0xc30] sm:$0xf]
      %v956 = vld [vmem:[%s166 + $0xc34] sm:$0xf]
      %v957 = vld [vmem:[%s166 + $0xc38] sm:$0xf]
      %v958 = vld [vmem:[%s166 + $0xc3c] sm:$0xf]
      %v959 = vld [vmem:[%s1] sm:$0xf]
      %v960 = vld [vmem:[%s1 + $0x4] sm:$0x1]
      %v1745 = vunpack.c.l.b16 %v175
      %v1746 = vunpack.c.l.b16 %v176
      %v1747 = vunpack.c.l.b16 %v177
      %v1748 = vunpack.c.l.b16 %v178
      %v1749 = vunpack.c.l.b16 %v179
      %v1750 = vunpack.c.l.b16 %v180
      %v1751 = vunpack.c.l.b16 %v181
      %v1752 = vunpack.c.l.b16 %v182
      %v1753 = vunpack.c.l.b16 %v183
      %v1754 = vunpack.c.l.b16 %v184
      %v1755 = vunpack.c.l.b16 %v185
      %v1756 = vunpack.c.l.b16 %v186
      %v1757 = vunpack.c.l.b16 %v187
      %v1758 = vunpack.c.l.b16 %v188
      %v1759 = vunpack.c.l.b16 %v189
      %v1760 = vunpack.c.l.b16 %v190
      %v1761 = vunpack.c.l.b16 %v191
      %v1762 = vunpack.c.l.b16 %v192
      %v1763 = vunpack.c.l.b16 %v193
      %v1764 = vunpack.c.l.b16 %v194
      %v1765 = vunpack.c.l.b16 %v195
      %v1766 = vunpack.c.l.b16 %v196
      %v1767 = vunpack.c.l.b16 %v197
      %v1768 = vunpack.c.l.b16 %v198
      %v1769 = vunpack.c.l.b16 %v199
      %v1770 = vunpack.c.l.b16 %v200
      %v1771 = vunpack.c.l.b16 %v201
      %v1772 = vunpack.c.l.b16 %v202
      %v1773 = vunpack.c.l.b16 %v203
      %v1774 = vunpack.c.l.b16 %v204
      %v1775 = vunpack.c.l.b16 %v205
      %v1776 = vunpack.c.l.b16 %v206
      %v1777 = vunpack.c.l.b16 %v207
      %v1778 = vunpack.c.l.b16 %v208
      %v1779 = vunpack.c.l.b16 %v209
      %v1780 = vunpack.c.l.b16 %v210
      %v1781 = vunpack.c.l.b16 %v211
      %v1782 = vunpack.c.l.b16 %v212
      %v1783 = vunpack.c.l.b16 %v213
      %v1784 = vunpack.c.l.b16 %v214
      %v1785 = vunpack.c.l.b16 %v215
      %v1786 = vunpack.c.l.b16 %v216
      %v1787 = vunpack.c.l.b16 %v217
      %v1788 = vunpack.c.l.b16 %v218
      %v1789 = vunpack.c.l.b16 %v219
      %v1790 = vunpack.c.l.b16 %v220
      %v1791 = vunpack.c.l.b16 %v221
      %v1792 = vunpack.c.l.b16 %v222
      %v1793 = vunpack.c.l.b16 %v223
      %v1794 = vunpack.c.l.b16 %v224
      %v1795 = vunpack.c.l.b16 %v225
      %v1796 = vunpack.c.l.b16 %v226
      %v1797 = vunpack.c.l.b16 %v227
      %v1798 = vunpack.c.l.b16 %v228
      %v1799 = vunpack.c.l.b16 %v229
      %v1800 = vunpack.c.l.b16 %v230
      %v1801 = vunpack.c.l.b16 %v231
      %v1802 = vunpack.c.l.b16 %v232
      %v1803 = vunpack.c.l.b16 %v233
      %v1804 = vunpack.c.l.b16 %v234
      %v1805 = vunpack.c.l.b16 %v235
      %v1806 = vunpack.c.l.b16 %v236
      %v1807 = vunpack.c.l.b16 %v237
      %v1808 = vunpack.c.l.b16 %v238
      %v1809 = vunpack.c.l.b16 %v239
      %v1810 = vunpack.c.l.b16 %v240
      %v1811 = vunpack.c.l.b16 %v241
      %v1812 = vunpack.c.l.b16 %v242
      %v1813 = vunpack.c.l.b16 %v243
      %v1814 = vunpack.c.l.b16 %v244
      %v1815 = vunpack.c.l.b16 %v245
      %v1816 = vunpack.c.l.b16 %v246
      %v1817 = vunpack.c.l.b16 %v247
      %v1818 = vunpack.c.l.b16 %v248
      %v1819 = vunpack.c.l.b16 %v249
      %v1820 = vunpack.c.l.b16 %v250
      %v1821 = vunpack.c.l.b16 %v251
      %v1822 = vunpack.c.l.b16 %v252
      %v1823 = vunpack.c.l.b16 %v253
      %v1824 = vunpack.c.l.b16 %v254
      %v1825 = vunpack.c.l.b16 %v255
      %v1826 = vunpack.c.l.b16 %v256
      %v1827 = vunpack.c.l.b16 %v257
      %v1828 = vunpack.c.l.b16 %v258
      %v1829 = vunpack.c.l.b16 %v259
      %v1830 = vunpack.c.l.b16 %v260
      %v1831 = vunpack.c.l.b16 %v261
      %v1832 = vunpack.c.l.b16 %v262
      %v1833 = vunpack.c.l.b16 %v263
      %v1834 = vunpack.c.l.b16 %v264
      %v1835 = vunpack.c.l.b16 %v265
      %v1836 = vunpack.c.l.b16 %v266
      %v1837 = vunpack.c.l.b16 %v267
      %v1838 = vunpack.c.l.b16 %v268
      %v1839 = vunpack.c.l.b16 %v269
      %v1840 = vunpack.c.l.b16 %v270
      %v1841 = vunpack.c.l.b16 %v271
      %v1842 = vunpack.c.l.b16 %v272
      %v1843 = vunpack.c.l.b16 %v273
      %v1844 = vunpack.c.l.b16 %v274
      %v1845 = vunpack.c.l.b16 %v275
      %v1846 = vunpack.c.l.b16 %v276
      %v1847 = vunpack.c.l.b16 %v277
      %v1848 = vunpack.c.l.b16 %v278
      %v1849 = vunpack.c.l.b16 %v279
      %v1850 = vunpack.c.l.b16 %v280
      %v1851 = vunpack.c.l.b16 %v281
      %v1852 = vunpack.c.l.b16 %v282
      %v1853 = vunpack.c.l.b16 %v283
      %v1854 = vunpack.c.l.b16 %v284
      %v1855 = vunpack.c.l.b16 %v285
      %v1856 = vunpack.c.l.b16 %v286
      %v1857 = vunpack.c.l.b16 %v287
      %v1858 = vunpack.c.l.b16 %v288
      %v1859 = vunpack.c.l.b16 %v289
      %v1860 = vunpack.c.l.b16 %v290
      %v1861 = vunpack.c.l.b16 %v291
      %v1862 = vunpack.c.l.b16 %v292
      %v1863 = vunpack.c.l.b16 %v293
      %v1864 = vunpack.c.l.b16 %v294
      %v1865 = vunpack.c.l.b16 %v295
      %v1866 = vunpack.c.l.b16 %v296
      %v1867 = vunpack.c.l.b16 %v297
      %v1868 = vunpack.c.l.b16 %v298
      %v1869 = vunpack.c.l.b16 %v299
      %v1870 = vunpack.c.l.b16 %v300
      %v1871 = vunpack.c.l.b16 %v301
      %v1872 = vunpack.c.l.b16 %v302
      %v1873 = vunpack.c.l.b16 %v303
      %v1874 = vunpack.c.l.b16 %v304
      %v1875 = vunpack.c.l.b16 %v305
      %v1876 = vunpack.c.l.b16 %v306
      %v1877 = vunpack.c.l.b16 %v307
      %v1878 = vunpack.c.l.b16 %v308
      %v1879 = vunpack.c.l.b16 %v309
      %v1880 = vunpack.c.l.b16 %v310
      %v1881 = vunpack.c.l.b16 %v311
      %v1882 = vunpack.c.l.b16 %v312
      %v1883 = vunpack.c.l.b16 %v313
      %v1884 = vunpack.c.l.b16 %v314
      %v1885 = vunpack.c.l.b16 %v315
      %v1886 = vunpack.c.l.b16 %v316
      %v1887 = vunpack.c.l.b16 %v317
      %v1888 = vunpack.c.l.b16 %v318
      %v1889 = vunpack.c.l.b16 %v319
      %v1890 = vunpack.c.l.b16 %v320
      %v1891 = vunpack.c.l.b16 %v321
      %v1892 = vunpack.c.l.b16 %v322
      %v1893 = vunpack.c.l.b16 %v323
      %v1894 = vunpack.c.l.b16 %v324
      %v1895 = vunpack.c.l.b16 %v325
      %v1896 = vunpack.c.l.b16 %v326
      %v1897 = vunpack.c.l.b16 %v327
      %v1898 = vunpack.c.l.b16 %v328
      %v1899 = vunpack.c.l.b16 %v329
      %v1900 = vunpack.c.l.b16 %v330
      %v1901 = vunpack.c.l.b16 %v331
      %v1902 = vunpack.c.l.b16 %v332
      %v1903 = vunpack.c.l.b16 %v333
      %v1904 = vunpack.c.l.b16 %v334
      %v1905 = vunpack.c.l.b16 %v335
      %v1906 = vunpack.c.l.b16 %v336
      %v1907 = vunpack.c.l.b16 %v337
      %v1908 = vunpack.c.l.b16 %v338
      %v1909 = vunpack.c.l.b16 %v339
      %v1910 = vunpack.c.l.b16 %v340
      %v1911 = vunpack.c.l.b16 %v341
      %v1912 = vunpack.c.l.b16 %v342
      %v1913 = vunpack.c.l.b16 %v343
      %v1914 = vunpack.c.l.b16 %v344
      %v1915 = vunpack.c.l.b16 %v345
      %v1916 = vunpack.c.l.b16 %v346
      %v1917 = vunpack.c.l.b16 %v347
      %v1918 = vunpack.c.l.b16 %v348
      %v1919 = vunpack.c.l.b16 %v349
      %v1920 = vunpack.c.l.b16 %v350
      %v1921 = vunpack.c.l.b16 %v351
      %v1922 = vunpack.c.l.b16 %v352
      %v1923 = vunpack.c.l.b16 %v353
      %v1924 = vunpack.c.l.b16 %v354
      %v1925 = vunpack.c.l.b16 %v355
      %v1926 = vunpack.c.l.b16 %v356
      %v1927 = vunpack.c.l.b16 %v357
      %v1928 = vunpack.c.l.b16 %v358
      %v1929 = vunpack.c.l.b16 %v359
      %v1930 = vunpack.c.l.b16 %v360
      %v1931 = vunpack.c.l.b16 %v361
      %v1932 = vunpack.c.l.b16 %v362
      %v1933 = vunpack.c.l.b16 %v363
      %v1934 = vunpack.c.l.b16 %v364
      %v1935 = vunpack.c.l.b16 %v365
      %v1936 = vunpack.c.l.b16 %v366
      %v1937 = vunpack.c.l.b16 %v367
      %v1938 = vunpack.c.l.b16 %v368
      %v1939 = vunpack.c.l.b16 %v369
      %v1940 = vunpack.c.l.b16 %v370
      %v1941 = vunpack.c.l.b16 %v371
      %v1942 = vunpack.c.l.b16 %v372
      %v1943 = vunpack.c.l.b16 %v373
      %v1944 = vunpack.c.l.b16 %v374
      %v1945 = vunpack.c.l.b16 %v375
      %v1946 = vunpack.c.l.b16 %v376
      %v1947 = vunpack.c.l.b16 %v377
      %v1948 = vunpack.c.l.b16 %v378
      %v1949 = vunpack.c.l.b16 %v379
      %v1950 = vunpack.c.l.b16 %v380
      %v1951 = vunpack.c.l.b16 %v381
      %v1952 = vunpack.c.l.b16 %v382
      %v1953 = vunpack.c.l.b16 %v383
      %v1954 = vunpack.c.l.b16 %v384
      %v1955 = vunpack.c.l.b16 %v385
      %v1956 = vunpack.c.l.b16 %v386
      %v1957 = vunpack.c.l.b16 %v387
      %v1958 = vunpack.c.l.b16 %v388
      %v1959 = vunpack.c.l.b16 %v389
      %v1960 = vunpack.c.l.b16 %v390
      %v1961 = vunpack.c.l.b16 %v391
      %v1962 = vunpack.c.l.b16 %v392
      %v1963 = vunpack.c.l.b16 %v393
      %v1964 = vunpack.c.l.b16 %v394
      %v1965 = vunpack.c.l.b16 %v395
      %v1966 = vunpack.c.l.b16 %v396
      %v1967 = vunpack.c.l.b16 %v397
      %v1968 = vunpack.c.l.b16 %v398
      %v1969 = vunpack.c.l.b16 %v399
      %v1970 = vunpack.c.l.b16 %v400
      %v1971 = vunpack.c.l.b16 %v401
      %v1972 = vunpack.c.l.b16 %v402
      %v1973 = vunpack.c.l.b16 %v403
      %v1974 = vunpack.c.l.b16 %v404
      %v1975 = vunpack.c.l.b16 %v405
      %v1976 = vunpack.c.l.b16 %v406
      %v1977 = vunpack.c.l.b16 %v407
      %v1978 = vunpack.c.l.b16 %v408
      %v1979 = vunpack.c.l.b16 %v409
      %v1980 = vunpack.c.l.b16 %v410
      %v1981 = vunpack.c.l.b16 %v411
      %v1982 = vunpack.c.l.b16 %v412
      %v1983 = vunpack.c.l.b16 %v413
      %v1984 = vunpack.c.l.b16 %v414
      %v1985 = vunpack.c.l.b16 %v415
      %v1986 = vunpack.c.l.b16 %v416
      %v1987 = vunpack.c.l.b16 %v417
      %v1988 = vunpack.c.l.b16 %v418
      %v1989 = vunpack.c.l.b16 %v419
      %v1990 = vunpack.c.l.b16 %v420
      %v1991 = vunpack.c.l.b16 %v421
      %v1992 = vunpack.c.l.b16 %v422
      %v1993 = vunpack.c.l.b16 %v423
      %v1994 = vunpack.c.l.b16 %v424
      %v1995 = vunpack.c.l.b16 %v425
      %v1996 = vunpack.c.l.b16 %v426
      %v1997 = vunpack.c.l.b16 %v427
      %v1998 = vunpack.c.l.b16 %v428
      %v1999 = vunpack.c.l.b16 %v429
      %v2000 = vunpack.c.l.b16 %v430
      %v2001 = vunpack.c.l.b16 %v431
      %v2002 = vunpack.c.l.b16 %v432
      %v2003 = vunpack.c.l.b16 %v433
      %v2004 = vunpack.c.l.b16 %v434
      %v2005 = vunpack.c.l.b16 %v435
      %v2006 = vunpack.c.l.b16 %v436
      %v2007 = vunpack.c.l.b16 %v437
      %v2008 = vunpack.c.l.b16 %v438
      %v2009 = vunpack.c.l.b16 %v439
      %v2010 = vunpack.c.l.b16 %v440
      %v2011 = vunpack.c.l.b16 %v441
      %v2012 = vunpack.c.l.b16 %v442
      %v2013 = vunpack.c.l.b16 %v443
      %v2014 = vunpack.c.l.b16 %v444
      %v2015 = vunpack.c.l.b16 %v445
      %v2016 = vunpack.c.l.b16 %v446
      %v2017 = vunpack.c.l.b16 %v447
      %v2018 = vunpack.c.l.b16 %v448
      %v2019 = vunpack.c.l.b16 %v449
      %v2020 = vunpack.c.l.b16 %v450
      %v2021 = vunpack.c.l.b16 %v451
      %v2022 = vunpack.c.l.b16 %v452
      %v2023 = vunpack.c.l.b16 %v453
      %v2024 = vunpack.c.l.b16 %v454
      %v2025 = vunpack.c.l.b16 %v455
      %v2026 = vunpack.c.l.b16 %v456
      %v2027 = vunpack.c.l.b16 %v457
      %v2028 = vunpack.c.l.b16 %v458
      %v2029 = vunpack.c.l.b16 %v459
      %v2030 = vunpack.c.l.b16 %v460
      %v2031 = vunpack.c.l.b16 %v461
      %v2032 = vunpack.c.l.b16 %v462
      %v2033 = vunpack.c.l.b16 %v463
      %v2034 = vunpack.c.l.b16 %v464
      %v2035 = vunpack.c.l.b16 %v465
      %v2036 = vunpack.c.l.b16 %v466
      %v2037 = vunpack.c.l.b16 %v467
      %v2038 = vunpack.c.l.b16 %v468
      %v2039 = vunpack.c.l.b16 %v469
      %v2040 = vunpack.c.l.b16 %v470
      %v2041 = vunpack.c.l.b16 %v471
      %v2042 = vunpack.c.l.b16 %v472
      %v2043 = vunpack.c.l.b16 %v473
      %v2044 = vunpack.c.l.b16 %v474
      %v2045 = vunpack.c.l.b16 %v475
      %v2046 = vunpack.c.l.b16 %v476
      %v2047 = vunpack.c.l.b16 %v477
      %v2048 = vunpack.c.l.b16 %v478
      %v2049 = vunpack.c.l.b16 %v479
      %v2050 = vunpack.c.l.b16 %v480
      %v2051 = vunpack.c.l.b16 %v481
      %v2052 = vunpack.c.l.b16 %v482
      %v2053 = vunpack.c.l.b16 %v483
      %v2054 = vunpack.c.l.b16 %v484
      %v2055 = vunpack.c.l.b16 %v485
      %v2056 = vunpack.c.l.b16 %v486
      %v2057 = vunpack.c.l.b16 %v487
      %v2058 = vunpack.c.l.b16 %v488
      %v2059 = vunpack.c.l.b16 %v489
      %v2060 = vunpack.c.l.b16 %v490
      %v2061 = vunpack.c.l.b16 %v491
      %v2062 = vunpack.c.l.b16 %v492
      %v2063 = vunpack.c.l.b16 %v493
      %v2064 = vunpack.c.l.b16 %v494
      %v2065 = vunpack.c.l.b16 %v495
      %v2066 = vunpack.c.l.b16 %v496
      %v2067 = vunpack.c.l.b16 %v497
      %v2068 = vunpack.c.l.b16 %v498
      %v2069 = vunpack.c.l.b16 %v499
      %v2070 = vunpack.c.l.b16 %v500
      %v2071 = vunpack.c.l.b16 %v501
      %v2072 = vunpack.c.l.b16 %v502
      %v2073 = vunpack.c.l.b16 %v503
      %v2074 = vunpack.c.l.b16 %v504
      %v2075 = vunpack.c.l.b16 %v505
      %v2076 = vunpack.c.l.b16 %v506
      %v2077 = vunpack.c.l.b16 %v507
      %v2078 = vunpack.c.l.b16 %v508
      %v2079 = vunpack.c.l.b16 %v509
      %v2080 = vunpack.c.l.b16 %v510
      %v2081 = vunpack.c.l.b16 %v511
      %v2082 = vunpack.c.l.b16 %v512
      %v2083 = vunpack.c.l.b16 %v513
      %v2084 = vunpack.c.l.b16 %v514
      %v2085 = vunpack.c.l.b16 %v515
      %v2086 = vunpack.c.l.b16 %v516
      %v2087 = vunpack.c.l.b16 %v517
      %v2088 = vunpack.c.l.b16 %v518
      %v2089 = vunpack.c.l.b16 %v519
      %v2090 = vunpack.c.l.b16 %v520
      %v2091 = vunpack.c.l.b16 %v521
      %v2092 = vunpack.c.l.b16 %v522
      %v2093 = vunpack.c.l.b16 %v523
      %v2094 = vunpack.c.l.b16 %v524
      %v2095 = vunpack.c.l.b16 %v525
      %v2096 = vunpack.c.l.b16 %v526
      %v2097 = vunpack.c.l.b16 %v527
      %v2098 = vunpack.c.l.b16 %v528
      %v2099 = vunpack.c.l.b16 %v529
      %v2100 = vunpack.c.l.b16 %v530
      %v2101 = vunpack.c.l.b16 %v531
      %v2102 = vunpack.c.l.b16 %v532
      %v2103 = vunpack.c.l.b16 %v533
      %v2104 = vunpack.c.l.b16 %v534
      %v2105 = vunpack.c.l.b16 %v535
      %v2106 = vunpack.c.l.b16 %v536
      %v2107 = vunpack.c.l.b16 %v537
      %v2108 = vunpack.c.l.b16 %v538
      %v2109 = vunpack.c.l.b16 %v539
      %v2110 = vunpack.c.l.b16 %v540
      %v2111 = vunpack.c.l.b16 %v541
      %v2112 = vunpack.c.l.b16 %v542
      %v2113 = vunpack.c.l.b16 %v543
      %v2114 = vunpack.c.l.b16 %v544
      %v2115 = vunpack.c.l.b16 %v545
      %v2116 = vunpack.c.l.b16 %v546
      %v2117 = vunpack.c.l.b16 %v547
      %v2118 = vunpack.c.l.b16 %v548
      %v2119 = vunpack.c.l.b16 %v549
      %v2120 = vunpack.c.l.b16 %v550
      %v2121 = vunpack.c.l.b16 %v551
      %v2122 = vunpack.c.l.b16 %v552
      %v2123 = vunpack.c.l.b16 %v553
      %v2124 = vunpack.c.l.b16 %v554
      %v2125 = vunpack.c.l.b16 %v555
      %v2126 = vunpack.c.l.b16 %v556
      %v2127 = vunpack.c.l.b16 %v557
      %v2128 = vunpack.c.l.b16 %v558
      %v2129 = vunpack.c.l.b16 %v559
      %v2130 = vunpack.c.l.b16 %v560
      %v2131 = vunpack.c.l.b16 %v561
      %v2132 = vunpack.c.l.b16 %v562
      %v2133 = vunpack.c.l.b16 %v563
      %v2134 = vunpack.c.l.b16 %v564
      %v2135 = vunpack.c.l.b16 %v565
      %v2136 = vunpack.c.l.b16 %v566
      %v2137 = vunpack.c.l.b16 %v567
      %v2138 = vunpack.c.l.b16 %v568
      %v2139 = vunpack.c.l.b16 %v569
      %v2140 = vunpack.c.l.b16 %v570
      %v2141 = vunpack.c.l.b16 %v571
      %v2142 = vunpack.c.l.b16 %v572
      %v2143 = vunpack.c.l.b16 %v573
      %v2144 = vunpack.c.l.b16 %v574
      %v2145 = vunpack.c.l.b16 %v575
      %v2146 = vunpack.c.l.b16 %v576
      %v2147 = vunpack.c.l.b16 %v577
      %v2148 = vunpack.c.l.b16 %v578
      %v2149 = vunpack.c.l.b16 %v579
      %v2150 = vunpack.c.l.b16 %v580
      %v2151 = vunpack.c.l.b16 %v581
      %v2152 = vunpack.c.l.b16 %v582
      %v2153 = vunpack.c.l.b16 %v583
      %v2154 = vunpack.c.l.b16 %v584
      %v2155 = vunpack.c.l.b16 %v585
      %v2156 = vunpack.c.l.b16 %v586
      %v2157 = vunpack.c.l.b16 %v587
      %v2158 = vunpack.c.l.b16 %v588
      %v2159 = vunpack.c.l.b16 %v589
      %v2160 = vunpack.c.l.b16 %v590
      %v2161 = vunpack.c.l.b16 %v591
      %v2162 = vunpack.c.l.b16 %v592
      %v2163 = vunpack.c.l.b16 %v593
      %v2164 = vunpack.c.l.b16 %v594
      %v2165 = vunpack.c.l.b16 %v595
      %v2166 = vunpack.c.l.b16 %v596
      %v2167 = vunpack.c.l.b16 %v597
      %v2168 = vunpack.c.l.b16 %v598
      %v2169 = vunpack.c.l.b16 %v599
      %v2170 = vunpack.c.l.b16 %v600
      %v2171 = vunpack.c.l.b16 %v601
      %v2172 = vunpack.c.l.b16 %v602
      %v2173 = vunpack.c.l.b16 %v603
      %v2174 = vunpack.c.l.b16 %v604
      %v2175 = vunpack.c.l.b16 %v605
      %v2176 = vunpack.c.l.b16 %v606
      %v2177 = vunpack.c.l.b16 %v607
      %v2178 = vunpack.c.l.b16 %v608
      %v2179 = vunpack.c.l.b16 %v609
      %v2180 = vunpack.c.l.b16 %v610
      %v2181 = vunpack.c.l.b16 %v611
      %v2182 = vunpack.c.l.b16 %v612
      %v2183 = vunpack.c.l.b16 %v613
      %v2184 = vunpack.c.l.b16 %v614
      %v2185 = vunpack.c.l.b16 %v615
      %v2186 = vunpack.c.l.b16 %v616
      %v2187 = vunpack.c.l.b16 %v617
      %v2188 = vunpack.c.l.b16 %v618
      %v2189 = vunpack.c.l.b16 %v619
      %v2190 = vunpack.c.l.b16 %v620
      %v2191 = vunpack.c.l.b16 %v621
      %v2192 = vunpack.c.l.b16 %v622
      %v2193 = vunpack.c.l.b16 %v623
      %v2194 = vunpack.c.l.b16 %v624
      %v2195 = vunpack.c.l.b16 %v625
      %v2196 = vunpack.c.l.b16 %v626
      %v2197 = vunpack.c.l.b16 %v627
      %v2198 = vunpack.c.l.b16 %v628
      %v2199 = vunpack.c.l.b16 %v629
      %v2200 = vunpack.c.l.b16 %v630
      %v2201 = vunpack.c.l.b16 %v631
      %v2202 = vunpack.c.l.b16 %v632
      %v2203 = vunpack.c.l.b16 %v633
      %v2204 = vunpack.c.l.b16 %v634
      %v2205 = vunpack.c.l.b16 %v635
      %v2206 = vunpack.c.l.b16 %v636
      %v2207 = vunpack.c.l.b16 %v637
      %v2208 = vunpack.c.l.b16 %v638
      %v2209 = vunpack.c.l.b16 %v639
      %v2210 = vunpack.c.l.b16 %v640
      %v2211 = vunpack.c.l.b16 %v641
      %v2212 = vunpack.c.l.b16 %v642
      %v2213 = vunpack.c.l.b16 %v643
      %v2214 = vunpack.c.l.b16 %v644
      %v2215 = vunpack.c.l.b16 %v645
      %v2216 = vunpack.c.l.b16 %v646
      %v2217 = vunpack.c.l.b16 %v647
      %v2218 = vunpack.c.l.b16 %v648
      %v2219 = vunpack.c.l.b16 %v649
      %v2220 = vunpack.c.l.b16 %v650
      %v2221 = vunpack.c.l.b16 %v651
      %v2222 = vunpack.c.l.b16 %v652
      %v2223 = vunpack.c.l.b16 %v653
      %v2224 = vunpack.c.l.b16 %v654
      %v2225 = vunpack.c.l.b16 %v655
      %v2226 = vunpack.c.l.b16 %v656
      %v2227 = vunpack.c.l.b16 %v657
      %v2228 = vunpack.c.l.b16 %v658
      %v2229 = vunpack.c.l.b16 %v659
      %v2230 = vunpack.c.l.b16 %v660
      %v2231 = vunpack.c.l.b16 %v661
      %v2232 = vunpack.c.l.b16 %v662
      %v2233 = vunpack.c.l.b16 %v663
      %v2234 = vunpack.c.l.b16 %v664
      %v2235 = vunpack.c.l.b16 %v665
      %v2236 = vunpack.c.l.b16 %v666
      %v2237 = vunpack.c.l.b16 %v667
      %v2238 = vunpack.c.l.b16 %v668
      %v2239 = vunpack.c.l.b16 %v669
      %v2240 = vunpack.c.l.b16 %v670
      %v2241 = vunpack.c.l.b16 %v671
      %v2242 = vunpack.c.l.b16 %v672
      %v2243 = vunpack.c.l.b16 %v673
      %v2244 = vunpack.c.l.b16 %v674
      %v2245 = vunpack.c.l.b16 %v675
      %v2246 = vunpack.c.l.b16 %v676
      %v2247 = vunpack.c.l.b16 %v677
      %v2248 = vunpack.c.l.b16 %v678
      %v2249 = vunpack.c.l.b16 %v679
      %v2250 = vunpack.c.l.b16 %v680
      %v2251 = vunpack.c.l.b16 %v681
      %v2252 = vunpack.c.l.b16 %v682
      %v2253 = vunpack.c.l.b16 %v683
      %v2254 = vunpack.c.l.b16 %v684
      %v2255 = vunpack.c.l.b16 %v685
      %v2256 = vunpack.c.l.b16 %v686
      %v2257 = vunpack.c.l.b16 %v687
      %v2258 = vunpack.c.l.b16 %v688
      %v2259 = vunpack.c.l.b16 %v689
      %v2260 = vunpack.c.l.b16 %v690
      %v2261 = vunpack.c.l.b16 %v691
      %v2262 = vunpack.c.l.b16 %v692
      %v2263 = vunpack.c.l.b16 %v693
      %v2264 = vunpack.c.l.b16 %v694
      %v2265 = vunpack.c.l.b16 %v695
      %v2266 = vunpack.c.l.b16 %v696
      %v2267 = vunpack.c.l.b16 %v697
      %v2268 = vunpack.c.l.b16 %v698
      %v2269 = vunpack.c.l.b16 %v699
      %v2270 = vunpack.c.l.b16 %v700
      %v2271 = vunpack.c.l.b16 %v701
      %v2272 = vunpack.c.l.b16 %v702
      %v2273 = vunpack.c.l.b16 %v703
      %v2274 = vunpack.c.l.b16 %v704
      %v2275 = vunpack.c.l.b16 %v705
      %v2276 = vunpack.c.l.b16 %v706
      %v2277 = vunpack.c.l.b16 %v707
      %v2278 = vunpack.c.l.b16 %v708
      %v2279 = vunpack.c.l.b16 %v709
      %v2280 = vunpack.c.l.b16 %v710
      %v2281 = vunpack.c.l.b16 %v711
      %v2282 = vunpack.c.l.b16 %v712
      %v2283 = vunpack.c.l.b16 %v713
      %v2284 = vunpack.c.l.b16 %v714
      %v2285 = vunpack.c.l.b16 %v715
      %v2286 = vunpack.c.l.b16 %v716
      %v2287 = vunpack.c.l.b16 %v717
      %v2288 = vunpack.c.l.b16 %v718
      %v2289 = vunpack.c.l.b16 %v719
      %v2290 = vunpack.c.l.b16 %v720
      %v2291 = vunpack.c.l.b16 %v721
      %v2292 = vunpack.c.l.b16 %v722
      %v2293 = vunpack.c.l.b16 %v723
      %v2294 = vunpack.c.l.b16 %v724
      %v2295 = vunpack.c.l.b16 %v725
      %v2296 = vunpack.c.l.b16 %v726
      %v2297 = vunpack.c.l.b16 %v727
      %v2298 = vunpack.c.l.b16 %v728
      %v2299 = vunpack.c.l.b16 %v729
      %v2300 = vunpack.c.l.b16 %v730
      %v2301 = vunpack.c.l.b16 %v731
      %v2302 = vunpack.c.l.b16 %v732
      %v2303 = vunpack.c.l.b16 %v733
      %v2304 = vunpack.c.l.b16 %v734
      %v2305 = vunpack.c.l.b16 %v735
      %v2306 = vunpack.c.l.b16 %v736
      %v2307 = vunpack.c.l.b16 %v737
      %v2308 = vunpack.c.l.b16 %v738
      %v2309 = vunpack.c.l.b16 %v739
      %v2310 = vunpack.c.l.b16 %v740
      %v2311 = vunpack.c.l.b16 %v741
      %v2312 = vunpack.c.l.b16 %v742
      %v2313 = vunpack.c.l.b16 %v743
      %v2314 = vunpack.c.l.b16 %v744
      %v2315 = vunpack.c.l.b16 %v745
      %v2316 = vunpack.c.l.b16 %v746
      %v2317 = vunpack.c.l.b16 %v747
      %v2318 = vunpack.c.l.b16 %v748
      %v2319 = vunpack.c.l.b16 %v749
      %v2320 = vunpack.c.l.b16 %v750
      %v2321 = vunpack.c.l.b16 %v751
      %v2322 = vunpack.c.l.b16 %v752
      %v2323 = vunpack.c.l.b16 %v753
      %v2324 = vunpack.c.l.b16 %v754
      %v2325 = vunpack.c.l.b16 %v755
      %v2326 = vunpack.c.l.b16 %v756
      %v2327 = vunpack.c.l.b16 %v757
      %v2328 = vunpack.c.l.b16 %v758
      %v2329 = vunpack.c.l.b16 %v759
      %v2330 = vunpack.c.l.b16 %v760
      %v2331 = vunpack.c.l.b16 %v761
      %v2332 = vunpack.c.l.b16 %v762
      %v2333 = vunpack.c.l.b16 %v763
      %v2334 = vunpack.c.l.b16 %v764
      %v2335 = vunpack.c.l.b16 %v765
      %v2336 = vunpack.c.l.b16 %v766
      %v2337 = vunpack.c.l.b16 %v767
      %v2338 = vunpack.c.l.b16 %v768
      %v2339 = vunpack.c.l.b16 %v769
      %v2340 = vunpack.c.l.b16 %v770
      %v2341 = vunpack.c.l.b16 %v771
      %v2342 = vunpack.c.l.b16 %v772
      %v2343 = vunpack.c.l.b16 %v773
      %v2344 = vunpack.c.l.b16 %v774
      %v2345 = vunpack.c.l.b16 %v775
      %v2346 = vunpack.c.l.b16 %v776
      %v2347 = vunpack.c.l.b16 %v777
      %v2348 = vunpack.c.l.b16 %v778
      %v2349 = vunpack.c.l.b16 %v779
      %v2350 = vunpack.c.l.b16 %v780
      %v2351 = vunpack.c.l.b16 %v781
      %v2352 = vunpack.c.l.b16 %v782
      %v2353 = vunpack.c.l.b16 %v783
      %v2354 = vunpack.c.l.b16 %v784
      %v2355 = vunpack.c.l.b16 %v785
      %v2356 = vunpack.c.l.b16 %v786
      %v2357 = vunpack.c.l.b16 %v787
      %v2358 = vunpack.c.l.b16 %v788
      %v2359 = vunpack.c.l.b16 %v789
      %v2360 = vunpack.c.l.b16 %v790
      %v2361 = vunpack.c.l.b16 %v791
      %v2362 = vunpack.c.l.b16 %v792
      %v2363 = vunpack.c.l.b16 %v793
      %v2364 = vunpack.c.l.b16 %v794
      %v2365 = vunpack.c.l.b16 %v795
      %v2366 = vunpack.c.l.b16 %v796
      %v2367 = vunpack.c.l.b16 %v797
      %v2368 = vunpack.c.l.b16 %v798
      %v2369 = vunpack.c.l.b16 %v799
      %v2370 = vunpack.c.l.b16 %v800
      %v2371 = vunpack.c.l.b16 %v801
      %v2372 = vunpack.c.l.b16 %v802
      %v2373 = vunpack.c.l.b16 %v803
      %v2374 = vunpack.c.l.b16 %v804
      %v2375 = vunpack.c.l.b16 %v805
      %v2376 = vunpack.c.l.b16 %v806
      %v2377 = vunpack.c.l.b16 %v807
      %v2378 = vunpack.c.l.b16 %v808
      %v2379 = vunpack.c.l.b16 %v809
      %v2380 = vunpack.c.l.b16 %v810
      %v2381 = vunpack.c.l.b16 %v811
      %v2382 = vunpack.c.l.b16 %v812
      %v2383 = vunpack.c.l.b16 %v813
      %v2384 = vunpack.c.l.b16 %v814
      %v2385 = vunpack.c.l.b16 %v815
      %v2386 = vunpack.c.l.b16 %v816
      %v2387 = vunpack.c.l.b16 %v817
      %v2388 = vunpack.c.l.b16 %v818
      %v2389 = vunpack.c.l.b16 %v819
      %v2390 = vunpack.c.l.b16 %v820
      %v2391 = vunpack.c.l.b16 %v821
      %v2392 = vunpack.c.l.b16 %v822
      %v2393 = vunpack.c.l.b16 %v823
      %v2394 = vunpack.c.l.b16 %v824
      %v2395 = vunpack.c.l.b16 %v825
      %v2396 = vunpack.c.l.b16 %v826
      %v2397 = vunpack.c.l.b16 %v827
      %v2398 = vunpack.c.l.b16 %v828
      %v2399 = vunpack.c.l.b16 %v829
      %v2400 = vunpack.c.l.b16 %v830
      %v2401 = vunpack.c.l.b16 %v831
      %v2402 = vunpack.c.l.b16 %v832
      %v2403 = vunpack.c.l.b16 %v833
      %v2404 = vunpack.c.l.b16 %v834
      %v2405 = vunpack.c.l.b16 %v835
      %v2406 = vunpack.c.l.b16 %v836
      %v2407 = vunpack.c.l.b16 %v837
      %v2408 = vunpack.c.l.b16 %v838
      %v2409 = vunpack.c.l.b16 %v839
      %v2410 = vunpack.c.l.b16 %v840
      %v2411 = vunpack.c.l.b16 %v841
      %v2412 = vunpack.c.l.b16 %v842
      %v2413 = vunpack.c.l.b16 %v843
      %v2414 = vunpack.c.l.b16 %v844
      %v2415 = vunpack.c.l.b16 %v845
      %v2416 = vunpack.c.l.b16 %v846
      %v2417 = vunpack.c.l.b16 %v847
      %v2418 = vunpack.c.l.b16 %v848
      %v2419 = vunpack.c.l.b16 %v849
      %v2420 = vunpack.c.l.b16 %v850
      %v2421 = vunpack.c.l.b16 %v851
      %v2422 = vunpack.c.l.b16 %v852
      %v2423 = vunpack.c.l.b16 %v853
      %v2424 = vunpack.c.l.b16 %v854
      %v2425 = vunpack.c.l.b16 %v855
      %v2426 = vunpack.c.l.b16 %v856
      %v2427 = vunpack.c.l.b16 %v857
      %v2428 = vunpack.c.l.b16 %v858
      %v2429 = vunpack.c.l.b16 %v859
      %v2430 = vunpack.c.l.b16 %v860
      %v2431 = vunpack.c.l.b16 %v861
      %v2432 = vunpack.c.l.b16 %v862
      %v2433 = vunpack.c.l.b16 %v863
      %v2434 = vunpack.c.l.b16 %v864
      %v2435 = vunpack.c.l.b16 %v865
      %v2436 = vunpack.c.l.b16 %v866
      %v2437 = vunpack.c.l.b16 %v867
      %v2438 = vunpack.c.l.b16 %v868
      %v2439 = vunpack.c.l.b16 %v869
      %v2440 = vunpack.c.l.b16 %v870
      %v2441 = vunpack.c.l.b16 %v871
      %v2442 = vunpack.c.l.b16 %v872
      %v2443 = vunpack.c.l.b16 %v873
      %v2444 = vunpack.c.l.b16 %v874
      %v2445 = vunpack.c.l.b16 %v875
      %v2446 = vunpack.c.l.b16 %v876
      %v2447 = vunpack.c.l.b16 %v877
      %v2448 = vunpack.c.l.b16 %v878
      %v2449 = vunpack.c.l.b16 %v879
      %v2450 = vunpack.c.l.b16 %v880
      %v2451 = vunpack.c.l.b16 %v881
      %v2452 = vunpack.c.l.b16 %v882
      %v2453 = vunpack.c.l.b16 %v883
      %v2454 = vunpack.c.l.b16 %v884
      %v2455 = vunpack.c.l.b16 %v885
      %v2456 = vunpack.c.l.b16 %v886
      %v2457 = vunpack.c.l.b16 %v887
      %v2458 = vunpack.c.l.b16 %v888
      %v2459 = vunpack.c.l.b16 %v889
      %v2460 = vunpack.c.l.b16 %v890
      %v2461 = vunpack.c.l.b16 %v891
      %v2462 = vunpack.c.l.b16 %v892
      %v2463 = vunpack.c.l.b16 %v893
      %v2464 = vunpack.c.l.b16 %v894
      %v2465 = vunpack.c.l.b16 %v895
      %v2466 = vunpack.c.l.b16 %v896
      %v2467 = vunpack.c.l.b16 %v897
      %v2468 = vunpack.c.l.b16 %v898
      %v2469 = vunpack.c.l.b16 %v899
      %v2470 = vunpack.c.l.b16 %v900
      %v2471 = vunpack.c.l.b16 %v901
      %v2472 = vunpack.c.l.b16 %v902
      %v2473 = vunpack.c.l.b16 %v903
      %v2474 = vunpack.c.l.b16 %v904
      %v2475 = vunpack.c.l.b16 %v905
      %v2476 = vunpack.c.l.b16 %v906
      %v2477 = vunpack.c.l.b16 %v907
      %v2478 = vunpack.c.l.b16 %v908
      %v2479 = vunpack.c.l.b16 %v909
      %v2480 = vunpack.c.l.b16 %v910
      %v2481 = vunpack.c.l.b16 %v911
      %v2482 = vunpack.c.l.b16 %v912
      %v2483 = vunpack.c.l.b16 %v913
      %v2484 = vunpack.c.l.b16 %v914
      %v2485 = vunpack.c.l.b16 %v915
      %v2486 = vunpack.c.l.b16 %v916
      %v2487 = vunpack.c.l.b16 %v917
      %v2488 = vunpack.c.l.b16 %v918
      %v2489 = vunpack.c.l.b16 %v919
      %v2490 = vunpack.c.l.b16 %v920
      %v2491 = vunpack.c.l.b16 %v921
      %v2492 = vunpack.c.l.b16 %v922
      %v2493 = vunpack.c.l.b16 %v923
      %v2494 = vunpack.c.l.b16 %v924
      %v2495 = vunpack.c.l.b16 %v925
      %v2496 = vunpack.c.l.b16 %v926
      %v2497 = vunpack.c.l.b16 %v927
      %v2498 = vunpack.c.l.b16 %v928
      %v2499 = vunpack.c.l.b16 %v929
      %v2500 = vunpack.c.l.b16 %v930
      %v2501 = vunpack.c.l.b16 %v931
      %v2502 = vunpack.c.l.b16 %v932
      %v2503 = vunpack.c.l.b16 %v933
      %v2504 = vunpack.c.l.b16 %v934
      %v2505 = vunpack.c.l.b16 %v935
      %v2506 = vunpack.c.l.b16 %v936
      %v2507 = vunpack.c.l.b16 %v937
      %v2508 = vunpack.c.l.b16 %v938
      %v2509 = vunpack.c.l.b16 %v939
      %v2510 = vunpack.c.l.b16 %v940
      %v2511 = vunpack.c.l.b16 %v941
      %v2512 = vunpack.c.l.b16 %v942
      %v2513 = vunpack.c.l.b16 %v943
      %v2514 = vunpack.c.l.b16 %v944
      %v2515 = vunpack.c.l.b16 %v945
      %v2516 = vunpack.c.l.b16 %v946
      %v2517 = vunpack.c.l.b16 %v947
      %v2518 = vunpack.c.l.b16 %v948
      %v2519 = vunpack.c.l.b16 %v949
      %v2520 = vunpack.c.l.b16 %v950
      %v2521 = vunpack.c.l.b16 %v951
      %v2522 = vunpack.c.l.b16 %v952
      %v2523 = vunpack.c.l.b16 %v953
      %v2524 = vunpack.c.l.b16 %v954
      %v2525 = vunpack.c.l.b16 %v955
      %v2526 = vunpack.c.l.b16 %v956
      %v2527 = vunpack.c.l.b16 %v957
      %v2528 = vunpack.c.l.b16 %v958
      %v2529 = vpack.c.b16 %v1746, %v1745
      %v2530 = vpack.c.b16 %v1748, %v1747
      %v2531 = vpack.c.b16 %v1750, %v1749
      %v2532 = vpack.c.b16 %v1752, %v1751
      %v2533 = vpack.c.b16 %v1754, %v1753
      %v2534 = vpack.c.b16 %v1756, %v1755
      %v2535 = vpack.c.b16 %v1758, %v1757
      %v2536 = vpack.c.b16 %v1760, %v1759
      %v2537 = vpack.c.b16 %v1762, %v1761
      %v2538 = vpack.c.b16 %v1764, %v1763
      %v2539 = vpack.c.b16 %v1766, %v1765
      %v2540 = vpack.c.b16 %v1768, %v1767
      %v2541 = vpack.c.b16 %v1770, %v1769
      %v2542 = vpack.c.b16 %v1772, %v1771
      %v2543 = vpack.c.b16 %v1774, %v1773
      %v2544 = vpack.c.b16 %v1776, %v1775
      %v2545 = vpack.c.b16 %v1778, %v1777
      %v2546 = vpack.c.b16 %v1780, %v1779
      %v2547 = vpack.c.b16 %v1782, %v1781
      %v2548 = vpack.c.b16 %v1784, %v1783
      %v2549 = vpack.c.b16 %v1786, %v1785
      %v2550 = vpack.c.b16 %v1788, %v1787
      %v2551 = vpack.c.b16 %v1790, %v1789
      %v2552 = vpack.c.b16 %v1792, %v1791
      %v2553 = vpack.c.b16 %v1794, %v1793
      %v2554 = vpack.c.b16 %v1796, %v1795
      %v2555 = vpack.c.b16 %v1798, %v1797
      %v2556 = vpack.c.b16 %v1800, %v1799
      %v2557 = vpack.c.b16 %v1802, %v1801
      %v2558 = vpack.c.b16 %v1804, %v1803
      %v2559 = vpack.c.b16 %v1806, %v1805
      %v2560 = vpack.c.b16 %v1808, %v1807
      %v2561 = vpack.c.b16 %v1810, %v1809
      %v2562 = vpack.c.b16 %v1812, %v1811
      %v2563 = vpack.c.b16 %v1814, %v1813
      %v2564 = vpack.c.b16 %v1816, %v1815
      %v2565 = vpack.c.b16 %v1818, %v1817
      %v2566 = vpack.c.b16 %v1820, %v1819
      %v2567 = vpack.c.b16 %v1822, %v1821
      %v2568 = vpack.c.b16 %v1824, %v1823
      %v2569 = vpack.c.b16 %v1826, %v1825
      %v2570 = vpack.c.b16 %v1828, %v1827
      %v2571 = vpack.c.b16 %v1830, %v1829
      %v2572 = vpack.c.b16 %v1832, %v1831
      %v2573 = vpack.c.b16 %v1834, %v1833
      %v2574 = vpack.c.b16 %v1836, %v1835
      %v2575 = vpack.c.b16 %v1838, %v1837
      %v2576 = vpack.c.b16 %v1840, %v1839
      %v2577 = vpack.c.b16 %v1842, %v1841
      %v2578 = vpack.c.b16 %v1844, %v1843
      %v2579 = vpack.c.b16 %v1846, %v1845
      %v2580 = vpack.c.b16 %v1848, %v1847
      %v2581 = vpack.c.b16 %v1850, %v1849
      %v2582 = vpack.c.b16 %v1852, %v1851
      %v2583 = vpack.c.b16 %v1854, %v1853
      %v2584 = vpack.c.b16 %v1856, %v1855
      %v2585 = vpack.c.b16 %v1858, %v1857
      %v2586 = vpack.c.b16 %v1860, %v1859
      %v2587 = vpack.c.b16 %v1862, %v1861
      %v2588 = vpack.c.b16 %v1864, %v1863
      %v2589 = vpack.c.b16 %v1866, %v1865
      %v2590 = vpack.c.b16 %v1868, %v1867
      %v2591 = vpack.c.b16 %v1870, %v1869
      %v2592 = vpack.c.b16 %v1872, %v1871
      %v2593 = vpack.c.b16 %v1874, %v1873
      %v2594 = vpack.c.b16 %v1876, %v1875
      %v2595 = vpack.c.b16 %v1878, %v1877
      %v2596 = vpack.c.b16 %v1880, %v1879
      %v2597 = vpack.c.b16 %v1882, %v1881
      %v2598 = vpack.c.b16 %v1884, %v1883
      %v2599 = vpack.c.b16 %v1886, %v1885
      %v2600 = vpack.c.b16 %v1888, %v1887
      %v2601 = vpack.c.b16 %v1890, %v1889
      %v2602 = vpack.c.b16 %v1892, %v1891
      %v2603 = vpack.c.b16 %v1894, %v1893
      %v2604 = vpack.c.b16 %v1896, %v1895
      %v2605 = vpack.c.b16 %v1898, %v1897
      %v2606 = vpack.c.b16 %v1900, %v1899
      %v2607 = vpack.c.b16 %v1902, %v1901
      %v2608 = vpack.c.b16 %v1904, %v1903
      %v2609 = vpack.c.b16 %v1906, %v1905
      %v2610 = vpack.c.b16 %v1908, %v1907
      %v2611 = vpack.c.b16 %v1910, %v1909
      %v2612 = vpack.c.b16 %v1912, %v1911
      %v2613 = vpack.c.b16 %v1914, %v1913
      %v2614 = vpack.c.b16 %v1916, %v1915
      %v2615 = vpack.c.b16 %v1918, %v1917
      %v2616 = vpack.c.b16 %v1920, %v1919
      %v2617 = vpack.c.b16 %v1922, %v1921
      %v2618 = vpack.c.b16 %v1924, %v1923
      %v2619 = vpack.c.b16 %v1926, %v1925
      %v2620 = vpack.c.b16 %v1928, %v1927
      %v2621 = vpack.c.b16 %v1930, %v1929
      %v2622 = vpack.c.b16 %v1932, %v1931
      %v2623 = vpack.c.b16 %v1934, %v1933
      %v2624 = vpack.c.b16 %v1936, %v1935
      %v2625 = vpack.c.b16 %v1938, %v1937
      %v2626 = vpack.c.b16 %v1940, %v1939
      %v2627 = vpack.c.b16 %v1942, %v1941
      %v2628 = vpack.c.b16 %v1944, %v1943
      %v2629 = vpack.c.b16 %v1946, %v1945
      %v2630 = vpack.c.b16 %v1948, %v1947
      %v2631 = vpack.c.b16 %v1950, %v1949
      %v2632 = vpack.c.b16 %v1952, %v1951
      %v2633 = vpack.c.b16 %v1954, %v1953
      %v2634 = vpack.c.b16 %v1956, %v1955
      %v2635 = vpack.c.b16 %v1958, %v1957
      %v2636 = vpack.c.b16 %v1960, %v1959
      %v2637 = vpack.c.b16 %v1962, %v1961
      %v2638 = vpack.c.b16 %v1964, %v1963
      %v2639 = vpack.c.b16 %v1966, %v1965
      %v2640 = vpack.c.b16 %v1968, %v1967
      %v2641 = vpack.c.b16 %v1970, %v1969
      %v2642 = vpack.c.b16 %v1972, %v1971
      %v2643 = vpack.c.b16 %v1974, %v1973
      %v2644 = vpack.c.b16 %v1976, %v1975
      %v2645 = vpack.c.b16 %v1978, %v1977
      %v2646 = vpack.c.b16 %v1980, %v1979
      %v2647 = vpack.c.b16 %v1982, %v1981
      %v2648 = vpack.c.b16 %v1984, %v1983
      %v2649 = vpack.c.b16 %v1986, %v1985
      %v2650 = vpack.c.b16 %v1988, %v1987
      %v2651 = vpack.c.b16 %v1990, %v1989
      %v2652 = vpack.c.b16 %v1992, %v1991
      %v2653 = vpack.c.b16 %v1994, %v1993
      %v2654 = vpack.c.b16 %v1996, %v1995
      %v2655 = vpack.c.b16 %v1998, %v1997
      %v2656 = vpack.c.b16 %v2000, %v1999
      %v2657 = vpack.c.b16 %v2002, %v2001
      %v2658 = vpack.c.b16 %v2004, %v2003
      %v2659 = vpack.c.b16 %v2006, %v2005
      %v2660 = vpack.c.b16 %v2008, %v2007
      %v2661 = vpack.c.b16 %v2010, %v2009
      %v2662 = vpack.c.b16 %v2012, %v2011
      %v2663 = vpack.c.b16 %v2014, %v2013
      %v2664 = vpack.c.b16 %v2016, %v2015
      %v2665 = vpack.c.b16 %v2018, %v2017
      %v2666 = vpack.c.b16 %v2020, %v2019
      %v2667 = vpack.c.b16 %v2022, %v2021
      %v2668 = vpack.c.b16 %v2024, %v2023
      %v2669 = vpack.c.b16 %v2026, %v2025
      %v2670 = vpack.c.b16 %v2028, %v2027
      %v2671 = vpack.c.b16 %v2030, %v2029
      %v2672 = vpack.c.b16 %v2032, %v2031
      %v2673 = vpack.c.b16 %v2034, %v2033
      %v2674 = vpack.c.b16 %v2036, %v2035
      %v2675 = vpack.c.b16 %v2038, %v2037
      %v2676 = vpack.c.b16 %v2040, %v2039
      %v2677 = vpack.c.b16 %v2042, %v2041
      %v2678 = vpack.c.b16 %v2044, %v2043
      %v2679 = vpack.c.b16 %v2046, %v2045
      %v2680 = vpack.c.b16 %v2048, %v2047
      %v2681 = vpack.c.b16 %v2050, %v2049
      %v2682 = vpack.c.b16 %v2052, %v2051
      %v2683 = vpack.c.b16 %v2054, %v2053
      %v2684 = vpack.c.b16 %v2056, %v2055
      %v2685 = vpack.c.b16 %v2058, %v2057
      %v2686 = vpack.c.b16 %v2060, %v2059
      %v2687 = vpack.c.b16 %v2062, %v2061
      %v2688 = vpack.c.b16 %v2064, %v2063
      %v2689 = vpack.c.b16 %v2066, %v2065
      %v2690 = vpack.c.b16 %v2068, %v2067
      %v2691 = vpack.c.b16 %v2070, %v2069
      %v2692 = vpack.c.b16 %v2072, %v2071
      %v2693 = vpack.c.b16 %v2074, %v2073
      %v2694 = vpack.c.b16 %v2076, %v2075
      %v2695 = vpack.c.b16 %v2078, %v2077
      %v2696 = vpack.c.b16 %v2080, %v2079
      %v2697 = vpack.c.b16 %v2082, %v2081
      %v2698 = vpack.c.b16 %v2084, %v2083
      %v2699 = vpack.c.b16 %v2086, %v2085
      %v2700 = vpack.c.b16 %v2088, %v2087
      %v2701 = vpack.c.b16 %v2090, %v2089
      %v2702 = vpack.c.b16 %v2092, %v2091
      %v2703 = vpack.c.b16 %v2094, %v2093
      %v2704 = vpack.c.b16 %v2096, %v2095
      %v2705 = vpack.c.b16 %v2098, %v2097
      %v2706 = vpack.c.b16 %v2100, %v2099
      %v2707 = vpack.c.b16 %v2102, %v2101
      %v2708 = vpack.c.b16 %v2104, %v2103
      %v2709 = vpack.c.b16 %v2106, %v2105
      %v2710 = vpack.c.b16 %v2108, %v2107
      %v2711 = vpack.c.b16 %v2110, %v2109
      %v2712 = vpack.c.b16 %v2112, %v2111
      %v2713 = vpack.c.b16 %v2114, %v2113
      %v2714 = vpack.c.b16 %v2116, %v2115
      %v2715 = vpack.c.b16 %v2118, %v2117
      %v2716 = vpack.c.b16 %v2120, %v2119
      %v2717 = vpack.c.b16 %v2122, %v2121
      %v2718 = vpack.c.b16 %v2124, %v2123
      %v2719 = vpack.c.b16 %v2126, %v2125
      %v2720 = vpack.c.b16 %v2128, %v2127
      %v2721 = vpack.c.b16 %v2130, %v2129
      %v2722 = vpack.c.b16 %v2132, %v2131
      %v2723 = vpack.c.b16 %v2134, %v2133
      %v2724 = vpack.c.b16 %v2136, %v2135
      %v2725 = vpack.c.b16 %v2138, %v2137
      %v2726 = vpack.c.b16 %v2140, %v2139
      %v2727 = vpack.c.b16 %v2142, %v2141
      %v2728 = vpack.c.b16 %v2144, %v2143
      %v2729 = vpack.c.b16 %v2146, %v2145
      %v2730 = vpack.c.b16 %v2148, %v2147
      %v2731 = vpack.c.b16 %v2150, %v2149
      %v2732 = vpack.c.b16 %v2152, %v2151
      %v2733 = vpack.c.b16 %v2154, %v2153
      %v2734 = vpack.c.b16 %v2156, %v2155
      %v2735 = vpack.c.b16 %v2158, %v2157
      %v2736 = vpack.c.b16 %v2160, %v2159
      %v2737 = vpack.c.b16 %v2162, %v2161
      %v2738 = vpack.c.b16 %v2164, %v2163
      %v2739 = vpack.c.b16 %v2166, %v2165
      %v2740 = vpack.c.b16 %v2168, %v2167
      %v2741 = vpack.c.b16 %v2170, %v2169
      %v2742 = vpack.c.b16 %v2172, %v2171
      %v2743 = vpack.c.b16 %v2174, %v2173
      %v2744 = vpack.c.b16 %v2176, %v2175
      %v2745 = vpack.c.b16 %v2178, %v2177
      %v2746 = vpack.c.b16 %v2180, %v2179
      %v2747 = vpack.c.b16 %v2182, %v2181
      %v2748 = vpack.c.b16 %v2184, %v2183
      %v2749 = vpack.c.b16 %v2186, %v2185
      %v2750 = vpack.c.b16 %v2188, %v2187
      %v2751 = vpack.c.b16 %v2190, %v2189
      %v2752 = vpack.c.b16 %v2192, %v2191
      %v2753 = vpack.c.b16 %v2194, %v2193
      %v2754 = vpack.c.b16 %v2196, %v2195
      %v2755 = vpack.c.b16 %v2198, %v2197
      %v2756 = vpack.c.b16 %v2200, %v2199
      %v2757 = vpack.c.b16 %v2202, %v2201
      %v2758 = vpack.c.b16 %v2204, %v2203
      %v2759 = vpack.c.b16 %v2206, %v2205
      %v2760 = vpack.c.b16 %v2208, %v2207
      %v2761 = vpack.c.b16 %v2210, %v2209
      %v2762 = vpack.c.b16 %v2212, %v2211
      %v2763 = vpack.c.b16 %v2214, %v2213
      %v2764 = vpack.c.b16 %v2216, %v2215
      %v2765 = vpack.c.b16 %v2218, %v2217
      %v2766 = vpack.c.b16 %v2220, %v2219
      %v2767 = vpack.c.b16 %v2222, %v2221
      %v2768 = vpack.c.b16 %v2224, %v2223
      %v2769 = vpack.c.b16 %v2226, %v2225
      %v2770 = vpack.c.b16 %v2228, %v2227
      %v2771 = vpack.c.b16 %v2230, %v2229
      %v2772 = vpack.c.b16 %v2232, %v2231
      %v2773 = vpack.c.b16 %v2234, %v2233
      %v2774 = vpack.c.b16 %v2236, %v2235
      %v2775 = vpack.c.b16 %v2238, %v2237
      %v2776 = vpack.c.b16 %v2240, %v2239
      %v2777 = vpack.c.b16 %v2242, %v2241
      %v2778 = vpack.c.b16 %v2244, %v2243
      %v2779 = vpack.c.b16 %v2246, %v2245
      %v2780 = vpack.c.b16 %v2248, %v2247
      %v2781 = vpack.c.b16 %v2250, %v2249
      %v2782 = vpack.c.b16 %v2252, %v2251
      %v2783 = vpack.c.b16 %v2254, %v2253
      %v2784 = vpack.c.b16 %v2256, %v2255
      %v2785 = vpack.c.b16 %v2258, %v2257
      %v2786 = vpack.c.b16 %v2260, %v2259
      %v2787 = vpack.c.b16 %v2262, %v2261
      %v2788 = vpack.c.b16 %v2264, %v2263
      %v2789 = vpack.c.b16 %v2266, %v2265
      %v2790 = vpack.c.b16 %v2268, %v2267
      %v2791 = vpack.c.b16 %v2270, %v2269
      %v2792 = vpack.c.b16 %v2272, %v2271
      %v2793 = vpack.c.b16 %v2274, %v2273
      %v2794 = vpack.c.b16 %v2276, %v2275
      %v2795 = vpack.c.b16 %v2278, %v2277
      %v2796 = vpack.c.b16 %v2280, %v2279
      %v2797 = vpack.c.b16 %v2282, %v2281
      %v2798 = vpack.c.b16 %v2284, %v2283
      %v2799 = vpack.c.b16 %v2286, %v2285
      %v2800 = vpack.c.b16 %v2288, %v2287
      %v2801 = vpack.c.b16 %v2290, %v2289
      %v2802 = vpack.c.b16 %v2292, %v2291
      %v2803 = vpack.c.b16 %v2294, %v2293
      %v2804 = vpack.c.b16 %v2296, %v2295
      %v2805 = vpack.c.b16 %v2298, %v2297
      %v2806 = vpack.c.b16 %v2300, %v2299
      %v2807 = vpack.c.b16 %v2302, %v2301
      %v2808 = vpack.c.b16 %v2304, %v2303
      %v2809 = vpack.c.b16 %v2306, %v2305
      %v2810 = vpack.c.b16 %v2308, %v2307
      %v2811 = vpack.c.b16 %v2310, %v2309
      %v2812 = vpack.c.b16 %v2312, %v2311
      %v2813 = vpack.c.b16 %v2314, %v2313
      %v2814 = vpack.c.b16 %v2316, %v2315
      %v2815 = vpack.c.b16 %v2318, %v2317
      %v2816 = vpack.c.b16 %v2320, %v2319
      %v2817 = vpack.c.b16 %v2322, %v2321
      %v2818 = vpack.c.b16 %v2324, %v2323
      %v2819 = vpack.c.b16 %v2326, %v2325
      %v2820 = vpack.c.b16 %v2328, %v2327
      %v2821 = vpack.c.b16 %v2330, %v2329
      %v2822 = vpack.c.b16 %v2332, %v2331
      %v2823 = vpack.c.b16 %v2334, %v2333
      %v2824 = vpack.c.b16 %v2336, %v2335
      %v2825 = vpack.c.b16 %v2338, %v2337
      %v2826 = vpack.c.b16 %v2340, %v2339
      %v2827 = vpack.c.b16 %v2342, %v2341
      %v2828 = vpack.c.b16 %v2344, %v2343
      %v2829 = vpack.c.b16 %v2346, %v2345
      %v2830 = vpack.c.b16 %v2348, %v2347
      %v2831 = vpack.c.b16 %v2350, %v2349
      %v2832 = vpack.c.b16 %v2352, %v2351
      %v2833 = vpack.c.b16 %v2354, %v2353
      %v2834 = vpack.c.b16 %v2356, %v2355
      %v2835 = vpack.c.b16 %v2358, %v2357
      %v2836 = vpack.c.b16 %v2360, %v2359
      %v2837 = vpack.c.b16 %v2362, %v2361
      %v2838 = vpack.c.b16 %v2364, %v2363
      %v2839 = vpack.c.b16 %v2366, %v2365
      %v2840 = vpack.c.b16 %v2368, %v2367
      %v2841 = vpack.c.b16 %v2370, %v2369
      %v2842 = vpack.c.b16 %v2372, %v2371
      %v2843 = vpack.c.b16 %v2374, %v2373
      %v2844 = vpack.c.b16 %v2376, %v2375
      %v2845 = vpack.c.b16 %v2378, %v2377
      %v2846 = vpack.c.b16 %v2380, %v2379
      %v2847 = vpack.c.b16 %v2382, %v2381
      %v2848 = vpack.c.b16 %v2384, %v2383
      %v2849 = vpack.c.b16 %v2386, %v2385
      %v2850 = vpack.c.b16 %v2388, %v2387
      %v2851 = vpack.c.b16 %v2390, %v2389
      %v2852 = vpack.c.b16 %v2392, %v2391
      %v2853 = vpack.c.b16 %v2394, %v2393
      %v2854 = vpack.c.b16 %v2396, %v2395
      %v2855 = vpack.c.b16 %v2398, %v2397
      %v2856 = vpack.c.b16 %v2400, %v2399
      %v2857 = vpack.c.b16 %v2402, %v2401
      %v2858 = vpack.c.b16 %v2404, %v2403
      %v2859 = vpack.c.b16 %v2406, %v2405
      %v2860 = vpack.c.b16 %v2408, %v2407
      %v2861 = vpack.c.b16 %v2410, %v2409
      %v2862 = vpack.c.b16 %v2412, %v2411
      %v2863 = vpack.c.b16 %v2414, %v2413
      %v2864 = vpack.c.b16 %v2416, %v2415
      %v2865 = vpack.c.b16 %v2418, %v2417
      %v2866 = vpack.c.b16 %v2420, %v2419
      %v2867 = vpack.c.b16 %v2422, %v2421
      %v2868 = vpack.c.b16 %v2424, %v2423
      %v2869 = vpack.c.b16 %v2426, %v2425
      %v2870 = vpack.c.b16 %v2428, %v2427
      %v2871 = vpack.c.b16 %v2430, %v2429
      %v2872 = vpack.c.b16 %v2432, %v2431
      %v2873 = vpack.c.b16 %v2434, %v2433
      %v2874 = vpack.c.b16 %v2436, %v2435
      %v2875 = vpack.c.b16 %v2438, %v2437
      %v2876 = vpack.c.b16 %v2440, %v2439
      %v2877 = vpack.c.b16 %v2442, %v2441
      %v2878 = vpack.c.b16 %v2444, %v2443
      %v2879 = vpack.c.b16 %v2446, %v2445
      %v2880 = vpack.c.b16 %v2448, %v2447
      %v2881 = vpack.c.b16 %v2450, %v2449
      %v2882 = vpack.c.b16 %v2452, %v2451
      %v2883 = vpack.c.b16 %v2454, %v2453
      %v2884 = vpack.c.b16 %v2456, %v2455
      %v2885 = vpack.c.b16 %v2458, %v2457
      %v2886 = vpack.c.b16 %v2460, %v2459
      %v2887 = vpack.c.b16 %v2462, %v2461
      %v2888 = vpack.c.b16 %v2464, %v2463
      %v2889 = vpack.c.b16 %v2466, %v2465
      %v2890 = vpack.c.b16 %v2468, %v2467
      %v2891 = vpack.c.b16 %v2470, %v2469
      %v2892 = vpack.c.b16 %v2472, %v2471
      %v2893 = vpack.c.b16 %v2474, %v2473
      %v2894 = vpack.c.b16 %v2476, %v2475
      %v2895 = vpack.c.b16 %v2478, %v2477
      %v2896 = vpack.c.b16 %v2480, %v2479
      %v2897 = vpack.c.b16 %v2482, %v2481
      %v2898 = vpack.c.b16 %v2484, %v2483
      %v2899 = vpack.c.b16 %v2486, %v2485
      %v2900 = vpack.c.b16 %v2488, %v2487
      %v2901 = vpack.c.b16 %v2490, %v2489
      %v2902 = vpack.c.b16 %v2492, %v2491
      %v2903 = vpack.c.b16 %v2494, %v2493
      %v2904 = vpack.c.b16 %v2496, %v2495
      %v2905 = vpack.c.b16 %v2498, %v2497
      %v2906 = vpack.c.b16 %v2500, %v2499
      %v2907 = vpack.c.b16 %v2502, %v2501
      %v2908 = vpack.c.b16 %v2504, %v2503
      %v2909 = vpack.c.b16 %v2506, %v2505
      %v2910 = vpack.c.b16 %v2508, %v2507
      %v2911 = vpack.c.b16 %v2510, %v2509
      %v2912 = vpack.c.b16 %v2512, %v2511
      %v2913 = vpack.c.b16 %v2514, %v2513
      %v2914 = vpack.c.b16 %v2516, %v2515
      %v2915 = vpack.c.b16 %v2518, %v2517
      %v2916 = vpack.c.b16 %v2520, %v2519
      %v2917 = vpack.c.b16 %v2522, %v2521
      %v2918 = vpack.c.b16 %v2524, %v2523
      %v2919 = vpack.c.b16 %v2526, %v2525
      %v2920 = vpack.c.b16 %v2528, %v2527
      %v2923 = vunpack.c.l.b16 %v959
      %v2924 = vunpack.c.l.b16 %v960
      %v2925 = vpack.c.b16 %v2924, %v2923
      %vm2926 = vcmask 72704
      %v2928 = vsel %vm2926, %v2529, 0
      %v2931 = vsel %vm2926, %v2530, 0
      %v2934 = vsel %vm2926, %v2531, 0
      %v2937 = vsel %vm2926, %v2532, 0
      %v2940 = vsel %vm2926, %v2533, 0
      %v2943 = vsel %vm2926, %v2534, 0
      %v2946 = vsel %vm2926, %v2535, 0
      %v2949 = vsel %vm2926, %v2536, 0
      %v2952 = vsel %vm2926, %v2537, 0
      %v2955 = vsel %vm2926, %v2538, 0
      %v2958 = vsel %vm2926, %v2539, 0
      %v2961 = vsel %vm2926, %v2540, 0
      %v2964 = vsel %vm2926, %v2541, 0
      %v2967 = vsel %vm2926, %v2542, 0
      %v2970 = vsel %vm2926, %v2543, 0
      %v2973 = vsel %vm2926, %v2544, 0
      %v2976 = vsel %vm2926, %v2545, 0
      %v2979 = vsel %vm2926, %v2546, 0
      %v2982 = vsel %vm2926, %v2547, 0
      %v2985 = vsel %vm2926, %v2548, 0
      %v2988 = vsel %vm2926, %v2549, 0
      %v2991 = vsel %vm2926, %v2550, 0
      %v2994 = vsel %vm2926, %v2551, 0
      %v2997 = vsel %vm2926, %v2552, 0
      %v3000 = vsel %vm2926, %v2553, 0
      %v3003 = vsel %vm2926, %v2554, 0
      %v3006 = vsel %vm2926, %v2555, 0
      %v3009 = vsel %vm2926, %v2556, 0
      %v3012 = vsel %vm2926, %v2557, 0
      %v3015 = vsel %vm2926, %v2558, 0
      %v3018 = vsel %vm2926, %v2559, 0
      %v3021 = vsel %vm2926, %v2560, 0
      %v3024 = vsel %vm2926, %v2561, 0
      %v3027 = vsel %vm2926, %v2562, 0
      %v3030 = vsel %vm2926, %v2563, 0
      %v3033 = vsel %vm2926, %v2564, 0
      %v3036 = vsel %vm2926, %v2565, 0
      %v3039 = vsel %vm2926, %v2566, 0
      %v3042 = vsel %vm2926, %v2567, 0
      %v3045 = vsel %vm2926, %v2568, 0
      %v3048 = vsel %vm2926, %v2569, 0
      %v3051 = vsel %vm2926, %v2570, 0
      %v3054 = vsel %vm2926, %v2571, 0
      %v3057 = vsel %vm2926, %v2572, 0
      %v3060 = vsel %vm2926, %v2573, 0
      %v3063 = vsel %vm2926, %v2574, 0
      %v3066 = vsel %vm2926, %v2575, 0
      %v3069 = vsel %vm2926, %v2576, 0
      %v3072 = vsel %vm2926, %v2577, 0
      %v3075 = vsel %vm2926, %v2578, 0
      %v3078 = vsel %vm2926, %v2579, 0
      %v3081 = vsel %vm2926, %v2580, 0
      %v3084 = vsel %vm2926, %v2581, 0
      %v3087 = vsel %vm2926, %v2582, 0
      %v3090 = vsel %vm2926, %v2583, 0
      %v3093 = vsel %vm2926, %v2584, 0
      %v3096 = vsel %vm2926, %v2585, 0
      %v3099 = vsel %vm2926, %v2586, 0
      %v3102 = vsel %vm2926, %v2587, 0
      %v3105 = vsel %vm2926, %v2588, 0
      %v3108 = vsel %vm2926, %v2589, 0
      %v3111 = vsel %vm2926, %v2590, 0
      %v3114 = vsel %vm2926, %v2591, 0
      %v3117 = vsel %vm2926, %v2592, 0
      %v3120 = vsel %vm2926, %v2593, 0
      %v3123 = vsel %vm2926, %v2594, 0
      %v3126 = vsel %vm2926, %v2595, 0
      %v3129 = vsel %vm2926, %v2596, 0
      %v3132 = vsel %vm2926, %v2597, 0
      %v3135 = vsel %vm2926, %v2598, 0
      %v3138 = vsel %vm2926, %v2599, 0
      %v3141 = vsel %vm2926, %v2600, 0
      %v3144 = vsel %vm2926, %v2601, 0
      %v3147 = vsel %vm2926, %v2602, 0
      %v3150 = vsel %vm2926, %v2603, 0
      %v3153 = vsel %vm2926, %v2604, 0
      %v3156 = vsel %vm2926, %v2605, 0
      %v3159 = vsel %vm2926, %v2606, 0
      %v3162 = vsel %vm2926, %v2607, 0
      %v3165 = vsel %vm2926, %v2608, 0
      %v3168 = vsel %vm2926, %v2609, 0
      %v3171 = vsel %vm2926, %v2610, 0
      %v3174 = vsel %vm2926, %v2611, 0
      %v3177 = vsel %vm2926, %v2612, 0
      %v3180 = vsel %vm2926, %v2613, 0
      %v3183 = vsel %vm2926, %v2614, 0
      %v3186 = vsel %vm2926, %v2615, 0
      %v3189 = vsel %vm2926, %v2616, 0
      %v3192 = vsel %vm2926, %v2617, 0
      %v3195 = vsel %vm2926, %v2618, 0
      %v3198 = vsel %vm2926, %v2619, 0
      %v3201 = vsel %vm2926, %v2620, 0
      %v3204 = vsel %vm2926, %v2621, 0
      %v3207 = vsel %vm2926, %v2622, 0
      %v3210 = vsel %vm2926, %v2623, 0
      %v3213 = vsel %vm2926, %v2624, 0
      %v3216 = vsel %vm2926, %v2625, 0
      %v3219 = vsel %vm2926, %v2626, 0
      %v3222 = vsel %vm2926, %v2627, 0
      %v3225 = vsel %vm2926, %v2628, 0
      %v3228 = vsel %vm2926, %v2629, 0
      %v3231 = vsel %vm2926, %v2630, 0
      %v3234 = vsel %vm2926, %v2631, 0
      %v3237 = vsel %vm2926, %v2632, 0
      %v3240 = vsel %vm2926, %v2633, 0
      %v3243 = vsel %vm2926, %v2634, 0
      %v3246 = vsel %vm2926, %v2635, 0
      %v3249 = vsel %vm2926, %v2636, 0
      %v3252 = vsel %vm2926, %v2637, 0
      %v3255 = vsel %vm2926, %v2638, 0
      %v3258 = vsel %vm2926, %v2639, 0
      %v3261 = vsel %vm2926, %v2640, 0
      %v3264 = vsel %vm2926, %v2641, 0
      %v3267 = vsel %vm2926, %v2642, 0
      %v3270 = vsel %vm2926, %v2643, 0
      %v3273 = vsel %vm2926, %v2644, 0
      %v3276 = vsel %vm2926, %v2645, 0
      %v3279 = vsel %vm2926, %v2646, 0
      %v3282 = vsel %vm2926, %v2647, 0
      %v3285 = vsel %vm2926, %v2648, 0
      %v3288 = vsel %vm2926, %v2649, 0
      %v3291 = vsel %vm2926, %v2650, 0
      %v3294 = vsel %vm2926, %v2651, 0
      %v3297 = vsel %vm2926, %v2652, 0
      %v3300 = vsel %vm2926, %v2653, 0
      %v3303 = vsel %vm2926, %v2654, 0
      %v3306 = vsel %vm2926, %v2655, 0
      %v3309 = vsel %vm2926, %v2656, 0
      %v3312 = vsel %vm2926, %v2657, 0
      %v3315 = vsel %vm2926, %v2658, 0
      %v3318 = vsel %vm2926, %v2659, 0
      %v3321 = vsel %vm2926, %v2660, 0
      %v3324 = vsel %vm2926, %v2661, 0
      %v3327 = vsel %vm2926, %v2662, 0
      %v3330 = vsel %vm2926, %v2663, 0
      %v3333 = vsel %vm2926, %v2664, 0
      %v3336 = vsel %vm2926, %v2665, 0
      %v3339 = vsel %vm2926, %v2666, 0
      %v3342 = vsel %vm2926, %v2667, 0
      %v3345 = vsel %vm2926, %v2668, 0
      %v3348 = vsel %vm2926, %v2669, 0
      %v3351 = vsel %vm2926, %v2670, 0
      %v3354 = vsel %vm2926, %v2671, 0
      %v3357 = vsel %vm2926, %v2672, 0
      %v3360 = vsel %vm2926, %v2673, 0
      %v3363 = vsel %vm2926, %v2674, 0
      %v3366 = vsel %vm2926, %v2675, 0
      %v3369 = vsel %vm2926, %v2676, 0
      %v3372 = vsel %vm2926, %v2677, 0
      %v3375 = vsel %vm2926, %v2678, 0
      %v3378 = vsel %vm2926, %v2679, 0
      %v3381 = vsel %vm2926, %v2680, 0
      %v3384 = vsel %vm2926, %v2681, 0
      %v3387 = vsel %vm2926, %v2682, 0
      %v3390 = vsel %vm2926, %v2683, 0
      %v3393 = vsel %vm2926, %v2684, 0
      %v3396 = vsel %vm2926, %v2685, 0
      %v3399 = vsel %vm2926, %v2686, 0
      %v3402 = vsel %vm2926, %v2687, 0
      %v3405 = vsel %vm2926, %v2688, 0
      %v3408 = vsel %vm2926, %v2689, 0
      %v3411 = vsel %vm2926, %v2690, 0
      %v3414 = vsel %vm2926, %v2691, 0
      %v3417 = vsel %vm2926, %v2692, 0
      %v3420 = vsel %vm2926, %v2693, 0
      %v3423 = vsel %vm2926, %v2694, 0
      %v3426 = vsel %vm2926, %v2695, 0
      %v3429 = vsel %vm2926, %v2696, 0
      %v3432 = vsel %vm2926, %v2697, 0
      %v3435 = vsel %vm2926, %v2698, 0
      %v3438 = vsel %vm2926, %v2699, 0
      %v3441 = vsel %vm2926, %v2700, 0
      %v3444 = vsel %vm2926, %v2701, 0
      %v3447 = vsel %vm2926, %v2702, 0
      %v3450 = vsel %vm2926, %v2703, 0
      %v3453 = vsel %vm2926, %v2704, 0
      %v3456 = vsel %vm2926, %v2705, 0
      %v3459 = vsel %vm2926, %v2706, 0
      %v3462 = vsel %vm2926, %v2707, 0
      %v3465 = vsel %vm2926, %v2708, 0
      %v3468 = vsel %vm2926, %v2709, 0
      %v3471 = vsel %vm2926, %v2710, 0
      %v3474 = vsel %vm2926, %v2711, 0
      %v3477 = vsel %vm2926, %v2712, 0
      %v3480 = vsel %vm2926, %v2713, 0
      %v3483 = vsel %vm2926, %v2714, 0
      %v3486 = vsel %vm2926, %v2715, 0
      %v3489 = vsel %vm2926, %v2716, 0
      %v3492 = vsel %vm2926, %v2717, 0
      %v3495 = vsel %vm2926, %v2718, 0
      %v3498 = vsel %vm2926, %v2719, 0
      %v3501 = vsel %vm2926, %v2720, 0
      %v3504 = vsel %vm2926, %v2721, 0
      %v3507 = vsel %vm2926, %v2722, 0
      %v3510 = vsel %vm2926, %v2723, 0
      %v3513 = vsel %vm2926, %v2724, 0
      %v3516 = vsel %vm2926, %v2725, 0
      %v3519 = vsel %vm2926, %v2726, 0
      %v3522 = vsel %vm2926, %v2727, 0
      %v3525 = vsel %vm2926, %v2728, 0
      %v3528 = vsel %vm2926, %v2729, 0
      %v3531 = vsel %vm2926, %v2730, 0
      %v3534 = vsel %vm2926, %v2731, 0
      %v3537 = vsel %vm2926, %v2732, 0
      %v3540 = vsel %vm2926, %v2733, 0
      %v3543 = vsel %vm2926, %v2734, 0
      %v3546 = vsel %vm2926, %v2735, 0
      %v3549 = vsel %vm2926, %v2736, 0
      %v3552 = vsel %vm2926, %v2737, 0
      %v3555 = vsel %vm2926, %v2738, 0
      %v3558 = vsel %vm2926, %v2739, 0
      %v3561 = vsel %vm2926, %v2740, 0
      %v3564 = vsel %vm2926, %v2741, 0
      %v3567 = vsel %vm2926, %v2742, 0
      %v3570 = vsel %vm2926, %v2743, 0
      %v3573 = vsel %vm2926, %v2744, 0
      %v3576 = vsel %vm2926, %v2745, 0
      %v3579 = vsel %vm2926, %v2746, 0
      %v3582 = vsel %vm2926, %v2747, 0
      %v3585 = vsel %vm2926, %v2748, 0
      %v3588 = vsel %vm2926, %v2749, 0
      %v3591 = vsel %vm2926, %v2750, 0
      %v3594 = vsel %vm2926, %v2751, 0
      %v3597 = vsel %vm2926, %v2752, 0
      %v3600 = vsel %vm2926, %v2753, 0
      %v3603 = vsel %vm2926, %v2754, 0
      %v3606 = vsel %vm2926, %v2755, 0
      %v3609 = vsel %vm2926, %v2756, 0
      %v3612 = vsel %vm2926, %v2757, 0
      %v3615 = vsel %vm2926, %v2758, 0
      %v3618 = vsel %vm2926, %v2759, 0
      %v3621 = vsel %vm2926, %v2760, 0
      %v3624 = vsel %vm2926, %v2761, 0
      %v3627 = vsel %vm2926, %v2762, 0
      %v3630 = vsel %vm2926, %v2763, 0
      %v3633 = vsel %vm2926, %v2764, 0
      %v3636 = vsel %vm2926, %v2765, 0
      %v3639 = vsel %vm2926, %v2766, 0
      %v3642 = vsel %vm2926, %v2767, 0
      %v3645 = vsel %vm2926, %v2768, 0
      %v3648 = vsel %vm2926, %v2769, 0
      %v3651 = vsel %vm2926, %v2770, 0
      %v3654 = vsel %vm2926, %v2771, 0
      %v3657 = vsel %vm2926, %v2772, 0
      %v3660 = vsel %vm2926, %v2773, 0
      %v3663 = vsel %vm2926, %v2774, 0
      %v3666 = vsel %vm2926, %v2775, 0
      %v3669 = vsel %vm2926, %v2776, 0
      %v3672 = vsel %vm2926, %v2777, 0
      %v3675 = vsel %vm2926, %v2778, 0
      %v3678 = vsel %vm2926, %v2779, 0
      %v3681 = vsel %vm2926, %v2780, 0
      %v3684 = vsel %vm2926, %v2781, 0
      %v3687 = vsel %vm2926, %v2782, 0
      %v3690 = vsel %vm2926, %v2783, 0
      %v3693 = vsel %vm2926, %v2784, 0
      %v3696 = vsel %vm2926, %v2785, 0
      %v3699 = vsel %vm2926, %v2786, 0
      %v3702 = vsel %vm2926, %v2787, 0
      %v3705 = vsel %vm2926, %v2788, 0
      %v3708 = vsel %vm2926, %v2789, 0
      %v3711 = vsel %vm2926, %v2790, 0
      %v3714 = vsel %vm2926, %v2791, 0
      %v3717 = vsel %vm2926, %v2792, 0
      %v3720 = vsel %vm2926, %v2793, 0
      %v3723 = vsel %vm2926, %v2794, 0
      %v3726 = vsel %vm2926, %v2795, 0
      %v3729 = vsel %vm2926, %v2796, 0
      %v3732 = vsel %vm2926, %v2797, 0
      %v3735 = vsel %vm2926, %v2798, 0
      %v3738 = vsel %vm2926, %v2799, 0
      %v3741 = vsel %vm2926, %v2800, 0
      %v3744 = vsel %vm2926, %v2801, 0
      %v3747 = vsel %vm2926, %v2802, 0
      %v3750 = vsel %vm2926, %v2803, 0
      %v3753 = vsel %vm2926, %v2804, 0
      %v3756 = vsel %vm2926, %v2805, 0
      %v3759 = vsel %vm2926, %v2806, 0
      %v3762 = vsel %vm2926, %v2807, 0
      %v3765 = vsel %vm2926, %v2808, 0
      %v3768 = vsel %vm2926, %v2809, 0
      %v3771 = vsel %vm2926, %v2810, 0
      %v3774 = vsel %vm2926, %v2811, 0
      %v3777 = vsel %vm2926, %v2812, 0
      %v3780 = vsel %vm2926, %v2813, 0
      %v3783 = vsel %vm2926, %v2814, 0
      %v3786 = vsel %vm2926, %v2815, 0
      %v3789 = vsel %vm2926, %v2816, 0
      %v3792 = vsel %vm2926, %v2817, 0
      %v3795 = vsel %vm2926, %v2818, 0
      %v3798 = vsel %vm2926, %v2819, 0
      %v3801 = vsel %vm2926, %v2820, 0
      %v3804 = vsel %vm2926, %v2821, 0
      %v3807 = vsel %vm2926, %v2822, 0
      %v3810 = vsel %vm2926, %v2823, 0
      %v3813 = vsel %vm2926, %v2824, 0
      %v3816 = vsel %vm2926, %v2825, 0
      %v3819 = vsel %vm2926, %v2826, 0
      %v3822 = vsel %vm2926, %v2827, 0
      %v3825 = vsel %vm2926, %v2828, 0
      %v3828 = vsel %vm2926, %v2829, 0
      %v3831 = vsel %vm2926, %v2830, 0
      %v3834 = vsel %vm2926, %v2831, 0
      %v3837 = vsel %vm2926, %v2832, 0
      %v3840 = vsel %vm2926, %v2833, 0
      %v3843 = vsel %vm2926, %v2834, 0
      %v3846 = vsel %vm2926, %v2835, 0
      %v3849 = vsel %vm2926, %v2836, 0
      %v3852 = vsel %vm2926, %v2837, 0
      %v3855 = vsel %vm2926, %v2838, 0
      %v3858 = vsel %vm2926, %v2839, 0
      %v3861 = vsel %vm2926, %v2840, 0
      %v3864 = vsel %vm2926, %v2841, 0
      %v3867 = vsel %vm2926, %v2842, 0
      %v3870 = vsel %vm2926, %v2843, 0
      %v3873 = vsel %vm2926, %v2844, 0
      %v3876 = vsel %vm2926, %v2845, 0
      %v3879 = vsel %vm2926, %v2846, 0
      %v3882 = vsel %vm2926, %v2847, 0
      %v3885 = vsel %vm2926, %v2848, 0
      %v3888 = vsel %vm2926, %v2849, 0
      %v3891 = vsel %vm2926, %v2850, 0
      %v3894 = vsel %vm2926, %v2851, 0
      %v3897 = vsel %vm2926, %v2852, 0
      %v3900 = vsel %vm2926, %v2853, 0
      %v3903 = vsel %vm2926, %v2854, 0
      %v3906 = vsel %vm2926, %v2855, 0
      %v3909 = vsel %vm2926, %v2856, 0
      %v3912 = vsel %vm2926, %v2857, 0
      %v3915 = vsel %vm2926, %v2858, 0
      %v3918 = vsel %vm2926, %v2859, 0
      %v3921 = vsel %vm2926, %v2860, 0
      %v3924 = vsel %vm2926, %v2861, 0
      %v3927 = vsel %vm2926, %v2862, 0
      %v3930 = vsel %vm2926, %v2863, 0
      %v3933 = vsel %vm2926, %v2864, 0
      %v3936 = vsel %vm2926, %v2865, 0
      %v3939 = vsel %vm2926, %v2866, 0
      %v3942 = vsel %vm2926, %v2867, 0
      %v3945 = vsel %vm2926, %v2868, 0
      %v3948 = vsel %vm2926, %v2869, 0
      %v3951 = vsel %vm2926, %v2870, 0
      %v3954 = vsel %vm2926, %v2871, 0
      %v3957 = vsel %vm2926, %v2872, 0
      %v3960 = vsel %vm2926, %v2873, 0
      %v3963 = vsel %vm2926, %v2874, 0
      %v3966 = vsel %vm2926, %v2875, 0
      %v3969 = vsel %vm2926, %v2876, 0
      %v3972 = vsel %vm2926, %v2877, 0
      %v3975 = vsel %vm2926, %v2878, 0
      %v3978 = vsel %vm2926, %v2879, 0
      %v3981 = vsel %vm2926, %v2880, 0
      %v3984 = vsel %vm2926, %v2881, 0
      %v3987 = vsel %vm2926, %v2882, 0
      %v3990 = vsel %vm2926, %v2883, 0
      %v3993 = vsel %vm2926, %v2884, 0
      %v3996 = vsel %vm2926, %v2885, 0
      %v3999 = vsel %vm2926, %v2886, 0
      %v4002 = vsel %vm2926, %v2887, 0
      %v4005 = vsel %vm2926, %v2888, 0
      %v4008 = vsel %vm2926, %v2889, 0
      %v4011 = vsel %vm2926, %v2890, 0
      %v4014 = vsel %vm2926, %v2891, 0
      %v4017 = vsel %vm2926, %v2892, 0
      %v4020 = vsel %vm2926, %v2893, 0
      %v4023 = vsel %vm2926, %v2894, 0
      %v4026 = vsel %vm2926, %v2895, 0
      %v4029 = vsel %vm2926, %v2896, 0
      %v4032 = vsel %vm2926, %v2897, 0
      %v4035 = vsel %vm2926, %v2898, 0
      %v4038 = vsel %vm2926, %v2899, 0
      %v4041 = vsel %vm2926, %v2900, 0
      %v4044 = vsel %vm2926, %v2901, 0
      %v4047 = vsel %vm2926, %v2902, 0
      %v4050 = vsel %vm2926, %v2903, 0
      %v4053 = vsel %vm2926, %v2904, 0
      %v4056 = vsel %vm2926, %v2905, 0
      %v4059 = vsel %vm2926, %v2906, 0
      %v4062 = vsel %vm2926, %v2907, 0
      %v4065 = vsel %vm2926, %v2908, 0
      %v4068 = vsel %vm2926, %v2909, 0
      %v4071 = vsel %vm2926, %v2910, 0
      %v4074 = vsel %vm2926, %v2911, 0
      %v4077 = vsel %vm2926, %v2912, 0
      %v4080 = vsel %vm2926, %v2913, 0
      %v4083 = vsel %vm2926, %v2914, 0
      %v4086 = vsel %vm2926, %v2915, 0
      %v4089 = vsel %vm2926, %v2916, 0
      %v4092 = vsel %vm2926, %v2917, 0
      %v4095 = vsel %vm2926, %v2918, 0
      %v4098 = vsel %vm2926, %v2919, 0
      %v4101 = vsel %vm2926, %v2920, 0
      %vm4103 = vcmask 1043456
      %vm4104 = vcmask 1044480
      %v4105 = vsel %vm4103, 4294967295, 65535
      %v4106 = vsel %vm4104, %v4105, 0
      %v4108 = vand.u32 %v2925, %v4106
      %4110 = vmatpush.bf16.msra.mxu0 0
      %4111 = vmatpush.bf16.msra.mxu0 0
      %4112 = vmatpush.bf16.msra.mxu0 0
      %4113 = vmatpush.bf16.msra.mxu0 0
      %4114 = vmatpush.bf16.msra.mxu0 0
      %4115 = vmatpush.bf16.msra.mxu0 0
      %4116 = vmatpush.bf16.msra.mxu0 0
      %4117 = vmatpush.bf16.msra.mxu0 %v4108
      %4118 = vmatmul.bf16.gmra.mxu0 %v2928
      %v4119 = vpop.f32.mrf.mxu0
      %v4120 = vadd.f32 0.0, %v4119
      %v4121 = vpop.f32.mrf.mxu0
      %v4122 = vadd.f32 0.0, %v4121
      %4123 = vmatmul.bf16.gmra.mxu0 %v2931
      %v4124 = vpop.f32.mrf.mxu0
      %v4125 = vadd.f32 0.0, %v4124
      %v4126 = vpop.f32.mrf.mxu0
      %v4127 = vadd.f32 0.0, %v4126
      %4128 = vmatmul.bf16.gmra.mxu0 %v2934
      %v4129 = vpop.f32.mrf.mxu0
      %v4130 = vadd.f32 0.0, %v4129
      %v4131 = vpop.f32.mrf.mxu0
      %v4132 = vadd.f32 0.0, %v4131
      %4133 = vmatmul.bf16.gmra.mxu0 %v2937
      %v4134 = vpop.f32.mrf.mxu0
      %v4135 = vadd.f32 0.0, %v4134
      %v4136 = vpop.f32.mrf.mxu0
      %v4137 = vadd.f32 0.0, %v4136
      %4138 = vmatmul.bf16.gmra.mxu0 %v2940
      %v4139 = vpop.f32.mrf.mxu0
      %v4140 = vadd.f32 0.0, %v4139
      %v4141 = vpop.f32.mrf.mxu0
      %v4142 = vadd.f32 0.0, %v4141
      %4143 = vmatmul.bf16.gmra.mxu0 %v2943
      %v4144 = vpop.f32.mrf.mxu0
      %v4145 = vadd.f32 0.0, %v4144
      %v4146 = vpop.f32.mrf.mxu0
      %v4147 = vadd.f32 0.0, %v4146
      %4148 = vmatmul.bf16.gmra.mxu0 %v2946
      %v4149 = vpop.f32.mrf.mxu0
      %v4150 = vadd.f32 0.0, %v4149
      %v4151 = vpop.f32.mrf.mxu0
      %v4152 = vadd.f32 0.0, %v4151
      %4153 = vmatmul.bf16.gmra.mxu0 %v2949
      %v4154 = vpop.f32.mrf.mxu0
      %v4155 = vadd.f32 0.0, %v4154
      %v4156 = vpop.f32.mrf.mxu0
      %v4157 = vadd.f32 0.0, %v4156
      %4158 = vmatmul.bf16.gmra.mxu0 %v2952
      %v4159 = vpop.f32.mrf.mxu0
      %v4160 = vadd.f32 0.0, %v4159
      %v4161 = vpop.f32.mrf.mxu0
      %v4162 = vadd.f32 0.0, %v4161
      %4163 = vmatmul.bf16.gmra.mxu0 %v2955
      %v4164 = vpop.f32.mrf.mxu0
      %v4165 = vadd.f32 0.0, %v4164
      %v4166 = vpop.f32.mrf.mxu0
      %v4167 = vadd.f32 0.0, %v4166
      %4168 = vmatmul.bf16.gmra.mxu0 %v2958
      %v4169 = vpop.f32.mrf.mxu0
      %v4170 = vadd.f32 0.0, %v4169
      %v4171 = vpop.f32.mrf.mxu0
      %v4172 = vadd.f32 0.0, %v4171
      %4173 = vmatmul.bf16.gmra.mxu0 %v2961
      %v4174 = vpop.f32.mrf.mxu0
      %v4175 = vadd.f32 0.0, %v4174
      %v4176 = vpop.f32.mrf.mxu0
      %v4177 = vadd.f32 0.0, %v4176
      %4178 = vmatmul.bf16.gmra.mxu0 %v2964
      %v4179 = vpop.f32.mrf.mxu0
      %v4180 = vadd.f32 0.0, %v4179
      %v4181 = vpop.f32.mrf.mxu0
      %v4182 = vadd.f32 0.0, %v4181
      %4183 = vmatmul.bf16.gmra.mxu0 %v2967
      %v4184 = vpop.f32.mrf.mxu0
      %v4185 = vadd.f32 0.0, %v4184
      %v4186 = vpop.f32.mrf.mxu0
      %v4187 = vadd.f32 0.0, %v4186
      %4188 = vmatmul.bf16.gmra.mxu0 %v2970
      %v4189 = vpop.f32.mrf.mxu0
      %v4190 = vadd.f32 0.0, %v4189
      %v4191 = vpop.f32.mrf.mxu0
      %v4192 = vadd.f32 0.0, %v4191
      %4193 = vmatmul.bf16.gmra.mxu0 %v2973
      %v4194 = vpop.f32.mrf.mxu0
      %v4195 = vadd.f32 0.0, %v4194
      %v4196 = vpop.f32.mrf.mxu0
      %v4197 = vadd.f32 0.0, %v4196
      %4198 = vmatmul.bf16.gmra.mxu0 %v2976
      %v4199 = vpop.f32.mrf.mxu0
      %v4200 = vadd.f32 0.0, %v4199
      %v4201 = vpop.f32.mrf.mxu0
      %v4202 = vadd.f32 0.0, %v4201
      %4203 = vmatmul.bf16.gmra.mxu0 %v2979
      %v4204 = vpop.f32.mrf.mxu0
      %v4205 = vadd.f32 0.0, %v4204
      %v4206 = vpop.f32.mrf.mxu0
      %v4207 = vadd.f32 0.0, %v4206
      %4208 = vmatmul.bf16.gmra.mxu0 %v2982
      %v4209 = vpop.f32.mrf.mxu0
      %v4210 = vadd.f32 0.0, %v4209
      %v4211 = vpop.f32.mrf.mxu0
      %v4212 = vadd.f32 0.0, %v4211
      %4213 = vmatmul.bf16.gmra.mxu0 %v2985
      %v4214 = vpop.f32.mrf.mxu0
      %v4215 = vadd.f32 0.0, %v4214
      %v4216 = vpop.f32.mrf.mxu0
      %v4217 = vadd.f32 0.0, %v4216
      %4218 = vmatmul.bf16.gmra.mxu0 %v2988
      %v4219 = vpop.f32.mrf.mxu0
      %v4220 = vadd.f32 0.0, %v4219
      %v4221 = vpop.f32.mrf.mxu0
      %v4222 = vadd.f32 0.0, %v4221
      %4223 = vmatmul.bf16.gmra.mxu0 %v2991
      %v4224 = vpop.f32.mrf.mxu0
      %v4225 = vadd.f32 0.0, %v4224
      %v4226 = vpop.f32.mrf.mxu0
      %v4227 = vadd.f32 0.0, %v4226
      %4228 = vmatmul.bf16.gmra.mxu0 %v2994
      %v4229 = vpop.f32.mrf.mxu0
      %v4230 = vadd.f32 0.0, %v4229
      %v4231 = vpop.f32.mrf.mxu0
      %v4232 = vadd.f32 0.0, %v4231
      %4233 = vmatmul.bf16.gmra.mxu0 %v2997
      %v4234 = vpop.f32.mrf.mxu0
      %v4235 = vadd.f32 0.0, %v4234
      %v4236 = vpop.f32.mrf.mxu0
      %v4237 = vadd.f32 0.0, %v4236
      %4238 = vmatmul.bf16.gmra.mxu0 %v3000
      %v4239 = vpop.f32.mrf.mxu0
      %v4240 = vadd.f32 0.0, %v4239
      %v4241 = vpop.f32.mrf.mxu0
      %v4242 = vadd.f32 0.0, %v4241
      %4243 = vmatmul.bf16.gmra.mxu0 %v3003
      %v4244 = vpop.f32.mrf.mxu0
      %v4245 = vadd.f32 0.0, %v4244
      %v4246 = vpop.f32.mrf.mxu0
      %v4247 = vadd.f32 0.0, %v4246
      %4248 = vmatmul.bf16.gmra.mxu0 %v3006
      %v4249 = vpop.f32.mrf.mxu0
      %v4250 = vadd.f32 0.0, %v4249
      %v4251 = vpop.f32.mrf.mxu0
      %v4252 = vadd.f32 0.0, %v4251
      %4253 = vmatmul.bf16.gmra.mxu0 %v3009
      %v4254 = vpop.f32.mrf.mxu0
      %v4255 = vadd.f32 0.0, %v4254
      %v4256 = vpop.f32.mrf.mxu0
      %v4257 = vadd.f32 0.0, %v4256
      %4258 = vmatmul.bf16.gmra.mxu0 %v3012
      %v4259 = vpop.f32.mrf.mxu0
      %v4260 = vadd.f32 0.0, %v4259
      %v4261 = vpop.f32.mrf.mxu0
      %v4262 = vadd.f32 0.0, %v4261
      %4263 = vmatmul.bf16.gmra.mxu0 %v3015
      %v4264 = vpop.f32.mrf.mxu0
      %v4265 = vadd.f32 0.0, %v4264
      %v4266 = vpop.f32.mrf.mxu0
      %v4267 = vadd.f32 0.0, %v4266
      %4268 = vmatmul.bf16.gmra.mxu0 %v3018
      %v4269 = vpop.f32.mrf.mxu0
      %v4270 = vadd.f32 0.0, %v4269
      %v4271 = vpop.f32.mrf.mxu0
      %v4272 = vadd.f32 0.0, %v4271
      %4273 = vmatmul.bf16.gmra.mxu0 %v3021
      %v4274 = vpop.f32.mrf.mxu0
      %v4275 = vadd.f32 0.0, %v4274
      %v4276 = vpop.f32.mrf.mxu0
      %v4277 = vadd.f32 0.0, %v4276
      %4278 = vmatmul.bf16.gmra.mxu0 %v3024
      %v4279 = vpop.f32.mrf.mxu0
      %v4280 = vadd.f32 0.0, %v4279
      %v4281 = vpop.f32.mrf.mxu0
      %v4282 = vadd.f32 0.0, %v4281
      %4283 = vmatmul.bf16.gmra.mxu0 %v3027
      %v4284 = vpop.f32.mrf.mxu0
      %v4285 = vadd.f32 0.0, %v4284
      %v4286 = vpop.f32.mrf.mxu0
      %v4287 = vadd.f32 0.0, %v4286
      %4288 = vmatmul.bf16.gmra.mxu0 %v3030
      %v4289 = vpop.f32.mrf.mxu0
      %v4290 = vadd.f32 0.0, %v4289
      %v4291 = vpop.f32.mrf.mxu0
      %v4292 = vadd.f32 0.0, %v4291
      %4293 = vmatmul.bf16.gmra.mxu0 %v3033
      %v4294 = vpop.f32.mrf.mxu0
      %v4295 = vadd.f32 0.0, %v4294
      %v4296 = vpop.f32.mrf.mxu0
      %v4297 = vadd.f32 0.0, %v4296
      %4298 = vmatmul.bf16.gmra.mxu0 %v3036
      %v4299 = vpop.f32.mrf.mxu0
      %v4300 = vadd.f32 0.0, %v4299
      %v4301 = vpop.f32.mrf.mxu0
      %v4302 = vadd.f32 0.0, %v4301
      %4303 = vmatmul.bf16.gmra.mxu0 %v3039
      %v4304 = vpop.f32.mrf.mxu0
      %v4305 = vadd.f32 0.0, %v4304
      %v4306 = vpop.f32.mrf.mxu0
      %v4307 = vadd.f32 0.0, %v4306
      %4308 = vmatmul.bf16.gmra.mxu0 %v3042
      %v4309 = vpop.f32.mrf.mxu0
      %v4310 = vadd.f32 0.0, %v4309
      %v4311 = vpop.f32.mrf.mxu0
      %v4312 = vadd.f32 0.0, %v4311
      %4313 = vmatmul.bf16.gmra.mxu0 %v3045
      %v4314 = vpop.f32.mrf.mxu0
      %v4315 = vadd.f32 0.0, %v4314
      %v4316 = vpop.f32.mrf.mxu0
      %v4317 = vadd.f32 0.0, %v4316
      %4318 = vmatmul.bf16.gmra.mxu0 %v3048
      %v4319 = vpop.f32.mrf.mxu0
      %v4320 = vadd.f32 0.0, %v4319
      %v4321 = vpop.f32.mrf.mxu0
      %v4322 = vadd.f32 0.0, %v4321
      %4323 = vmatmul.bf16.gmra.mxu0 %v3051
      %v4324 = vpop.f32.mrf.mxu0
      %v4325 = vadd.f32 0.0, %v4324
      %v4326 = vpop.f32.mrf.mxu0
      %v4327 = vadd.f32 0.0, %v4326
      %4328 = vmatmul.bf16.gmra.mxu0 %v3054
      %v4329 = vpop.f32.mrf.mxu0
      %v4330 = vadd.f32 0.0, %v4329
      %v4331 = vpop.f32.mrf.mxu0
      %v4332 = vadd.f32 0.0, %v4331
      %4333 = vmatmul.bf16.gmra.mxu0 %v3057
      %v4334 = vpop.f32.mrf.mxu0
      %v4335 = vadd.f32 0.0, %v4334
      %v4336 = vpop.f32.mrf.mxu0
      %v4337 = vadd.f32 0.0, %v4336
      %4338 = vmatmul.bf16.gmra.mxu0 %v3060
      %v4339 = vpop.f32.mrf.mxu0
      %v4340 = vadd.f32 0.0, %v4339
      %v4341 = vpop.f32.mrf.mxu0
      %v4342 = vadd.f32 0.0, %v4341
      %4343 = vmatmul.bf16.gmra.mxu0 %v3063
      %v4344 = vpop.f32.mrf.mxu0
      %v4345 = vadd.f32 0.0, %v4344
      %v4346 = vpop.f32.mrf.mxu0
      %v4347 = vadd.f32 0.0, %v4346
      %4348 = vmatmul.bf16.gmra.mxu0 %v3066
      %v4349 = vpop.f32.mrf.mxu0
      %v4350 = vadd.f32 0.0, %v4349
      %v4351 = vpop.f32.mrf.mxu0
      %v4352 = vadd.f32 0.0, %v4351
      %4353 = vmatmul.bf16.gmra.mxu0 %v3069
      %v4354 = vpop.f32.mrf.mxu0
      %v4355 = vadd.f32 0.0, %v4354
      %v4356 = vpop.f32.mrf.mxu0
      %v4357 = vadd.f32 0.0, %v4356
      %4358 = vmatmul.bf16.gmra.mxu0 %v3072
      %v4359 = vpop.f32.mrf.mxu0
      %v4360 = vadd.f32 0.0, %v4359
      %v4361 = vpop.f32.mrf.mxu0
      %v4362 = vadd.f32 0.0, %v4361
      %4363 = vmatmul.bf16.gmra.mxu0 %v3075
      %v4364 = vpop.f32.mrf.mxu0
      %v4365 = vadd.f32 0.0, %v4364
      %v4366 = vpop.f32.mrf.mxu0
      %v4367 = vadd.f32 0.0, %v4366
      %4368 = vmatmul.bf16.gmra.mxu0 %v3078
      %v4369 = vpop.f32.mrf.mxu0
      %v4370 = vadd.f32 0.0, %v4369
      %v4371 = vpop.f32.mrf.mxu0
      %v4372 = vadd.f32 0.0, %v4371
      %4373 = vmatmul.bf16.gmra.mxu0 %v3081
      %v4374 = vpop.f32.mrf.mxu0
      %v4375 = vadd.f32 0.0, %v4374
      %v4376 = vpop.f32.mrf.mxu0
      %v4377 = vadd.f32 0.0, %v4376
      %4378 = vmatmul.bf16.gmra.mxu0 %v3084
      %v4379 = vpop.f32.mrf.mxu0
      %v4380 = vadd.f32 0.0, %v4379
      %v4381 = vpop.f32.mrf.mxu0
      %v4382 = vadd.f32 0.0, %v4381
      %4383 = vmatmul.bf16.gmra.mxu0 %v3087
      %v4384 = vpop.f32.mrf.mxu0
      %v4385 = vadd.f32 0.0, %v4384
      %v4386 = vpop.f32.mrf.mxu0
      %v4387 = vadd.f32 0.0, %v4386
      %4388 = vmatmul.bf16.gmra.mxu0 %v3090
      %v4389 = vpop.f32.mrf.mxu0
      %v4390 = vadd.f32 0.0, %v4389
      %v4391 = vpop.f32.mrf.mxu0
      %v4392 = vadd.f32 0.0, %v4391
      %4393 = vmatmul.bf16.gmra.mxu0 %v3093
      %v4394 = vpop.f32.mrf.mxu0
      %v4395 = vadd.f32 0.0, %v4394
      %v4396 = vpop.f32.mrf.mxu0
      %v4397 = vadd.f32 0.0, %v4396
      %4398 = vmatmul.bf16.gmra.mxu0 %v3096
      %v4399 = vpop.f32.mrf.mxu0
      %v4400 = vadd.f32 0.0, %v4399
      %v4401 = vpop.f32.mrf.mxu0
      %v4402 = vadd.f32 0.0, %v4401
      %4403 = vmatmul.bf16.gmra.mxu0 %v3099
      %v4404 = vpop.f32.mrf.mxu0
      %v4405 = vadd.f32 0.0, %v4404
      %v4406 = vpop.f32.mrf.mxu0
      %v4407 = vadd.f32 0.0, %v4406
      %4408 = vmatmul.bf16.gmra.mxu0 %v3102
      %v4409 = vpop.f32.mrf.mxu0
      %v4410 = vadd.f32 0.0, %v4409
      %v4411 = vpop.f32.mrf.mxu0
      %v4412 = vadd.f32 0.0, %v4411
      %4413 = vmatmul.bf16.gmra.mxu0 %v3105
      %v4414 = vpop.f32.mrf.mxu0
      %v4415 = vadd.f32 0.0, %v4414
      %v4416 = vpop.f32.mrf.mxu0
      %v4417 = vadd.f32 0.0, %v4416
      %4418 = vmatmul.bf16.gmra.mxu0 %v3108
      %v4419 = vpop.f32.mrf.mxu0
      %v4420 = vadd.f32 0.0, %v4419
      %v4421 = vpop.f32.mrf.mxu0
      %v4422 = vadd.f32 0.0, %v4421
      %4423 = vmatmul.bf16.gmra.mxu0 %v3111
      %v4424 = vpop.f32.mrf.mxu0
      %v4425 = vadd.f32 0.0, %v4424
      %v4426 = vpop.f32.mrf.mxu0
      %v4427 = vadd.f32 0.0, %v4426
      %4428 = vmatmul.bf16.gmra.mxu0 %v3114
      %v4429 = vpop.f32.mrf.mxu0
      %v4430 = vadd.f32 0.0, %v4429
      %v4431 = vpop.f32.mrf.mxu0
      %v4432 = vadd.f32 0.0, %v4431
      %4433 = vmatmul.bf16.gmra.mxu0 %v3117
      %v4434 = vpop.f32.mrf.mxu0
      %v4435 = vadd.f32 0.0, %v4434
      %v4436 = vpop.f32.mrf.mxu0
      %v4437 = vadd.f32 0.0, %v4436
      %4438 = vmatmul.bf16.gmra.mxu0 %v3120
      %v4439 = vpop.f32.mrf.mxu0
      %v4440 = vadd.f32 0.0, %v4439
      %v4441 = vpop.f32.mrf.mxu0
      %v4442 = vadd.f32 0.0, %v4441
      %4443 = vmatmul.bf16.gmra.mxu0 %v3123
      %v4444 = vpop.f32.mrf.mxu0
      %v4445 = vadd.f32 0.0, %v4444
      %v4446 = vpop.f32.mrf.mxu0
      %v4447 = vadd.f32 0.0, %v4446
      %4448 = vmatmul.bf16.gmra.mxu0 %v3126
      %v4449 = vpop.f32.mrf.mxu0
      %v4450 = vadd.f32 0.0, %v4449
      %v4451 = vpop.f32.mrf.mxu0
      %v4452 = vadd.f32 0.0, %v4451
      %4453 = vmatmul.bf16.gmra.mxu0 %v3129
      %v4454 = vpop.f32.mrf.mxu0
      %v4455 = vadd.f32 0.0, %v4454
      %v4456 = vpop.f32.mrf.mxu0
      %v4457 = vadd.f32 0.0, %v4456
      %4458 = vmatmul.bf16.gmra.mxu0 %v3132
      %v4459 = vpop.f32.mrf.mxu0
      %v4460 = vadd.f32 0.0, %v4459
      %v4461 = vpop.f32.mrf.mxu0
      %v4462 = vadd.f32 0.0, %v4461
      %4463 = vmatmul.bf16.gmra.mxu0 %v3135
      %v4464 = vpop.f32.mrf.mxu0
      %v4465 = vadd.f32 0.0, %v4464
      %v4466 = vpop.f32.mrf.mxu0
      %v4467 = vadd.f32 0.0, %v4466
      %4468 = vmatmul.bf16.gmra.mxu0 %v3138
      %v4469 = vpop.f32.mrf.mxu0
      %v4470 = vadd.f32 0.0, %v4469
      %v4471 = vpop.f32.mrf.mxu0
      %v4472 = vadd.f32 0.0, %v4471
      %4473 = vmatmul.bf16.gmra.mxu0 %v3141
      %v4474 = vpop.f32.mrf.mxu0
      %v4475 = vadd.f32 0.0, %v4474
      %v4476 = vpop.f32.mrf.mxu0
      %v4477 = vadd.f32 0.0, %v4476
      %4478 = vmatmul.bf16.gmra.mxu0 %v3144
      %v4479 = vpop.f32.mrf.mxu0
      %v4480 = vadd.f32 0.0, %v4479
      %v4481 = vpop.f32.mrf.mxu0
      %v4482 = vadd.f32 0.0, %v4481
      %4483 = vmatmul.bf16.gmra.mxu0 %v3147
      %v4484 = vpop.f32.mrf.mxu0
      %v4485 = vadd.f32 0.0, %v4484
      %v4486 = vpop.f32.mrf.mxu0
      %v4487 = vadd.f32 0.0, %v4486
      %4488 = vmatmul.bf16.gmra.mxu0 %v3150
      %v4489 = vpop.f32.mrf.mxu0
      %v4490 = vadd.f32 0.0, %v4489
      %v4491 = vpop.f32.mrf.mxu0
      %v4492 = vadd.f32 0.0, %v4491
      %4493 = vmatmul.bf16.gmra.mxu0 %v3153
      %v4494 = vpop.f32.mrf.mxu0
      %v4495 = vadd.f32 0.0, %v4494
      %v4496 = vpop.f32.mrf.mxu0
      %v4497 = vadd.f32 0.0, %v4496
      %4498 = vmatmul.bf16.gmra.mxu0 %v3156
      %v4499 = vpop.f32.mrf.mxu0
      %v4500 = vadd.f32 0.0, %v4499
      %v4501 = vpop.f32.mrf.mxu0
      %v4502 = vadd.f32 0.0, %v4501
      %4503 = vmatmul.bf16.gmra.mxu0 %v3159
      %v4504 = vpop.f32.mrf.mxu0
      %v4505 = vadd.f32 0.0, %v4504
      %v4506 = vpop.f32.mrf.mxu0
      %v4507 = vadd.f32 0.0, %v4506
      %4508 = vmatmul.bf16.gmra.mxu0 %v3162
      %v4509 = vpop.f32.mrf.mxu0
      %v4510 = vadd.f32 0.0, %v4509
      %v4511 = vpop.f32.mrf.mxu0
      %v4512 = vadd.f32 0.0, %v4511
      %4513 = vmatmul.bf16.gmra.mxu0 %v3165
      %v4514 = vpop.f32.mrf.mxu0
      %v4515 = vadd.f32 0.0, %v4514
      %v4516 = vpop.f32.mrf.mxu0
      %v4517 = vadd.f32 0.0, %v4516
      %4518 = vmatmul.bf16.gmra.mxu0 %v3168
      %v4519 = vpop.f32.mrf.mxu0
      %v4520 = vadd.f32 0.0, %v4519
      %v4521 = vpop.f32.mrf.mxu0
      %v4522 = vadd.f32 0.0, %v4521
      %4523 = vmatmul.bf16.gmra.mxu0 %v3171
      %v4524 = vpop.f32.mrf.mxu0
      %v4525 = vadd.f32 0.0, %v4524
      %v4526 = vpop.f32.mrf.mxu0
      %v4527 = vadd.f32 0.0, %v4526
      %4528 = vmatmul.bf16.gmra.mxu0 %v3174
      %v4529 = vpop.f32.mrf.mxu0
      %v4530 = vadd.f32 0.0, %v4529
      %v4531 = vpop.f32.mrf.mxu0
      %v4532 = vadd.f32 0.0, %v4531
      %4533 = vmatmul.bf16.gmra.mxu0 %v3177
      %v4534 = vpop.f32.mrf.mxu0
      %v4535 = vadd.f32 0.0, %v4534
      %v4536 = vpop.f32.mrf.mxu0
      %v4537 = vadd.f32 0.0, %v4536
      %4538 = vmatmul.bf16.gmra.mxu0 %v3180
      %v4539 = vpop.f32.mrf.mxu0
      %v4540 = vadd.f32 0.0, %v4539
      %v4541 = vpop.f32.mrf.mxu0
      %v4542 = vadd.f32 0.0, %v4541
      %4543 = vmatmul.bf16.gmra.mxu0 %v3183
      %v4544 = vpop.f32.mrf.mxu0
      %v4545 = vadd.f32 0.0, %v4544
      %v4546 = vpop.f32.mrf.mxu0
      %v4547 = vadd.f32 0.0, %v4546
      %4548 = vmatmul.bf16.gmra.mxu0 %v3186
      %v4549 = vpop.f32.mrf.mxu0
      %v4550 = vadd.f32 0.0, %v4549
      %v4551 = vpop.f32.mrf.mxu0
      %v4552 = vadd.f32 0.0, %v4551
      %4553 = vmatmul.bf16.gmra.mxu0 %v3189
      %v4554 = vpop.f32.mrf.mxu0
      %v4555 = vadd.f32 0.0, %v4554
      %v4556 = vpop.f32.mrf.mxu0
      %v4557 = vadd.f32 0.0, %v4556
      %4558 = vmatmul.bf16.gmra.mxu0 %v3192
      %v4559 = vpop.f32.mrf.mxu0
      %v4560 = vadd.f32 0.0, %v4559
      %v4561 = vpop.f32.mrf.mxu0
      %v4562 = vadd.f32 0.0, %v4561
      %4563 = vmatmul.bf16.gmra.mxu0 %v3195
      %v4564 = vpop.f32.mrf.mxu0
      %v4565 = vadd.f32 0.0, %v4564
      %v4566 = vpop.f32.mrf.mxu0
      %v4567 = vadd.f32 0.0, %v4566
      %4568 = vmatmul.bf16.gmra.mxu0 %v3198
      %v4569 = vpop.f32.mrf.mxu0
      %v4570 = vadd.f32 0.0, %v4569
      %v4571 = vpop.f32.mrf.mxu0
      %v4572 = vadd.f32 0.0, %v4571
      %4573 = vmatmul.bf16.gmra.mxu0 %v3201
      %v4574 = vpop.f32.mrf.mxu0
      %v4575 = vadd.f32 0.0, %v4574
      %v4576 = vpop.f32.mrf.mxu0
      %v4577 = vadd.f32 0.0, %v4576
      %4578 = vmatmul.bf16.gmra.mxu0 %v3204
      %v4579 = vpop.f32.mrf.mxu0
      %v4580 = vadd.f32 0.0, %v4579
      %v4581 = vpop.f32.mrf.mxu0
      %v4582 = vadd.f32 0.0, %v4581
      %4583 = vmatmul.bf16.gmra.mxu0 %v3207
      %v4584 = vpop.f32.mrf.mxu0
      %v4585 = vadd.f32 0.0, %v4584
      %v4586 = vpop.f32.mrf.mxu0
      %v4587 = vadd.f32 0.0, %v4586
      %4588 = vmatmul.bf16.gmra.mxu0 %v3210
      %v4589 = vpop.f32.mrf.mxu0
      %v4590 = vadd.f32 0.0, %v4589
      %v4591 = vpop.f32.mrf.mxu0
      %v4592 = vadd.f32 0.0, %v4591
      %4593 = vmatmul.bf16.gmra.mxu0 %v3213
      %v4594 = vpop.f32.mrf.mxu0
      %v4595 = vadd.f32 0.0, %v4594
      %v4596 = vpop.f32.mrf.mxu0
      %v4597 = vadd.f32 0.0, %v4596
      %4598 = vmatmul.bf16.gmra.mxu0 %v3216
      %v4599 = vpop.f32.mrf.mxu0
      %v4600 = vadd.f32 0.0, %v4599
      %v4601 = vpop.f32.mrf.mxu0
      %v4602 = vadd.f32 0.0, %v4601
      %4603 = vmatmul.bf16.gmra.mxu0 %v3219
      %v4604 = vpop.f32.mrf.mxu0
      %v4605 = vadd.f32 0.0, %v4604
      %v4606 = vpop.f32.mrf.mxu0
      %v4607 = vadd.f32 0.0, %v4606
      %4608 = vmatmul.bf16.gmra.mxu0 %v3222
      %v4609 = vpop.f32.mrf.mxu0
      %v4610 = vadd.f32 0.0, %v4609
      %v4611 = vpop.f32.mrf.mxu0
      %v4612 = vadd.f32 0.0, %v4611
      %4613 = vmatmul.bf16.gmra.mxu0 %v3225
      %v4614 = vpop.f32.mrf.mxu0
      %v4615 = vadd.f32 0.0, %v4614
      %v4616 = vpop.f32.mrf.mxu0
      %v4617 = vadd.f32 0.0, %v4616
      %4618 = vmatmul.bf16.gmra.mxu0 %v3228
      %v4619 = vpop.f32.mrf.mxu0
      %v4620 = vadd.f32 0.0, %v4619
      %v4621 = vpop.f32.mrf.mxu0
      %v4622 = vadd.f32 0.0, %v4621
      %4623 = vmatmul.bf16.gmra.mxu0 %v3231
      %v4624 = vpop.f32.mrf.mxu0
      %v4625 = vadd.f32 0.0, %v4624
      %v4626 = vpop.f32.mrf.mxu0
      %v4627 = vadd.f32 0.0, %v4626
      %4628 = vmatmul.bf16.gmra.mxu0 %v3234
      %v4629 = vpop.f32.mrf.mxu0
      %v4630 = vadd.f32 0.0, %v4629
      %v4631 = vpop.f32.mrf.mxu0
      %v4632 = vadd.f32 0.0, %v4631
      %4633 = vmatmul.bf16.gmra.mxu0 %v3237
      %v4634 = vpop.f32.mrf.mxu0
      %v4635 = vadd.f32 0.0, %v4634
      %v4636 = vpop.f32.mrf.mxu0
      %v4637 = vadd.f32 0.0, %v4636
      %4638 = vmatmul.bf16.gmra.mxu0 %v3240
      %v4639 = vpop.f32.mrf.mxu0
      %v4640 = vadd.f32 0.0, %v4639
      %v4641 = vpop.f32.mrf.mxu0
      %v4642 = vadd.f32 0.0, %v4641
      %4643 = vmatmul.bf16.gmra.mxu0 %v3243
      %v4644 = vpop.f32.mrf.mxu0
      %v4645 = vadd.f32 0.0, %v4644
      %v4646 = vpop.f32.mrf.mxu0
      %v4647 = vadd.f32 0.0, %v4646
      %4648 = vmatmul.bf16.gmra.mxu0 %v3246
      %v4649 = vpop.f32.mrf.mxu0
      %v4650 = vadd.f32 0.0, %v4649
      %v4651 = vpop.f32.mrf.mxu0
      %v4652 = vadd.f32 0.0, %v4651
      %4653 = vmatmul.bf16.gmra.mxu0 %v3249
      %v4654 = vpop.f32.mrf.mxu0
      %v4655 = vadd.f32 0.0, %v4654
      %v4656 = vpop.f32.mrf.mxu0
      %v4657 = vadd.f32 0.0, %v4656
      %4658 = vmatmul.bf16.gmra.mxu0 %v3252
      %v4659 = vpop.f32.mrf.mxu0
      %v4660 = vadd.f32 0.0, %v4659
      %v4661 = vpop.f32.mrf.mxu0
      %v4662 = vadd.f32 0.0, %v4661
      %4663 = vmatmul.bf16.gmra.mxu0 %v3255
      %v4664 = vpop.f32.mrf.mxu0
      %v4665 = vadd.f32 0.0, %v4664
      %v4666 = vpop.f32.mrf.mxu0
      %v4667 = vadd.f32 0.0, %v4666
      %4668 = vmatmul.bf16.gmra.mxu0 %v3258
      %v4669 = vpop.f32.mrf.mxu0
      %v4670 = vadd.f32 0.0, %v4669
      %v4671 = vpop.f32.mrf.mxu0
      %v4672 = vadd.f32 0.0, %v4671
      %4673 = vmatmul.bf16.gmra.mxu0 %v3261
      %v4674 = vpop.f32.mrf.mxu0
      %v4675 = vadd.f32 0.0, %v4674
      %v4676 = vpop.f32.mrf.mxu0
      %v4677 = vadd.f32 0.0, %v4676
      %4678 = vmatmul.bf16.gmra.mxu0 %v3264
      %v4679 = vpop.f32.mrf.mxu0
      %v4680 = vadd.f32 0.0, %v4679
      %v4681 = vpop.f32.mrf.mxu0
      %v4682 = vadd.f32 0.0, %v4681
      %4683 = vmatmul.bf16.gmra.mxu0 %v3267
      %v4684 = vpop.f32.mrf.mxu0
      %v4685 = vadd.f32 0.0, %v4684
      %v4686 = vpop.f32.mrf.mxu0
      %v4687 = vadd.f32 0.0, %v4686
      %4688 = vmatmul.bf16.gmra.mxu0 %v3270
      %v4689 = vpop.f32.mrf.mxu0
      %v4690 = vadd.f32 0.0, %v4689
      %v4691 = vpop.f32.mrf.mxu0
      %v4692 = vadd.f32 0.0, %v4691
      %4693 = vmatmul.bf16.gmra.mxu0 %v3273
      %v4694 = vpop.f32.mrf.mxu0
      %v4695 = vadd.f32 0.0, %v4694
      %v4696 = vpop.f32.mrf.mxu0
      %v4697 = vadd.f32 0.0, %v4696
      %4698 = vmatmul.bf16.gmra.mxu0 %v3276
      %v4699 = vpop.f32.mrf.mxu0
      %v4700 = vadd.f32 0.0, %v4699
      %v4701 = vpop.f32.mrf.mxu0
      %v4702 = vadd.f32 0.0, %v4701
      %4703 = vmatmul.bf16.gmra.mxu0 %v3279
      %v4704 = vpop.f32.mrf.mxu0
      %v4705 = vadd.f32 0.0, %v4704
      %v4706 = vpop.f32.mrf.mxu0
      %v4707 = vadd.f32 0.0, %v4706
      %4708 = vmatmul.bf16.gmra.mxu0 %v3282
      %v4709 = vpop.f32.mrf.mxu0
      %v4710 = vadd.f32 0.0, %v4709
      %v4711 = vpop.f32.mrf.mxu0
      %v4712 = vadd.f32 0.0, %v4711
      %4713 = vmatmul.bf16.gmra.mxu0 %v3285
      %v4714 = vpop.f32.mrf.mxu0
      %v4715 = vadd.f32 0.0, %v4714
      %v4716 = vpop.f32.mrf.mxu0
      %v4717 = vadd.f32 0.0, %v4716
      %4718 = vmatmul.bf16.gmra.mxu0 %v3288
      %v4719 = vpop.f32.mrf.mxu0
      %v4720 = vadd.f32 0.0, %v4719
      %v4721 = vpop.f32.mrf.mxu0
      %v4722 = vadd.f32 0.0, %v4721
      %4723 = vmatmul.bf16.gmra.mxu0 %v3291
      %v4724 = vpop.f32.mrf.mxu0
      %v4725 = vadd.f32 0.0, %v4724
      %v4726 = vpop.f32.mrf.mxu0
      %v4727 = vadd.f32 0.0, %v4726
      %4728 = vmatmul.bf16.gmra.mxu0 %v3294
      %v4729 = vpop.f32.mrf.mxu0
      %v4730 = vadd.f32 0.0, %v4729
      %v4731 = vpop.f32.mrf.mxu0
      %v4732 = vadd.f32 0.0, %v4731
      %4733 = vmatmul.bf16.gmra.mxu0 %v3297
      %v4734 = vpop.f32.mrf.mxu0
      %v4735 = vadd.f32 0.0, %v4734
      %v4736 = vpop.f32.mrf.mxu0
      %v4737 = vadd.f32 0.0, %v4736
      %4738 = vmatmul.bf16.gmra.mxu0 %v3300
      %v4739 = vpop.f32.mrf.mxu0
      %v4740 = vadd.f32 0.0, %v4739
      %v4741 = vpop.f32.mrf.mxu0
      %v4742 = vadd.f32 0.0, %v4741
      %4743 = vmatmul.bf16.gmra.mxu0 %v3303
      %v4744 = vpop.f32.mrf.mxu0
      %v4745 = vadd.f32 0.0, %v4744
      %v4746 = vpop.f32.mrf.mxu0
      %v4747 = vadd.f32 0.0, %v4746
      %4748 = vmatmul.bf16.gmra.mxu0 %v3306
      %v4749 = vpop.f32.mrf.mxu0
      %v4750 = vadd.f32 0.0, %v4749
      %v4751 = vpop.f32.mrf.mxu0
      %v4752 = vadd.f32 0.0, %v4751
      %4753 = vmatmul.bf16.gmra.mxu0 %v3309
      %v4754 = vpop.f32.mrf.mxu0
      %v4755 = vadd.f32 0.0, %v4754
      %v4756 = vpop.f32.mrf.mxu0
      %v4757 = vadd.f32 0.0, %v4756
      %4758 = vmatmul.bf16.gmra.mxu0 %v3312
      %v4759 = vpop.f32.mrf.mxu0
      %v4760 = vadd.f32 0.0, %v4759
      %v4761 = vpop.f32.mrf.mxu0
      %v4762 = vadd.f32 0.0, %v4761
      %4763 = vmatmul.bf16.gmra.mxu0 %v3315
      %v4764 = vpop.f32.mrf.mxu0
      %v4765 = vadd.f32 0.0, %v4764
      %v4766 = vpop.f32.mrf.mxu0
      %v4767 = vadd.f32 0.0, %v4766
      %4768 = vmatmul.bf16.gmra.mxu0 %v3318
      %v4769 = vpop.f32.mrf.mxu0
      %v4770 = vadd.f32 0.0, %v4769
      %v4771 = vpop.f32.mrf.mxu0
      %v4772 = vadd.f32 0.0, %v4771
      %4773 = vmatmul.bf16.gmra.mxu0 %v3321
      %v4774 = vpop.f32.mrf.mxu0
      %v4775 = vadd.f32 0.0, %v4774
      %v4776 = vpop.f32.mrf.mxu0
      %v4777 = vadd.f32 0.0, %v4776
      %4778 = vmatmul.bf16.gmra.mxu0 %v3324
      %v4779 = vpop.f32.mrf.mxu0
      %v4780 = vadd.f32 0.0, %v4779
      %v4781 = vpop.f32.mrf.mxu0
      %v4782 = vadd.f32 0.0, %v4781
      %4783 = vmatmul.bf16.gmra.mxu0 %v3327
      %v4784 = vpop.f32.mrf.mxu0
      %v4785 = vadd.f32 0.0, %v4784
      %v4786 = vpop.f32.mrf.mxu0
      %v4787 = vadd.f32 0.0, %v4786
      %4788 = vmatmul.bf16.gmra.mxu0 %v3330
      %v4789 = vpop.f32.mrf.mxu0
      %v4790 = vadd.f32 0.0, %v4789
      %v4791 = vpop.f32.mrf.mxu0
      %v4792 = vadd.f32 0.0, %v4791
      %4793 = vmatmul.bf16.gmra.mxu0 %v3333
      %v4794 = vpop.f32.mrf.mxu0
      %v4795 = vadd.f32 0.0, %v4794
      %v4796 = vpop.f32.mrf.mxu0
      %v4797 = vadd.f32 0.0, %v4796
      %4798 = vmatmul.bf16.gmra.mxu0 %v3336
      %v4799 = vpop.f32.mrf.mxu0
      %v4800 = vadd.f32 0.0, %v4799
      %v4801 = vpop.f32.mrf.mxu0
      %v4802 = vadd.f32 0.0, %v4801
      %4803 = vmatmul.bf16.gmra.mxu0 %v3339
      %v4804 = vpop.f32.mrf.mxu0
      %v4805 = vadd.f32 0.0, %v4804
      %v4806 = vpop.f32.mrf.mxu0
      %v4807 = vadd.f32 0.0, %v4806
      %4808 = vmatmul.bf16.gmra.mxu0 %v3342
      %v4809 = vpop.f32.mrf.mxu0
      %v4810 = vadd.f32 0.0, %v4809
      %v4811 = vpop.f32.mrf.mxu0
      %v4812 = vadd.f32 0.0, %v4811
      %4813 = vmatmul.bf16.gmra.mxu0 %v3345
      %v4814 = vpop.f32.mrf.mxu0
      %v4815 = vadd.f32 0.0, %v4814
      %v4816 = vpop.f32.mrf.mxu0
      %v4817 = vadd.f32 0.0, %v4816
      %4818 = vmatmul.bf16.gmra.mxu0 %v3348
      %v4819 = vpop.f32.mrf.mxu0
      %v4820 = vadd.f32 0.0, %v4819
      %v4821 = vpop.f32.mrf.mxu0
      %v4822 = vadd.f32 0.0, %v4821
      %4823 = vmatmul.bf16.gmra.mxu0 %v3351
      %v4824 = vpop.f32.mrf.mxu0
      %v4825 = vadd.f32 0.0, %v4824
      %v4826 = vpop.f32.mrf.mxu0
      %v4827 = vadd.f32 0.0, %v4826
      %4828 = vmatmul.bf16.gmra.mxu0 %v3354
      %v4829 = vpop.f32.mrf.mxu0
      %v4830 = vadd.f32 0.0, %v4829
      %v4831 = vpop.f32.mrf.mxu0
      %v4832 = vadd.f32 0.0, %v4831
      %4833 = vmatmul.bf16.gmra.mxu0 %v3357
      %v4834 = vpop.f32.mrf.mxu0
      %v4835 = vadd.f32 0.0, %v4834
      %v4836 = vpop.f32.mrf.mxu0
      %v4837 = vadd.f32 0.0, %v4836
      %4838 = vmatmul.bf16.gmra.mxu0 %v3360
      %v4839 = vpop.f32.mrf.mxu0
      %v4840 = vadd.f32 0.0, %v4839
      %v4841 = vpop.f32.mrf.mxu0
      %v4842 = vadd.f32 0.0, %v4841
      %4843 = vmatmul.bf16.gmra.mxu0 %v3363
      %v4844 = vpop.f32.mrf.mxu0
      %v4845 = vadd.f32 0.0, %v4844
      %v4846 = vpop.f32.mrf.mxu0
      %v4847 = vadd.f32 0.0, %v4846
      %4848 = vmatmul.bf16.gmra.mxu0 %v3366
      %v4849 = vpop.f32.mrf.mxu0
      %v4850 = vadd.f32 0.0, %v4849
      %v4851 = vpop.f32.mrf.mxu0
      %v4852 = vadd.f32 0.0, %v4851
      %4853 = vmatmul.bf16.gmra.mxu0 %v3369
      %v4854 = vpop.f32.mrf.mxu0
      %v4855 = vadd.f32 0.0, %v4854
      %v4856 = vpop.f32.mrf.mxu0
      %v4857 = vadd.f32 0.0, %v4856
      %4858 = vmatmul.bf16.gmra.mxu0 %v3372
      %v4859 = vpop.f32.mrf.mxu0
      %v4860 = vadd.f32 0.0, %v4859
      %v4861 = vpop.f32.mrf.mxu0
      %v4862 = vadd.f32 0.0, %v4861
      %4863 = vmatmul.bf16.gmra.mxu0 %v3375
      %v4864 = vpop.f32.mrf.mxu0
      %v4865 = vadd.f32 0.0, %v4864
      %v4866 = vpop.f32.mrf.mxu0
      %v4867 = vadd.f32 0.0, %v4866
      %4868 = vmatmul.bf16.gmra.mxu0 %v3378
      %v4869 = vpop.f32.mrf.mxu0
      %v4870 = vadd.f32 0.0, %v4869
      %v4871 = vpop.f32.mrf.mxu0
      %v4872 = vadd.f32 0.0, %v4871
      %4873 = vmatmul.bf16.gmra.mxu0 %v3381
      %v4874 = vpop.f32.mrf.mxu0
      %v4875 = vadd.f32 0.0, %v4874
      %v4876 = vpop.f32.mrf.mxu0
      %v4877 = vadd.f32 0.0, %v4876
      %4878 = vmatmul.bf16.gmra.mxu0 %v3384
      %v4879 = vpop.f32.mrf.mxu0
      %v4880 = vadd.f32 0.0, %v4879
      %v4881 = vpop.f32.mrf.mxu0
      %v4882 = vadd.f32 0.0, %v4881
      %4883 = vmatmul.bf16.gmra.mxu0 %v3387
      %v4884 = vpop.f32.mrf.mxu0
      %v4885 = vadd.f32 0.0, %v4884
      %v4886 = vpop.f32.mrf.mxu0
      %v4887 = vadd.f32 0.0, %v4886
      %4888 = vmatmul.bf16.gmra.mxu0 %v3390
      %v4889 = vpop.f32.mrf.mxu0
      %v4890 = vadd.f32 0.0, %v4889
      %v4891 = vpop.f32.mrf.mxu0
      %v4892 = vadd.f32 0.0, %v4891
      %4893 = vmatmul.bf16.gmra.mxu0 %v3393
      %v4894 = vpop.f32.mrf.mxu0
      %v4895 = vadd.f32 0.0, %v4894
      %v4896 = vpop.f32.mrf.mxu0
      %v4897 = vadd.f32 0.0, %v4896
      %4898 = vmatmul.bf16.gmra.mxu0 %v3396
      %v4899 = vpop.f32.mrf.mxu0
      %v4900 = vadd.f32 0.0, %v4899
      %v4901 = vpop.f32.mrf.mxu0
      %v4902 = vadd.f32 0.0, %v4901
      %4903 = vmatmul.bf16.gmra.mxu0 %v3399
      %v4904 = vpop.f32.mrf.mxu0
      %v4905 = vadd.f32 0.0, %v4904
      %v4906 = vpop.f32.mrf.mxu0
      %v4907 = vadd.f32 0.0, %v4906
      %4908 = vmatmul.bf16.gmra.mxu0 %v3402
      %v4909 = vpop.f32.mrf.mxu0
      %v4910 = vadd.f32 0.0, %v4909
      %v4911 = vpop.f32.mrf.mxu0
      %v4912 = vadd.f32 0.0, %v4911
      %4913 = vmatmul.bf16.gmra.mxu0 %v3405
      %v4914 = vpop.f32.mrf.mxu0
      %v4915 = vadd.f32 0.0, %v4914
      %v4916 = vpop.f32.mrf.mxu0
      %v4917 = vadd.f32 0.0, %v4916
      %4918 = vmatmul.bf16.gmra.mxu0 %v3408
      %v4919 = vpop.f32.mrf.mxu0
      %v4920 = vadd.f32 0.0, %v4919
      %v4921 = vpop.f32.mrf.mxu0
      %v4922 = vadd.f32 0.0, %v4921
      %4923 = vmatmul.bf16.gmra.mxu0 %v3411
      %v4924 = vpop.f32.mrf.mxu0
      %v4925 = vadd.f32 0.0, %v4924
      %v4926 = vpop.f32.mrf.mxu0
      %v4927 = vadd.f32 0.0, %v4926
      %4928 = vmatmul.bf16.gmra.mxu0 %v3414
      %v4929 = vpop.f32.mrf.mxu0
      %v4930 = vadd.f32 0.0, %v4929
      %v4931 = vpop.f32.mrf.mxu0
      %v4932 = vadd.f32 0.0, %v4931
      %4933 = vmatmul.bf16.gmra.mxu0 %v3417
      %v4934 = vpop.f32.mrf.mxu0
      %v4935 = vadd.f32 0.0, %v4934
      %v4936 = vpop.f32.mrf.mxu0
      %v4937 = vadd.f32 0.0, %v4936
      %4938 = vmatmul.bf16.gmra.mxu0 %v3420
      %v4939 = vpop.f32.mrf.mxu0
      %v4940 = vadd.f32 0.0, %v4939
      %v4941 = vpop.f32.mrf.mxu0
      %v4942 = vadd.f32 0.0, %v4941
      %4943 = vmatmul.bf16.gmra.mxu0 %v3423
      %v4944 = vpop.f32.mrf.mxu0
      %v4945 = vadd.f32 0.0, %v4944
      %v4946 = vpop.f32.mrf.mxu0
      %v4947 = vadd.f32 0.0, %v4946
      %4948 = vmatmul.bf16.gmra.mxu0 %v3426
      %v4949 = vpop.f32.mrf.mxu0
      %v4950 = vadd.f32 0.0, %v4949
      %v4951 = vpop.f32.mrf.mxu0
      %v4952 = vadd.f32 0.0, %v4951
      %4953 = vmatmul.bf16.gmra.mxu0 %v3429
      %v4954 = vpop.f32.mrf.mxu0
      %v4955 = vadd.f32 0.0, %v4954
      %v4956 = vpop.f32.mrf.mxu0
      %v4957 = vadd.f32 0.0, %v4956
      %4958 = vmatmul.bf16.gmra.mxu0 %v3432
      %v4959 = vpop.f32.mrf.mxu0
      %v4960 = vadd.f32 0.0, %v4959
      %v4961 = vpop.f32.mrf.mxu0
      %v4962 = vadd.f32 0.0, %v4961
      %4963 = vmatmul.bf16.gmra.mxu0 %v3435
      %v4964 = vpop.f32.mrf.mxu0
      %v4965 = vadd.f32 0.0, %v4964
      %v4966 = vpop.f32.mrf.mxu0
      %v4967 = vadd.f32 0.0, %v4966
      %4968 = vmatmul.bf16.gmra.mxu0 %v3438
      %v4969 = vpop.f32.mrf.mxu0
      %v4970 = vadd.f32 0.0, %v4969
      %v4971 = vpop.f32.mrf.mxu0
      %v4972 = vadd.f32 0.0, %v4971
      %4973 = vmatmul.bf16.gmra.mxu0 %v3441
      %v4974 = vpop.f32.mrf.mxu0
      %v4975 = vadd.f32 0.0, %v4974
      %v4976 = vpop.f32.mrf.mxu0
      %v4977 = vadd.f32 0.0, %v4976
      %4978 = vmatmul.bf16.gmra.mxu0 %v3444
      %v4979 = vpop.f32.mrf.mxu0
      %v4980 = vadd.f32 0.0, %v4979
      %v4981 = vpop.f32.mrf.mxu0
      %v4982 = vadd.f32 0.0, %v4981
      %4983 = vmatmul.bf16.gmra.mxu0 %v3447
      %v4984 = vpop.f32.mrf.mxu0
      %v4985 = vadd.f32 0.0, %v4984
      %v4986 = vpop.f32.mrf.mxu0
      %v4987 = vadd.f32 0.0, %v4986
      %4988 = vmatmul.bf16.gmra.mxu0 %v3450
      %v4989 = vpop.f32.mrf.mxu0
      %v4990 = vadd.f32 0.0, %v4989
      %v4991 = vpop.f32.mrf.mxu0
      %v4992 = vadd.f32 0.0, %v4991
      %4993 = vmatmul.bf16.gmra.mxu0 %v3453
      %v4994 = vpop.f32.mrf.mxu0
      %v4995 = vadd.f32 0.0, %v4994
      %v4996 = vpop.f32.mrf.mxu0
      %v4997 = vadd.f32 0.0, %v4996
      %4998 = vmatmul.bf16.gmra.mxu0 %v3456
      %v4999 = vpop.f32.mrf.mxu0
      %v5000 = vadd.f32 0.0, %v4999
      %v5001 = vpop.f32.mrf.mxu0
      %v5002 = vadd.f32 0.0, %v5001
      %5003 = vmatmul.bf16.gmra.mxu0 %v3459
      %v5004 = vpop.f32.mrf.mxu0
      %v5005 = vadd.f32 0.0, %v5004
      %v5006 = vpop.f32.mrf.mxu0
      %v5007 = vadd.f32 0.0, %v5006
      %5008 = vmatmul.bf16.gmra.mxu0 %v3462
      %v5009 = vpop.f32.mrf.mxu0
      %v5010 = vadd.f32 0.0, %v5009
      %v5011 = vpop.f32.mrf.mxu0
      %v5012 = vadd.f32 0.0, %v5011
      %5013 = vmatmul.bf16.gmra.mxu0 %v3465
      %v5014 = vpop.f32.mrf.mxu0
      %v5015 = vadd.f32 0.0, %v5014
      %v5016 = vpop.f32.mrf.mxu0
      %v5017 = vadd.f32 0.0, %v5016
      %5018 = vmatmul.bf16.gmra.mxu0 %v3468
      %v5019 = vpop.f32.mrf.mxu0
      %v5020 = vadd.f32 0.0, %v5019
      %v5021 = vpop.f32.mrf.mxu0
      %v5022 = vadd.f32 0.0, %v5021
      %5023 = vmatmul.bf16.gmra.mxu0 %v3471
      %v5024 = vpop.f32.mrf.mxu0
      %v5025 = vadd.f32 0.0, %v5024
      %v5026 = vpop.f32.mrf.mxu0
      %v5027 = vadd.f32 0.0, %v5026
      %5028 = vmatmul.bf16.gmra.mxu0 %v3474
      %v5029 = vpop.f32.mrf.mxu0
      %v5030 = vadd.f32 0.0, %v5029
      %v5031 = vpop.f32.mrf.mxu0
      %v5032 = vadd.f32 0.0, %v5031
      %5033 = vmatmul.bf16.gmra.mxu0 %v3477
      %v5034 = vpop.f32.mrf.mxu0
      %v5035 = vadd.f32 0.0, %v5034
      %v5036 = vpop.f32.mrf.mxu0
      %v5037 = vadd.f32 0.0, %v5036
      %5038 = vmatmul.bf16.gmra.mxu0 %v3480
      %v5039 = vpop.f32.mrf.mxu0
      %v5040 = vadd.f32 0.0, %v5039
      %v5041 = vpop.f32.mrf.mxu0
      %v5042 = vadd.f32 0.0, %v5041
      %5043 = vmatmul.bf16.gmra.mxu0 %v3483
      %v5044 = vpop.f32.mrf.mxu0
      %v5045 = vadd.f32 0.0, %v5044
      %v5046 = vpop.f32.mrf.mxu0
      %v5047 = vadd.f32 0.0, %v5046
      %5048 = vmatmul.bf16.gmra.mxu0 %v3486
      %v5049 = vpop.f32.mrf.mxu0
      %v5050 = vadd.f32 0.0, %v5049
      %v5051 = vpop.f32.mrf.mxu0
      %v5052 = vadd.f32 0.0, %v5051
      %5053 = vmatmul.bf16.gmra.mxu0 %v3489
      %v5054 = vpop.f32.mrf.mxu0
      %v5055 = vadd.f32 0.0, %v5054
      %v5056 = vpop.f32.mrf.mxu0
      %v5057 = vadd.f32 0.0, %v5056
      %5058 = vmatmul.bf16.gmra.mxu0 %v3492
      %v5059 = vpop.f32.mrf.mxu0
      %v5060 = vadd.f32 0.0, %v5059
      %v5061 = vpop.f32.mrf.mxu0
      %v5062 = vadd.f32 0.0, %v5061
      %5063 = vmatmul.bf16.gmra.mxu0 %v3495
      %v5064 = vpop.f32.mrf.mxu0
      %v5065 = vadd.f32 0.0, %v5064
      %v5066 = vpop.f32.mrf.mxu0
      %v5067 = vadd.f32 0.0, %v5066
      %5068 = vmatmul.bf16.gmra.mxu0 %v3498
      %v5069 = vpop.f32.mrf.mxu0
      %v5070 = vadd.f32 0.0, %v5069
      %v5071 = vpop.f32.mrf.mxu0
      %v5072 = vadd.f32 0.0, %v5071
      %5073 = vmatmul.bf16.gmra.mxu0 %v3501
      %v5074 = vpop.f32.mrf.mxu0
      %v5075 = vadd.f32 0.0, %v5074
      %v5076 = vpop.f32.mrf.mxu0
      %v5077 = vadd.f32 0.0, %v5076
      %5078 = vmatmul.bf16.gmra.mxu0 %v3504
      %v5079 = vpop.f32.mrf.mxu0
      %v5080 = vadd.f32 0.0, %v5079
      %v5081 = vpop.f32.mrf.mxu0
      %v5082 = vadd.f32 0.0, %v5081
      %5083 = vmatmul.bf16.gmra.mxu0 %v3507
      %v5084 = vpop.f32.mrf.mxu0
      %v5085 = vadd.f32 0.0, %v5084
      %v5086 = vpop.f32.mrf.mxu0
      %v5087 = vadd.f32 0.0, %v5086
      %5088 = vmatmul.bf16.gmra.mxu0 %v3510
      %v5089 = vpop.f32.mrf.mxu0
      %v5090 = vadd.f32 0.0, %v5089
      %v5091 = vpop.f32.mrf.mxu0
      %v5092 = vadd.f32 0.0, %v5091
      %5093 = vmatmul.bf16.gmra.mxu0 %v3513
      %v5094 = vpop.f32.mrf.mxu0
      %v5095 = vadd.f32 0.0, %v5094
      %v5096 = vpop.f32.mrf.mxu0
      %v5097 = vadd.f32 0.0, %v5096
      %5098 = vmatmul.bf16.gmra.mxu0 %v3516
      %v5099 = vpop.f32.mrf.mxu0
      %v5100 = vadd.f32 0.0, %v5099
      %v5101 = vpop.f32.mrf.mxu0
      %v5102 = vadd.f32 0.0, %v5101
      %5103 = vmatmul.bf16.gmra.mxu0 %v3519
      %v5104 = vpop.f32.mrf.mxu0
      %v5105 = vadd.f32 0.0, %v5104
      %v5106 = vpop.f32.mrf.mxu0
      %v5107 = vadd.f32 0.0, %v5106
      %5108 = vmatmul.bf16.gmra.mxu0 %v3522
      %v5109 = vpop.f32.mrf.mxu0
      %v5110 = vadd.f32 0.0, %v5109
      %v5111 = vpop.f32.mrf.mxu0
      %v5112 = vadd.f32 0.0, %v5111
      %5113 = vmatmul.bf16.gmra.mxu0 %v3525
      %v5114 = vpop.f32.mrf.mxu0
      %v5115 = vadd.f32 0.0, %v5114
      %v5116 = vpop.f32.mrf.mxu0
      %v5117 = vadd.f32 0.0, %v5116
      %5118 = vmatmul.bf16.gmra.mxu0 %v3528
      %v5119 = vpop.f32.mrf.mxu0
      %v5120 = vadd.f32 0.0, %v5119
      %v5121 = vpop.f32.mrf.mxu0
      %v5122 = vadd.f32 0.0, %v5121
      %5123 = vmatmul.bf16.gmra.mxu0 %v3531
      %v5124 = vpop.f32.mrf.mxu0
      %v5125 = vadd.f32 0.0, %v5124
      %v5126 = vpop.f32.mrf.mxu0
      %v5127 = vadd.f32 0.0, %v5126
      %5128 = vmatmul.bf16.gmra.mxu0 %v3534
      %v5129 = vpop.f32.mrf.mxu0
      %v5130 = vadd.f32 0.0, %v5129
      %v5131 = vpop.f32.mrf.mxu0
      %v5132 = vadd.f32 0.0, %v5131
      %5133 = vmatmul.bf16.gmra.mxu0 %v3537
      %v5134 = vpop.f32.mrf.mxu0
      %v5135 = vadd.f32 0.0, %v5134
      %v5136 = vpop.f32.mrf.mxu0
      %v5137 = vadd.f32 0.0, %v5136
      %5138 = vmatmul.bf16.gmra.mxu0 %v3540
      %v5139 = vpop.f32.mrf.mxu0
      %v5140 = vadd.f32 0.0, %v5139
      %v5141 = vpop.f32.mrf.mxu0
      %v5142 = vadd.f32 0.0, %v5141
      %5143 = vmatmul.bf16.gmra.mxu0 %v3543
      %v5144 = vpop.f32.mrf.mxu0
      %v5145 = vadd.f32 0.0, %v5144
      %v5146 = vpop.f32.mrf.mxu0
      %v5147 = vadd.f32 0.0, %v5146
      %5148 = vmatmul.bf16.gmra.mxu0 %v3546
      %v5149 = vpop.f32.mrf.mxu0
      %v5150 = vadd.f32 0.0, %v5149
      %v5151 = vpop.f32.mrf.mxu0
      %v5152 = vadd.f32 0.0, %v5151
      %5153 = vmatmul.bf16.gmra.mxu0 %v3549
      %v5154 = vpop.f32.mrf.mxu0
      %v5155 = vadd.f32 0.0, %v5154
      %v5156 = vpop.f32.mrf.mxu0
      %v5157 = vadd.f32 0.0, %v5156
      %5158 = vmatmul.bf16.gmra.mxu0 %v3552
      %v5159 = vpop.f32.mrf.mxu0
      %v5160 = vadd.f32 0.0, %v5159
      %v5161 = vpop.f32.mrf.mxu0
      %v5162 = vadd.f32 0.0, %v5161
      %5163 = vmatmul.bf16.gmra.mxu0 %v3555
      %v5164 = vpop.f32.mrf.mxu0
      %v5165 = vadd.f32 0.0, %v5164
      %v5166 = vpop.f32.mrf.mxu0
      %v5167 = vadd.f32 0.0, %v5166
      %5168 = vmatmul.bf16.gmra.mxu0 %v3558
      %v5169 = vpop.f32.mrf.mxu0
      %v5170 = vadd.f32 0.0, %v5169
      %v5171 = vpop.f32.mrf.mxu0
      %v5172 = vadd.f32 0.0, %v5171
      %5173 = vmatmul.bf16.gmra.mxu0 %v3561
      %v5174 = vpop.f32.mrf.mxu0
      %v5175 = vadd.f32 0.0, %v5174
      %v5176 = vpop.f32.mrf.mxu0
      %v5177 = vadd.f32 0.0, %v5176
      %5178 = vmatmul.bf16.gmra.mxu0 %v3564
      %v5179 = vpop.f32.mrf.mxu0
      %v5180 = vadd.f32 0.0, %v5179
      %v5181 = vpop.f32.mrf.mxu0
      %v5182 = vadd.f32 0.0, %v5181
      %5183 = vmatmul.bf16.gmra.mxu0 %v3567
      %v5184 = vpop.f32.mrf.mxu0
      %v5185 = vadd.f32 0.0, %v5184
      %v5186 = vpop.f32.mrf.mxu0
      %v5187 = vadd.f32 0.0, %v5186
      %5188 = vmatmul.bf16.gmra.mxu0 %v3570
      %v5189 = vpop.f32.mrf.mxu0
      %v5190 = vadd.f32 0.0, %v5189
      %v5191 = vpop.f32.mrf.mxu0
      %v5192 = vadd.f32 0.0, %v5191
      %5193 = vmatmul.bf16.gmra.mxu0 %v3573
      %v5194 = vpop.f32.mrf.mxu0
      %v5195 = vadd.f32 0.0, %v5194
      %v5196 = vpop.f32.mrf.mxu0
      %v5197 = vadd.f32 0.0, %v5196
      %5198 = vmatmul.bf16.gmra.mxu0 %v3576
      %v5199 = vpop.f32.mrf.mxu0
      %v5200 = vadd.f32 0.0, %v5199
      %v5201 = vpop.f32.mrf.mxu0
      %v5202 = vadd.f32 0.0, %v5201
      %5203 = vmatmul.bf16.gmra.mxu0 %v3579
      %v5204 = vpop.f32.mrf.mxu0
      %v5205 = vadd.f32 0.0, %v5204
      %v5206 = vpop.f32.mrf.mxu0
      %v5207 = vadd.f32 0.0, %v5206
      %5208 = vmatmul.bf16.gmra.mxu0 %v3582
      %v5209 = vpop.f32.mrf.mxu0
      %v5210 = vadd.f32 0.0, %v5209
      %v5211 = vpop.f32.mrf.mxu0
      %v5212 = vadd.f32 0.0, %v5211
      %5213 = vmatmul.bf16.gmra.mxu0 %v3585
      %v5214 = vpop.f32.mrf.mxu0
      %v5215 = vadd.f32 0.0, %v5214
      %v5216 = vpop.f32.mrf.mxu0
      %v5217 = vadd.f32 0.0, %v5216
      %5218 = vmatmul.bf16.gmra.mxu0 %v3588
      %v5219 = vpop.f32.mrf.mxu0
      %v5220 = vadd.f32 0.0, %v5219
      %v5221 = vpop.f32.mrf.mxu0
      %v5222 = vadd.f32 0.0, %v5221
      %5223 = vmatmul.bf16.gmra.mxu0 %v3591
      %v5224 = vpop.f32.mrf.mxu0
      %v5225 = vadd.f32 0.0, %v5224
      %v5226 = vpop.f32.mrf.mxu0
      %v5227 = vadd.f32 0.0, %v5226
      %5228 = vmatmul.bf16.gmra.mxu0 %v3594
      %v5229 = vpop.f32.mrf.mxu0
      %v5230 = vadd.f32 0.0, %v5229
      %v5231 = vpop.f32.mrf.mxu0
      %v5232 = vadd.f32 0.0, %v5231
      %5233 = vmatmul.bf16.gmra.mxu0 %v3597
      %v5234 = vpop.f32.mrf.mxu0
      %v5235 = vadd.f32 0.0, %v5234
      %v5236 = vpop.f32.mrf.mxu0
      %v5237 = vadd.f32 0.0, %v5236
      %5238 = vmatmul.bf16.gmra.mxu0 %v3600
      %v5239 = vpop.f32.mrf.mxu0
      %v5240 = vadd.f32 0.0, %v5239
      %v5241 = vpop.f32.mrf.mxu0
      %v5242 = vadd.f32 0.0, %v5241
      %5243 = vmatmul.bf16.gmra.mxu0 %v3603
      %v5244 = vpop.f32.mrf.mxu0
      %v5245 = vadd.f32 0.0, %v5244
      %v5246 = vpop.f32.mrf.mxu0
      %v5247 = vadd.f32 0.0, %v5246
      %5248 = vmatmul.bf16.gmra.mxu0 %v3606
      %v5249 = vpop.f32.mrf.mxu0
      %v5250 = vadd.f32 0.0, %v5249
      %v5251 = vpop.f32.mrf.mxu0
      %v5252 = vadd.f32 0.0, %v5251
      %5253 = vmatmul.bf16.gmra.mxu0 %v3609
      %v5254 = vpop.f32.mrf.mxu0
      %v5255 = vadd.f32 0.0, %v5254
      %v5256 = vpop.f32.mrf.mxu0
      %v5257 = vadd.f32 0.0, %v5256
      %5258 = vmatmul.bf16.gmra.mxu0 %v3612
      %v5259 = vpop.f32.mrf.mxu0
      %v5260 = vadd.f32 0.0, %v5259
      %v5261 = vpop.f32.mrf.mxu0
      %v5262 = vadd.f32 0.0, %v5261
      %5263 = vmatmul.bf16.gmra.mxu0 %v3615
      %v5264 = vpop.f32.mrf.mxu0
      %v5265 = vadd.f32 0.0, %v5264
      %v5266 = vpop.f32.mrf.mxu0
      %v5267 = vadd.f32 0.0, %v5266
      %5268 = vmatmul.bf16.gmra.mxu0 %v3618
      %v5269 = vpop.f32.mrf.mxu0
      %v5270 = vadd.f32 0.0, %v5269
      %v5271 = vpop.f32.mrf.mxu0
      %v5272 = vadd.f32 0.0, %v5271
      %5273 = vmatmul.bf16.gmra.mxu0 %v3621
      %v5274 = vpop.f32.mrf.mxu0
      %v5275 = vadd.f32 0.0, %v5274
      %v5276 = vpop.f32.mrf.mxu0
      %v5277 = vadd.f32 0.0, %v5276
      %5278 = vmatmul.bf16.gmra.mxu0 %v3624
      %v5279 = vpop.f32.mrf.mxu0
      %v5280 = vadd.f32 0.0, %v5279
      %v5281 = vpop.f32.mrf.mxu0
      %v5282 = vadd.f32 0.0, %v5281
      %5283 = vmatmul.bf16.gmra.mxu0 %v3627
      %v5284 = vpop.f32.mrf.mxu0
      %v5285 = vadd.f32 0.0, %v5284
      %v5286 = vpop.f32.mrf.mxu0
      %v5287 = vadd.f32 0.0, %v5286
      %5288 = vmatmul.bf16.gmra.mxu0 %v3630
      %v5289 = vpop.f32.mrf.mxu0
      %v5290 = vadd.f32 0.0, %v5289
      %v5291 = vpop.f32.mrf.mxu0
      %v5292 = vadd.f32 0.0, %v5291
      %5293 = vmatmul.bf16.gmra.mxu0 %v3633
      %v5294 = vpop.f32.mrf.mxu0
      %v5295 = vadd.f32 0.0, %v5294
      %v5296 = vpop.f32.mrf.mxu0
      %v5297 = vadd.f32 0.0, %v5296
      %5298 = vmatmul.bf16.gmra.mxu0 %v3636
      %v5299 = vpop.f32.mrf.mxu0
      %v5300 = vadd.f32 0.0, %v5299
      %v5301 = vpop.f32.mrf.mxu0
      %v5302 = vadd.f32 0.0, %v5301
      %5303 = vmatmul.bf16.gmra.mxu0 %v3639
      %v5304 = vpop.f32.mrf.mxu0
      %v5305 = vadd.f32 0.0, %v5304
      %v5306 = vpop.f32.mrf.mxu0
      %v5307 = vadd.f32 0.0, %v5306
      %5308 = vmatmul.bf16.gmra.mxu0 %v3642
      %v5309 = vpop.f32.mrf.mxu0
      %v5310 = vadd.f32 0.0, %v5309
      %v5311 = vpop.f32.mrf.mxu0
      %v5312 = vadd.f32 0.0, %v5311
      %5313 = vmatmul.bf16.gmra.mxu0 %v3645
      %v5314 = vpop.f32.mrf.mxu0
      %v5315 = vadd.f32 0.0, %v5314
      %v5316 = vpop.f32.mrf.mxu0
      %v5317 = vadd.f32 0.0, %v5316
      %5318 = vmatmul.bf16.gmra.mxu0 %v3648
      %v5319 = vpop.f32.mrf.mxu0
      %v5320 = vadd.f32 0.0, %v5319
      %v5321 = vpop.f32.mrf.mxu0
      %v5322 = vadd.f32 0.0, %v5321
      %5323 = vmatmul.bf16.gmra.mxu0 %v3651
      %v5324 = vpop.f32.mrf.mxu0
      %v5325 = vadd.f32 0.0, %v5324
      %v5326 = vpop.f32.mrf.mxu0
      %v5327 = vadd.f32 0.0, %v5326
      %5328 = vmatmul.bf16.gmra.mxu0 %v3654
      %v5329 = vpop.f32.mrf.mxu0
      %v5330 = vadd.f32 0.0, %v5329
      %v5331 = vpop.f32.mrf.mxu0
      %v5332 = vadd.f32 0.0, %v5331
      %5333 = vmatmul.bf16.gmra.mxu0 %v3657
      %v5334 = vpop.f32.mrf.mxu0
      %v5335 = vadd.f32 0.0, %v5334
      %v5336 = vpop.f32.mrf.mxu0
      %v5337 = vadd.f32 0.0, %v5336
      %5338 = vmatmul.bf16.gmra.mxu0 %v3660
      %v5339 = vpop.f32.mrf.mxu0
      %v5340 = vadd.f32 0.0, %v5339
      %v5341 = vpop.f32.mrf.mxu0
      %v5342 = vadd.f32 0.0, %v5341
      %5343 = vmatmul.bf16.gmra.mxu0 %v3663
      %v5344 = vpop.f32.mrf.mxu0
      %v5345 = vadd.f32 0.0, %v5344
      %v5346 = vpop.f32.mrf.mxu0
      %v5347 = vadd.f32 0.0, %v5346
      %5348 = vmatmul.bf16.gmra.mxu0 %v3666
      %v5349 = vpop.f32.mrf.mxu0
      %v5350 = vadd.f32 0.0, %v5349
      %v5351 = vpop.f32.mrf.mxu0
      %v5352 = vadd.f32 0.0, %v5351
      %5353 = vmatmul.bf16.gmra.mxu0 %v3669
      %v5354 = vpop.f32.mrf.mxu0
      %v5355 = vadd.f32 0.0, %v5354
      %v5356 = vpop.f32.mrf.mxu0
      %v5357 = vadd.f32 0.0, %v5356
      %5358 = vmatmul.bf16.gmra.mxu0 %v3672
      %v5359 = vpop.f32.mrf.mxu0
      %v5360 = vadd.f32 0.0, %v5359
      %v5361 = vpop.f32.mrf.mxu0
      %v5362 = vadd.f32 0.0, %v5361
      %5363 = vmatmul.bf16.gmra.mxu0 %v3675
      %v5364 = vpop.f32.mrf.mxu0
      %v5365 = vadd.f32 0.0, %v5364
      %v5366 = vpop.f32.mrf.mxu0
      %v5367 = vadd.f32 0.0, %v5366
      %5368 = vmatmul.bf16.gmra.mxu0 %v3678
      %v5369 = vpop.f32.mrf.mxu0
      %v5370 = vadd.f32 0.0, %v5369
      %v5371 = vpop.f32.mrf.mxu0
      %v5372 = vadd.f32 0.0, %v5371
      %5373 = vmatmul.bf16.gmra.mxu0 %v3681
      %v5374 = vpop.f32.mrf.mxu0
      %v5375 = vadd.f32 0.0, %v5374
      %v5376 = vpop.f32.mrf.mxu0
      %v5377 = vadd.f32 0.0, %v5376
      %5378 = vmatmul.bf16.gmra.mxu0 %v3684
      %v5379 = vpop.f32.mrf.mxu0
      %v5380 = vadd.f32 0.0, %v5379
      %v5381 = vpop.f32.mrf.mxu0
      %v5382 = vadd.f32 0.0, %v5381
      %5383 = vmatmul.bf16.gmra.mxu0 %v3687
      %v5384 = vpop.f32.mrf.mxu0
      %v5385 = vadd.f32 0.0, %v5384
      %v5386 = vpop.f32.mrf.mxu0
      %v5387 = vadd.f32 0.0, %v5386
      %5388 = vmatmul.bf16.gmra.mxu0 %v3690
      %v5389 = vpop.f32.mrf.mxu0
      %v5390 = vadd.f32 0.0, %v5389
      %v5391 = vpop.f32.mrf.mxu0
      %v5392 = vadd.f32 0.0, %v5391
      %5393 = vmatmul.bf16.gmra.mxu0 %v3693
      %v5394 = vpop.f32.mrf.mxu0
      %v5395 = vadd.f32 0.0, %v5394
      %v5396 = vpop.f32.mrf.mxu0
      %v5397 = vadd.f32 0.0, %v5396
      %5398 = vmatmul.bf16.gmra.mxu0 %v3696
      %v5399 = vpop.f32.mrf.mxu0
      %v5400 = vadd.f32 0.0, %v5399
      %v5401 = vpop.f32.mrf.mxu0
      %v5402 = vadd.f32 0.0, %v5401
      %5403 = vmatmul.bf16.gmra.mxu0 %v3699
      %v5404 = vpop.f32.mrf.mxu0
      %v5405 = vadd.f32 0.0, %v5404
      %v5406 = vpop.f32.mrf.mxu0
      %v5407 = vadd.f32 0.0, %v5406
      %5408 = vmatmul.bf16.gmra.mxu0 %v3702
      %v5409 = vpop.f32.mrf.mxu0
      %v5410 = vadd.f32 0.0, %v5409
      %v5411 = vpop.f32.mrf.mxu0
      %v5412 = vadd.f32 0.0, %v5411
      %5413 = vmatmul.bf16.gmra.mxu0 %v3705
      %v5414 = vpop.f32.mrf.mxu0
      %v5415 = vadd.f32 0.0, %v5414
      %v5416 = vpop.f32.mrf.mxu0
      %v5417 = vadd.f32 0.0, %v5416
      %5418 = vmatmul.bf16.gmra.mxu0 %v3708
      %v5419 = vpop.f32.mrf.mxu0
      %v5420 = vadd.f32 0.0, %v5419
      %v5421 = vpop.f32.mrf.mxu0
      %v5422 = vadd.f32 0.0, %v5421
      %5423 = vmatmul.bf16.gmra.mxu0 %v3711
      %v5424 = vpop.f32.mrf.mxu0
      %v5425 = vadd.f32 0.0, %v5424
      %v5426 = vpop.f32.mrf.mxu0
      %v5427 = vadd.f32 0.0, %v5426
      %5428 = vmatmul.bf16.gmra.mxu0 %v3714
      %v5429 = vpop.f32.mrf.mxu0
      %v5430 = vadd.f32 0.0, %v5429
      %v5431 = vpop.f32.mrf.mxu0
      %v5432 = vadd.f32 0.0, %v5431
      %5433 = vmatmul.bf16.gmra.mxu0 %v3717
      %v5434 = vpop.f32.mrf.mxu0
      %v5435 = vadd.f32 0.0, %v5434
      %v5436 = vpop.f32.mrf.mxu0
      %v5437 = vadd.f32 0.0, %v5436
      %5438 = vmatmul.bf16.gmra.mxu0 %v3720
      %v5439 = vpop.f32.mrf.mxu0
      %v5440 = vadd.f32 0.0, %v5439
      %v5441 = vpop.f32.mrf.mxu0
      %v5442 = vadd.f32 0.0, %v5441
      %5443 = vmatmul.bf16.gmra.mxu0 %v3723
      %v5444 = vpop.f32.mrf.mxu0
      %v5445 = vadd.f32 0.0, %v5444
      %v5446 = vpop.f32.mrf.mxu0
      %v5447 = vadd.f32 0.0, %v5446
      %5448 = vmatmul.bf16.gmra.mxu0 %v3726
      %v5449 = vpop.f32.mrf.mxu0
      %v5450 = vadd.f32 0.0, %v5449
      %v5451 = vpop.f32.mrf.mxu0
      %v5452 = vadd.f32 0.0, %v5451
      %5453 = vmatmul.bf16.gmra.mxu0 %v3729
      %v5454 = vpop.f32.mrf.mxu0
      %v5455 = vadd.f32 0.0, %v5454
      %v5456 = vpop.f32.mrf.mxu0
      %v5457 = vadd.f32 0.0, %v5456
      %5458 = vmatmul.bf16.gmra.mxu0 %v3732
      %v5459 = vpop.f32.mrf.mxu0
      %v5460 = vadd.f32 0.0, %v5459
      %v5461 = vpop.f32.mrf.mxu0
      %v5462 = vadd.f32 0.0, %v5461
      %5463 = vmatmul.bf16.gmra.mxu0 %v3735
      %v5464 = vpop.f32.mrf.mxu0
      %v5465 = vadd.f32 0.0, %v5464
      %v5466 = vpop.f32.mrf.mxu0
      %v5467 = vadd.f32 0.0, %v5466
      %5468 = vmatmul.bf16.gmra.mxu0 %v3738
      %v5469 = vpop.f32.mrf.mxu0
      %v5470 = vadd.f32 0.0, %v5469
      %v5471 = vpop.f32.mrf.mxu0
      %v5472 = vadd.f32 0.0, %v5471
      %5473 = vmatmul.bf16.gmra.mxu0 %v3741
      %v5474 = vpop.f32.mrf.mxu0
      %v5475 = vadd.f32 0.0, %v5474
      %v5476 = vpop.f32.mrf.mxu0
      %v5477 = vadd.f32 0.0, %v5476
      %5478 = vmatmul.bf16.gmra.mxu0 %v3744
      %v5479 = vpop.f32.mrf.mxu0
      %v5480 = vadd.f32 0.0, %v5479
      %v5481 = vpop.f32.mrf.mxu0
      %v5482 = vadd.f32 0.0, %v5481
      %5483 = vmatmul.bf16.gmra.mxu0 %v3747
      %v5484 = vpop.f32.mrf.mxu0
      %v5485 = vadd.f32 0.0, %v5484
      %v5486 = vpop.f32.mrf.mxu0
      %v5487 = vadd.f32 0.0, %v5486
      %5488 = vmatmul.bf16.gmra.mxu0 %v3750
      %v5489 = vpop.f32.mrf.mxu0
      %v5490 = vadd.f32 0.0, %v5489
      %v5491 = vpop.f32.mrf.mxu0
      %v5492 = vadd.f32 0.0, %v5491
      %5493 = vmatmul.bf16.gmra.mxu0 %v3753
      %v5494 = vpop.f32.mrf.mxu0
      %v5495 = vadd.f32 0.0, %v5494
      %v5496 = vpop.f32.mrf.mxu0
      %v5497 = vadd.f32 0.0, %v5496
      %5498 = vmatmul.bf16.gmra.mxu0 %v3756
      %v5499 = vpop.f32.mrf.mxu0
      %v5500 = vadd.f32 0.0, %v5499
      %v5501 = vpop.f32.mrf.mxu0
      %v5502 = vadd.f32 0.0, %v5501
      %5503 = vmatmul.bf16.gmra.mxu0 %v3759
      %v5504 = vpop.f32.mrf.mxu0
      %v5505 = vadd.f32 0.0, %v5504
      %v5506 = vpop.f32.mrf.mxu0
      %v5507 = vadd.f32 0.0, %v5506
      %5508 = vmatmul.bf16.gmra.mxu0 %v3762
      %v5509 = vpop.f32.mrf.mxu0
      %v5510 = vadd.f32 0.0, %v5509
      %v5511 = vpop.f32.mrf.mxu0
      %v5512 = vadd.f32 0.0, %v5511
      %5513 = vmatmul.bf16.gmra.mxu0 %v3765
      %v5514 = vpop.f32.mrf.mxu0
      %v5515 = vadd.f32 0.0, %v5514
      %v5516 = vpop.f32.mrf.mxu0
      %v5517 = vadd.f32 0.0, %v5516
      %5518 = vmatmul.bf16.gmra.mxu0 %v3768
      %v5519 = vpop.f32.mrf.mxu0
      %v5520 = vadd.f32 0.0, %v5519
      %v5521 = vpop.f32.mrf.mxu0
      %v5522 = vadd.f32 0.0, %v5521
      %5523 = vmatmul.bf16.gmra.mxu0 %v3771
      %v5524 = vpop.f32.mrf.mxu0
      %v5525 = vadd.f32 0.0, %v5524
      %v5526 = vpop.f32.mrf.mxu0
      %v5527 = vadd.f32 0.0, %v5526
      %5528 = vmatmul.bf16.gmra.mxu0 %v3774
      %v5529 = vpop.f32.mrf.mxu0
      %v5530 = vadd.f32 0.0, %v5529
      %v5531 = vpop.f32.mrf.mxu0
      %v5532 = vadd.f32 0.0, %v5531
      %5533 = vmatmul.bf16.gmra.mxu0 %v3777
      %v5534 = vpop.f32.mrf.mxu0
      %v5535 = vadd.f32 0.0, %v5534
      %v5536 = vpop.f32.mrf.mxu0
      %v5537 = vadd.f32 0.0, %v5536
      %5538 = vmatmul.bf16.gmra.mxu0 %v3780
      %v5539 = vpop.f32.mrf.mxu0
      %v5540 = vadd.f32 0.0, %v5539
      %v5541 = vpop.f32.mrf.mxu0
      %v5542 = vadd.f32 0.0, %v5541
      %5543 = vmatmul.bf16.gmra.mxu0 %v3783
      %v5544 = vpop.f32.mrf.mxu0
      %v5545 = vadd.f32 0.0, %v5544
      %v5546 = vpop.f32.mrf.mxu0
      %v5547 = vadd.f32 0.0, %v5546
      %5548 = vmatmul.bf16.gmra.mxu0 %v3786
      %v5549 = vpop.f32.mrf.mxu0
      %v5550 = vadd.f32 0.0, %v5549
      %v5551 = vpop.f32.mrf.mxu0
      %v5552 = vadd.f32 0.0, %v5551
      %5553 = vmatmul.bf16.gmra.mxu0 %v3789
      %v5554 = vpop.f32.mrf.mxu0
      %v5555 = vadd.f32 0.0, %v5554
      %v5556 = vpop.f32.mrf.mxu0
      %v5557 = vadd.f32 0.0, %v5556
      %5558 = vmatmul.bf16.gmra.mxu0 %v3792
      %v5559 = vpop.f32.mrf.mxu0
      %v5560 = vadd.f32 0.0, %v5559
      %v5561 = vpop.f32.mrf.mxu0
      %v5562 = vadd.f32 0.0, %v5561
      %5563 = vmatmul.bf16.gmra.mxu0 %v3795
      %v5564 = vpop.f32.mrf.mxu0
      %v5565 = vadd.f32 0.0, %v5564
      %v5566 = vpop.f32.mrf.mxu0
      %v5567 = vadd.f32 0.0, %v5566
      %5568 = vmatmul.bf16.gmra.mxu0 %v3798
      %v5569 = vpop.f32.mrf.mxu0
      %v5570 = vadd.f32 0.0, %v5569
      %v5571 = vpop.f32.mrf.mxu0
      %v5572 = vadd.f32 0.0, %v5571
      %5573 = vmatmul.bf16.gmra.mxu0 %v3801
      %v5574 = vpop.f32.mrf.mxu0
      %v5575 = vadd.f32 0.0, %v5574
      %v5576 = vpop.f32.mrf.mxu0
      %v5577 = vadd.f32 0.0, %v5576
      %5578 = vmatmul.bf16.gmra.mxu0 %v3804
      %v5579 = vpop.f32.mrf.mxu0
      %v5580 = vadd.f32 0.0, %v5579
      %v5581 = vpop.f32.mrf.mxu0
      %v5582 = vadd.f32 0.0, %v5581
      %5583 = vmatmul.bf16.gmra.mxu0 %v3807
      %v5584 = vpop.f32.mrf.mxu0
      %v5585 = vadd.f32 0.0, %v5584
      %v5586 = vpop.f32.mrf.mxu0
      %v5587 = vadd.f32 0.0, %v5586
      %5588 = vmatmul.bf16.gmra.mxu0 %v3810
      %v5589 = vpop.f32.mrf.mxu0
      %v5590 = vadd.f32 0.0, %v5589
      %v5591 = vpop.f32.mrf.mxu0
      %v5592 = vadd.f32 0.0, %v5591
      %5593 = vmatmul.bf16.gmra.mxu0 %v3813
      %v5594 = vpop.f32.mrf.mxu0
      %v5595 = vadd.f32 0.0, %v5594
      %v5596 = vpop.f32.mrf.mxu0
      %v5597 = vadd.f32 0.0, %v5596
      %5598 = vmatmul.bf16.gmra.mxu0 %v3816
      %v5599 = vpop.f32.mrf.mxu0
      %v5600 = vadd.f32 0.0, %v5599
      %v5601 = vpop.f32.mrf.mxu0
      %v5602 = vadd.f32 0.0, %v5601
      %5603 = vmatmul.bf16.gmra.mxu0 %v3819
      %v5604 = vpop.f32.mrf.mxu0
      %v5605 = vadd.f32 0.0, %v5604
      %v5606 = vpop.f32.mrf.mxu0
      %v5607 = vadd.f32 0.0, %v5606
      %5608 = vmatmul.bf16.gmra.mxu0 %v3822
      %v5609 = vpop.f32.mrf.mxu0
      %v5610 = vadd.f32 0.0, %v5609
      %v5611 = vpop.f32.mrf.mxu0
      %v5612 = vadd.f32 0.0, %v5611
      %5613 = vmatmul.bf16.gmra.mxu0 %v3825
      %v5614 = vpop.f32.mrf.mxu0
      %v5615 = vadd.f32 0.0, %v5614
      %v5616 = vpop.f32.mrf.mxu0
      %v5617 = vadd.f32 0.0, %v5616
      %5618 = vmatmul.bf16.gmra.mxu0 %v3828
      %v5619 = vpop.f32.mrf.mxu0
      %v5620 = vadd.f32 0.0, %v5619
      %v5621 = vpop.f32.mrf.mxu0
      %v5622 = vadd.f32 0.0, %v5621
      %5623 = vmatmul.bf16.gmra.mxu0 %v3831
      %v5624 = vpop.f32.mrf.mxu0
      %v5625 = vadd.f32 0.0, %v5624
      %v5626 = vpop.f32.mrf.mxu0
      %v5627 = vadd.f32 0.0, %v5626
      %5628 = vmatmul.bf16.gmra.mxu0 %v3834
      %v5629 = vpop.f32.mrf.mxu0
      %v5630 = vadd.f32 0.0, %v5629
      %v5631 = vpop.f32.mrf.mxu0
      %v5632 = vadd.f32 0.0, %v5631
      %5633 = vmatmul.bf16.gmra.mxu0 %v3837
      %v5634 = vpop.f32.mrf.mxu0
      %v5635 = vadd.f32 0.0, %v5634
      %v5636 = vpop.f32.mrf.mxu0
      %v5637 = vadd.f32 0.0, %v5636
      %5638 = vmatmul.bf16.gmra.mxu0 %v3840
      %v5639 = vpop.f32.mrf.mxu0
      %v5640 = vadd.f32 0.0, %v5639
      %v5641 = vpop.f32.mrf.mxu0
      %v5642 = vadd.f32 0.0, %v5641
      %5643 = vmatmul.bf16.gmra.mxu0 %v3843
      %v5644 = vpop.f32.mrf.mxu0
      %v5645 = vadd.f32 0.0, %v5644
      %v5646 = vpop.f32.mrf.mxu0
      %v5647 = vadd.f32 0.0, %v5646
      %5648 = vmatmul.bf16.gmra.mxu0 %v3846
      %v5649 = vpop.f32.mrf.mxu0
      %v5650 = vadd.f32 0.0, %v5649
      %v5651 = vpop.f32.mrf.mxu0
      %v5652 = vadd.f32 0.0, %v5651
      %5653 = vmatmul.bf16.gmra.mxu0 %v3849
      %v5654 = vpop.f32.mrf.mxu0
      %v5655 = vadd.f32 0.0, %v5654
      %v5656 = vpop.f32.mrf.mxu0
      %v5657 = vadd.f32 0.0, %v5656
      %5658 = vmatmul.bf16.gmra.mxu0 %v3852
      %v5659 = vpop.f32.mrf.mxu0
      %v5660 = vadd.f32 0.0, %v5659
      %v5661 = vpop.f32.mrf.mxu0
      %v5662 = vadd.f32 0.0, %v5661
      %5663 = vmatmul.bf16.gmra.mxu0 %v3855
      %v5664 = vpop.f32.mrf.mxu0
      %v5665 = vadd.f32 0.0, %v5664
      %v5666 = vpop.f32.mrf.mxu0
      %v5667 = vadd.f32 0.0, %v5666
      %5668 = vmatmul.bf16.gmra.mxu0 %v3858
      %v5669 = vpop.f32.mrf.mxu0
      %v5670 = vadd.f32 0.0, %v5669
      %v5671 = vpop.f32.mrf.mxu0
      %v5672 = vadd.f32 0.0, %v5671
      %5673 = vmatmul.bf16.gmra.mxu0 %v3861
      %v5674 = vpop.f32.mrf.mxu0
      %v5675 = vadd.f32 0.0, %v5674
      %v5676 = vpop.f32.mrf.mxu0
      %v5677 = vadd.f32 0.0, %v5676
      %5678 = vmatmul.bf16.gmra.mxu0 %v3864
      %v5679 = vpop.f32.mrf.mxu0
      %v5680 = vadd.f32 0.0, %v5679
      %v5681 = vpop.f32.mrf.mxu0
      %v5682 = vadd.f32 0.0, %v5681
      %5683 = vmatmul.bf16.gmra.mxu0 %v3867
      %v5684 = vpop.f32.mrf.mxu0
      %v5685 = vadd.f32 0.0, %v5684
      %v5686 = vpop.f32.mrf.mxu0
      %v5687 = vadd.f32 0.0, %v5686
      %5688 = vmatmul.bf16.gmra.mxu0 %v3870
      %v5689 = vpop.f32.mrf.mxu0
      %v5690 = vadd.f32 0.0, %v5689
      %v5691 = vpop.f32.mrf.mxu0
      %v5692 = vadd.f32 0.0, %v5691
      %5693 = vmatmul.bf16.gmra.mxu0 %v3873
      %v5694 = vpop.f32.mrf.mxu0
      %v5695 = vadd.f32 0.0, %v5694
      %v5696 = vpop.f32.mrf.mxu0
      %v5697 = vadd.f32 0.0, %v5696
      %5698 = vmatmul.bf16.gmra.mxu0 %v3876
      %v5699 = vpop.f32.mrf.mxu0
      %v5700 = vadd.f32 0.0, %v5699
      %v5701 = vpop.f32.mrf.mxu0
      %v5702 = vadd.f32 0.0, %v5701
      %5703 = vmatmul.bf16.gmra.mxu0 %v3879
      %v5704 = vpop.f32.mrf.mxu0
      %v5705 = vadd.f32 0.0, %v5704
      %v5706 = vpop.f32.mrf.mxu0
      %v5707 = vadd.f32 0.0, %v5706
      %5708 = vmatmul.bf16.gmra.mxu0 %v3882
      %v5709 = vpop.f32.mrf.mxu0
      %v5710 = vadd.f32 0.0, %v5709
      %v5711 = vpop.f32.mrf.mxu0
      %v5712 = vadd.f32 0.0, %v5711
      %5713 = vmatmul.bf16.gmra.mxu0 %v3885
      %v5714 = vpop.f32.mrf.mxu0
      %v5715 = vadd.f32 0.0, %v5714
      %v5716 = vpop.f32.mrf.mxu0
      %v5717 = vadd.f32 0.0, %v5716
      %5718 = vmatmul.bf16.gmra.mxu0 %v3888
      %v5719 = vpop.f32.mrf.mxu0
      %v5720 = vadd.f32 0.0, %v5719
      %v5721 = vpop.f32.mrf.mxu0
      %v5722 = vadd.f32 0.0, %v5721
      %5723 = vmatmul.bf16.gmra.mxu0 %v3891
      %v5724 = vpop.f32.mrf.mxu0
      %v5725 = vadd.f32 0.0, %v5724
      %v5726 = vpop.f32.mrf.mxu0
      %v5727 = vadd.f32 0.0, %v5726
      %5728 = vmatmul.bf16.gmra.mxu0 %v3894
      %v5729 = vpop.f32.mrf.mxu0
      %v5730 = vadd.f32 0.0, %v5729
      %v5731 = vpop.f32.mrf.mxu0
      %v5732 = vadd.f32 0.0, %v5731
      %5733 = vmatmul.bf16.gmra.mxu0 %v3897
      %v5734 = vpop.f32.mrf.mxu0
      %v5735 = vadd.f32 0.0, %v5734
      %v5736 = vpop.f32.mrf.mxu0
      %v5737 = vadd.f32 0.0, %v5736
      %5738 = vmatmul.bf16.gmra.mxu0 %v3900
      %v5739 = vpop.f32.mrf.mxu0
      %v5740 = vadd.f32 0.0, %v5739
      %v5741 = vpop.f32.mrf.mxu0
      %v5742 = vadd.f32 0.0, %v5741
      %5743 = vmatmul.bf16.gmra.mxu0 %v3903
      %v5744 = vpop.f32.mrf.mxu0
      %v5745 = vadd.f32 0.0, %v5744
      %v5746 = vpop.f32.mrf.mxu0
      %v5747 = vadd.f32 0.0, %v5746
      %5748 = vmatmul.bf16.gmra.mxu0 %v3906
      %v5749 = vpop.f32.mrf.mxu0
      %v5750 = vadd.f32 0.0, %v5749
      %v5751 = vpop.f32.mrf.mxu0
      %v5752 = vadd.f32 0.0, %v5751
      %5753 = vmatmul.bf16.gmra.mxu0 %v3909
      %v5754 = vpop.f32.mrf.mxu0
      %v5755 = vadd.f32 0.0, %v5754
      %v5756 = vpop.f32.mrf.mxu0
      %v5757 = vadd.f32 0.0, %v5756
      %5758 = vmatmul.bf16.gmra.mxu0 %v3912
      %v5759 = vpop.f32.mrf.mxu0
      %v5760 = vadd.f32 0.0, %v5759
      %v5761 = vpop.f32.mrf.mxu0
      %v5762 = vadd.f32 0.0, %v5761
      %5763 = vmatmul.bf16.gmra.mxu0 %v3915
      %v5764 = vpop.f32.mrf.mxu0
      %v5765 = vadd.f32 0.0, %v5764
      %v5766 = vpop.f32.mrf.mxu0
      %v5767 = vadd.f32 0.0, %v5766
      %5768 = vmatmul.bf16.gmra.mxu0 %v3918
      %v5769 = vpop.f32.mrf.mxu0
      %v5770 = vadd.f32 0.0, %v5769
      %v5771 = vpop.f32.mrf.mxu0
      %v5772 = vadd.f32 0.0, %v5771
      %5773 = vmatmul.bf16.gmra.mxu0 %v3921
      %v5774 = vpop.f32.mrf.mxu0
      %v5775 = vadd.f32 0.0, %v5774
      %v5776 = vpop.f32.mrf.mxu0
      %v5777 = vadd.f32 0.0, %v5776
      %5778 = vmatmul.bf16.gmra.mxu0 %v3924
      %v5779 = vpop.f32.mrf.mxu0
      %v5780 = vadd.f32 0.0, %v5779
      %v5781 = vpop.f32.mrf.mxu0
      %v5782 = vadd.f32 0.0, %v5781
      %5783 = vmatmul.bf16.gmra.mxu0 %v3927
      %v5784 = vpop.f32.mrf.mxu0
      %v5785 = vadd.f32 0.0, %v5784
      %v5786 = vpop.f32.mrf.mxu0
      %v5787 = vadd.f32 0.0, %v5786
      %5788 = vmatmul.bf16.gmra.mxu0 %v3930
      %v5789 = vpop.f32.mrf.mxu0
      %v5790 = vadd.f32 0.0, %v5789
      %v5791 = vpop.f32.mrf.mxu0
      %v5792 = vadd.f32 0.0, %v5791
      %5793 = vmatmul.bf16.gmra.mxu0 %v3933
      %v5794 = vpop.f32.mrf.mxu0
      %v5795 = vadd.f32 0.0, %v5794
      %v5796 = vpop.f32.mrf.mxu0
      %v5797 = vadd.f32 0.0, %v5796
      %5798 = vmatmul.bf16.gmra.mxu0 %v3936
      %v5799 = vpop.f32.mrf.mxu0
      %v5800 = vadd.f32 0.0, %v5799
      %v5801 = vpop.f32.mrf.mxu0
      %v5802 = vadd.f32 0.0, %v5801
      %5803 = vmatmul.bf16.gmra.mxu0 %v3939
      %v5804 = vpop.f32.mrf.mxu0
      %v5805 = vadd.f32 0.0, %v5804
      %v5806 = vpop.f32.mrf.mxu0
      %v5807 = vadd.f32 0.0, %v5806
      %5808 = vmatmul.bf16.gmra.mxu0 %v3942
      %v5809 = vpop.f32.mrf.mxu0
      %v5810 = vadd.f32 0.0, %v5809
      %v5811 = vpop.f32.mrf.mxu0
      %v5812 = vadd.f32 0.0, %v5811
      %5813 = vmatmul.bf16.gmra.mxu0 %v3945
      %v5814 = vpop.f32.mrf.mxu0
      %v5815 = vadd.f32 0.0, %v5814
      %v5816 = vpop.f32.mrf.mxu0
      %v5817 = vadd.f32 0.0, %v5816
      %5818 = vmatmul.bf16.gmra.mxu0 %v3948
      %v5819 = vpop.f32.mrf.mxu0
      %v5820 = vadd.f32 0.0, %v5819
      %v5821 = vpop.f32.mrf.mxu0
      %v5822 = vadd.f32 0.0, %v5821
      %5823 = vmatmul.bf16.gmra.mxu0 %v3951
      %v5824 = vpop.f32.mrf.mxu0
      %v5825 = vadd.f32 0.0, %v5824
      %v5826 = vpop.f32.mrf.mxu0
      %v5827 = vadd.f32 0.0, %v5826
      %5828 = vmatmul.bf16.gmra.mxu0 %v3954
      %v5829 = vpop.f32.mrf.mxu0
      %v5830 = vadd.f32 0.0, %v5829
      %v5831 = vpop.f32.mrf.mxu0
      %v5832 = vadd.f32 0.0, %v5831
      %5833 = vmatmul.bf16.gmra.mxu0 %v3957
      %v5834 = vpop.f32.mrf.mxu0
      %v5835 = vadd.f32 0.0, %v5834
      %v5836 = vpop.f32.mrf.mxu0
      %v5837 = vadd.f32 0.0, %v5836
      %5838 = vmatmul.bf16.gmra.mxu0 %v3960
      %v5839 = vpop.f32.mrf.mxu0
      %v5840 = vadd.f32 0.0, %v5839
      %v5841 = vpop.f32.mrf.mxu0
      %v5842 = vadd.f32 0.0, %v5841
      %5843 = vmatmul.bf16.gmra.mxu0 %v3963
      %v5844 = vpop.f32.mrf.mxu0
      %v5845 = vadd.f32 0.0, %v5844
      %v5846 = vpop.f32.mrf.mxu0
      %v5847 = vadd.f32 0.0, %v5846
      %5848 = vmatmul.bf16.gmra.mxu0 %v3966
      %v5849 = vpop.f32.mrf.mxu0
      %v5850 = vadd.f32 0.0, %v5849
      %v5851 = vpop.f32.mrf.mxu0
      %v5852 = vadd.f32 0.0, %v5851
      %5853 = vmatmul.bf16.gmra.mxu0 %v3969
      %v5854 = vpop.f32.mrf.mxu0
      %v5855 = vadd.f32 0.0, %v5854
      %v5856 = vpop.f32.mrf.mxu0
      %v5857 = vadd.f32 0.0, %v5856
      %5858 = vmatmul.bf16.gmra.mxu0 %v3972
      %v5859 = vpop.f32.mrf.mxu0
      %v5860 = vadd.f32 0.0, %v5859
      %v5861 = vpop.f32.mrf.mxu0
      %v5862 = vadd.f32 0.0, %v5861
      %5863 = vmatmul.bf16.gmra.mxu0 %v3975
      %v5864 = vpop.f32.mrf.mxu0
      %v5865 = vadd.f32 0.0, %v5864
      %v5866 = vpop.f32.mrf.mxu0
      %v5867 = vadd.f32 0.0, %v5866
      %5868 = vmatmul.bf16.gmra.mxu0 %v3978
      %v5869 = vpop.f32.mrf.mxu0
      %v5870 = vadd.f32 0.0, %v5869
      %v5871 = vpop.f32.mrf.mxu0
      %v5872 = vadd.f32 0.0, %v5871
      %5873 = vmatmul.bf16.gmra.mxu0 %v3981
      %v5874 = vpop.f32.mrf.mxu0
      %v5875 = vadd.f32 0.0, %v5874
      %v5876 = vpop.f32.mrf.mxu0
      %v5877 = vadd.f32 0.0, %v5876
      %5878 = vmatmul.bf16.gmra.mxu0 %v3984
      %v5879 = vpop.f32.mrf.mxu0
      %v5880 = vadd.f32 0.0, %v5879
      %v5881 = vpop.f32.mrf.mxu0
      %v5882 = vadd.f32 0.0, %v5881
      %5883 = vmatmul.bf16.gmra.mxu0 %v3987
      %v5884 = vpop.f32.mrf.mxu0
      %v5885 = vadd.f32 0.0, %v5884
      %v5886 = vpop.f32.mrf.mxu0
      %v5887 = vadd.f32 0.0, %v5886
      %5888 = vmatmul.bf16.gmra.mxu0 %v3990
      %v5889 = vpop.f32.mrf.mxu0
      %v5890 = vadd.f32 0.0, %v5889
      %v5891 = vpop.f32.mrf.mxu0
      %v5892 = vadd.f32 0.0, %v5891
      %5893 = vmatmul.bf16.gmra.mxu0 %v3993
      %v5894 = vpop.f32.mrf.mxu0
      %v5895 = vadd.f32 0.0, %v5894
      %v5896 = vpop.f32.mrf.mxu0
      %v5897 = vadd.f32 0.0, %v5896
      %5898 = vmatmul.bf16.gmra.mxu0 %v3996
      %v5899 = vpop.f32.mrf.mxu0
      %v5900 = vadd.f32 0.0, %v5899
      %v5901 = vpop.f32.mrf.mxu0
      %v5902 = vadd.f32 0.0, %v5901
      %5903 = vmatmul.bf16.gmra.mxu0 %v3999
      %v5904 = vpop.f32.mrf.mxu0
      %v5905 = vadd.f32 0.0, %v5904
      %v5906 = vpop.f32.mrf.mxu0
      %v5907 = vadd.f32 0.0, %v5906
      %5908 = vmatmul.bf16.gmra.mxu0 %v4002
      %v5909 = vpop.f32.mrf.mxu0
      %v5910 = vadd.f32 0.0, %v5909
      %v5911 = vpop.f32.mrf.mxu0
      %v5912 = vadd.f32 0.0, %v5911
      %5913 = vmatmul.bf16.gmra.mxu0 %v4005
      %v5914 = vpop.f32.mrf.mxu0
      %v5915 = vadd.f32 0.0, %v5914
      %v5916 = vpop.f32.mrf.mxu0
      %v5917 = vadd.f32 0.0, %v5916
      %5918 = vmatmul.bf16.gmra.mxu0 %v4008
      %v5919 = vpop.f32.mrf.mxu0
      %v5920 = vadd.f32 0.0, %v5919
      %v5921 = vpop.f32.mrf.mxu0
      %v5922 = vadd.f32 0.0, %v5921
      %5923 = vmatmul.bf16.gmra.mxu0 %v4011
      %v5924 = vpop.f32.mrf.mxu0
      %v5925 = vadd.f32 0.0, %v5924
      %v5926 = vpop.f32.mrf.mxu0
      %v5927 = vadd.f32 0.0, %v5926
      %5928 = vmatmul.bf16.gmra.mxu0 %v4014
      %v5929 = vpop.f32.mrf.mxu0
      %v5930 = vadd.f32 0.0, %v5929
      %v5931 = vpop.f32.mrf.mxu0
      %v5932 = vadd.f32 0.0, %v5931
      %5933 = vmatmul.bf16.gmra.mxu0 %v4017
      %v5934 = vpop.f32.mrf.mxu0
      %v5935 = vadd.f32 0.0, %v5934
      %v5936 = vpop.f32.mrf.mxu0
      %v5937 = vadd.f32 0.0, %v5936
      %5938 = vmatmul.bf16.gmra.mxu0 %v4020
      %v5939 = vpop.f32.mrf.mxu0
      %v5940 = vadd.f32 0.0, %v5939
      %v5941 = vpop.f32.mrf.mxu0
      %v5942 = vadd.f32 0.0, %v5941
      %5943 = vmatmul.bf16.gmra.mxu0 %v4023
      %v5944 = vpop.f32.mrf.mxu0
      %v5945 = vadd.f32 0.0, %v5944
      %v5946 = vpop.f32.mrf.mxu0
      %v5947 = vadd.f32 0.0, %v5946
      %5948 = vmatmul.bf16.gmra.mxu0 %v4026
      %v5949 = vpop.f32.mrf.mxu0
      %v5950 = vadd.f32 0.0, %v5949
      %v5951 = vpop.f32.mrf.mxu0
      %v5952 = vadd.f32 0.0, %v5951
      %5953 = vmatmul.bf16.gmra.mxu0 %v4029
      %v5954 = vpop.f32.mrf.mxu0
      %v5955 = vadd.f32 0.0, %v5954
      %v5956 = vpop.f32.mrf.mxu0
      %v5957 = vadd.f32 0.0, %v5956
      %5958 = vmatmul.bf16.gmra.mxu0 %v4032
      %v5959 = vpop.f32.mrf.mxu0
      %v5960 = vadd.f32 0.0, %v5959
      %v5961 = vpop.f32.mrf.mxu0
      %v5962 = vadd.f32 0.0, %v5961
      %5963 = vmatmul.bf16.gmra.mxu0 %v4035
      %v5964 = vpop.f32.mrf.mxu0
      %v5965 = vadd.f32 0.0, %v5964
      %v5966 = vpop.f32.mrf.mxu0
      %v5967 = vadd.f32 0.0, %v5966
      %5968 = vmatmul.bf16.gmra.mxu0 %v4038
      %v5969 = vpop.f32.mrf.mxu0
      %v5970 = vadd.f32 0.0, %v5969
      %v5971 = vpop.f32.mrf.mxu0
      %v5972 = vadd.f32 0.0, %v5971
      %5973 = vmatmul.bf16.gmra.mxu0 %v4041
      %v5974 = vpop.f32.mrf.mxu0
      %v5975 = vadd.f32 0.0, %v5974
      %v5976 = vpop.f32.mrf.mxu0
      %v5977 = vadd.f32 0.0, %v5976
      %5978 = vmatmul.bf16.gmra.mxu0 %v4044
      %v5979 = vpop.f32.mrf.mxu0
      %v5980 = vadd.f32 0.0, %v5979
      %v5981 = vpop.f32.mrf.mxu0
      %v5982 = vadd.f32 0.0, %v5981
      %5983 = vmatmul.bf16.gmra.mxu0 %v4047
      %v5984 = vpop.f32.mrf.mxu0
      %v5985 = vadd.f32 0.0, %v5984
      %v5986 = vpop.f32.mrf.mxu0
      %v5987 = vadd.f32 0.0, %v5986
      %5988 = vmatmul.bf16.gmra.mxu0 %v4050
      %v5989 = vpop.f32.mrf.mxu0
      %v5990 = vadd.f32 0.0, %v5989
      %v5991 = vpop.f32.mrf.mxu0
      %v5992 = vadd.f32 0.0, %v5991
      %5993 = vmatmul.bf16.gmra.mxu0 %v4053
      %v5994 = vpop.f32.mrf.mxu0
      %v5995 = vadd.f32 0.0, %v5994
      %v5996 = vpop.f32.mrf.mxu0
      %v5997 = vadd.f32 0.0, %v5996
      %5998 = vmatmul.bf16.gmra.mxu0 %v4056
      %v5999 = vpop.f32.mrf.mxu0
      %v6000 = vadd.f32 0.0, %v5999
      %v6001 = vpop.f32.mrf.mxu0
      %v6002 = vadd.f32 0.0, %v6001
      %6003 = vmatmul.bf16.gmra.mxu0 %v4059
      %v6004 = vpop.f32.mrf.mxu0
      %v6005 = vadd.f32 0.0, %v6004
      %v6006 = vpop.f32.mrf.mxu0
      %v6007 = vadd.f32 0.0, %v6006
      %6008 = vmatmul.bf16.gmra.mxu0 %v4062
      %v6009 = vpop.f32.mrf.mxu0
      %v6010 = vadd.f32 0.0, %v6009
      %v6011 = vpop.f32.mrf.mxu0
      %v6012 = vadd.f32 0.0, %v6011
      %6013 = vmatmul.bf16.gmra.mxu0 %v4065
      %v6014 = vpop.f32.mrf.mxu0
      %v6015 = vadd.f32 0.0, %v6014
      %v6016 = vpop.f32.mrf.mxu0
      %v6017 = vadd.f32 0.0, %v6016
      %6018 = vmatmul.bf16.gmra.mxu0 %v4068
      %v6019 = vpop.f32.mrf.mxu0
      %v6020 = vadd.f32 0.0, %v6019
      %v6021 = vpop.f32.mrf.mxu0
      %v6022 = vadd.f32 0.0, %v6021
      %6023 = vmatmul.bf16.gmra.mxu0 %v4071
      %v6024 = vpop.f32.mrf.mxu0
      %v6025 = vadd.f32 0.0, %v6024
      %v6026 = vpop.f32.mrf.mxu0
      %v6027 = vadd.f32 0.0, %v6026
      %6028 = vmatmul.bf16.gmra.mxu0 %v4074
      %v6029 = vpop.f32.mrf.mxu0
      %v6030 = vadd.f32 0.0, %v6029
      %v6031 = vpop.f32.mrf.mxu0
      %v6032 = vadd.f32 0.0, %v6031
      %6033 = vmatmul.bf16.gmra.mxu0 %v4077
      %v6034 = vpop.f32.mrf.mxu0
      %v6035 = vadd.f32 0.0, %v6034
      %v6036 = vpop.f32.mrf.mxu0
      %v6037 = vadd.f32 0.0, %v6036
      %6038 = vmatmul.bf16.gmra.mxu0 %v4080
      %v6039 = vpop.f32.mrf.mxu0
      %v6040 = vadd.f32 0.0, %v6039
      %v6041 = vpop.f32.mrf.mxu0
      %v6042 = vadd.f32 0.0, %v6041
      %6043 = vmatmul.bf16.gmra.mxu0 %v4083
      %v6044 = vpop.f32.mrf.mxu0
      %v6045 = vadd.f32 0.0, %v6044
      %v6046 = vpop.f32.mrf.mxu0
      %v6047 = vadd.f32 0.0, %v6046
      %6048 = vmatmul.bf16.gmra.mxu0 %v4086
      %v6049 = vpop.f32.mrf.mxu0
      %v6050 = vadd.f32 0.0, %v6049
      %v6051 = vpop.f32.mrf.mxu0
      %v6052 = vadd.f32 0.0, %v6051
      %6053 = vmatmul.bf16.gmra.mxu0 %v4089
      %v6054 = vpop.f32.mrf.mxu0
      %v6055 = vadd.f32 0.0, %v6054
      %v6056 = vpop.f32.mrf.mxu0
      %v6057 = vadd.f32 0.0, %v6056
      %6058 = vmatmul.bf16.gmra.mxu0 %v4092
      %v6059 = vpop.f32.mrf.mxu0
      %v6060 = vadd.f32 0.0, %v6059
      %v6061 = vpop.f32.mrf.mxu0
      %v6062 = vadd.f32 0.0, %v6061
      %6063 = vmatmul.bf16.gmra.mxu0 %v4095
      %v6064 = vpop.f32.mrf.mxu0
      %v6065 = vadd.f32 0.0, %v6064
      %v6066 = vpop.f32.mrf.mxu0
      %v6067 = vadd.f32 0.0, %v6066
      %6068 = vmatmul.bf16.gmra.mxu0 %v4098
      %v6069 = vpop.f32.mrf.mxu0
      %v6070 = vadd.f32 0.0, %v6069
      %v6071 = vpop.f32.mrf.mxu0
      %v6072 = vadd.f32 0.0, %v6071
      %6073 = vmatmul.bf16.gmra.mxu0 %v4101
      %v6074 = vpop.f32.mrf.mxu0
      %v6075 = vadd.f32 0.0, %v6074
      %v6076 = vpop.f32.mrf.mxu0
      %v6077 = vadd.f32 0.0, %v6076
      %6078 = vdwg.mxu0
      %v6079 = vmax.f32 %v4120, %v4610
      %v6080 = vmax.f32 %v4122, %v4612
      %v6081 = vmax.f32 %v4125, %v4615
      %v6082 = vmax.f32 %v4127, %v4617
      %v6083 = vmax.f32 %v4130, %v4620
      %v6084 = vmax.f32 %v4132, %v4622
      %v6085 = vmax.f32 %v4135, %v4625
      %v6086 = vmax.f32 %v4137, %v4627
      %v6087 = vmax.f32 %v4140, %v4630
      %v6088 = vmax.f32 %v4142, %v4632
      %v6089 = vmax.f32 %v4145, %v4635
      %v6090 = vmax.f32 %v4147, %v4637
      %v6091 = vmax.f32 %v4150, %v4640
      %v6092 = vmax.f32 %v4152, %v4642
      %v6093 = vmax.f32 %v4155, %v4645
      %v6094 = vmax.f32 %v4157, %v4647
      %v6095 = vmax.f32 %v4160, %v4650
      %v6096 = vmax.f32 %v4162, %v4652
      %v6097 = vmax.f32 %v4165, %v4655
      %v6098 = vmax.f32 %v4167, %v4657
      %v6099 = vmax.f32 %v4170, %v4660
      %v6100 = vmax.f32 %v4172, %v4662
      %v6101 = vmax.f32 %v4175, %v4665
      %v6102 = vmax.f32 %v4177, %v4667
      %v6103 = vmax.f32 %v4180, %v4670
      %v6104 = vmax.f32 %v4182, %v4672
      %v6105 = vmax.f32 %v4185, %v4675
      %v6106 = vmax.f32 %v4187, %v4677
      %v6107 = vmax.f32 %v4190, %v4680
      %v6108 = vmax.f32 %v4192, %v4682
      %v6109 = vmax.f32 %v4195, %v4685
      %v6110 = vmax.f32 %v4197, %v4687
      %v6111 = vmax.f32 %v4200, %v4690
      %v6112 = vmax.f32 %v4202, %v4692
      %v6113 = vmax.f32 %v4205, %v4695
      %v6114 = vmax.f32 %v4207, %v4697
      %v6115 = vmax.f32 %v4210, %v4700
      %v6116 = vmax.f32 %v4212, %v4702
      %v6117 = vmax.f32 %v4215, %v4705
      %v6118 = vmax.f32 %v4217, %v4707
      %v6119 = vmax.f32 %v4220, %v4710
      %v6120 = vmax.f32 %v4222, %v4712
      %v6121 = vmax.f32 %v4225, %v4715
      %v6122 = vmax.f32 %v4227, %v4717
      %v6123 = vmax.f32 %v4230, %v4720
      %v6124 = vmax.f32 %v4232, %v4722
      %v6125 = vmax.f32 %v4235, %v4725
      %v6126 = vmax.f32 %v4237, %v4727
      %v6127 = vmax.f32 %v4240, %v4730
      %v6128 = vmax.f32 %v4242, %v4732
      %v6129 = vmax.f32 %v4245, %v4735
      %v6130 = vmax.f32 %v4247, %v4737
      %v6131 = vmax.f32 %v4250, %v4740
      %v6132 = vmax.f32 %v4252, %v4742
      %v6133 = vmax.f32 %v4255, %v4745
      %v6134 = vmax.f32 %v4257, %v4747
      %v6135 = vmax.f32 %v4260, %v4750
      %v6136 = vmax.f32 %v4262, %v4752
      %v6137 = vmax.f32 %v4265, %v4755
      %v6138 = vmax.f32 %v4267, %v4757
      %v6139 = vmax.f32 %v4270, %v4760
      %v6140 = vmax.f32 %v4272, %v4762
      %v6141 = vmax.f32 %v4275, %v4765
      %v6142 = vmax.f32 %v4277, %v4767
      %v6143 = vmax.f32 %v4280, %v4770
      %v6144 = vmax.f32 %v4282, %v4772
      %v6145 = vmax.f32 %v4285, %v4775
      %v6146 = vmax.f32 %v4287, %v4777
      %v6147 = vmax.f32 %v4290, %v4780
      %v6148 = vmax.f32 %v4292, %v4782
      %v6149 = vmax.f32 %v4295, %v4785
      %v6150 = vmax.f32 %v4297, %v4787
      %v6151 = vmax.f32 %v4300, %v4790
      %v6152 = vmax.f32 %v4302, %v4792
      %v6153 = vmax.f32 %v4305, %v4795
      %v6154 = vmax.f32 %v4307, %v4797
      %v6155 = vmax.f32 %v4310, %v4800
      %v6156 = vmax.f32 %v4312, %v4802
      %v6157 = vmax.f32 %v4315, %v4805
      %v6158 = vmax.f32 %v4317, %v4807
      %v6159 = vmax.f32 %v4320, %v4810
      %v6160 = vmax.f32 %v4322, %v4812
      %v6161 = vmax.f32 %v4325, %v4815
      %v6162 = vmax.f32 %v4327, %v4817
      %v6163 = vmax.f32 %v4330, %v4820
      %v6164 = vmax.f32 %v4332, %v4822
      %v6165 = vmax.f32 %v4335, %v4825
      %v6166 = vmax.f32 %v4337, %v4827
      %v6167 = vmax.f32 %v4340, %v4830
      %v6168 = vmax.f32 %v4342, %v4832
      %v6169 = vmax.f32 %v4345, %v4835
      %v6170 = vmax.f32 %v4347, %v4837
      %v6171 = vmax.f32 %v4350, %v4840
      %v6172 = vmax.f32 %v4352, %v4842
      %v6173 = vmax.f32 %v4355, %v4845
      %v6174 = vmax.f32 %v4357, %v4847
      %v6175 = vmax.f32 %v4360, %v4850
      %v6176 = vmax.f32 %v4362, %v4852
      %v6177 = vmax.f32 %v4365, %v4855
      %v6178 = vmax.f32 %v4367, %v4857
      %v6179 = vmax.f32 %v4370, %v4860
      %v6180 = vmax.f32 %v4372, %v4862
      %v6181 = vmax.f32 %v4375, %v4865
      %v6182 = vmax.f32 %v4377, %v4867
      %v6183 = vmax.f32 %v4380, %v4870
      %v6184 = vmax.f32 %v4382, %v4872
      %v6185 = vmax.f32 %v4385, %v4875
      %v6186 = vmax.f32 %v4387, %v4877
      %v6187 = vmax.f32 %v4390, %v4880
      %v6188 = vmax.f32 %v4392, %v4882
      %v6189 = vmax.f32 %v4395, %v4885
      %v6190 = vmax.f32 %v4397, %v4887
      %v6191 = vmax.f32 %v4400, %v4890
      %v6192 = vmax.f32 %v4402, %v4892
      %v6193 = vmax.f32 %v4405, %v4895
      %v6194 = vmax.f32 %v4407, %v4897
      %v6195 = vmax.f32 %v4410, %v4900
      %v6196 = vmax.f32 %v4412, %v4902
      %v6197 = vmax.f32 %v4415, %v4905
      %v6198 = vmax.f32 %v4417, %v4907
      %v6199 = vmax.f32 %v4420, %v4910
      %v6200 = vmax.f32 %v4422, %v4912
      %v6201 = vmax.f32 %v4425, %v4915
      %v6202 = vmax.f32 %v4427, %v4917
      %v6203 = vmax.f32 %v4430, %v4920
      %v6204 = vmax.f32 %v4432, %v4922
      %v6205 = vmax.f32 %v4435, %v4925
      %v6206 = vmax.f32 %v4437, %v4927
      %v6207 = vmax.f32 %v4440, %v4930
      %v6208 = vmax.f32 %v4442, %v4932
      %v6209 = vmax.f32 %v4445, %v4935
      %v6210 = vmax.f32 %v4447, %v4937
      %v6211 = vmax.f32 %v4450, %v4940
      %v6212 = vmax.f32 %v4452, %v4942
      %v6213 = vmax.f32 %v4455, %v4945
      %v6214 = vmax.f32 %v4457, %v4947
      %v6215 = vmax.f32 %v4460, %v4950
      %v6216 = vmax.f32 %v4462, %v4952
      %v6217 = vmax.f32 %v4465, %v4955
      %v6218 = vmax.f32 %v4467, %v4957
      %v6219 = vmax.f32 %v4470, %v4960
      %v6220 = vmax.f32 %v4472, %v4962
      %v6221 = vmax.f32 %v4475, %v4965
      %v6222 = vmax.f32 %v4477, %v4967
      %v6223 = vmax.f32 %v4480, %v4970
      %v6224 = vmax.f32 %v4482, %v4972
      %v6225 = vmax.f32 %v4485, %v4975
      %v6226 = vmax.f32 %v4487, %v4977
      %v6227 = vmax.f32 %v4490, %v4980
      %v6228 = vmax.f32 %v4492, %v4982
      %v6229 = vmax.f32 %v4495, %v4985
      %v6230 = vmax.f32 %v4497, %v4987
      %v6231 = vmax.f32 %v4500, %v4990
      %v6232 = vmax.f32 %v4502, %v4992
      %v6233 = vmax.f32 %v4505, %v4995
      %v6234 = vmax.f32 %v4507, %v4997
      %v6235 = vmax.f32 %v4510, %v5000
      %v6236 = vmax.f32 %v4512, %v5002
      %v6237 = vmax.f32 %v4515, %v5005
      %v6238 = vmax.f32 %v4517, %v5007
      %v6239 = vmax.f32 %v4520, %v5010
      %v6240 = vmax.f32 %v4522, %v5012
      %v6241 = vmax.f32 %v4525, %v5015
      %v6242 = vmax.f32 %v4527, %v5017
      %v6243 = vmax.f32 %v4530, %v5020
      %v6244 = vmax.f32 %v4532, %v5022
      %v6245 = vmax.f32 %v4535, %v5025
      %v6246 = vmax.f32 %v4537, %v5027
      %v6247 = vmax.f32 %v4540, %v5030
      %v6248 = vmax.f32 %v4542, %v5032
      %v6249 = vmax.f32 %v4545, %v5035
      %v6250 = vmax.f32 %v4547, %v5037
      %v6251 = vmax.f32 %v4550, %v5040
      %v6252 = vmax.f32 %v4552, %v5042
      %v6253 = vmax.f32 %v4555, %v5045
      %v6254 = vmax.f32 %v4557, %v5047
      %v6255 = vmax.f32 %v4560, %v5050
      %v6256 = vmax.f32 %v4562, %v5052
      %v6257 = vmax.f32 %v4565, %v5055
      %v6258 = vmax.f32 %v4567, %v5057
      %v6259 = vmax.f32 %v4570, %v5060
      %v6260 = vmax.f32 %v4572, %v5062
      %v6261 = vmax.f32 %v4575, %v5065
      %v6262 = vmax.f32 %v4577, %v5067
      %v6263 = vmax.f32 %v4580, %v5070
      %v6264 = vmax.f32 %v4582, %v5072
      %v6265 = vmax.f32 %v4585, %v5075
      %v6266 = vmax.f32 %v4587, %v5077
      %v6267 = vmax.f32 %v4590, %v5080
      %v6268 = vmax.f32 %v4592, %v5082
      %v6269 = vmax.f32 %v4595, %v5085
      %v6270 = vmax.f32 %v4597, %v5087
      %v6271 = vmax.f32 %v4600, %v5090
      %v6272 = vmax.f32 %v4602, %v5092
      %v6273 = vmax.f32 %v4605, %v5095
      %v6274 = vmax.f32 %v4607, %v5097
      %v6275 = vmax.f32 %v5100, %v5590
      %v6276 = vmax.f32 %v5102, %v5592
      %v6277 = vmax.f32 %v5105, %v5595
      %v6278 = vmax.f32 %v5107, %v5597
      %v6279 = vmax.f32 %v5110, %v5600
      %v6280 = vmax.f32 %v5112, %v5602
      %v6281 = vmax.f32 %v5115, %v5605
      %v6282 = vmax.f32 %v5117, %v5607
      %v6283 = vmax.f32 %v5120, %v5610
      %v6284 = vmax.f32 %v5122, %v5612
      %v6285 = vmax.f32 %v5125, %v5615
      %v6286 = vmax.f32 %v5127, %v5617
      %v6287 = vmax.f32 %v5130, %v5620
      %v6288 = vmax.f32 %v5132, %v5622
      %v6289 = vmax.f32 %v5135, %v5625
      %v6290 = vmax.f32 %v5137, %v5627
      %v6291 = vmax.f32 %v5140, %v5630
      %v6292 = vmax.f32 %v5142, %v5632
      %v6293 = vmax.f32 %v5145, %v5635
      %v6294 = vmax.f32 %v5147, %v5637
      %v6295 = vmax.f32 %v5150, %v5640
      %v6296 = vmax.f32 %v5152, %v5642
      %v6297 = vmax.f32 %v5155, %v5645
      %v6298 = vmax.f32 %v5157, %v5647
      %v6299 = vmax.f32 %v5160, %v5650
      %v6300 = vmax.f32 %v5162, %v5652
      %v6301 = vmax.f32 %v5165, %v5655
      %v6302 = vmax.f32 %v5167, %v5657
      %v6303 = vmax.f32 %v5170, %v5660
      %v6304 = vmax.f32 %v5172, %v5662
      %v6305 = vmax.f32 %v5175, %v5665
      %v6306 = vmax.f32 %v5177, %v5667
      %v6307 = vmax.f32 %v5180, %v5670
      %v6308 = vmax.f32 %v5182, %v5672
      %v6309 = vmax.f32 %v5185, %v5675
      %v6310 = vmax.f32 %v5187, %v5677
      %v6311 = vmax.f32 %v5190, %v5680
      %v6312 = vmax.f32 %v5192, %v5682
      %v6313 = vmax.f32 %v5195, %v5685
      %v6314 = vmax.f32 %v5197, %v5687
      %v6315 = vmax.f32 %v5200, %v5690
      %v6316 = vmax.f32 %v5202, %v5692
      %v6317 = vmax.f32 %v5205, %v5695
      %v6318 = vmax.f32 %v5207, %v5697
      %v6319 = vmax.f32 %v5210, %v5700
      %v6320 = vmax.f32 %v5212, %v5702
      %v6321 = vmax.f32 %v5215, %v5705
      %v6322 = vmax.f32 %v5217, %v5707
      %v6323 = vmax.f32 %v5220, %v5710
      %v6324 = vmax.f32 %v5222, %v5712
      %v6325 = vmax.f32 %v5225, %v5715
      %v6326 = vmax.f32 %v5227, %v5717
      %v6327 = vmax.f32 %v5230, %v5720
      %v6328 = vmax.f32 %v5232, %v5722
      %v6329 = vmax.f32 %v5235, %v5725
      %v6330 = vmax.f32 %v5237, %v5727
      %v6331 = vmax.f32 %v5240, %v5730
      %v6332 = vmax.f32 %v5242, %v5732
      %v6333 = vmax.f32 %v5245, %v5735
      %v6334 = vmax.f32 %v5247, %v5737
      %v6335 = vmax.f32 %v5250, %v5740
      %v6336 = vmax.f32 %v5252, %v5742
      %v6337 = vmax.f32 %v5255, %v5745
      %v6338 = vmax.f32 %v5257, %v5747
      %v6339 = vmax.f32 %v5260, %v5750
      %v6340 = vmax.f32 %v5262, %v5752
      %v6341 = vmax.f32 %v5265, %v5755
      %v6342 = vmax.f32 %v5267, %v5757
      %v6343 = vmax.f32 %v5270, %v5760
      %v6344 = vmax.f32 %v5272, %v5762
      %v6345 = vmax.f32 %v5275, %v5765
      %v6346 = vmax.f32 %v5277, %v5767
      %v6347 = vmax.f32 %v5280, %v5770
      %v6348 = vmax.f32 %v5282, %v5772
      %v6349 = vmax.f32 %v5285, %v5775
      %v6350 = vmax.f32 %v5287, %v5777
      %v6351 = vmax.f32 %v5290, %v5780
      %v6352 = vmax.f32 %v5292, %v5782
      %v6353 = vmax.f32 %v5295, %v5785
      %v6354 = vmax.f32 %v5297, %v5787
      %v6355 = vmax.f32 %v5300, %v5790
      %v6356 = vmax.f32 %v5302, %v5792
      %v6357 = vmax.f32 %v5305, %v5795
      %v6358 = vmax.f32 %v5307, %v5797
      %v6359 = vmax.f32 %v5310, %v5800
      %v6360 = vmax.f32 %v5312, %v5802
      %v6361 = vmax.f32 %v5315, %v5805
      %v6362 = vmax.f32 %v5317, %v5807
      %v6363 = vmax.f32 %v5320, %v5810
      %v6364 = vmax.f32 %v5322, %v5812
      %v6365 = vmax.f32 %v5325, %v5815
      %v6366 = vmax.f32 %v5327, %v5817
      %v6367 = vmax.f32 %v5330, %v5820
      %v6368 = vmax.f32 %v5332, %v5822
      %v6369 = vmax.f32 %v5335, %v5825
      %v6370 = vmax.f32 %v5337, %v5827
      %v6371 = vmax.f32 %v5340, %v5830
      %v6372 = vmax.f32 %v5342, %v5832
      %v6373 = vmax.f32 %v5345, %v5835
      %v6374 = vmax.f32 %v5347, %v5837
      %v6375 = vmax.f32 %v5350, %v5840
      %v6376 = vmax.f32 %v5352, %v5842
      %v6377 = vmax.f32 %v5355, %v5845
      %v6378 = vmax.f32 %v5357, %v5847
      %v6379 = vmax.f32 %v5360, %v5850
      %v6380 = vmax.f32 %v5362, %v5852
      %v6381 = vmax.f32 %v5365, %v5855
      %v6382 = vmax.f32 %v5367, %v5857
      %v6383 = vmax.f32 %v5370, %v5860
      %v6384 = vmax.f32 %v5372, %v5862
      %v6385 = vmax.f32 %v5375, %v5865
      %v6386 = vmax.f32 %v5377, %v5867
      %v6387 = vmax.f32 %v5380, %v5870
      %v6388 = vmax.f32 %v5382, %v5872
      %v6389 = vmax.f32 %v5385, %v5875
      %v6390 = vmax.f32 %v5387, %v5877
      %v6391 = vmax.f32 %v5390, %v5880
      %v6392 = vmax.f32 %v5392, %v5882
      %v6393 = vmax.f32 %v5395, %v5885
      %v6394 = vmax.f32 %v5397, %v5887
      %v6395 = vmax.f32 %v5400, %v5890
      %v6396 = vmax.f32 %v5402, %v5892
      %v6397 = vmax.f32 %v5405, %v5895
      %v6398 = vmax.f32 %v5407, %v5897
      %v6399 = vmax.f32 %v5410, %v5900
      %v6400 = vmax.f32 %v5412, %v5902
      %v6401 = vmax.f32 %v5415, %v5905
      %v6402 = vmax.f32 %v5417, %v5907
      %v6403 = vmax.f32 %v5420, %v5910
      %v6404 = vmax.f32 %v5422, %v5912
      %v6405 = vmax.f32 %v5425, %v5915
      %v6406 = vmax.f32 %v5427, %v5917
      %v6407 = vmax.f32 %v5430, %v5920
      %v6408 = vmax.f32 %v5432, %v5922
      %v6409 = vmax.f32 %v5435, %v5925
      %v6410 = vmax.f32 %v5437, %v5927
      %v6411 = vmax.f32 %v5440, %v5930
      %v6412 = vmax.f32 %v5442, %v5932
      %v6413 = vmax.f32 %v5445, %v5935
      %v6414 = vmax.f32 %v5447, %v5937
      %v6415 = vmax.f32 %v5450, %v5940
      %v6416 = vmax.f32 %v5452, %v5942
      %v6417 = vmax.f32 %v5455, %v5945
      %v6418 = vmax.f32 %v5457, %v5947
      %v6419 = vmax.f32 %v5460, %v5950
      %v6420 = vmax.f32 %v5462, %v5952
      %v6421 = vmax.f32 %v5465, %v5955
      %v6422 = vmax.f32 %v5467, %v5957
      %v6423 = vmax.f32 %v5470, %v5960
      %v6424 = vmax.f32 %v5472, %v5962
      %v6425 = vmax.f32 %v5475, %v5965
      %v6426 = vmax.f32 %v5477, %v5967
      %v6427 = vmax.f32 %v5480, %v5970
      %v6428 = vmax.f32 %v5482, %v5972
      %v6429 = vmax.f32 %v5485, %v5975
      %v6430 = vmax.f32 %v5487, %v5977
      %v6431 = vmax.f32 %v5490, %v5980
      %v6432 = vmax.f32 %v5492, %v5982
      %v6433 = vmax.f32 %v5495, %v5985
      %v6434 = vmax.f32 %v5497, %v5987
      %v6435 = vmax.f32 %v5500, %v5990
      %v6436 = vmax.f32 %v5502, %v5992
      %v6437 = vmax.f32 %v5505, %v5995
      %v6438 = vmax.f32 %v5507, %v5997
      %v6439 = vmax.f32 %v5510, %v6000
      %v6440 = vmax.f32 %v5512, %v6002
      %v6441 = vmax.f32 %v5515, %v6005
      %v6442 = vmax.f32 %v5517, %v6007
      %v6443 = vmax.f32 %v5520, %v6010
      %v6444 = vmax.f32 %v5522, %v6012
      %v6445 = vmax.f32 %v5525, %v6015
      %v6446 = vmax.f32 %v5527, %v6017
      %v6447 = vmax.f32 %v5530, %v6020
      %v6448 = vmax.f32 %v5532, %v6022
      %v6449 = vmax.f32 %v5535, %v6025
      %v6450 = vmax.f32 %v5537, %v6027
      %v6451 = vmax.f32 %v5540, %v6030
      %v6452 = vmax.f32 %v5542, %v6032
      %v6453 = vmax.f32 %v5545, %v6035
      %v6454 = vmax.f32 %v5547, %v6037
      %v6455 = vmax.f32 %v5550, %v6040
      %v6456 = vmax.f32 %v5552, %v6042
      %v6457 = vmax.f32 %v5555, %v6045
      %v6458 = vmax.f32 %v5557, %v6047
      %v6459 = vmax.f32 %v5560, %v6050
      %v6460 = vmax.f32 %v5562, %v6052
      %v6461 = vmax.f32 %v5565, %v6055
      %v6462 = vmax.f32 %v5567, %v6057
      %v6463 = vmax.f32 %v5570, %v6060
      %v6464 = vmax.f32 %v5572, %v6062
      %v6465 = vmax.f32 %v5575, %v6065
      %v6466 = vmax.f32 %v5577, %v6067
      %v6467 = vmax.f32 %v5580, %v6070
      %v6468 = vmax.f32 %v5582, %v6072
      %v6469 = vmax.f32 %v5585, %v6075
      %v6470 = vmax.f32 %v5587, %v6077
      %v6471 = vmax.f32 %v6079, %v6275
      %v6472 = vmax.f32 %v6080, %v6276
      %v6473 = vmax.f32 %v6081, %v6277
      %v6474 = vmax.f32 %v6082, %v6278
      %v6475 = vmax.f32 %v6083, %v6279
      %v6476 = vmax.f32 %v6084, %v6280
      %v6477 = vmax.f32 %v6085, %v6281
      %v6478 = vmax.f32 %v6086, %v6282
      %v6479 = vmax.f32 %v6087, %v6283
      %v6480 = vmax.f32 %v6088, %v6284
      %v6481 = vmax.f32 %v6089, %v6285
      %v6482 = vmax.f32 %v6090, %v6286
      %v6483 = vmax.f32 %v6091, %v6287
      %v6484 = vmax.f32 %v6092, %v6288
      %v6485 = vmax.f32 %v6093, %v6289
      %v6486 = vmax.f32 %v6094, %v6290
      %v6487 = vmax.f32 %v6095, %v6291
      %v6488 = vmax.f32 %v6096, %v6292
      %v6489 = vmax.f32 %v6097, %v6293
      %v6490 = vmax.f32 %v6098, %v6294
      %v6491 = vmax.f32 %v6099, %v6295
      %v6492 = vmax.f32 %v6100, %v6296
      %v6493 = vmax.f32 %v6101, %v6297
      %v6494 = vmax.f32 %v6102, %v6298
      %v6495 = vmax.f32 %v6103, %v6299
      %v6496 = vmax.f32 %v6104, %v6300
      %v6497 = vmax.f32 %v6105, %v6301
      %v6498 = vmax.f32 %v6106, %v6302
      %v6499 = vmax.f32 %v6107, %v6303
      %v6500 = vmax.f32 %v6108, %v6304
      %v6501 = vmax.f32 %v6109, %v6305
      %v6502 = vmax.f32 %v6110, %v6306
      %v6503 = vmax.f32 %v6111, %v6307
      %v6504 = vmax.f32 %v6112, %v6308
      %v6505 = vmax.f32 %v6113, %v6309
      %v6506 = vmax.f32 %v6114, %v6310
      %v6507 = vmax.f32 %v6115, %v6311
      %v6508 = vmax.f32 %v6116, %v6312
      %v6509 = vmax.f32 %v6117, %v6313
      %v6510 = vmax.f32 %v6118, %v6314
      %v6511 = vmax.f32 %v6119, %v6315
      %v6512 = vmax.f32 %v6120, %v6316
      %v6513 = vmax.f32 %v6121, %v6317
      %v6514 = vmax.f32 %v6122, %v6318
      %v6515 = vmax.f32 %v6123, %v6319
      %v6516 = vmax.f32 %v6124, %v6320
      %v6517 = vmax.f32 %v6125, %v6321
      %v6518 = vmax.f32 %v6126, %v6322
      %v6519 = vmax.f32 %v6127, %v6323
      %v6520 = vmax.f32 %v6128, %v6324
      %v6521 = vmax.f32 %v6129, %v6325
      %v6522 = vmax.f32 %v6130, %v6326
      %v6523 = vmax.f32 %v6131, %v6327
      %v6524 = vmax.f32 %v6132, %v6328
      %v6525 = vmax.f32 %v6133, %v6329
      %v6526 = vmax.f32 %v6134, %v6330
      %v6527 = vmax.f32 %v6135, %v6331
      %v6528 = vmax.f32 %v6136, %v6332
      %v6529 = vmax.f32 %v6137, %v6333
      %v6530 = vmax.f32 %v6138, %v6334
      %v6531 = vmax.f32 %v6139, %v6335
      %v6532 = vmax.f32 %v6140, %v6336
      %v6533 = vmax.f32 %v6141, %v6337
      %v6534 = vmax.f32 %v6142, %v6338
      %v6535 = vmax.f32 %v6143, %v6339
      %v6536 = vmax.f32 %v6144, %v6340
      %v6537 = vmax.f32 %v6145, %v6341
      %v6538 = vmax.f32 %v6146, %v6342
      %v6539 = vmax.f32 %v6147, %v6343
      %v6540 = vmax.f32 %v6148, %v6344
      %v6541 = vmax.f32 %v6149, %v6345
      %v6542 = vmax.f32 %v6150, %v6346
      %v6543 = vmax.f32 %v6151, %v6347
      %v6544 = vmax.f32 %v6152, %v6348
      %v6545 = vmax.f32 %v6153, %v6349
      %v6546 = vmax.f32 %v6154, %v6350
      %v6547 = vmax.f32 %v6155, %v6351
      %v6548 = vmax.f32 %v6156, %v6352
      %v6549 = vmax.f32 %v6157, %v6353
      %v6550 = vmax.f32 %v6158, %v6354
      %v6551 = vmax.f32 %v6159, %v6355
      %v6552 = vmax.f32 %v6160, %v6356
      %v6553 = vmax.f32 %v6161, %v6357
      %v6554 = vmax.f32 %v6162, %v6358
      %v6555 = vmax.f32 %v6163, %v6359
      %v6556 = vmax.f32 %v6164, %v6360
      %v6557 = vmax.f32 %v6165, %v6361
      %v6558 = vmax.f32 %v6166, %v6362
      %v6559 = vmax.f32 %v6167, %v6363
      %v6560 = vmax.f32 %v6168, %v6364
      %v6561 = vmax.f32 %v6169, %v6365
      %v6562 = vmax.f32 %v6170, %v6366
      %v6563 = vmax.f32 %v6171, %v6367
      %v6564 = vmax.f32 %v6172, %v6368
      %v6565 = vmax.f32 %v6173, %v6369
      %v6566 = vmax.f32 %v6174, %v6370
      %v6567 = vmax.f32 %v6175, %v6371
      %v6568 = vmax.f32 %v6176, %v6372
      %v6569 = vmax.f32 %v6177, %v6373
      %v6570 = vmax.f32 %v6178, %v6374
      %v6571 = vmax.f32 %v6179, %v6375
      %v6572 = vmax.f32 %v6180, %v6376
      %v6573 = vmax.f32 %v6181, %v6377
      %v6574 = vmax.f32 %v6182, %v6378
      %v6575 = vmax.f32 %v6183, %v6379
      %v6576 = vmax.f32 %v6184, %v6380
      %v6577 = vmax.f32 %v6185, %v6381
      %v6578 = vmax.f32 %v6186, %v6382
      %v6579 = vmax.f32 %v6187, %v6383
      %v6580 = vmax.f32 %v6188, %v6384
      %v6581 = vmax.f32 %v6189, %v6385
      %v6582 = vmax.f32 %v6190, %v6386
      %v6583 = vmax.f32 %v6191, %v6387
      %v6584 = vmax.f32 %v6192, %v6388
      %v6585 = vmax.f32 %v6193, %v6389
      %v6586 = vmax.f32 %v6194, %v6390
      %v6587 = vmax.f32 %v6195, %v6391
      %v6588 = vmax.f32 %v6196, %v6392
      %v6589 = vmax.f32 %v6197, %v6393
      %v6590 = vmax.f32 %v6198, %v6394
      %v6591 = vmax.f32 %v6199, %v6395
      %v6592 = vmax.f32 %v6200, %v6396
      %v6593 = vmax.f32 %v6201, %v6397
      %v6594 = vmax.f32 %v6202, %v6398
      %v6595 = vmax.f32 %v6203, %v6399
      %v6596 = vmax.f32 %v6204, %v6400
      %v6597 = vmax.f32 %v6205, %v6401
      %v6598 = vmax.f32 %v6206, %v6402
      %v6599 = vmax.f32 %v6207, %v6403
      %v6600 = vmax.f32 %v6208, %v6404
      %v6601 = vmax.f32 %v6209, %v6405
      %v6602 = vmax.f32 %v6210, %v6406
      %v6603 = vmax.f32 %v6211, %v6407
      %v6604 = vmax.f32 %v6212, %v6408
      %v6605 = vmax.f32 %v6213, %v6409
      %v6606 = vmax.f32 %v6214, %v6410
      %v6607 = vmax.f32 %v6215, %v6411
      %v6608 = vmax.f32 %v6216, %v6412
      %v6609 = vmax.f32 %v6217, %v6413
      %v6610 = vmax.f32 %v6218, %v6414
      %v6611 = vmax.f32 %v6219, %v6415
      %v6612 = vmax.f32 %v6220, %v6416
      %v6613 = vmax.f32 %v6221, %v6417
      %v6614 = vmax.f32 %v6222, %v6418
      %v6615 = vmax.f32 %v6223, %v6419
      %v6616 = vmax.f32 %v6224, %v6420
      %v6617 = vmax.f32 %v6225, %v6421
      %v6618 = vmax.f32 %v6226, %v6422
      %v6619 = vmax.f32 %v6227, %v6423
      %v6620 = vmax.f32 %v6228, %v6424
      %v6621 = vmax.f32 %v6229, %v6425
      %v6622 = vmax.f32 %v6230, %v6426
      %v6623 = vmax.f32 %v6231, %v6427
      %v6624 = vmax.f32 %v6232, %v6428
      %v6625 = vmax.f32 %v6233, %v6429
      %v6626 = vmax.f32 %v6234, %v6430
      %v6627 = vmax.f32 %v6235, %v6431
      %v6628 = vmax.f32 %v6236, %v6432
      %v6629 = vmax.f32 %v6237, %v6433
      %v6630 = vmax.f32 %v6238, %v6434
      %v6631 = vmax.f32 %v6239, %v6435
      %v6632 = vmax.f32 %v6240, %v6436
      %v6633 = vmax.f32 %v6241, %v6437
      %v6634 = vmax.f32 %v6242, %v6438
      %v6635 = vmax.f32 %v6243, %v6439
      %v6636 = vmax.f32 %v6244, %v6440
      %v6637 = vmax.f32 %v6245, %v6441
      %v6638 = vmax.f32 %v6246, %v6442
      %v6639 = vmax.f32 %v6247, %v6443
      %v6640 = vmax.f32 %v6248, %v6444
      %v6641 = vmax.f32 %v6249, %v6445
      %v6642 = vmax.f32 %v6250, %v6446
      %v6643 = vmax.f32 %v6251, %v6447
      %v6644 = vmax.f32 %v6252, %v6448
      %v6645 = vmax.f32 %v6253, %v6449
      %v6646 = vmax.f32 %v6254, %v6450
      %v6647 = vmax.f32 %v6255, %v6451
      %v6648 = vmax.f32 %v6256, %v6452
      %v6649 = vmax.f32 %v6257, %v6453
      %v6650 = vmax.f32 %v6258, %v6454
      %v6651 = vmax.f32 %v6259, %v6455
      %v6652 = vmax.f32 %v6260, %v6456
      %v6653 = vmax.f32 %v6261, %v6457
      %v6654 = vmax.f32 %v6262, %v6458
      %v6655 = vmax.f32 %v6263, %v6459
      %v6656 = vmax.f32 %v6264, %v6460
      %v6657 = vmax.f32 %v6265, %v6461
      %v6658 = vmax.f32 %v6266, %v6462
      %v6659 = vmax.f32 %v6267, %v6463
      %v6660 = vmax.f32 %v6268, %v6464
      %v6661 = vmax.f32 %v6269, %v6465
      %v6662 = vmax.f32 %v6270, %v6466
      %v6663 = vmax.f32 %v6271, %v6467
      %v6664 = vmax.f32 %v6272, %v6468
      %v6665 = vmax.f32 %v6273, %v6469
      %v6666 = vmax.f32 %v6274, %v6470
      %v6667 = vld [vmem:[%s2] sm:$0x1]
      %v6669 = vperm.slane %v6667, 0
      %v6671 = vadd.f32 %v6471, %v6669
      %v6672 = vadd.f32 %v6472, %v6669
      %v6673 = vadd.f32 %v6473, %v6669
      %v6674 = vadd.f32 %v6474, %v6669
      %v6675 = vadd.f32 %v6475, %v6669
      %v6676 = vadd.f32 %v6476, %v6669
      %v6677 = vadd.f32 %v6477, %v6669
      %v6678 = vadd.f32 %v6478, %v6669
      %v6679 = vadd.f32 %v6479, %v6669
      %v6680 = vadd.f32 %v6480, %v6669
      %v6681 = vadd.f32 %v6481, %v6669
      %v6682 = vadd.f32 %v6482, %v6669
      %v6683 = vadd.f32 %v6483, %v6669
      %v6684 = vadd.f32 %v6484, %v6669
      %v6685 = vadd.f32 %v6485, %v6669
      %v6686 = vadd.f32 %v6486, %v6669
      %v6687 = vadd.f32 %v6487, %v6669
      %v6688 = vadd.f32 %v6488, %v6669
      %v6689 = vadd.f32 %v6489, %v6669
      %v6690 = vadd.f32 %v6490, %v6669
      %v6691 = vadd.f32 %v6491, %v6669
      %v6692 = vadd.f32 %v6492, %v6669
      %v6693 = vadd.f32 %v6493, %v6669
      %v6694 = vadd.f32 %v6494, %v6669
      %v6695 = vadd.f32 %v6495, %v6669
      %v6696 = vadd.f32 %v6496, %v6669
      %v6697 = vadd.f32 %v6497, %v6669
      %v6698 = vadd.f32 %v6498, %v6669
      %v6699 = vadd.f32 %v6499, %v6669
      %v6700 = vadd.f32 %v6500, %v6669
      %v6701 = vadd.f32 %v6501, %v6669
      %v6702 = vadd.f32 %v6502, %v6669
      %v6703 = vadd.f32 %v6503, %v6669
      %v6704 = vadd.f32 %v6504, %v6669
      %v6705 = vadd.f32 %v6505, %v6669
      %v6706 = vadd.f32 %v6506, %v6669
      %v6707 = vadd.f32 %v6507, %v6669
      %v6708 = vadd.f32 %v6508, %v6669
      %v6709 = vadd.f32 %v6509, %v6669
      %v6710 = vadd.f32 %v6510, %v6669
      %v6711 = vadd.f32 %v6511, %v6669
      %v6712 = vadd.f32 %v6512, %v6669
      %v6713 = vadd.f32 %v6513, %v6669
      %v6714 = vadd.f32 %v6514, %v6669
      %v6715 = vadd.f32 %v6515, %v6669
      %v6716 = vadd.f32 %v6516, %v6669
      %v6717 = vadd.f32 %v6517, %v6669
      %v6718 = vadd.f32 %v6518, %v6669
      %v6719 = vadd.f32 %v6519, %v6669
      %v6720 = vadd.f32 %v6520, %v6669
      %v6721 = vadd.f32 %v6521, %v6669
      %v6722 = vadd.f32 %v6522, %v6669
      %v6723 = vadd.f32 %v6523, %v6669
      %v6724 = vadd.f32 %v6524, %v6669
      %v6725 = vadd.f32 %v6525, %v6669
      %v6726 = vadd.f32 %v6526, %v6669
      %v6727 = vadd.f32 %v6527, %v6669
      %v6728 = vadd.f32 %v6528, %v6669
      %v6729 = vadd.f32 %v6529, %v6669
      %v6730 = vadd.f32 %v6530, %v6669
      %v6731 = vadd.f32 %v6531, %v6669
      %v6732 = vadd.f32 %v6532, %v6669
      %v6733 = vadd.f32 %v6533, %v6669
      %v6734 = vadd.f32 %v6534, %v6669
      %v6735 = vadd.f32 %v6535, %v6669
      %v6736 = vadd.f32 %v6536, %v6669
      %v6737 = vadd.f32 %v6537, %v6669
      %v6738 = vadd.f32 %v6538, %v6669
      %v6739 = vadd.f32 %v6539, %v6669
      %v6740 = vadd.f32 %v6540, %v6669
      %v6741 = vadd.f32 %v6541, %v6669
      %v6742 = vadd.f32 %v6542, %v6669
      %v6743 = vadd.f32 %v6543, %v6669
      %v6744 = vadd.f32 %v6544, %v6669
      %v6745 = vadd.f32 %v6545, %v6669
      %v6746 = vadd.f32 %v6546, %v6669
      %v6747 = vadd.f32 %v6547, %v6669
      %v6748 = vadd.f32 %v6548, %v6669
      %v6749 = vadd.f32 %v6549, %v6669
      %v6750 = vadd.f32 %v6550, %v6669
      %v6751 = vadd.f32 %v6551, %v6669
      %v6752 = vadd.f32 %v6552, %v6669
      %v6753 = vadd.f32 %v6553, %v6669
      %v6754 = vadd.f32 %v6554, %v6669
      %v6755 = vadd.f32 %v6555, %v6669
      %v6756 = vadd.f32 %v6556, %v6669
      %v6757 = vadd.f32 %v6557, %v6669
      %v6758 = vadd.f32 %v6558, %v6669
      %v6759 = vadd.f32 %v6559, %v6669
      %v6760 = vadd.f32 %v6560, %v6669
      %v6761 = vadd.f32 %v6561, %v6669
      %v6762 = vadd.f32 %v6562, %v6669
      %v6763 = vadd.f32 %v6563, %v6669
      %v6764 = vadd.f32 %v6564, %v6669
      %v6765 = vadd.f32 %v6565, %v6669
      %v6766 = vadd.f32 %v6566, %v6669
      %v6767 = vadd.f32 %v6567, %v6669
      %v6768 = vadd.f32 %v6568, %v6669
      %v6769 = vadd.f32 %v6569, %v6669
      %v6770 = vadd.f32 %v6570, %v6669
      %v6771 = vadd.f32 %v6571, %v6669
      %v6772 = vadd.f32 %v6572, %v6669
      %v6773 = vadd.f32 %v6573, %v6669
      %v6774 = vadd.f32 %v6574, %v6669
      %v6775 = vadd.f32 %v6575, %v6669
      %v6776 = vadd.f32 %v6576, %v6669
      %v6777 = vadd.f32 %v6577, %v6669
      %v6778 = vadd.f32 %v6578, %v6669
      %v6779 = vadd.f32 %v6579, %v6669
      %v6780 = vadd.f32 %v6580, %v6669
      %v6781 = vadd.f32 %v6581, %v6669
      %v6782 = vadd.f32 %v6582, %v6669
      %v6783 = vadd.f32 %v6583, %v6669
      %v6784 = vadd.f32 %v6584, %v6669
      %v6785 = vadd.f32 %v6585, %v6669
      %v6786 = vadd.f32 %v6586, %v6669
      %v6787 = vadd.f32 %v6587, %v6669
      %v6788 = vadd.f32 %v6588, %v6669
      %v6789 = vadd.f32 %v6589, %v6669
      %v6790 = vadd.f32 %v6590, %v6669
      %v6791 = vadd.f32 %v6591, %v6669
      %v6792 = vadd.f32 %v6592, %v6669
      %v6793 = vadd.f32 %v6593, %v6669
      %v6794 = vadd.f32 %v6594, %v6669
      %v6795 = vadd.f32 %v6595, %v6669
      %v6796 = vadd.f32 %v6596, %v6669
      %v6797 = vadd.f32 %v6597, %v6669
      %v6798 = vadd.f32 %v6598, %v6669
      %v6799 = vadd.f32 %v6599, %v6669
      %v6800 = vadd.f32 %v6600, %v6669
      %v6801 = vadd.f32 %v6601, %v6669
      %v6802 = vadd.f32 %v6602, %v6669
      %v6803 = vadd.f32 %v6603, %v6669
      %v6804 = vadd.f32 %v6604, %v6669
      %v6805 = vadd.f32 %v6605, %v6669
      %v6806 = vadd.f32 %v6606, %v6669
      %v6807 = vadd.f32 %v6607, %v6669
      %v6808 = vadd.f32 %v6608, %v6669
      %v6809 = vadd.f32 %v6609, %v6669
      %v6810 = vadd.f32 %v6610, %v6669
      %v6811 = vadd.f32 %v6611, %v6669
      %v6812 = vadd.f32 %v6612, %v6669
      %v6813 = vadd.f32 %v6613, %v6669
      %v6814 = vadd.f32 %v6614, %v6669
      %v6815 = vadd.f32 %v6615, %v6669
      %v6816 = vadd.f32 %v6616, %v6669
      %v6817 = vadd.f32 %v6617, %v6669
      %v6818 = vadd.f32 %v6618, %v6669
      %v6819 = vadd.f32 %v6619, %v6669
      %v6820 = vadd.f32 %v6620, %v6669
      %v6821 = vadd.f32 %v6621, %v6669
      %v6822 = vadd.f32 %v6622, %v6669
      %v6823 = vadd.f32 %v6623, %v6669
      %v6824 = vadd.f32 %v6624, %v6669
      %v6825 = vadd.f32 %v6625, %v6669
      %v6826 = vadd.f32 %v6626, %v6669
      %v6827 = vadd.f32 %v6627, %v6669
      %v6828 = vadd.f32 %v6628, %v6669
      %v6829 = vadd.f32 %v6629, %v6669
      %v6830 = vadd.f32 %v6630, %v6669
      %v6831 = vadd.f32 %v6631, %v6669
      %v6832 = vadd.f32 %v6632, %v6669
      %v6833 = vadd.f32 %v6633, %v6669
      %v6834 = vadd.f32 %v6634, %v6669
      %v6835 = vadd.f32 %v6635, %v6669
      %v6836 = vadd.f32 %v6636, %v6669
      %v6837 = vadd.f32 %v6637, %v6669
      %v6838 = vadd.f32 %v6638, %v6669
      %v6839 = vadd.f32 %v6639, %v6669
      %v6840 = vadd.f32 %v6640, %v6669
      %v6841 = vadd.f32 %v6641, %v6669
      %v6842 = vadd.f32 %v6642, %v6669
      %v6843 = vadd.f32 %v6643, %v6669
      %v6844 = vadd.f32 %v6644, %v6669
      %v6845 = vadd.f32 %v6645, %v6669
      %v6846 = vadd.f32 %v6646, %v6669
      %v6847 = vadd.f32 %v6647, %v6669
      %v6848 = vadd.f32 %v6648, %v6669
      %v6849 = vadd.f32 %v6649, %v6669
      %v6850 = vadd.f32 %v6650, %v6669
      %v6851 = vadd.f32 %v6651, %v6669
      %v6852 = vadd.f32 %v6652, %v6669
      %v6853 = vadd.f32 %v6653, %v6669
      %v6854 = vadd.f32 %v6654, %v6669
      %v6855 = vadd.f32 %v6655, %v6669
      %v6856 = vadd.f32 %v6656, %v6669
      %v6857 = vadd.f32 %v6657, %v6669
      %v6858 = vadd.f32 %v6658, %v6669
      %v6859 = vadd.f32 %v6659, %v6669
      %v6860 = vadd.f32 %v6660, %v6669
      %v6861 = vadd.f32 %v6661, %v6669
      %v6862 = vadd.f32 %v6662, %v6669
      %v6863 = vadd.f32 %v6663, %v6669
      %v6864 = vadd.f32 %v6664, %v6669
      %v6865 = vadd.f32 %v6665, %v6669
      %v6866 = vadd.f32 %v6666, %v6669
      %v6867 = vmax.f32 %v6671, 0.0
      %v6868 = vmax.f32 %v6672, 0.0
      %v6869 = vmax.f32 %v6673, 0.0
      %v6870 = vmax.f32 %v6674, 0.0
      %v6871 = vmax.f32 %v6675, 0.0
      %v6872 = vmax.f32 %v6676, 0.0
      %v6873 = vmax.f32 %v6677, 0.0
      %v6874 = vmax.f32 %v6678, 0.0
      %v6875 = vmax.f32 %v6679, 0.0
      %v6876 = vmax.f32 %v6680, 0.0
      %v6877 = vmax.f32 %v6681, 0.0
      %v6878 = vmax.f32 %v6682, 0.0
      %v6879 = vmax.f32 %v6683, 0.0
      %v6880 = vmax.f32 %v6684, 0.0
      %v6881 = vmax.f32 %v6685, 0.0
      %v6882 = vmax.f32 %v6686, 0.0
      %v6883 = vmax.f32 %v6687, 0.0
      %v6884 = vmax.f32 %v6688, 0.0
      %v6885 = vmax.f32 %v6689, 0.0
      %v6886 = vmax.f32 %v6690, 0.0
      %v6887 = vmax.f32 %v6691, 0.0
      %v6888 = vmax.f32 %v6692, 0.0
      %v6889 = vmax.f32 %v6693, 0.0
      %v6890 = vmax.f32 %v6694, 0.0
      %v6891 = vmax.f32 %v6695, 0.0
      %v6892 = vmax.f32 %v6696, 0.0
      %v6893 = vmax.f32 %v6697, 0.0
      %v6894 = vmax.f32 %v6698, 0.0
      %v6895 = vmax.f32 %v6699, 0.0
      %v6896 = vmax.f32 %v6700, 0.0
      %v6897 = vmax.f32 %v6701, 0.0
      %v6898 = vmax.f32 %v6702, 0.0
      %v6899 = vmax.f32 %v6703, 0.0
      %v6900 = vmax.f32 %v6704, 0.0
      %v6901 = vmax.f32 %v6705, 0.0
      %v6902 = vmax.f32 %v6706, 0.0
      %v6903 = vmax.f32 %v6707, 0.0
      %v6904 = vmax.f32 %v6708, 0.0
      %v6905 = vmax.f32 %v6709, 0.0
      %v6906 = vmax.f32 %v6710, 0.0
      %v6907 = vmax.f32 %v6711, 0.0
      %v6908 = vmax.f32 %v6712, 0.0
      %v6909 = vmax.f32 %v6713, 0.0
      %v6910 = vmax.f32 %v6714, 0.0
      %v6911 = vmax.f32 %v6715, 0.0
      %v6912 = vmax.f32 %v6716, 0.0
      %v6913 = vmax.f32 %v6717, 0.0
      %v6914 = vmax.f32 %v6718, 0.0
      %v6915 = vmax.f32 %v6719, 0.0
      %v6916 = vmax.f32 %v6720, 0.0
      %v6917 = vmax.f32 %v6721, 0.0
      %v6918 = vmax.f32 %v6722, 0.0
      %v6919 = vmax.f32 %v6723, 0.0
      %v6920 = vmax.f32 %v6724, 0.0
      %v6921 = vmax.f32 %v6725, 0.0
      %v6922 = vmax.f32 %v6726, 0.0
      %v6923 = vmax.f32 %v6727, 0.0
      %v6924 = vmax.f32 %v6728, 0.0
      %v6925 = vmax.f32 %v6729, 0.0
      %v6926 = vmax.f32 %v6730, 0.0
      %v6927 = vmax.f32 %v6731, 0.0
      %v6928 = vmax.f32 %v6732, 0.0
      %v6929 = vmax.f32 %v6733, 0.0
      %v6930 = vmax.f32 %v6734, 0.0
      %v6931 = vmax.f32 %v6735, 0.0
      %v6932 = vmax.f32 %v6736, 0.0
      %v6933 = vmax.f32 %v6737, 0.0
      %v6934 = vmax.f32 %v6738, 0.0
      %v6935 = vmax.f32 %v6739, 0.0
      %v6936 = vmax.f32 %v6740, 0.0
      %v6937 = vmax.f32 %v6741, 0.0
      %v6938 = vmax.f32 %v6742, 0.0
      %v6939 = vmax.f32 %v6743, 0.0
      %v6940 = vmax.f32 %v6744, 0.0
      %v6941 = vmax.f32 %v6745, 0.0
      %v6942 = vmax.f32 %v6746, 0.0
      %v6943 = vmax.f32 %v6747, 0.0
      %v6944 = vmax.f32 %v6748, 0.0
      %v6945 = vmax.f32 %v6749, 0.0
      %v6946 = vmax.f32 %v6750, 0.0
      %v6947 = vmax.f32 %v6751, 0.0
      %v6948 = vmax.f32 %v6752, 0.0
      %v6949 = vmax.f32 %v6753, 0.0
      %v6950 = vmax.f32 %v6754, 0.0
      %v6951 = vmax.f32 %v6755, 0.0
      %v6952 = vmax.f32 %v6756, 0.0
      %v6953 = vmax.f32 %v6757, 0.0
      %v6954 = vmax.f32 %v6758, 0.0
      %v6955 = vmax.f32 %v6759, 0.0
      %v6956 = vmax.f32 %v6760, 0.0
      %v6957 = vmax.f32 %v6761, 0.0
      %v6958 = vmax.f32 %v6762, 0.0
      %v6959 = vmax.f32 %v6763, 0.0
      %v6960 = vmax.f32 %v6764, 0.0
      %v6961 = vmax.f32 %v6765, 0.0
      %v6962 = vmax.f32 %v6766, 0.0
      %v6963 = vmax.f32 %v6767, 0.0
      %v6964 = vmax.f32 %v6768, 0.0
      %v6965 = vmax.f32 %v6769, 0.0
      %v6966 = vmax.f32 %v6770, 0.0
      %v6967 = vmax.f32 %v6771, 0.0
      %v6968 = vmax.f32 %v6772, 0.0
      %v6969 = vmax.f32 %v6773, 0.0
      %v6970 = vmax.f32 %v6774, 0.0
      %v6971 = vmax.f32 %v6775, 0.0
      %v6972 = vmax.f32 %v6776, 0.0
      %v6973 = vmax.f32 %v6777, 0.0
      %v6974 = vmax.f32 %v6778, 0.0
      %v6975 = vmax.f32 %v6779, 0.0
      %v6976 = vmax.f32 %v6780, 0.0
      %v6977 = vmax.f32 %v6781, 0.0
      %v6978 = vmax.f32 %v6782, 0.0
      %v6979 = vmax.f32 %v6783, 0.0
      %v6980 = vmax.f32 %v6784, 0.0
      %v6981 = vmax.f32 %v6785, 0.0
      %v6982 = vmax.f32 %v6786, 0.0
      %v6983 = vmax.f32 %v6787, 0.0
      %v6984 = vmax.f32 %v6788, 0.0
      %v6985 = vmax.f32 %v6789, 0.0
      %v6986 = vmax.f32 %v6790, 0.0
      %v6987 = vmax.f32 %v6791, 0.0
      %v6988 = vmax.f32 %v6792, 0.0
      %v6989 = vmax.f32 %v6793, 0.0
      %v6990 = vmax.f32 %v6794, 0.0
      %v6991 = vmax.f32 %v6795, 0.0
      %v6992 = vmax.f32 %v6796, 0.0
      %v6993 = vmax.f32 %v6797, 0.0
      %v6994 = vmax.f32 %v6798, 0.0
      %v6995 = vmax.f32 %v6799, 0.0
      %v6996 = vmax.f32 %v6800, 0.0
      %v6997 = vmax.f32 %v6801, 0.0
      %v6998 = vmax.f32 %v6802, 0.0
      %v6999 = vmax.f32 %v6803, 0.0
      %v7000 = vmax.f32 %v6804, 0.0
      %v7001 = vmax.f32 %v6805, 0.0
      %v7002 = vmax.f32 %v6806, 0.0
      %v7003 = vmax.f32 %v6807, 0.0
      %v7004 = vmax.f32 %v6808, 0.0
      %v7005 = vmax.f32 %v6809, 0.0
      %v7006 = vmax.f32 %v6810, 0.0
      %v7007 = vmax.f32 %v6811, 0.0
      %v7008 = vmax.f32 %v6812, 0.0
      %v7009 = vmax.f32 %v6813, 0.0
      %v7010 = vmax.f32 %v6814, 0.0
      %v7011 = vmax.f32 %v6815, 0.0
      %v7012 = vmax.f32 %v6816, 0.0
      %v7013 = vmax.f32 %v6817, 0.0
      %v7014 = vmax.f32 %v6818, 0.0
      %v7015 = vmax.f32 %v6819, 0.0
      %v7016 = vmax.f32 %v6820, 0.0
      %v7017 = vmax.f32 %v6821, 0.0
      %v7018 = vmax.f32 %v6822, 0.0
      %v7019 = vmax.f32 %v6823, 0.0
      %v7020 = vmax.f32 %v6824, 0.0
      %v7021 = vmax.f32 %v6825, 0.0
      %v7022 = vmax.f32 %v6826, 0.0
      %v7023 = vmax.f32 %v6827, 0.0
      %v7024 = vmax.f32 %v6828, 0.0
      %v7025 = vmax.f32 %v6829, 0.0
      %v7026 = vmax.f32 %v6830, 0.0
      %v7027 = vmax.f32 %v6831, 0.0
      %v7028 = vmax.f32 %v6832, 0.0
      %v7029 = vmax.f32 %v6833, 0.0
      %v7030 = vmax.f32 %v6834, 0.0
      %v7031 = vmax.f32 %v6835, 0.0
      %v7032 = vmax.f32 %v6836, 0.0
      %v7033 = vmax.f32 %v6837, 0.0
      %v7034 = vmax.f32 %v6838, 0.0
      %v7035 = vmax.f32 %v6839, 0.0
      %v7036 = vmax.f32 %v6840, 0.0
      %v7037 = vmax.f32 %v6841, 0.0
      %v7038 = vmax.f32 %v6842, 0.0
      %v7039 = vmax.f32 %v6843, 0.0
      %v7040 = vmax.f32 %v6844, 0.0
      %v7041 = vmax.f32 %v6845, 0.0
      %v7042 = vmax.f32 %v6846, 0.0
      %v7043 = vmax.f32 %v6847, 0.0
      %v7044 = vmax.f32 %v6848, 0.0
      %v7045 = vmax.f32 %v6849, 0.0
      %v7046 = vmax.f32 %v6850, 0.0
      %v7047 = vmax.f32 %v6851, 0.0
      %v7048 = vmax.f32 %v6852, 0.0
      %v7049 = vmax.f32 %v6853, 0.0
      %v7050 = vmax.f32 %v6854, 0.0
      %v7051 = vmax.f32 %v6855, 0.0
      %v7052 = vmax.f32 %v6856, 0.0
      %v7053 = vmax.f32 %v6857, 0.0
      %v7054 = vmax.f32 %v6858, 0.0
      %v7055 = vmax.f32 %v6859, 0.0
      %v7056 = vmax.f32 %v6860, 0.0
      %v7057 = vmax.f32 %v6861, 0.0
      %v7058 = vmax.f32 %v6862, 0.0
      %v7059 = vmax.f32 %v6863, 0.0
      %v7060 = vmax.f32 %v6864, 0.0
      %v7061 = vmax.f32 %v6865, 0.0
      %v7062 = vmax.f32 %v6866, 0.0
      %v7063 = vpack.c.bf16 %v6867, %v6867
      %v7064 = vpack.c.bf16 %v6868, %v6868
      %v7065 = vpack.c.bf16 %v6869, %v6869
      %v7066 = vpack.c.bf16 %v6870, %v6870
      %v7067 = vpack.c.bf16 %v6871, %v6871
      %v7068 = vpack.c.bf16 %v6872, %v6872
      %v7069 = vpack.c.bf16 %v6873, %v6873
      %v7070 = vpack.c.bf16 %v6874, %v6874
      %v7071 = vpack.c.bf16 %v6875, %v6875
      %v7072 = vpack.c.bf16 %v6876, %v6876
      %v7073 = vpack.c.bf16 %v6877, %v6877
      %v7074 = vpack.c.bf16 %v6878, %v6878
      %v7075 = vpack.c.bf16 %v6879, %v6879
      %v7076 = vpack.c.bf16 %v6880, %v6880
      %v7077 = vpack.c.bf16 %v6881, %v6881
      %v7078 = vpack.c.bf16 %v6882, %v6882
      %v7079 = vpack.c.bf16 %v6883, %v6883
      %v7080 = vpack.c.bf16 %v6884, %v6884
      %v7081 = vpack.c.bf16 %v6885, %v6885
      %v7082 = vpack.c.bf16 %v6886, %v6886
      %v7083 = vpack.c.bf16 %v6887, %v6887
      %v7084 = vpack.c.bf16 %v6888, %v6888
      %v7085 = vpack.c.bf16 %v6889, %v6889
      %v7086 = vpack.c.bf16 %v6890, %v6890
      %v7087 = vpack.c.bf16 %v6891, %v6891
      %v7088 = vpack.c.bf16 %v6892, %v6892
      %v7089 = vpack.c.bf16 %v6893, %v6893
      %v7090 = vpack.c.bf16 %v6894, %v6894
      %v7091 = vpack.c.bf16 %v6895, %v6895
      %v7092 = vpack.c.bf16 %v6896, %v6896
      %v7093 = vpack.c.bf16 %v6897, %v6897
      %v7094 = vpack.c.bf16 %v6898, %v6898
      %v7095 = vpack.c.bf16 %v6899, %v6899
      %v7096 = vpack.c.bf16 %v6900, %v6900
      %v7097 = vpack.c.bf16 %v6901, %v6901
      %v7098 = vpack.c.bf16 %v6902, %v6902
      %v7099 = vpack.c.bf16 %v6903, %v6903
      %v7100 = vpack.c.bf16 %v6904, %v6904
      %v7101 = vpack.c.bf16 %v6905, %v6905
      %v7102 = vpack.c.bf16 %v6906, %v6906
      %v7103 = vpack.c.bf16 %v6907, %v6907
      %v7104 = vpack.c.bf16 %v6908, %v6908
      %v7105 = vpack.c.bf16 %v6909, %v6909
      %v7106 = vpack.c.bf16 %v6910, %v6910
      %v7107 = vpack.c.bf16 %v6911, %v6911
      %v7108 = vpack.c.bf16 %v6912, %v6912
      %v7109 = vpack.c.bf16 %v6913, %v6913
      %v7110 = vpack.c.bf16 %v6914, %v6914
      %v7111 = vpack.c.bf16 %v6915, %v6915
      %v7112 = vpack.c.bf16 %v6916, %v6916
      %v7113 = vpack.c.bf16 %v6917, %v6917
      %v7114 = vpack.c.bf16 %v6918, %v6918
      %v7115 = vpack.c.bf16 %v6919, %v6919
      %v7116 = vpack.c.bf16 %v6920, %v6920
      %v7117 = vpack.c.bf16 %v6921, %v6921
      %v7118 = vpack.c.bf16 %v6922, %v6922
      %v7119 = vpack.c.bf16 %v6923, %v6923
      %v7120 = vpack.c.bf16 %v6924, %v6924
      %v7121 = vpack.c.bf16 %v6925, %v6925
      %v7122 = vpack.c.bf16 %v6926, %v6926
      %v7123 = vpack.c.bf16 %v6927, %v6927
      %v7124 = vpack.c.bf16 %v6928, %v6928
      %v7125 = vpack.c.bf16 %v6929, %v6929
      %v7126 = vpack.c.bf16 %v6930, %v6930
      %v7127 = vpack.c.bf16 %v6931, %v6931
      %v7128 = vpack.c.bf16 %v6932, %v6932
      %v7129 = vpack.c.bf16 %v6933, %v6933
      %v7130 = vpack.c.bf16 %v6934, %v6934
      %v7131 = vpack.c.bf16 %v6935, %v6935
      %v7132 = vpack.c.bf16 %v6936, %v6936
      %v7133 = vpack.c.bf16 %v6937, %v6937
      %v7134 = vpack.c.bf16 %v6938, %v6938
      %v7135 = vpack.c.bf16 %v6939, %v6939
      %v7136 = vpack.c.bf16 %v6940, %v6940
      %v7137 = vpack.c.bf16 %v6941, %v6941
      %v7138 = vpack.c.bf16 %v6942, %v6942
      %v7139 = vpack.c.bf16 %v6943, %v6943
      %v7140 = vpack.c.bf16 %v6944, %v6944
      %v7141 = vpack.c.bf16 %v6945, %v6945
      %v7142 = vpack.c.bf16 %v6946, %v6946
      %v7143 = vpack.c.bf16 %v6947, %v6947
      %v7144 = vpack.c.bf16 %v6948, %v6948
      %v7145 = vpack.c.bf16 %v6949, %v6949
      %v7146 = vpack.c.bf16 %v6950, %v6950
      %v7147 = vpack.c.bf16 %v6951, %v6951
      %v7148 = vpack.c.bf16 %v6952, %v6952
      %v7149 = vpack.c.bf16 %v6953, %v6953
      %v7150 = vpack.c.bf16 %v6954, %v6954
      %v7151 = vpack.c.bf16 %v6955, %v6955
      %v7152 = vpack.c.bf16 %v6956, %v6956
      %v7153 = vpack.c.bf16 %v6957, %v6957
      %v7154 = vpack.c.bf16 %v6958, %v6958
      %v7155 = vpack.c.bf16 %v6959, %v6959
      %v7156 = vpack.c.bf16 %v6960, %v6960
      %v7157 = vpack.c.bf16 %v6961, %v6961
      %v7158 = vpack.c.bf16 %v6962, %v6962
      %v7159 = vpack.c.bf16 %v6963, %v6963
      %v7160 = vpack.c.bf16 %v6964, %v6964
      %v7161 = vpack.c.bf16 %v6965, %v6965
      %v7162 = vpack.c.bf16 %v6966, %v6966
      %v7163 = vpack.c.bf16 %v6967, %v6967
      %v7164 = vpack.c.bf16 %v6968, %v6968
      %v7165 = vpack.c.bf16 %v6969, %v6969
      %v7166 = vpack.c.bf16 %v6970, %v6970
      %v7167 = vpack.c.bf16 %v6971, %v6971
      %v7168 = vpack.c.bf16 %v6972, %v6972
      %v7169 = vpack.c.bf16 %v6973, %v6973
      %v7170 = vpack.c.bf16 %v6974, %v6974
      %v7171 = vpack.c.bf16 %v6975, %v6975
      %v7172 = vpack.c.bf16 %v6976, %v6976
      %v7173 = vpack.c.bf16 %v6977, %v6977
      %v7174 = vpack.c.bf16 %v6978, %v6978
      %v7175 = vpack.c.bf16 %v6979, %v6979
      %v7176 = vpack.c.bf16 %v6980, %v6980
      %v7177 = vpack.c.bf16 %v6981, %v6981
      %v7178 = vpack.c.bf16 %v6982, %v6982
      %v7179 = vpack.c.bf16 %v6983, %v6983
      %v7180 = vpack.c.bf16 %v6984, %v6984
      %v7181 = vpack.c.bf16 %v6985, %v6985
      %v7182 = vpack.c.bf16 %v6986, %v6986
      %v7183 = vpack.c.bf16 %v6987, %v6987
      %v7184 = vpack.c.bf16 %v6988, %v6988
      %v7185 = vpack.c.bf16 %v6989, %v6989
      %v7186 = vpack.c.bf16 %v6990, %v6990
      %v7187 = vpack.c.bf16 %v6991, %v6991
      %v7188 = vpack.c.bf16 %v6992, %v6992
      %v7189 = vpack.c.bf16 %v6993, %v6993
      %v7190 = vpack.c.bf16 %v6994, %v6994
      %v7191 = vpack.c.bf16 %v6995, %v6995
      %v7192 = vpack.c.bf16 %v6996, %v6996
      %v7193 = vpack.c.bf16 %v6997, %v6997
      %v7194 = vpack.c.bf16 %v6998, %v6998
      %v7195 = vpack.c.bf16 %v6999, %v6999
      %v7196 = vpack.c.bf16 %v7000, %v7000
      %v7197 = vpack.c.bf16 %v7001, %v7001
      %v7198 = vpack.c.bf16 %v7002, %v7002
      %v7199 = vpack.c.bf16 %v7003, %v7003
      %v7200 = vpack.c.bf16 %v7004, %v7004
      %v7201 = vpack.c.bf16 %v7005, %v7005
      %v7202 = vpack.c.bf16 %v7006, %v7006
      %v7203 = vpack.c.bf16 %v7007, %v7007
      %v7204 = vpack.c.bf16 %v7008, %v7008
      %v7205 = vpack.c.bf16 %v7009, %v7009
      %v7206 = vpack.c.bf16 %v7010, %v7010
      %v7207 = vpack.c.bf16 %v7011, %v7011
      %v7208 = vpack.c.bf16 %v7012, %v7012
      %v7209 = vpack.c.bf16 %v7013, %v7013
      %v7210 = vpack.c.bf16 %v7014, %v7014
      %v7211 = vpack.c.bf16 %v7015, %v7015
      %v7212 = vpack.c.bf16 %v7016, %v7016
      %v7213 = vpack.c.bf16 %v7017, %v7017
      %v7214 = vpack.c.bf16 %v7018, %v7018
      %v7215 = vpack.c.bf16 %v7019, %v7019
      %v7216 = vpack.c.bf16 %v7020, %v7020
      %v7217 = vpack.c.bf16 %v7021, %v7021
      %v7218 = vpack.c.bf16 %v7022, %v7022
      %v7219 = vpack.c.bf16 %v7023, %v7023
      %v7220 = vpack.c.bf16 %v7024, %v7024
      %v7221 = vpack.c.bf16 %v7025, %v7025
      %v7222 = vpack.c.bf16 %v7026, %v7026
      %v7223 = vpack.c.bf16 %v7027, %v7027
      %v7224 = vpack.c.bf16 %v7028, %v7028
      %v7225 = vpack.c.bf16 %v7029, %v7029
      %v7226 = vpack.c.bf16 %v7030, %v7030
      %v7227 = vpack.c.bf16 %v7031, %v7031
      %v7228 = vpack.c.bf16 %v7032, %v7032
      %v7229 = vpack.c.bf16 %v7033, %v7033
      %v7230 = vpack.c.bf16 %v7034, %v7034
      %v7231 = vpack.c.bf16 %v7035, %v7035
      %v7232 = vpack.c.bf16 %v7036, %v7036
      %v7233 = vpack.c.bf16 %v7037, %v7037
      %v7234 = vpack.c.bf16 %v7038, %v7038
      %v7235 = vpack.c.bf16 %v7039, %v7039
      %v7236 = vpack.c.bf16 %v7040, %v7040
      %v7237 = vpack.c.bf16 %v7041, %v7041
      %v7238 = vpack.c.bf16 %v7042, %v7042
      %v7239 = vpack.c.bf16 %v7043, %v7043
      %v7240 = vpack.c.bf16 %v7044, %v7044
      %v7241 = vpack.c.bf16 %v7045, %v7045
      %v7242 = vpack.c.bf16 %v7046, %v7046
      %v7243 = vpack.c.bf16 %v7047, %v7047
      %v7244 = vpack.c.bf16 %v7048, %v7048
      %v7245 = vpack.c.bf16 %v7049, %v7049
      %v7246 = vpack.c.bf16 %v7050, %v7050
      %v7247 = vpack.c.bf16 %v7051, %v7051
      %v7248 = vpack.c.bf16 %v7052, %v7052
      %v7249 = vpack.c.bf16 %v7053, %v7053
      %v7250 = vpack.c.bf16 %v7054, %v7054
      %v7251 = vpack.c.bf16 %v7055, %v7055
      %v7252 = vpack.c.bf16 %v7056, %v7056
      %v7253 = vpack.c.bf16 %v7057, %v7057
      %v7254 = vpack.c.bf16 %v7058, %v7058
      %v7255 = vpack.c.bf16 %v7059, %v7059
      %v7256 = vpack.c.bf16 %v7060, %v7060
      %v7257 = vpack.c.bf16 %v7061, %v7061
      %v7258 = vpack.c.bf16 %v7062, %v7062
      %vm7259 = vcmask 60416
      %7260 = vst.msk [vmem:[%s172] sm:$0xf] %vm7259, %v7063
      %7261 = vst.msk [vmem:[%s172 + $0x4] sm:$0xf] %vm7259, %v7064
      %7262 = vst.msk [vmem:[%s172 + $0x8] sm:$0xf] %vm7259, %v7065
      %7263 = vst.msk [vmem:[%s172 + $0xc] sm:$0xf] %vm7259, %v7066
      %7264 = vst.msk [vmem:[%s172 + $0x10] sm:$0xf] %vm7259, %v7067
      %7265 = vst.msk [vmem:[%s172 + $0x14] sm:$0xf] %vm7259, %v7068
      %7266 = vst.msk [vmem:[%s172 + $0x18] sm:$0xf] %vm7259, %v7069
      %7267 = vst.msk [vmem:[%s172 + $0x1c] sm:$0xf] %vm7259, %v7070
      %7268 = vst.msk [vmem:[%s172 + $0x20] sm:$0xf] %vm7259, %v7071
      %7269 = vst.msk [vmem:[%s172 + $0x24] sm:$0xf] %vm7259, %v7072
      %7270 = vst.msk [vmem:[%s172 + $0x28] sm:$0xf] %vm7259, %v7073
      %7271 = vst.msk [vmem:[%s172 + $0x2c] sm:$0xf] %vm7259, %v7074
      %7272 = vst.msk [vmem:[%s172 + $0x30] sm:$0xf] %vm7259, %v7075
      %7273 = vst.msk [vmem:[%s172 + $0x34] sm:$0xf] %vm7259, %v7076
      %7274 = vst.msk [vmem:[%s172 + $0x38] sm:$0xf] %vm7259, %v7077
      %7275 = vst.msk [vmem:[%s172 + $0x3c] sm:$0xf] %vm7259, %v7078
      %7276 = vst.msk [vmem:[%s172 + $0x40] sm:$0xf] %vm7259, %v7079
      %7277 = vst.msk [vmem:[%s172 + $0x44] sm:$0xf] %vm7259, %v7080
      %7278 = vst.msk [vmem:[%s172 + $0x48] sm:$0xf] %vm7259, %v7081
      %7279 = vst.msk [vmem:[%s172 + $0x4c] sm:$0xf] %vm7259, %v7082
      %7280 = vst.msk [vmem:[%s172 + $0x50] sm:$0xf] %vm7259, %v7083
      %7281 = vst.msk [vmem:[%s172 + $0x54] sm:$0xf] %vm7259, %v7084
      %7282 = vst.msk [vmem:[%s172 + $0x58] sm:$0xf] %vm7259, %v7085
      %7283 = vst.msk [vmem:[%s172 + $0x5c] sm:$0xf] %vm7259, %v7086
      %7284 = vst.msk [vmem:[%s172 + $0x60] sm:$0xf] %vm7259, %v7087
      %7285 = vst.msk [vmem:[%s172 + $0x64] sm:$0xf] %vm7259, %v7088
      %7286 = vst.msk [vmem:[%s172 + $0x68] sm:$0xf] %vm7259, %v7089
      %7287 = vst.msk [vmem:[%s172 + $0x6c] sm:$0xf] %vm7259, %v7090
      %7288 = vst.msk [vmem:[%s172 + $0x70] sm:$0xf] %vm7259, %v7091
      %7289 = vst.msk [vmem:[%s172 + $0x74] sm:$0xf] %vm7259, %v7092
      %7290 = vst.msk [vmem:[%s172 + $0x78] sm:$0xf] %vm7259, %v7093
      %7291 = vst.msk [vmem:[%s172 + $0x7c] sm:$0xf] %vm7259, %v7094
      %7292 = vst.msk [vmem:[%s172 + $0x80] sm:$0xf] %vm7259, %v7095
      %7293 = vst.msk [vmem:[%s172 + $0x84] sm:$0xf] %vm7259, %v7096
      %7294 = vst.msk [vmem:[%s172 + $0x88] sm:$0xf] %vm7259, %v7097
      %7295 = vst.msk [vmem:[%s172 + $0x8c] sm:$0xf] %vm7259, %v7098
      %7296 = vst.msk [vmem:[%s172 + $0x90] sm:$0xf] %vm7259, %v7099
      %7297 = vst.msk [vmem:[%s172 + $0x94] sm:$0xf] %vm7259, %v7100
      %7298 = vst.msk [vmem:[%s172 + $0x98] sm:$0xf] %vm7259, %v7101
      %7299 = vst.msk [vmem:[%s172 + $0x9c] sm:$0xf] %vm7259, %v7102
      %7300 = vst.msk [vmem:[%s172 + $0xa0] sm:$0xf] %vm7259, %v7103
      %7301 = vst.msk [vmem:[%s172 + $0xa4] sm:$0xf] %vm7259, %v7104
      %7302 = vst.msk [vmem:[%s172 + $0xa8] sm:$0xf] %vm7259, %v7105
      %7303 = vst.msk [vmem:[%s172 + $0xac] sm:$0xf] %vm7259, %v7106
      %7304 = vst.msk [vmem:[%s172 + $0xb0] sm:$0xf] %vm7259, %v7107
      %7305 = vst.msk [vmem:[%s172 + $0xb4] sm:$0xf] %vm7259, %v7108
      %7306 = vst.msk [vmem:[%s172 + $0xb8] sm:$0xf] %vm7259, %v7109
      %7307 = vst.msk [vmem:[%s172 + $0xbc] sm:$0xf] %vm7259, %v7110
      %7308 = vst.msk [vmem:[%s172 + $0xc0] sm:$0xf] %vm7259, %v7111
      %7309 = vst.msk [vmem:[%s172 + $0xc4] sm:$0xf] %vm7259, %v7112
      %7310 = vst.msk [vmem:[%s172 + $0xc8] sm:$0xf] %vm7259, %v7113
      %7311 = vst.msk [vmem:[%s172 + $0xcc] sm:$0xf] %vm7259, %v7114
      %7312 = vst.msk [vmem:[%s172 + $0xd0] sm:$0xf] %vm7259, %v7115
      %7313 = vst.msk [vmem:[%s172 + $0xd4] sm:$0xf] %vm7259, %v7116
      %7314 = vst.msk [vmem:[%s172 + $0xd8] sm:$0xf] %vm7259, %v7117
      %7315 = vst.msk [vmem:[%s172 + $0xdc] sm:$0xf] %vm7259, %v7118
      %7316 = vst.msk [vmem:[%s172 + $0xe0] sm:$0xf] %vm7259, %v7119
      %7317 = vst.msk [vmem:[%s172 + $0xe4] sm:$0xf] %vm7259, %v7120
      %7318 = vst.msk [vmem:[%s172 + $0xe8] sm:$0xf] %vm7259, %v7121
      %7319 = vst.msk [vmem:[%s172 + $0xec] sm:$0xf] %vm7259, %v7122
      %7320 = vst.msk [vmem:[%s172 + $0xf0] sm:$0xf] %vm7259, %v7123
      %7321 = vst.msk [vmem:[%s172 + $0xf4] sm:$0xf] %vm7259, %v7124
      %7322 = vst.msk [vmem:[%s172 + $0xf8] sm:$0xf] %vm7259, %v7125
      %7323 = vst.msk [vmem:[%s172 + $0xfc] sm:$0xf] %vm7259, %v7126
      %7324 = vst.msk [vmem:[%s172 + $0x100] sm:$0xf] %vm7259, %v7127
      %7325 = vst.msk [vmem:[%s172 + $0x104] sm:$0xf] %vm7259, %v7128
      %7326 = vst.msk [vmem:[%s172 + $0x108] sm:$0xf] %vm7259, %v7129
      %7327 = vst.msk [vmem:[%s172 + $0x10c] sm:$0xf] %vm7259, %v7130
      %7328 = vst.msk [vmem:[%s172 + $0x110] sm:$0xf] %vm7259, %v7131
      %7329 = vst.msk [vmem:[%s172 + $0x114] sm:$0xf] %vm7259, %v7132
      %7330 = vst.msk [vmem:[%s172 + $0x118] sm:$0xf] %vm7259, %v7133
      %7331 = vst.msk [vmem:[%s172 + $0x11c] sm:$0xf] %vm7259, %v7134
      %7332 = vst.msk [vmem:[%s172 + $0x120] sm:$0xf] %vm7259, %v7135
      %7333 = vst.msk [vmem:[%s172 + $0x124] sm:$0xf] %vm7259, %v7136
      %7334 = vst.msk [vmem:[%s172 + $0x128] sm:$0xf] %vm7259, %v7137
      %7335 = vst.msk [vmem:[%s172 + $0x12c] sm:$0xf] %vm7259, %v7138
      %7336 = vst.msk [vmem:[%s172 + $0x130] sm:$0xf] %vm7259, %v7139
      %7337 = vst.msk [vmem:[%s172 + $0x134] sm:$0xf] %vm7259, %v7140
      %7338 = vst.msk [vmem:[%s172 + $0x138] sm:$0xf] %vm7259, %v7141
      %7339 = vst.msk [vmem:[%s172 + $0x13c] sm:$0xf] %vm7259, %v7142
      %7340 = vst.msk [vmem:[%s172 + $0x140] sm:$0xf] %vm7259, %v7143
      %7341 = vst.msk [vmem:[%s172 + $0x144] sm:$0xf] %vm7259, %v7144
      %7342 = vst.msk [vmem:[%s172 + $0x148] sm:$0xf] %vm7259, %v7145
      %7343 = vst.msk [vmem:[%s172 + $0x14c] sm:$0xf] %vm7259, %v7146
      %7344 = vst.msk [vmem:[%s172 + $0x150] sm:$0xf] %vm7259, %v7147
      %7345 = vst.msk [vmem:[%s172 + $0x154] sm:$0xf] %vm7259, %v7148
      %7346 = vst.msk [vmem:[%s172 + $0x158] sm:$0xf] %vm7259, %v7149
      %7347 = vst.msk [vmem:[%s172 + $0x15c] sm:$0xf] %vm7259, %v7150
      %7348 = vst.msk [vmem:[%s172 + $0x160] sm:$0xf] %vm7259, %v7151
      %7349 = vst.msk [vmem:[%s172 + $0x164] sm:$0xf] %vm7259, %v7152
      %7350 = vst.msk [vmem:[%s172 + $0x168] sm:$0xf] %vm7259, %v7153
      %7351 = vst.msk [vmem:[%s172 + $0x16c] sm:$0xf] %vm7259, %v7154
      %7352 = vst.msk [vmem:[%s172 + $0x170] sm:$0xf] %vm7259, %v7155
      %7353 = vst.msk [vmem:[%s172 + $0x174] sm:$0xf] %vm7259, %v7156
      %7354 = vst.msk [vmem:[%s172 + $0x178] sm:$0xf] %vm7259, %v7157
      %7355 = vst.msk [vmem:[%s172 + $0x17c] sm:$0xf] %vm7259, %v7158
      %7356 = vst.msk [vmem:[%s172 + $0x180] sm:$0xf] %vm7259, %v7159
      %7357 = vst.msk [vmem:[%s172 + $0x184] sm:$0xf] %vm7259, %v7160
      %7358 = vst.msk [vmem:[%s172 + $0x188] sm:$0xf] %vm7259, %v7161
      %7359 = vst.msk [vmem:[%s172 + $0x18c] sm:$0xf] %vm7259, %v7162
      %7360 = vst.msk [vmem:[%s172 + $0x190] sm:$0xf] %vm7259, %v7163
      %7361 = vst.msk [vmem:[%s172 + $0x194] sm:$0xf] %vm7259, %v7164
      %7362 = vst.msk [vmem:[%s172 + $0x198] sm:$0xf] %vm7259, %v7165
      %7363 = vst.msk [vmem:[%s172 + $0x19c] sm:$0xf] %vm7259, %v7166
      %7364 = vst.msk [vmem:[%s172 + $0x1a0] sm:$0xf] %vm7259, %v7167
      %7365 = vst.msk [vmem:[%s172 + $0x1a4] sm:$0xf] %vm7259, %v7168
      %7366 = vst.msk [vmem:[%s172 + $0x1a8] sm:$0xf] %vm7259, %v7169
      %7367 = vst.msk [vmem:[%s172 + $0x1ac] sm:$0xf] %vm7259, %v7170
      %7368 = vst.msk [vmem:[%s172 + $0x1b0] sm:$0xf] %vm7259, %v7171
      %7369 = vst.msk [vmem:[%s172 + $0x1b4] sm:$0xf] %vm7259, %v7172
      %7370 = vst.msk [vmem:[%s172 + $0x1b8] sm:$0xf] %vm7259, %v7173
      %7371 = vst.msk [vmem:[%s172 + $0x1bc] sm:$0xf] %vm7259, %v7174
      %7372 = vst.msk [vmem:[%s172 + $0x1c0] sm:$0xf] %vm7259, %v7175
      %7373 = vst.msk [vmem:[%s172 + $0x1c4] sm:$0xf] %vm7259, %v7176
      %7374 = vst.msk [vmem:[%s172 + $0x1c8] sm:$0xf] %vm7259, %v7177
      %7375 = vst.msk [vmem:[%s172 + $0x1cc] sm:$0xf] %vm7259, %v7178
      %7376 = vst.msk [vmem:[%s172 + $0x1d0] sm:$0xf] %vm7259, %v7179
      %7377 = vst.msk [vmem:[%s172 + $0x1d4] sm:$0xf] %vm7259, %v7180
      %7378 = vst.msk [vmem:[%s172 + $0x1d8] sm:$0xf] %vm7259, %v7181
      %7379 = vst.msk [vmem:[%s172 + $0x1dc] sm:$0xf] %vm7259, %v7182
      %7380 = vst.msk [vmem:[%s172 + $0x1e0] sm:$0xf] %vm7259, %v7183
      %7381 = vst.msk [vmem:[%s172 + $0x1e4] sm:$0xf] %vm7259, %v7184
      %7382 = vst.msk [vmem:[%s172 + $0x1e8] sm:$0xf] %vm7259, %v7185
      %7383 = vst.msk [vmem:[%s172 + $0x1ec] sm:$0xf] %vm7259, %v7186
      %7384 = vst.msk [vmem:[%s172 + $0x1f0] sm:$0xf] %vm7259, %v7187
      %7385 = vst.msk [vmem:[%s172 + $0x1f4] sm:$0xf] %vm7259, %v7188
      %7386 = vst.msk [vmem:[%s172 + $0x1f8] sm:$0xf] %vm7259, %v7189
      %7387 = vst.msk [vmem:[%s172 + $0x1fc] sm:$0xf] %vm7259, %v7190
      %7388 = vst.msk [vmem:[%s172 + $0x200] sm:$0xf] %vm7259, %v7191
      %7389 = vst.msk [vmem:[%s172 + $0x204] sm:$0xf] %vm7259, %v7192
      %7390 = vst.msk [vmem:[%s172 + $0x208] sm:$0xf] %vm7259, %v7193
      %7391 = vst.msk [vmem:[%s172 + $0x20c] sm:$0xf] %vm7259, %v7194
      %7392 = vst.msk [vmem:[%s172 + $0x210] sm:$0xf] %vm7259, %v7195
      %7393 = vst.msk [vmem:[%s172 + $0x214] sm:$0xf] %vm7259, %v7196
      %7394 = vst.msk [vmem:[%s172 + $0x218] sm:$0xf] %vm7259, %v7197
      %7395 = vst.msk [vmem:[%s172 + $0x21c] sm:$0xf] %vm7259, %v7198
      %7396 = vst.msk [vmem:[%s172 + $0x220] sm:$0xf] %vm7259, %v7199
      %7397 = vst.msk [vmem:[%s172 + $0x224] sm:$0xf] %vm7259, %v7200
      %7398 = vst.msk [vmem:[%s172 + $0x228] sm:$0xf] %vm7259, %v7201
      %7399 = vst.msk [vmem:[%s172 + $0x22c] sm:$0xf] %vm7259, %v7202
      %7400 = vst.msk [vmem:[%s172 + $0x230] sm:$0xf] %vm7259, %v7203
      %7401 = vst.msk [vmem:[%s172 + $0x234] sm:$0xf] %vm7259, %v7204
      %7402 = vst.msk [vmem:[%s172 + $0x238] sm:$0xf] %vm7259, %v7205
      %7403 = vst.msk [vmem:[%s172 + $0x23c] sm:$0xf] %vm7259, %v7206
      %7404 = vst.msk [vmem:[%s172 + $0x240] sm:$0xf] %vm7259, %v7207
      %7405 = vst.msk [vmem:[%s172 + $0x244] sm:$0xf] %vm7259, %v7208
      %7406 = vst.msk [vmem:[%s172 + $0x248] sm:$0xf] %vm7259, %v7209
      %7407 = vst.msk [vmem:[%s172 + $0x24c] sm:$0xf] %vm7259, %v7210
      %7408 = vst.msk [vmem:[%s172 + $0x250] sm:$0xf] %vm7259, %v7211
      %7409 = vst.msk [vmem:[%s172 + $0x254] sm:$0xf] %vm7259, %v7212
      %7410 = vst.msk [vmem:[%s172 + $0x258] sm:$0xf] %vm7259, %v7213
      %7411 = vst.msk [vmem:[%s172 + $0x25c] sm:$0xf] %vm7259, %v7214
      %7412 = vst.msk [vmem:[%s172 + $0x260] sm:$0xf] %vm7259, %v7215
      %7413 = vst.msk [vmem:[%s172 + $0x264] sm:$0xf] %vm7259, %v7216
      %7414 = vst.msk [vmem:[%s172 + $0x268] sm:$0xf] %vm7259, %v7217
      %7415 = vst.msk [vmem:[%s172 + $0x26c] sm:$0xf] %vm7259, %v7218
      %7416 = vst.msk [vmem:[%s172 + $0x270] sm:$0xf] %vm7259, %v7219
      %7417 = vst.msk [vmem:[%s172 + $0x274] sm:$0xf] %vm7259, %v7220
      %7418 = vst.msk [vmem:[%s172 + $0x278] sm:$0xf] %vm7259, %v7221
      %7419 = vst.msk [vmem:[%s172 + $0x27c] sm:$0xf] %vm7259, %v7222
      %7420 = vst.msk [vmem:[%s172 + $0x280] sm:$0xf] %vm7259, %v7223
      %7421 = vst.msk [vmem:[%s172 + $0x284] sm:$0xf] %vm7259, %v7224
      %7422 = vst.msk [vmem:[%s172 + $0x288] sm:$0xf] %vm7259, %v7225
      %7423 = vst.msk [vmem:[%s172 + $0x28c] sm:$0xf] %vm7259, %v7226
      %7424 = vst.msk [vmem:[%s172 + $0x290] sm:$0xf] %vm7259, %v7227
      %7425 = vst.msk [vmem:[%s172 + $0x294] sm:$0xf] %vm7259, %v7228
      %7426 = vst.msk [vmem:[%s172 + $0x298] sm:$0xf] %vm7259, %v7229
      %7427 = vst.msk [vmem:[%s172 + $0x29c] sm:$0xf] %vm7259, %v7230
      %7428 = vst.msk [vmem:[%s172 + $0x2a0] sm:$0xf] %vm7259, %v7231
      %7429 = vst.msk [vmem:[%s172 + $0x2a4] sm:$0xf] %vm7259, %v7232
      %7430 = vst.msk [vmem:[%s172 + $0x2a8] sm:$0xf] %vm7259, %v7233
      %7431 = vst.msk [vmem:[%s172 + $0x2ac] sm:$0xf] %vm7259, %v7234
      %7432 = vst.msk [vmem:[%s172 + $0x2b0] sm:$0xf] %vm7259, %v7235
      %7433 = vst.msk [vmem:[%s172 + $0x2b4] sm:$0xf] %vm7259, %v7236
      %7434 = vst.msk [vmem:[%s172 + $0x2b8] sm:$0xf] %vm7259, %v7237
      %7435 = vst.msk [vmem:[%s172 + $0x2bc] sm:$0xf] %vm7259, %v7238
      %7436 = vst.msk [vmem:[%s172 + $0x2c0] sm:$0xf] %vm7259, %v7239
      %7437 = vst.msk [vmem:[%s172 + $0x2c4] sm:$0xf] %vm7259, %v7240
      %7438 = vst.msk [vmem:[%s172 + $0x2c8] sm:$0xf] %vm7259, %v7241
      %7439 = vst.msk [vmem:[%s172 + $0x2cc] sm:$0xf] %vm7259, %v7242
      %7440 = vst.msk [vmem:[%s172 + $0x2d0] sm:$0xf] %vm7259, %v7243
      %7441 = vst.msk [vmem:[%s172 + $0x2d4] sm:$0xf] %vm7259, %v7244
      %7442 = vst.msk [vmem:[%s172 + $0x2d8] sm:$0xf] %vm7259, %v7245
      %7443 = vst.msk [vmem:[%s172 + $0x2dc] sm:$0xf] %vm7259, %v7246
      %7444 = vst.msk [vmem:[%s172 + $0x2e0] sm:$0xf] %vm7259, %v7247
      %7445 = vst.msk [vmem:[%s172 + $0x2e4] sm:$0xf] %vm7259, %v7248
      %7446 = vst.msk [vmem:[%s172 + $0x2e8] sm:$0xf] %vm7259, %v7249
      %7447 = vst.msk [vmem:[%s172 + $0x2ec] sm:$0xf] %vm7259, %v7250
      %7448 = vst.msk [vmem:[%s172 + $0x2f0] sm:$0xf] %vm7259, %v7251
      %7449 = vst.msk [vmem:[%s172 + $0x2f4] sm:$0xf] %vm7259, %v7252
      %7450 = vst.msk [vmem:[%s172 + $0x2f8] sm:$0xf] %vm7259, %v7253
      %7451 = vst.msk [vmem:[%s172 + $0x2fc] sm:$0xf] %vm7259, %v7254
      %7452 = vst.msk [vmem:[%s172 + $0x300] sm:$0xf] %vm7259, %v7255
      %7453 = vst.msk [vmem:[%s172 + $0x304] sm:$0xf] %vm7259, %v7256
      %7454 = vst.msk [vmem:[%s172 + $0x308] sm:$0xf] %vm7259, %v7257
      %7455 = vst.msk [vmem:[%s172 + $0x30c] sm:$0xf] %vm7259, %v7258
      %s7456 = smul.u32 196, %s14
      %p7457 = scmp.lt.s32.totalorder %s7456, 391
      %s7458 = scalar_select %p7457, %s7456, 391
      %s7459 = smul.addr %s7458, 4
      %s7460 = scalar_lea.vmem %s3, %s7459
      // Predicated region
      $region33: #{convnet_dropout_forward.3} parent=31 // pred_check
        %p7461 = pneg %p100
      $region34: #{convnet_dropout_forward.3} parent=31 // pred_check_branch
        %7463 = sbr.rel (%p7461) target = $region36
      $region35: #{convnet_dropout_forward.3} parent=31 // pred_region
        %s7464 = smul.u32 196, %s14
      $region36: #{convnet_dropout_forward.3} parent=31 // pred_fallthru
        _
    $region32: #{convnet_dropout_forward.3} parent=5 // pred_fallthru
      _
    %p7465 = scmp.le.s32.totalorder 2, %s9
    // Predicated region
    $region37: #{convnet_dropout_forward.3} parent=5 // pred_check
      %p7466 = pneg %p7465
    $region38: #{convnet_dropout_forward.3} parent=5 // pred_check_branch
      %7468 = sbr.rel (%p7466) target = $region40
    $region39: #{convnet_dropout_forward.3} parent=5 // pred_region
      %s7469 = ssub.s32 %s9, 2
      // Predicated region
      $region41: #{convnet_dropout_forward.3} parent=39 // pred_check
        %p7470 = pneg %p106
      $region42: #{convnet_dropout_forward.3} parent=39 // pred_check_branch
        %7472 = sbr.rel (%p7470) target = $region44
      $region43: #{convnet_dropout_forward.3} parent=39 // pred_region
        %s7473 = smul.u32 196, %s15
        %p7474 = scmp.lt.s32.totalorder %s7473, 391
        %s7475 = scalar_select %p7474, %s7473, 391
        %s7476 = smul.addr %s7475, 4
        %s7477 = scalar_lea.vmem %s3, %s7476
      $region44: #{convnet_dropout_forward.3} parent=39 // pred_fallthru
        _
    $region40: #{convnet_dropout_forward.3} parent=5 // pred_fallthru
      _
  $region6: #{convnet_dropout_forward.3} parent=0 // loop_footer
    %s13 = sadd.s32 1, %s9
  $region7: #{convnet_dropout_forward.3} parent=0 // loop_footer_branch
    %8 = sbr.rel target = $region3
  $region8: #{convnet_dropout_forward.3} parent=0 // loop_exit
    _

// kernel: convnet_dropout_forward.4
$region0: #{convnet_dropout_forward.4}
  #allocation0 [shape = 'u32[]', space=smem, size = 0x4, offset = 0x4, fixed_abs, tag = 'smem constant byte address 0x4 - core index']
  #allocation1 [shape = 'u32[72,128]{1,0:T(1,128)}', space=vmem, size = 0x9000, scoped, tag = 'internal scratch']
  %s0 = inlined_call_operand.vmem [shape: bf16[3136,72], index: 0, kind: input, shape index: {}]
  %s1 = inlined_call_operand.vmem [shape: bf16[72,16], index: 1, kind: input, shape index: {}]
  %s2 = inlined_call_operand.vmem [shape: f32[1,16], index: 2, kind: input, shape index: {}]
  %s3 = inlined_call_operand.vmem [shape: bf16[784,16], index: 3, kind: output, shape index: {}]
  %s4 = sld [smem:[#allocation0]]
  $region45: #{convnet_dropout_forward.4} parent=0
    _
  %s6 = ssub.s32 1, %s4
  %s7 = scalar_select 0, %s6, %s4
  loop: start=0, step=1, limit=4
  $region2: #{convnet_dropout_forward.4} parent=0 // loop_pre_header
    _
  $region3: #{convnet_dropout_forward.4} parent=0 // loop_header
    %s9 = sphi 0, %s13
    %p10 = scmp.ge.s32.totalorder %s9, 4
    %s19 = sphi 0, %s21
    %s22 = sphi 0, %s19
    %s23 = sphi 0, %s22
    %s39 = sphi 0, %s23
    %s43 = sphi 0, %s43
    %s45 = sphi 0, %s43
    %s46 = sphi 0, %s45
    %s60 = sphi 0, %s46
    %s64 = sphi 0, %s64
    %s66 = sphi 0, %s64
    %s67 = sphi 0, %s66
    %s81 = sphi 0, %s67
    %s87 = sphi 0, %s89
    %s90 = sphi 0, %s87
    %s91 = sphi 0, %s90
    %s107 = sphi 0, %s91
  $region4: #{convnet_dropout_forward.4} parent=0 // loop_header_branch
    %12 = sbr.rel (%p10) target = $region8
  $region5: #{convnet_dropout_forward.4} parent=0 // loop_body
    %s14 = ssub.s32 %s9, 1
    %s15 = ssub.s32 %s9, 2
    %s16 = sadd.s32 %s9, 1
    %s17 = ssub.s32 %s9, %s16
    %p18 = scmp.eq.s32.totalorder %s17, 0
    %s20 = sadd.s32 %s19, 1
    %s21 = scalar_select %p18, %s19, %s20
    %p24 = pneg %p18
    %p25 = scmp.eq.s32.totalorder %s9, 1
    %p26 = por %p24, %p25
    %p27 = scmp.ne.s32.totalorder %s19, %s22
    %p28 = scmp.eq.s32.totalorder %s9, 0
    %p29 = por %p27, %p28
    %p30 = scmp.ne.s32.totalorder %s19, %s22
    %p31 = scmp.eq.s32.totalorder %s14, 1
    %p32 = por %p30, %p31
    %p33 = scmp.ne.s32.totalorder %s22, %s23
    %p34 = scmp.eq.s32.totalorder %s14, 0
    %p35 = por %p33, %p34
    %p36 = scmp.ne.s32.totalorder %s22, %s23
    %p37 = scmp.eq.s32.totalorder %s15, 1
    %p38 = por %p36, %p37
    %p40 = scmp.ne.s32.totalorder %s23, %s39
    %p41 = scmp.eq.s32.totalorder %s15, 0
    %p42 = por %p40, %p41
    %s44 = sadd.s32 %s43, 1
    %p47 = scmp.eq.s32.totalorder %s9, 1
    %p48 = scmp.ne.s32.totalorder %s43, %s45
    %p49 = scmp.eq.s32.totalorder %s9, 0
    %p50 = por %p48, %p49
    %p51 = scmp.ne.s32.totalorder %s43, %s45
    %p52 = scmp.eq.s32.totalorder %s14, 1
    %p53 = por %p51, %p52
    %p54 = scmp.ne.s32.totalorder %s45, %s46
    %p55 = scmp.eq.s32.totalorder %s14, 0
    %p56 = por %p54, %p55
    %p57 = scmp.ne.s32.totalorder %s45, %s46
    %p58 = scmp.eq.s32.totalorder %s15, 1
    %p59 = por %p57, %p58
    %p61 = scmp.ne.s32.totalorder %s46, %s60
    %p62 = scmp.eq.s32.totalorder %s15, 0
    %p63 = por %p61, %p62
    %s65 = sadd.s32 %s64, 1
    %p68 = scmp.eq.s32.totalorder %s9, 1
    %p69 = scmp.ne.s32.totalorder %s64, %s66
    %p70 = scmp.eq.s32.totalorder %s9, 0
    %p71 = por %p69, %p70
    %p72 = scmp.ne.s32.totalorder %s64, %s66
    %p73 = scmp.eq.s32.totalorder %s14, 1
    %p74 = por %p72, %p73
    %p75 = scmp.ne.s32.totalorder %s66, %s67
    %p76 = scmp.eq.s32.totalorder %s14, 0
    %p77 = por %p75, %p76
    %p78 = scmp.ne.s32.totalorder %s66, %s67
    %p79 = scmp.eq.s32.totalorder %s15, 1
    %p80 = por %p78, %p79
    %p82 = scmp.ne.s32.totalorder %s67, %s81
    %p83 = scmp.eq.s32.totalorder %s15, 0
    %p84 = por %p82, %p83
    %s85 = ssub.s32 %s9, %s16
    %p86 = scmp.eq.s32.totalorder %s85, 0
    %s88 = sadd.s32 %s87, 1
    %s89 = scalar_select %p86, %s87, %s88
    %p92 = pneg %p86
    %p93 = scmp.eq.s32.totalorder %s9, 1
    %p94 = por %p92, %p93
    %p95 = scmp.ne.s32.totalorder %s87, %s90
    %p96 = scmp.eq.s32.totalorder %s9, 0
    %p97 = por %p95, %p96
    %p98 = scmp.ne.s32.totalorder %s87, %s90
    %p99 = scmp.eq.s32.totalorder %s14, 1
    %p100 = por %p98, %p99
    %p101 = scmp.ne.s32.totalorder %s90, %s91
    %p102 = scmp.eq.s32.totalorder %s14, 0
    %p103 = por %p101, %p102
    %p104 = scmp.ne.s32.totalorder %s90, %s91
    %p105 = scmp.eq.s32.totalorder %s15, 1
    %p106 = por %p104, %p105
    %p108 = scmp.ne.s32.totalorder %s91, %s107
    %p109 = scmp.eq.s32.totalorder %s15, 0
    %p110 = por %p108, %p109
    %p111 = scmp.le.s32.totalorder 1, %s9
    %p112 = scmp.lt.s32.totalorder %s9, 3
    %p113 = pnand %p111, %p112
    %p114 = pneg %p113
    // Predicated region
    $region9: #{convnet_dropout_forward.4} parent=5 // pred_check
      _
    $region10: #{convnet_dropout_forward.4} parent=5 // pred_check_branch
      %116 = sbr.rel (%p113) target = $region12
    $region11: #{convnet_dropout_forward.4} parent=5 // pred_region
      %s117 = ssub.s32 %s9, 1
      // Predicated region
      $region13: #{convnet_dropout_forward.4} parent=11 // pred_check
        %p118 = pneg %p56
      $region14: #{convnet_dropout_forward.4} parent=11 // pred_check_branch
        %120 = sbr.rel (%p118) target = $region16
      $region15: #{convnet_dropout_forward.4} parent=11 // pred_region
        _
      $region16: #{convnet_dropout_forward.4} parent=11 // pred_fallthru
        _
      // Predicated region
      $region17: #{convnet_dropout_forward.4} parent=11 // pred_check
        %p121 = pneg %p77
      $region18: #{convnet_dropout_forward.4} parent=11 // pred_check_branch
        %123 = sbr.rel (%p121) target = $region20
      $region19: #{convnet_dropout_forward.4} parent=11 // pred_region
        _
      $region20: #{convnet_dropout_forward.4} parent=11 // pred_fallthru
        _
    $region12: #{convnet_dropout_forward.4} parent=5 // pred_fallthru
      _
    %p124 = scmp.lt.s32.totalorder %s9, 2
    // Predicated region
    $region21: #{convnet_dropout_forward.4} parent=5 // pred_check
      %p125 = pneg %p124
    $region22: #{convnet_dropout_forward.4} parent=5 // pred_check_branch
      %127 = sbr.rel (%p125) target = $region24
    $region23: #{convnet_dropout_forward.4} parent=5 // pred_region
      // Predicated region
      $region25: #{convnet_dropout_forward.4} parent=23 // pred_check
        %p128 = pneg %p29
      $region26: #{convnet_dropout_forward.4} parent=23 // pred_check_branch
        %130 = sbr.rel (%p128) target = $region28
      $region27: #{convnet_dropout_forward.4} parent=23 // pred_region
        %s131 = smul.u32 196, %s9
        %p132 = scmp.lt.s32.totalorder %s131, 391
        %s133 = scalar_select %p132, %s131, 391
        %s134 = smul.addr %s133, 4
        %s135 = scalar_lea.vmem %s0, %s134
        %s136 = smul.u32 196, %s9
      $region28: #{convnet_dropout_forward.4} parent=23 // pred_fallthru
        _
    $region24: #{convnet_dropout_forward.4} parent=5 // pred_fallthru
      _
    %p137 = scmp.le.s32.totalorder 1, %s9
    %p138 = scmp.lt.s32.totalorder %s9, 3
    %p139 = pnand %p137, %p138
    %p140 = pneg %p139
    // Predicated region
    $region29: #{convnet_dropout_forward.4} parent=5 // pred_check
      _
    $region30: #{convnet_dropout_forward.4} parent=5 // pred_check_branch
      %142 = sbr.rel (%p139) target = $region32
    $region31: #{convnet_dropout_forward.4} parent=5 // pred_region
      %s143 = ssub.s32 %s9, 1
      %s144 = smul.u32 196, %s14
      %p145 = scmp.lt.s32.totalorder %s144, 391
      %s146 = scalar_select %p145, %s144, 391
      %s147 = smul.addr %s146, 4
      %s148 = scalar_lea.vmem %s0, %s147
      %p149 = pneg %p35
      %p150 = pneg %p32
      %p151 = pneg %p56
      %p152 = pneg %p53
      %p153 = pneg %p77
      %p154 = pneg %p74
      %p155 = pneg %p103
      %p156 = pneg %p100
      %s157 = smul.u32 49, %s14
      %p158 = scmp.lt.s32.totalorder %s157, 97
      %s159 = scalar_select %p158, %s157, 97
      %s160 = smul.addr %s159, 4
      %s161 = scalar_lea.vmem %s3, %s160
      %s162 = smul.u32 196, %s14
      %p163 = scmp.lt.s32.totalorder %s162, 391
      %s164 = scalar_select %p163, %s162, 391
      %s165 = smul.addr %s164, 4
      %s166 = scalar_lea.vmem %s0, %s165
      %s167 = smul.u32 196, %s14
      %s168 = smul.u32 49, %s14
      %p169 = scmp.lt.s32.totalorder %s168, 97
      %s170 = scalar_select %p169, %s168, 97
      %s171 = smul.addr %s170, 4
      %s172 = scalar_lea.vmem %s3, %s171
      %s173 = smul.u32 49, %s14
      %v175 = vld [vmem:[%s166] sm:$0xf]
      %v176 = vld [vmem:[%s166 + $0x4] sm:$0xf]
      %v177 = vld [vmem:[%s166 + $0x8] sm:$0xf]
      %v178 = vld [vmem:[%s166 + $0xc] sm:$0xf]
      %v179 = vld [vmem:[%s166 + $0x10] sm:$0xf]
      %v180 = vld [vmem:[%s166 + $0x14] sm:$0xf]
      %v181 = vld [vmem:[%s166 + $0x18] sm:$0xf]
      %v182 = vld [vmem:[%s166 + $0x1c] sm:$0xf]
      %v183 = vld [vmem:[%s166 + $0x20] sm:$0xf]
      %v184 = vld [vmem:[%s166 + $0x24] sm:$0xf]
      %v185 = vld [vmem:[%s166 + $0x28] sm:$0xf]
      %v186 = vld [vmem:[%s166 + $0x2c] sm:$0xf]
      %v187 = vld [vmem:[%s166 + $0x30] sm:$0xf]
      %v188 = vld [vmem:[%s166 + $0x34] sm:$0xf]
      %v189 = vld [vmem:[%s166 + $0x38] sm:$0xf]
      %v190 = vld [vmem:[%s166 + $0x3c] sm:$0xf]
      %v191 = vld [vmem:[%s166 + $0x40] sm:$0xf]
      %v192 = vld [vmem:[%s166 + $0x44] sm:$0xf]
      %v193 = vld [vmem:[%s166 + $0x48] sm:$0xf]
      %v194 = vld [vmem:[%s166 + $0x4c] sm:$0xf]
      %v195 = vld [vmem:[%s166 + $0x50] sm:$0xf]
      %v196 = vld [vmem:[%s166 + $0x54] sm:$0xf]
      %v197 = vld [vmem:[%s166 + $0x58] sm:$0xf]
      %v198 = vld [vmem:[%s166 + $0x5c] sm:$0xf]
      %v199 = vld [vmem:[%s166 + $0x60] sm:$0xf]
      %v200 = vld [vmem:[%s166 + $0x64] sm:$0xf]
      %v201 = vld [vmem:[%s166 + $0x68] sm:$0xf]
      %v202 = vld [vmem:[%s166 + $0x6c] sm:$0xf]
      %v203 = vld [vmem:[%s166 + $0x70] sm:$0xf]
      %v204 = vld [vmem:[%s166 + $0x74] sm:$0xf]
      %v205 = vld [vmem:[%s166 + $0x78] sm:$0xf]
      %v206 = vld [vmem:[%s166 + $0x7c] sm:$0xf]
      %v207 = vld [vmem:[%s166 + $0x80] sm:$0xf]
      %v208 = vld [vmem:[%s166 + $0x84] sm:$0xf]
      %v209 = vld [vmem:[%s166 + $0x88] sm:$0xf]
      %v210 = vld [vmem:[%s166 + $0x8c] sm:$0xf]
      %v211 = vld [vmem:[%s166 + $0x90] sm:$0xf]
      %v212 = vld [vmem:[%s166 + $0x94] sm:$0xf]
      %v213 = vld [vmem:[%s166 + $0x98] sm:$0xf]
      %v214 = vld [vmem:[%s166 + $0x9c] sm:$0xf]
      %v215 = vld [vmem:[%s166 + $0xa0] sm:$0xf]
      %v216 = vld [vmem:[%s166 + $0xa4] sm:$0xf]
      %v217 = vld [vmem:[%s166 + $0xa8] sm:$0xf]
      %v218 = vld [vmem:[%s166 + $0xac] sm:$0xf]
      %v219 = vld [vmem:[%s166 + $0xb0] sm:$0xf]
      %v220 = vld [vmem:[%s166 + $0xb4] sm:$0xf]
      %v221 = vld [vmem:[%s166 + $0xb8] sm:$0xf]
      %v222 = vld [vmem:[%s166 + $0xbc] sm:$0xf]
      %v223 = vld [vmem:[%s166 + $0xc0] sm:$0xf]
      %v224 = vld [vmem:[%s166 + $0xc4] sm:$0xf]
      %v225 = vld [vmem:[%s166 + $0xc8] sm:$0xf]
      %v226 = vld [vmem:[%s166 + $0xcc] sm:$0xf]
      %v227 = vld [vmem:[%s166 + $0xd0] sm:$0xf]
      %v228 = vld [vmem:[%s166 + $0xd4] sm:$0xf]
      %v229 = vld [vmem:[%s166 + $0xd8] sm:$0xf]
      %v230 = vld [vmem:[%s166 + $0xdc] sm:$0xf]
      %v231 = vld [vmem:[%s166 + $0xe0] sm:$0xf]
      %v232 = vld [vmem:[%s166 + $0xe4] sm:$0xf]
      %v233 = vld [vmem:[%s166 + $0xe8] sm:$0xf]
      %v234 = vld [vmem:[%s166 + $0xec] sm:$0xf]
      %v235 = vld [vmem:[%s166 + $0xf0] sm:$0xf]
      %v236 = vld [vmem:[%s166 + $0xf4] sm:$0xf]
      %v237 = vld [vmem:[%s166 + $0xf8] sm:$0xf]
      %v238 = vld [vmem:[%s166 + $0xfc] sm:$0xf]
      %v239 = vld [vmem:[%s166 + $0x100] sm:$0xf]
      %v240 = vld [vmem:[%s166 + $0x104] sm:$0xf]
      %v241 = vld [vmem:[%s166 + $0x108] sm:$0xf]
      %v242 = vld [vmem:[%s166 + $0x10c] sm:$0xf]
      %v243 = vld [vmem:[%s166 + $0x110] sm:$0xf]
      %v244 = vld [vmem:[%s166 + $0x114] sm:$0xf]
      %v245 = vld [vmem:[%s166 + $0x118] sm:$0xf]
      %v246 = vld [vmem:[%s166 + $0x11c] sm:$0xf]
      %v247 = vld [vmem:[%s166 + $0x120] sm:$0xf]
      %v248 = vld [vmem:[%s166 + $0x124] sm:$0xf]
      %v249 = vld [vmem:[%s166 + $0x128] sm:$0xf]
      %v250 = vld [vmem:[%s166 + $0x12c] sm:$0xf]
      %v251 = vld [vmem:[%s166 + $0x130] sm:$0xf]
      %v252 = vld [vmem:[%s166 + $0x134] sm:$0xf]
      %v253 = vld [vmem:[%s166 + $0x138] sm:$0xf]
      %v254 = vld [vmem:[%s166 + $0x13c] sm:$0xf]
      %v255 = vld [vmem:[%s166 + $0x140] sm:$0xf]
      %v256 = vld [vmem:[%s166 + $0x144] sm:$0xf]
      %v257 = vld [vmem:[%s166 + $0x148] sm:$0xf]
      %v258 = vld [vmem:[%s166 + $0x14c] sm:$0xf]
      %v259 = vld [vmem:[%s166 + $0x150] sm:$0xf]
      %v260 = vld [vmem:[%s166 + $0x154] sm:$0xf]
      %v261 = vld [vmem:[%s166 + $0x158] sm:$0xf]
      %v262 = vld [vmem:[%s166 + $0x15c] sm:$0xf]
      %v263 = vld [vmem:[%s166 + $0x160] sm:$0xf]
      %v264 = vld [vmem:[%s166 + $0x164] sm:$0xf]
      %v265 = vld [vmem:[%s166 + $0x168] sm:$0xf]
      %v266 = vld [vmem:[%s166 + $0x16c] sm:$0xf]
      %v267 = vld [vmem:[%s166 + $0x170] sm:$0xf]
      %v268 = vld [vmem:[%s166 + $0x174] sm:$0xf]
      %v269 = vld [vmem:[%s166 + $0x178] sm:$0xf]
      %v270 = vld [vmem:[%s166 + $0x17c] sm:$0xf]
      %v271 = vld [vmem:[%s166 + $0x180] sm:$0xf]
      %v272 = vld [vmem:[%s166 + $0x184] sm:$0xf]
      %v273 = vld [vmem:[%s166 + $0x188] sm:$0xf]
      %v274 = vld [vmem:[%s166 + $0x18c] sm:$0xf]
      %v275 = vld [vmem:[%s166 + $0x190] sm:$0xf]
      %v276 = vld [vmem:[%s166 + $0x194] sm:$0xf]
      %v277 = vld [vmem:[%s166 + $0x198] sm:$0xf]
      %v278 = vld [vmem:[%s166 + $0x19c] sm:$0xf]
      %v279 = vld [vmem:[%s166 + $0x1a0] sm:$0xf]
      %v280 = vld [vmem:[%s166 + $0x1a4] sm:$0xf]
      %v281 = vld [vmem:[%s166 + $0x1a8] sm:$0xf]
      %v282 = vld [vmem:[%s166 + $0x1ac] sm:$0xf]
      %v283 = vld [vmem:[%s166 + $0x1b0] sm:$0xf]
      %v284 = vld [vmem:[%s166 + $0x1b4] sm:$0xf]
      %v285 = vld [vmem:[%s166 + $0x1b8] sm:$0xf]
      %v286 = vld [vmem:[%s166 + $0x1bc] sm:$0xf]
      %v287 = vld [vmem:[%s166 + $0x1c0] sm:$0xf]
      %v288 = vld [vmem:[%s166 + $0x1c4] sm:$0xf]
      %v289 = vld [vmem:[%s166 + $0x1c8] sm:$0xf]
      %v290 = vld [vmem:[%s166 + $0x1cc] sm:$0xf]
      %v291 = vld [vmem:[%s166 + $0x1d0] sm:$0xf]
      %v292 = vld [vmem:[%s166 + $0x1d4] sm:$0xf]
      %v293 = vld [vmem:[%s166 + $0x1d8] sm:$0xf]
      %v294 = vld [vmem:[%s166 + $0x1dc] sm:$0xf]
      %v295 = vld [vmem:[%s166 + $0x1e0] sm:$0xf]
      %v296 = vld [vmem:[%s166 + $0x1e4] sm:$0xf]
      %v297 = vld [vmem:[%s166 + $0x1e8] sm:$0xf]
      %v298 = vld [vmem:[%s166 + $0x1ec] sm:$0xf]
      %v299 = vld [vmem:[%s166 + $0x1f0] sm:$0xf]
      %v300 = vld [vmem:[%s166 + $0x1f4] sm:$0xf]
      %v301 = vld [vmem:[%s166 + $0x1f8] sm:$0xf]
      %v302 = vld [vmem:[%s166 + $0x1fc] sm:$0xf]
      %v303 = vld [vmem:[%s166 + $0x200] sm:$0xf]
      %v304 = vld [vmem:[%s166 + $0x204] sm:$0xf]
      %v305 = vld [vmem:[%s166 + $0x208] sm:$0xf]
      %v306 = vld [vmem:[%s166 + $0x20c] sm:$0xf]
      %v307 = vld [vmem:[%s166 + $0x210] sm:$0xf]
      %v308 = vld [vmem:[%s166 + $0x214] sm:$0xf]
      %v309 = vld [vmem:[%s166 + $0x218] sm:$0xf]
      %v310 = vld [vmem:[%s166 + $0x21c] sm:$0xf]
      %v311 = vld [vmem:[%s166 + $0x220] sm:$0xf]
      %v312 = vld [vmem:[%s166 + $0x224] sm:$0xf]
      %v313 = vld [vmem:[%s166 + $0x228] sm:$0xf]
      %v314 = vld [vmem:[%s166 + $0x22c] sm:$0xf]
      %v315 = vld [vmem:[%s166 + $0x230] sm:$0xf]
      %v316 = vld [vmem:[%s166 + $0x234] sm:$0xf]
      %v317 = vld [vmem:[%s166 + $0x238] sm:$0xf]
      %v318 = vld [vmem:[%s166 + $0x23c] sm:$0xf]
      %v319 = vld [vmem:[%s166 + $0x240] sm:$0xf]
      %v320 = vld [vmem:[%s166 + $0x244] sm:$0xf]
      %v321 = vld [vmem:[%s166 + $0x248] sm:$0xf]
      %v322 = vld [vmem:[%s166 + $0x24c] sm:$0xf]
      %v323 = vld [vmem:[%s166 + $0x250] sm:$0xf]
      %v324 = vld [vmem:[%s166 + $0x254] sm:$0xf]
      %v325 = vld [vmem:[%s166 + $0x258] sm:$0xf]
      %v326 = vld [vmem:[%s166 + $0x25c] sm:$0xf]
      %v327 = vld [vmem:[%s166 + $0x260] sm:$0xf]
      %v328 = vld [vmem:[%s166 + $0x264] sm:$0xf]
      %v329 = vld [vmem:[%s166 + $0x268] sm:$0xf]
      %v330 = vld [vmem:[%s166 + $0x26c] sm:$0xf]
      %v331 = vld [vmem:[%s166 + $0x270] sm:$0xf]
      %v332 = vld [vmem:[%s166 + $0x274] sm:$0xf]
      %v333 = vld [vmem:[%s166 + $0x278] sm:$0xf]
      %v334 = vld [vmem:[%s166 + $0x27c] sm:$0xf]
      %v335 = vld [vmem:[%s166 + $0x280] sm:$0xf]
      %v336 = vld [vmem:[%s166 + $0x284] sm:$0xf]
      %v337 = vld [vmem:[%s166 + $0x288] sm:$0xf]
      %v338 = vld [vmem:[%s166 + $0x28c] sm:$0xf]
      %v339 = vld [vmem:[%s166 + $0x290] sm:$0xf]
      %v340 = vld [vmem:[%s166 + $0x294] sm:$0xf]
      %v341 = vld [vmem:[%s166 + $0x298] sm:$0xf]
      %v342 = vld [vmem:[%s166 + $0x29c] sm:$0xf]
      %v343 = vld [vmem:[%s166 + $0x2a0] sm:$0xf]
      %v344 = vld [vmem:[%s166 + $0x2a4] sm:$0xf]
      %v345 = vld [vmem:[%s166 + $0x2a8] sm:$0xf]
      %v346 = vld [vmem:[%s166 + $0x2ac] sm:$0xf]
      %v347 = vld [vmem:[%s166 + $0x2b0] sm:$0xf]
      %v348 = vld [vmem:[%s166 + $0x2b4] sm:$0xf]
      %v349 = vld [vmem:[%s166 + $0x2b8] sm:$0xf]
      %v350 = vld [vmem:[%s166 + $0x2bc] sm:$0xf]
      %v351 = vld [vmem:[%s166 + $0x2c0] sm:$0xf]
      %v352 = vld [vmem:[%s166 + $0x2c4] sm:$0xf]
      %v353 = vld [vmem:[%s166 + $0x2c8] sm:$0xf]
      %v354 = vld [vmem:[%s166 + $0x2cc] sm:$0xf]
      %v355 = vld [vmem:[%s166 + $0x2d0] sm:$0xf]
      %v356 = vld [vmem:[%s166 + $0x2d4] sm:$0xf]
      %v357 = vld [vmem:[%s166 + $0x2d8] sm:$0xf]
      %v358 = vld [vmem:[%s166 + $0x2dc] sm:$0xf]
      %v359 = vld [vmem:[%s166 + $0x2e0] sm:$0xf]
      %v360 = vld [vmem:[%s166 + $0x2e4] sm:$0xf]
      %v361 = vld [vmem:[%s166 + $0x2e8] sm:$0xf]
      %v362 = vld [vmem:[%s166 + $0x2ec] sm:$0xf]
      %v363 = vld [vmem:[%s166 + $0x2f0] sm:$0xf]
      %v364 = vld [vmem:[%s166 + $0x2f4] sm:$0xf]
      %v365 = vld [vmem:[%s166 + $0x2f8] sm:$0xf]
      %v366 = vld [vmem:[%s166 + $0x2fc] sm:$0xf]
      %v367 = vld [vmem:[%s166 + $0x300] sm:$0xf]
      %v368 = vld [vmem:[%s166 + $0x304] sm:$0xf]
      %v369 = vld [vmem:[%s166 + $0x308] sm:$0xf]
      %v370 = vld [vmem:[%s166 + $0x30c] sm:$0xf]
      %v371 = vld [vmem:[%s1] sm:$0xf]
      %v372 = vld [vmem:[%s1 + $0x4] sm:$0xf]
      %v373 = vld [vmem:[%s1 + $0x8] sm:$0xf]
      %v374 = vld [vmem:[%s1 + $0xc] sm:$0xf]
      %v375 = vld [vmem:[%s1 + $0x10] sm:$0xf]
      %v376 = vld [vmem:[%s1 + $0x14] sm:$0xf]
      %v377 = vld [vmem:[%s1 + $0x18] sm:$0xf]
      %v378 = vld [vmem:[%s1 + $0x1c] sm:$0xf]
      %v379 = vld [vmem:[%s1 + $0x20] sm:$0xf]
      %v576 = vunpack.c.l.b16 %v175
      %v577 = vunpack.c.l.b16 %v176
      %v578 = vunpack.c.l.b16 %v177
      %v579 = vunpack.c.l.b16 %v178
      %v580 = vunpack.c.l.b16 %v179
      %v581 = vunpack.c.l.b16 %v180
      %v582 = vunpack.c.l.b16 %v181
      %v583 = vunpack.c.l.b16 %v182
      %v584 = vunpack.c.l.b16 %v183
      %v585 = vunpack.c.l.b16 %v184
      %v586 = vunpack.c.l.b16 %v185
      %v587 = vunpack.c.l.b16 %v186
      %v588 = vunpack.c.l.b16 %v187
      %v589 = vunpack.c.l.b16 %v188
      %v590 = vunpack.c.l.b16 %v189
      %v591 = vunpack.c.l.b16 %v190
      %v592 = vunpack.c.l.b16 %v191
      %v593 = vunpack.c.l.b16 %v192
      %v594 = vunpack.c.l.b16 %v193
      %v595 = vunpack.c.l.b16 %v194
      %v596 = vunpack.c.l.b16 %v195
      %v597 = vunpack.c.l.b16 %v196
      %v598 = vunpack.c.l.b16 %v197
      %v599 = vunpack.c.l.b16 %v198
      %v600 = vunpack.c.l.b16 %v199
      %v601 = vunpack.c.l.b16 %v200
      %v602 = vunpack.c.l.b16 %v201
      %v603 = vunpack.c.l.b16 %v202
      %v604 = vunpack.c.l.b16 %v203
      %v605 = vunpack.c.l.b16 %v204
      %v606 = vunpack.c.l.b16 %v205
      %v607 = vunpack.c.l.b16 %v206
      %v608 = vunpack.c.l.b16 %v207
      %v609 = vunpack.c.l.b16 %v208
      %v610 = vunpack.c.l.b16 %v209
      %v611 = vunpack.c.l.b16 %v210
      %v612 = vunpack.c.l.b16 %v211
      %v613 = vunpack.c.l.b16 %v212
      %v614 = vunpack.c.l.b16 %v213
      %v615 = vunpack.c.l.b16 %v214
      %v616 = vunpack.c.l.b16 %v215
      %v617 = vunpack.c.l.b16 %v216
      %v618 = vunpack.c.l.b16 %v217
      %v619 = vunpack.c.l.b16 %v218
      %v620 = vunpack.c.l.b16 %v219
      %v621 = vunpack.c.l.b16 %v220
      %v622 = vunpack.c.l.b16 %v221
      %v623 = vunpack.c.l.b16 %v222
      %v624 = vunpack.c.l.b16 %v223
      %v625 = vunpack.c.l.b16 %v224
      %v626 = vunpack.c.l.b16 %v225
      %v627 = vunpack.c.l.b16 %v226
      %v628 = vunpack.c.l.b16 %v227
      %v629 = vunpack.c.l.b16 %v228
      %v630 = vunpack.c.l.b16 %v229
      %v631 = vunpack.c.l.b16 %v230
      %v632 = vunpack.c.l.b16 %v231
      %v633 = vunpack.c.l.b16 %v232
      %v634 = vunpack.c.l.b16 %v233
      %v635 = vunpack.c.l.b16 %v234
      %v636 = vunpack.c.l.b16 %v235
      %v637 = vunpack.c.l.b16 %v236
      %v638 = vunpack.c.l.b16 %v237
      %v639 = vunpack.c.l.b16 %v238
      %v640 = vunpack.c.l.b16 %v239
      %v641 = vunpack.c.l.b16 %v240
      %v642 = vunpack.c.l.b16 %v241
      %v643 = vunpack.c.l.b16 %v242
      %v644 = vunpack.c.l.b16 %v243
      %v645 = vunpack.c.l.b16 %v244
      %v646 = vunpack.c.l.b16 %v245
      %v647 = vunpack.c.l.b16 %v246
      %v648 = vunpack.c.l.b16 %v247
      %v649 = vunpack.c.l.b16 %v248
      %v650 = vunpack.c.l.b16 %v249
      %v651 = vunpack.c.l.b16 %v250
      %v652 = vunpack.c.l.b16 %v251
      %v653 = vunpack.c.l.b16 %v252
      %v654 = vunpack.c.l.b16 %v253
      %v655 = vunpack.c.l.b16 %v254
      %v656 = vunpack.c.l.b16 %v255
      %v657 = vunpack.c.l.b16 %v256
      %v658 = vunpack.c.l.b16 %v257
      %v659 = vunpack.c.l.b16 %v258
      %v660 = vunpack.c.l.b16 %v259
      %v661 = vunpack.c.l.b16 %v260
      %v662 = vunpack.c.l.b16 %v261
      %v663 = vunpack.c.l.b16 %v262
      %v664 = vunpack.c.l.b16 %v263
      %v665 = vunpack.c.l.b16 %v264
      %v666 = vunpack.c.l.b16 %v265
      %v667 = vunpack.c.l.b16 %v266
      %v668 = vunpack.c.l.b16 %v267
      %v669 = vunpack.c.l.b16 %v268
      %v670 = vunpack.c.l.b16 %v269
      %v671 = vunpack.c.l.b16 %v270
      %v672 = vunpack.c.l.b16 %v271
      %v673 = vunpack.c.l.b16 %v272
      %v674 = vunpack.c.l.b16 %v273
      %v675 = vunpack.c.l.b16 %v274
      %v676 = vunpack.c.l.b16 %v275
      %v677 = vunpack.c.l.b16 %v276
      %v678 = vunpack.c.l.b16 %v277
      %v679 = vunpack.c.l.b16 %v278
      %v680 = vunpack.c.l.b16 %v279
      %v681 = vunpack.c.l.b16 %v280
      %v682 = vunpack.c.l.b16 %v281
      %v683 = vunpack.c.l.b16 %v282
      %v684 = vunpack.c.l.b16 %v283
      %v685 = vunpack.c.l.b16 %v284
      %v686 = vunpack.c.l.b16 %v285
      %v687 = vunpack.c.l.b16 %v286
      %v688 = vunpack.c.l.b16 %v287
      %v689 = vunpack.c.l.b16 %v288
      %v690 = vunpack.c.l.b16 %v289
      %v691 = vunpack.c.l.b16 %v290
      %v692 = vunpack.c.l.b16 %v291
      %v693 = vunpack.c.l.b16 %v292
      %v694 = vunpack.c.l.b16 %v293
      %v695 = vunpack.c.l.b16 %v294
      %v696 = vunpack.c.l.b16 %v295
      %v697 = vunpack.c.l.b16 %v296
      %v698 = vunpack.c.l.b16 %v297
      %v699 = vunpack.c.l.b16 %v298
      %v700 = vunpack.c.l.b16 %v299
      %v701 = vunpack.c.l.b16 %v300
      %v702 = vunpack.c.l.b16 %v301
      %v703 = vunpack.c.l.b16 %v302
      %v704 = vunpack.c.l.b16 %v303
      %v705 = vunpack.c.l.b16 %v304
      %v706 = vunpack.c.l.b16 %v305
      %v707 = vunpack.c.l.b16 %v306
      %v708 = vunpack.c.l.b16 %v307
      %v709 = vunpack.c.l.b16 %v308
      %v710 = vunpack.c.l.b16 %v309
      %v711 = vunpack.c.l.b16 %v310
      %v712 = vunpack.c.l.b16 %v311
      %v713 = vunpack.c.l.b16 %v312
      %v714 = vunpack.c.l.b16 %v313
      %v715 = vunpack.c.l.b16 %v314
      %v716 = vunpack.c.l.b16 %v315
      %v717 = vunpack.c.l.b16 %v316
      %v718 = vunpack.c.l.b16 %v317
      %v719 = vunpack.c.l.b16 %v318
      %v720 = vunpack.c.l.b16 %v319
      %v721 = vunpack.c.l.b16 %v320
      %v722 = vunpack.c.l.b16 %v321
      %v723 = vunpack.c.l.b16 %v322
      %v724 = vunpack.c.l.b16 %v323
      %v725 = vunpack.c.l.b16 %v324
      %v726 = vunpack.c.l.b16 %v325
      %v727 = vunpack.c.l.b16 %v326
      %v728 = vunpack.c.l.b16 %v327
      %v729 = vunpack.c.l.b16 %v328
      %v730 = vunpack.c.l.b16 %v329
      %v731 = vunpack.c.l.b16 %v330
      %v732 = vunpack.c.l.b16 %v331
      %v733 = vunpack.c.l.b16 %v332
      %v734 = vunpack.c.l.b16 %v333
      %v735 = vunpack.c.l.b16 %v334
      %v736 = vunpack.c.l.b16 %v335
      %v737 = vunpack.c.l.b16 %v336
      %v738 = vunpack.c.l.b16 %v337
      %v739 = vunpack.c.l.b16 %v338
      %v740 = vunpack.c.l.b16 %v339
      %v741 = vunpack.c.l.b16 %v340
      %v742 = vunpack.c.l.b16 %v341
      %v743 = vunpack.c.l.b16 %v342
      %v744 = vunpack.c.l.b16 %v343
      %v745 = vunpack.c.l.b16 %v344
      %v746 = vunpack.c.l.b16 %v345
      %v747 = vunpack.c.l.b16 %v346
      %v748 = vunpack.c.l.b16 %v347
      %v749 = vunpack.c.l.b16 %v348
      %v750 = vunpack.c.l.b16 %v349
      %v751 = vunpack.c.l.b16 %v350
      %v752 = vunpack.c.l.b16 %v351
      %v753 = vunpack.c.l.b16 %v352
      %v754 = vunpack.c.l.b16 %v353
      %v755 = vunpack.c.l.b16 %v354
      %v756 = vunpack.c.l.b16 %v355
      %v757 = vunpack.c.l.b16 %v356
      %v758 = vunpack.c.l.b16 %v357
      %v759 = vunpack.c.l.b16 %v358
      %v760 = vunpack.c.l.b16 %v359
      %v761 = vunpack.c.l.b16 %v360
      %v762 = vunpack.c.l.b16 %v361
      %v763 = vunpack.c.l.b16 %v362
      %v764 = vunpack.c.l.b16 %v363
      %v765 = vunpack.c.l.b16 %v364
      %v766 = vunpack.c.l.b16 %v365
      %v767 = vunpack.c.l.b16 %v366
      %v768 = vunpack.c.l.b16 %v367
      %v769 = vunpack.c.l.b16 %v368
      %v770 = vunpack.c.l.b16 %v369
      %v771 = vunpack.c.l.b16 %v370
      %v772 = vpack.c.b16 %v577, %v576
      %v773 = vpack.c.b16 %v579, %v578
      %v774 = vpack.c.b16 %v581, %v580
      %v775 = vpack.c.b16 %v583, %v582
      %v776 = vpack.c.b16 %v585, %v584
      %v777 = vpack.c.b16 %v587, %v586
      %v778 = vpack.c.b16 %v589, %v588
      %v779 = vpack.c.b16 %v591, %v590
      %v780 = vpack.c.b16 %v593, %v592
      %v781 = vpack.c.b16 %v595, %v594
      %v782 = vpack.c.b16 %v597, %v596
      %v783 = vpack.c.b16 %v599, %v598
      %v784 = vpack.c.b16 %v601, %v600
      %v785 = vpack.c.b16 %v603, %v602
      %v786 = vpack.c.b16 %v605, %v604
      %v787 = vpack.c.b16 %v607, %v606
      %v788 = vpack.c.b16 %v609, %v608
      %v789 = vpack.c.b16 %v611, %v610
      %v790 = vpack.c.b16 %v613, %v612
      %v791 = vpack.c.b16 %v615, %v614
      %v792 = vpack.c.b16 %v617, %v616
      %v793 = vpack.c.b16 %v619, %v618
      %v794 = vpack.c.b16 %v621, %v620
      %v795 = vpack.c.b16 %v623, %v622
      %v796 = vpack.c.b16 %v625, %v624
      %v797 = vpack.c.b16 %v627, %v626
      %v798 = vpack.c.b16 %v629, %v628
      %v799 = vpack.c.b16 %v631, %v630
      %v800 = vpack.c.b16 %v633, %v632
      %v801 = vpack.c.b16 %v635, %v634
      %v802 = vpack.c.b16 %v637, %v636
      %v803 = vpack.c.b16 %v639, %v638
      %v804 = vpack.c.b16 %v641, %v640
      %v805 = vpack.c.b16 %v643, %v642
      %v806 = vpack.c.b16 %v645, %v644
      %v807 = vpack.c.b16 %v647, %v646
      %v808 = vpack.c.b16 %v649, %v648
      %v809 = vpack.c.b16 %v651, %v650
      %v810 = vpack.c.b16 %v653, %v652
      %v811 = vpack.c.b16 %v655, %v654
      %v812 = vpack.c.b16 %v657, %v656
      %v813 = vpack.c.b16 %v659, %v658
      %v814 = vpack.c.b16 %v661, %v660
      %v815 = vpack.c.b16 %v663, %v662
      %v816 = vpack.c.b16 %v665, %v664
      %v817 = vpack.c.b16 %v667, %v666
      %v818 = vpack.c.b16 %v669, %v668
      %v819 = vpack.c.b16 %v671, %v670
      %v820 = vpack.c.b16 %v673, %v672
      %v821 = vpack.c.b16 %v675, %v674
      %v822 = vpack.c.b16 %v677, %v676
      %v823 = vpack.c.b16 %v679, %v678
      %v824 = vpack.c.b16 %v681, %v680
      %v825 = vpack.c.b16 %v683, %v682
      %v826 = vpack.c.b16 %v685, %v684
      %v827 = vpack.c.b16 %v687, %v686
      %v828 = vpack.c.b16 %v689, %v688
      %v829 = vpack.c.b16 %v691, %v690
      %v830 = vpack.c.b16 %v693, %v692
      %v831 = vpack.c.b16 %v695, %v694
      %v832 = vpack.c.b16 %v697, %v696
      %v833 = vpack.c.b16 %v699, %v698
      %v834 = vpack.c.b16 %v701, %v700
      %v835 = vpack.c.b16 %v703, %v702
      %v836 = vpack.c.b16 %v705, %v704
      %v837 = vpack.c.b16 %v707, %v706
      %v838 = vpack.c.b16 %v709, %v708
      %v839 = vpack.c.b16 %v711, %v710
      %v840 = vpack.c.b16 %v713, %v712
      %v841 = vpack.c.b16 %v715, %v714
      %v842 = vpack.c.b16 %v717, %v716
      %v843 = vpack.c.b16 %v719, %v718
      %v844 = vpack.c.b16 %v721, %v720
      %v845 = vpack.c.b16 %v723, %v722
      %v846 = vpack.c.b16 %v725, %v724
      %v847 = vpack.c.b16 %v727, %v726
      %v848 = vpack.c.b16 %v729, %v728
      %v849 = vpack.c.b16 %v731, %v730
      %v850 = vpack.c.b16 %v733, %v732
      %v851 = vpack.c.b16 %v735, %v734
      %v852 = vpack.c.b16 %v737, %v736
      %v853 = vpack.c.b16 %v739, %v738
      %v854 = vpack.c.b16 %v741, %v740
      %v855 = vpack.c.b16 %v743, %v742
      %v856 = vpack.c.b16 %v745, %v744
      %v857 = vpack.c.b16 %v747, %v746
      %v858 = vpack.c.b16 %v749, %v748
      %v859 = vpack.c.b16 %v751, %v750
      %v860 = vpack.c.b16 %v753, %v752
      %v861 = vpack.c.b16 %v755, %v754
      %v862 = vpack.c.b16 %v757, %v756
      %v863 = vpack.c.b16 %v759, %v758
      %v864 = vpack.c.b16 %v761, %v760
      %v865 = vpack.c.b16 %v763, %v762
      %v866 = vpack.c.b16 %v765, %v764
      %v867 = vpack.c.b16 %v767, %v766
      %v868 = vpack.c.b16 %v769, %v768
      %v869 = vpack.c.b16 %v771, %v770
      %v879 = vunpack.c.l.b16 %v371
      %v880 = vunpack.c.l.b16 %v372
      %v881 = vunpack.c.l.b16 %v373
      %v882 = vunpack.c.l.b16 %v374
      %v883 = vunpack.c.l.b16 %v375
      %v884 = vunpack.c.l.b16 %v376
      %v885 = vunpack.c.l.b16 %v377
      %v886 = vunpack.c.l.b16 %v378
      %v887 = vunpack.c.l.b16 %v379
      %v888 = vpack.c.b16 %v880, %v879
      %v889 = vpack.c.b16 %v882, %v881
      %v890 = vpack.c.b16 %v884, %v883
      %v891 = vpack.c.b16 %v886, %v885
      %v892 = vpack.c.b16 %v887, %v887
      %vm897 = vcmask 588800
      %v899 = vsel %vm897, %v772, 0
      %v902 = vsel %vm897, %v773, 0
      %v905 = vsel %vm897, %v774, 0
      %v908 = vsel %vm897, %v775, 0
      %v911 = vsel %vm897, %v776, 0
      %v914 = vsel %vm897, %v777, 0
      %v917 = vsel %vm897, %v778, 0
      %v920 = vsel %vm897, %v779, 0
      %v923 = vsel %vm897, %v780, 0
      %v926 = vsel %vm897, %v781, 0
      %v929 = vsel %vm897, %v782, 0
      %v932 = vsel %vm897, %v783, 0
      %v935 = vsel %vm897, %v784, 0
      %v938 = vsel %vm897, %v785, 0
      %v941 = vsel %vm897, %v786, 0
      %v944 = vsel %vm897, %v787, 0
      %v947 = vsel %vm897, %v788, 0
      %v950 = vsel %vm897, %v789, 0
      %v953 = vsel %vm897, %v790, 0
      %v956 = vsel %vm897, %v791, 0
      %v959 = vsel %vm897, %v792, 0
      %v962 = vsel %vm897, %v793, 0
      %v965 = vsel %vm897, %v794, 0
      %v968 = vsel %vm897, %v795, 0
      %v971 = vsel %vm897, %v796, 0
      %v974 = vsel %vm897, %v797, 0
      %v977 = vsel %vm897, %v798, 0
      %v980 = vsel %vm897, %v799, 0
      %v983 = vsel %vm897, %v800, 0
      %v986 = vsel %vm897, %v801, 0
      %v989 = vsel %vm897, %v802, 0
      %v992 = vsel %vm897, %v803, 0
      %v995 = vsel %vm897, %v804, 0
      %v998 = vsel %vm897, %v805, 0
      %v1001 = vsel %vm897, %v806, 0
      %v1004 = vsel %vm897, %v807, 0
      %v1007 = vsel %vm897, %v808, 0
      %v1010 = vsel %vm897, %v809, 0
      %v1013 = vsel %vm897, %v810, 0
      %v1016 = vsel %vm897, %v811, 0
      %v1019 = vsel %vm897, %v812, 0
      %v1022 = vsel %vm897, %v813, 0
      %v1025 = vsel %vm897, %v814, 0
      %v1028 = vsel %vm897, %v815, 0
      %v1031 = vsel %vm897, %v816, 0
      %v1034 = vsel %vm897, %v817, 0
      %v1037 = vsel %vm897, %v818, 0
      %v1040 = vsel %vm897, %v819, 0
      %v1043 = vsel %vm897, %v820, 0
      %v1046 = vsel %vm897, %v821, 0
      %v1049 = vsel %vm897, %v822, 0
      %v1052 = vsel %vm897, %v823, 0
      %v1055 = vsel %vm897, %v824, 0
      %v1058 = vsel %vm897, %v825, 0
      %v1061 = vsel %vm897, %v826, 0
      %v1064 = vsel %vm897, %v827, 0
      %v1067 = vsel %vm897, %v828, 0
      %v1070 = vsel %vm897, %v829, 0
      %v1073 = vsel %vm897, %v830, 0
      %v1076 = vsel %vm897, %v831, 0
      %v1079 = vsel %vm897, %v832, 0
      %v1082 = vsel %vm897, %v833, 0
      %v1085 = vsel %vm897, %v834, 0
      %v1088 = vsel %vm897, %v835, 0
      %v1091 = vsel %vm897, %v836, 0
      %v1094 = vsel %vm897, %v837, 0
      %v1097 = vsel %vm897, %v838, 0
      %v1100 = vsel %vm897, %v839, 0
      %v1103 = vsel %vm897, %v840, 0
      %v1106 = vsel %vm897, %v841, 0
      %v1109 = vsel %vm897, %v842, 0
      %v1112 = vsel %vm897, %v843, 0
      %v1115 = vsel %vm897, %v844, 0
      %v1118 = vsel %vm897, %v845, 0
      %v1121 = vsel %vm897, %v846, 0
      %v1124 = vsel %vm897, %v847, 0
      %v1127 = vsel %vm897, %v848, 0
      %v1130 = vsel %vm897, %v849, 0
      %v1133 = vsel %vm897, %v850, 0
      %v1136 = vsel %vm897, %v851, 0
      %v1139 = vsel %vm897, %v852, 0
      %v1142 = vsel %vm897, %v853, 0
      %v1145 = vsel %vm897, %v854, 0
      %v1148 = vsel %vm897, %v855, 0
      %v1151 = vsel %vm897, %v856, 0
      %v1154 = vsel %vm897, %v857, 0
      %v1157 = vsel %vm897, %v858, 0
      %v1160 = vsel %vm897, %v859, 0
      %v1163 = vsel %vm897, %v860, 0
      %v1166 = vsel %vm897, %v861, 0
      %v1169 = vsel %vm897, %v862, 0
      %v1172 = vsel %vm897, %v863, 0
      %v1175 = vsel %vm897, %v864, 0
      %v1178 = vsel %vm897, %v865, 0
      %v1181 = vsel %vm897, %v866, 0
      %v1184 = vsel %vm897, %v867, 0
      %v1187 = vsel %vm897, %v868, 0
      %v1190 = vsel %vm897, %v869, 0
      %vm1192 = vcmask 1043456
      %v1194 = vsel %vm1192, %v892, 0
      %1196 = vmatpush.bf16.msra.mxu0 0
      %1197 = vmatpush.bf16.msra.mxu0 0
      %1198 = vmatpush.bf16.msra.mxu0 0
      %1199 = vmatpush.bf16.msra.mxu0 %v1194
      %1200 = vmatpush.bf16.msra.mxu0 %v891
      %1201 = vmatpush.bf16.msra.mxu0 %v890
      %1202 = vmatpush.bf16.msra.mxu0 %v889
      %1203 = vmatpush.bf16.msra.mxu0 %v888
      %1204 = vmatmul.bf16.gmra.mxu0 %v899
      %v1205 = vpop.f32.mrf.mxu0
      %v1206 = vadd.f32 0.0, %v1205
      %v1207 = vpop.f32.mrf.mxu0
      %v1208 = vadd.f32 0.0, %v1207
      %1209 = vmatmul.bf16.gmra.mxu0 %v902
      %v1210 = vpop.f32.mrf.mxu0
      %v1211 = vadd.f32 0.0, %v1210
      %v1212 = vpop.f32.mrf.mxu0
      %v1213 = vadd.f32 0.0, %v1212
      %1214 = vmatmul.bf16.gmra.mxu0 %v905
      %v1215 = vpop.f32.mrf.mxu0
      %v1216 = vadd.f32 0.0, %v1215
      %v1217 = vpop.f32.mrf.mxu0
      %v1218 = vadd.f32 0.0, %v1217
      %1219 = vmatmul.bf16.gmra.mxu0 %v908
      %v1220 = vpop.f32.mrf.mxu0
      %v1221 = vadd.f32 0.0, %v1220
      %v1222 = vpop.f32.mrf.mxu0
      %v1223 = vadd.f32 0.0, %v1222
      %1224 = vmatmul.bf16.gmra.mxu0 %v911
      %v1225 = vpop.f32.mrf.mxu0
      %v1226 = vadd.f32 0.0, %v1225
      %v1227 = vpop.f32.mrf.mxu0
      %v1228 = vadd.f32 0.0, %v1227
      %1229 = vmatmul.bf16.gmra.mxu0 %v914
      %v1230 = vpop.f32.mrf.mxu0
      %v1231 = vadd.f32 0.0, %v1230
      %v1232 = vpop.f32.mrf.mxu0
      %v1233 = vadd.f32 0.0, %v1232
      %1234 = vmatmul.bf16.gmra.mxu0 %v917
      %v1235 = vpop.f32.mrf.mxu0
      %v1236 = vadd.f32 0.0, %v1235
      %v1237 = vpop.f32.mrf.mxu0
      %v1238 = vadd.f32 0.0, %v1237
      %1239 = vmatmul.bf16.gmra.mxu0 %v920
      %v1240 = vpop.f32.mrf.mxu0
      %v1241 = vadd.f32 0.0, %v1240
      %v1242 = vpop.f32.mrf.mxu0
      %v1243 = vadd.f32 0.0, %v1242
      %1244 = vmatmul.bf16.gmra.mxu0 %v923
      %v1245 = vpop.f32.mrf.mxu0
      %v1246 = vadd.f32 0.0, %v1245
      %v1247 = vpop.f32.mrf.mxu0
      %v1248 = vadd.f32 0.0, %v1247
      %1249 = vmatmul.bf16.gmra.mxu0 %v926
      %v1250 = vpop.f32.mrf.mxu0
      %v1251 = vadd.f32 0.0, %v1250
      %v1252 = vpop.f32.mrf.mxu0
      %v1253 = vadd.f32 0.0, %v1252
      %1254 = vmatmul.bf16.gmra.mxu0 %v929
      %v1255 = vpop.f32.mrf.mxu0
      %v1256 = vadd.f32 0.0, %v1255
      %v1257 = vpop.f32.mrf.mxu0
      %v1258 = vadd.f32 0.0, %v1257
      %1259 = vmatmul.bf16.gmra.mxu0 %v932
      %v1260 = vpop.f32.mrf.mxu0
      %v1261 = vadd.f32 0.0, %v1260
      %v1262 = vpop.f32.mrf.mxu0
      %v1263 = vadd.f32 0.0, %v1262
      %1264 = vmatmul.bf16.gmra.mxu0 %v935
      %v1265 = vpop.f32.mrf.mxu0
      %v1266 = vadd.f32 0.0, %v1265
      %v1267 = vpop.f32.mrf.mxu0
      %v1268 = vadd.f32 0.0, %v1267
      %1269 = vmatmul.bf16.gmra.mxu0 %v938
      %v1270 = vpop.f32.mrf.mxu0
      %v1271 = vadd.f32 0.0, %v1270
      %v1272 = vpop.f32.mrf.mxu0
      %v1273 = vadd.f32 0.0, %v1272
      %1274 = vmatmul.bf16.gmra.mxu0 %v941
      %v1275 = vpop.f32.mrf.mxu0
      %v1276 = vadd.f32 0.0, %v1275
      %v1277 = vpop.f32.mrf.mxu0
      %v1278 = vadd.f32 0.0, %v1277
      %1279 = vmatmul.bf16.gmra.mxu0 %v944
      %v1280 = vpop.f32.mrf.mxu0
      %v1281 = vadd.f32 0.0, %v1280
      %v1282 = vpop.f32.mrf.mxu0
      %v1283 = vadd.f32 0.0, %v1282
      %1284 = vmatmul.bf16.gmra.mxu0 %v947
      %v1285 = vpop.f32.mrf.mxu0
      %v1286 = vadd.f32 0.0, %v1285
      %v1287 = vpop.f32.mrf.mxu0
      %v1288 = vadd.f32 0.0, %v1287
      %1289 = vmatmul.bf16.gmra.mxu0 %v950
      %v1290 = vpop.f32.mrf.mxu0
      %v1291 = vadd.f32 0.0, %v1290
      %v1292 = vpop.f32.mrf.mxu0
      %v1293 = vadd.f32 0.0, %v1292
      %1294 = vmatmul.bf16.gmra.mxu0 %v953
      %v1295 = vpop.f32.mrf.mxu0
      %v1296 = vadd.f32 0.0, %v1295
      %v1297 = vpop.f32.mrf.mxu0
      %v1298 = vadd.f32 0.0, %v1297
      %1299 = vmatmul.bf16.gmra.mxu0 %v956
      %v1300 = vpop.f32.mrf.mxu0
      %v1301 = vadd.f32 0.0, %v1300
      %v1302 = vpop.f32.mrf.mxu0
      %v1303 = vadd.f32 0.0, %v1302
      %1304 = vmatmul.bf16.gmra.mxu0 %v959
      %v1305 = vpop.f32.mrf.mxu0
      %v1306 = vadd.f32 0.0, %v1305
      %v1307 = vpop.f32.mrf.mxu0
      %v1308 = vadd.f32 0.0, %v1307
      %1309 = vmatmul.bf16.gmra.mxu0 %v962
      %v1310 = vpop.f32.mrf.mxu0
      %v1311 = vadd.f32 0.0, %v1310
      %v1312 = vpop.f32.mrf.mxu0
      %v1313 = vadd.f32 0.0, %v1312
      %1314 = vmatmul.bf16.gmra.mxu0 %v965
      %v1315 = vpop.f32.mrf.mxu0
      %v1316 = vadd.f32 0.0, %v1315
      %v1317 = vpop.f32.mrf.mxu0
      %v1318 = vadd.f32 0.0, %v1317
      %1319 = vmatmul.bf16.gmra.mxu0 %v968
      %v1320 = vpop.f32.mrf.mxu0
      %v1321 = vadd.f32 0.0, %v1320
      %v1322 = vpop.f32.mrf.mxu0
      %v1323 = vadd.f32 0.0, %v1322
      %1324 = vmatmul.bf16.gmra.mxu0 %v971
      %v1325 = vpop.f32.mrf.mxu0
      %v1326 = vadd.f32 0.0, %v1325
      %v1327 = vpop.f32.mrf.mxu0
      %v1328 = vadd.f32 0.0, %v1327
      %1329 = vmatmul.bf16.gmra.mxu0 %v974
      %v1330 = vpop.f32.mrf.mxu0
      %v1331 = vadd.f32 0.0, %v1330
      %v1332 = vpop.f32.mrf.mxu0
      %v1333 = vadd.f32 0.0, %v1332
      %1334 = vmatmul.bf16.gmra.mxu0 %v977
      %v1335 = vpop.f32.mrf.mxu0
      %v1336 = vadd.f32 0.0, %v1335
      %v1337 = vpop.f32.mrf.mxu0
      %v1338 = vadd.f32 0.0, %v1337
      %1339 = vmatmul.bf16.gmra.mxu0 %v980
      %v1340 = vpop.f32.mrf.mxu0
      %v1341 = vadd.f32 0.0, %v1340
      %v1342 = vpop.f32.mrf.mxu0
      %v1343 = vadd.f32 0.0, %v1342
      %1344 = vmatmul.bf16.gmra.mxu0 %v983
      %v1345 = vpop.f32.mrf.mxu0
      %v1346 = vadd.f32 0.0, %v1345
      %v1347 = vpop.f32.mrf.mxu0
      %v1348 = vadd.f32 0.0, %v1347
      %1349 = vmatmul.bf16.gmra.mxu0 %v986
      %v1350 = vpop.f32.mrf.mxu0
      %v1351 = vadd.f32 0.0, %v1350
      %v1352 = vpop.f32.mrf.mxu0
      %v1353 = vadd.f32 0.0, %v1352
      %1354 = vmatmul.bf16.gmra.mxu0 %v989
      %v1355 = vpop.f32.mrf.mxu0
      %v1356 = vadd.f32 0.0, %v1355
      %v1357 = vpop.f32.mrf.mxu0
      %v1358 = vadd.f32 0.0, %v1357
      %1359 = vmatmul.bf16.gmra.mxu0 %v992
      %v1360 = vpop.f32.mrf.mxu0
      %v1361 = vadd.f32 0.0, %v1360
      %v1362 = vpop.f32.mrf.mxu0
      %v1363 = vadd.f32 0.0, %v1362
      %1364 = vmatmul.bf16.gmra.mxu0 %v995
      %v1365 = vpop.f32.mrf.mxu0
      %v1366 = vadd.f32 0.0, %v1365
      %v1367 = vpop.f32.mrf.mxu0
      %v1368 = vadd.f32 0.0, %v1367
      %1369 = vmatmul.bf16.gmra.mxu0 %v998
      %v1370 = vpop.f32.mrf.mxu0
      %v1371 = vadd.f32 0.0, %v1370
      %v1372 = vpop.f32.mrf.mxu0
      %v1373 = vadd.f32 0.0, %v1372
      %1374 = vmatmul.bf16.gmra.mxu0 %v1001
      %v1375 = vpop.f32.mrf.mxu0
      %v1376 = vadd.f32 0.0, %v1375
      %v1377 = vpop.f32.mrf.mxu0
      %v1378 = vadd.f32 0.0, %v1377
      %1379 = vmatmul.bf16.gmra.mxu0 %v1004
      %v1380 = vpop.f32.mrf.mxu0
      %v1381 = vadd.f32 0.0, %v1380
      %v1382 = vpop.f32.mrf.mxu0
      %v1383 = vadd.f32 0.0, %v1382
      %1384 = vmatmul.bf16.gmra.mxu0 %v1007
      %v1385 = vpop.f32.mrf.mxu0
      %v1386 = vadd.f32 0.0, %v1385
      %v1387 = vpop.f32.mrf.mxu0
      %v1388 = vadd.f32 0.0, %v1387
      %1389 = vmatmul.bf16.gmra.mxu0 %v1010
      %v1390 = vpop.f32.mrf.mxu0
      %v1391 = vadd.f32 0.0, %v1390
      %v1392 = vpop.f32.mrf.mxu0
      %v1393 = vadd.f32 0.0, %v1392
      %1394 = vmatmul.bf16.gmra.mxu0 %v1013
      %v1395 = vpop.f32.mrf.mxu0
      %v1396 = vadd.f32 0.0, %v1395
      %v1397 = vpop.f32.mrf.mxu0
      %v1398 = vadd.f32 0.0, %v1397
      %1399 = vmatmul.bf16.gmra.mxu0 %v1016
      %v1400 = vpop.f32.mrf.mxu0
      %v1401 = vadd.f32 0.0, %v1400
      %v1402 = vpop.f32.mrf.mxu0
      %v1403 = vadd.f32 0.0, %v1402
      %1404 = vmatmul.bf16.gmra.mxu0 %v1019
      %v1405 = vpop.f32.mrf.mxu0
      %v1406 = vadd.f32 0.0, %v1405
      %v1407 = vpop.f32.mrf.mxu0
      %v1408 = vadd.f32 0.0, %v1407
      %1409 = vmatmul.bf16.gmra.mxu0 %v1022
      %v1410 = vpop.f32.mrf.mxu0
      %v1411 = vadd.f32 0.0, %v1410
      %v1412 = vpop.f32.mrf.mxu0
      %v1413 = vadd.f32 0.0, %v1412
      %1414 = vmatmul.bf16.gmra.mxu0 %v1025
      %v1415 = vpop.f32.mrf.mxu0
      %v1416 = vadd.f32 0.0, %v1415
      %v1417 = vpop.f32.mrf.mxu0
      %v1418 = vadd.f32 0.0, %v1417
      %1419 = vmatmul.bf16.gmra.mxu0 %v1028
      %v1420 = vpop.f32.mrf.mxu0
      %v1421 = vadd.f32 0.0, %v1420
      %v1422 = vpop.f32.mrf.mxu0
      %v1423 = vadd.f32 0.0, %v1422
      %1424 = vmatmul.bf16.gmra.mxu0 %v1031
      %v1425 = vpop.f32.mrf.mxu0
      %v1426 = vadd.f32 0.0, %v1425
      %v1427 = vpop.f32.mrf.mxu0
      %v1428 = vadd.f32 0.0, %v1427
      %1429 = vmatmul.bf16.gmra.mxu0 %v1034
      %v1430 = vpop.f32.mrf.mxu0
      %v1431 = vadd.f32 0.0, %v1430
      %v1432 = vpop.f32.mrf.mxu0
      %v1433 = vadd.f32 0.0, %v1432
      %1434 = vmatmul.bf16.gmra.mxu0 %v1037
      %v1435 = vpop.f32.mrf.mxu0
      %v1436 = vadd.f32 0.0, %v1435
      %v1437 = vpop.f32.mrf.mxu0
      %v1438 = vadd.f32 0.0, %v1437
      %1439 = vmatmul.bf16.gmra.mxu0 %v1040
      %v1440 = vpop.f32.mrf.mxu0
      %v1441 = vadd.f32 0.0, %v1440
      %v1442 = vpop.f32.mrf.mxu0
      %v1443 = vadd.f32 0.0, %v1442
      %1444 = vmatmul.bf16.gmra.mxu0 %v1043
      %v1445 = vpop.f32.mrf.mxu0
      %v1446 = vadd.f32 0.0, %v1445
      %v1447 = vpop.f32.mrf.mxu0
      %v1448 = vadd.f32 0.0, %v1447
      %1449 = vmatmul.bf16.gmra.mxu0 %v1046
      %v1450 = vpop.f32.mrf.mxu0
      %v1451 = vadd.f32 0.0, %v1450
      %v1452 = vpop.f32.mrf.mxu0
      %v1453 = vadd.f32 0.0, %v1452
      %1454 = vmatmul.bf16.gmra.mxu0 %v1049
      %v1455 = vpop.f32.mrf.mxu0
      %v1456 = vadd.f32 0.0, %v1455
      %v1457 = vpop.f32.mrf.mxu0
      %v1458 = vadd.f32 0.0, %v1457
      %1459 = vmatmul.bf16.gmra.mxu0 %v1052
      %v1460 = vpop.f32.mrf.mxu0
      %v1461 = vadd.f32 0.0, %v1460
      %v1462 = vpop.f32.mrf.mxu0
      %v1463 = vadd.f32 0.0, %v1462
      %1464 = vmatmul.bf16.gmra.mxu0 %v1055
      %v1465 = vpop.f32.mrf.mxu0
      %v1466 = vadd.f32 0.0, %v1465
      %v1467 = vpop.f32.mrf.mxu0
      %v1468 = vadd.f32 0.0, %v1467
      %1469 = vmatmul.bf16.gmra.mxu0 %v1058
      %v1470 = vpop.f32.mrf.mxu0
      %v1471 = vadd.f32 0.0, %v1470
      %v1472 = vpop.f32.mrf.mxu0
      %v1473 = vadd.f32 0.0, %v1472
      %1474 = vmatmul.bf16.gmra.mxu0 %v1061
      %v1475 = vpop.f32.mrf.mxu0
      %v1476 = vadd.f32 0.0, %v1475
      %v1477 = vpop.f32.mrf.mxu0
      %v1478 = vadd.f32 0.0, %v1477
      %1479 = vmatmul.bf16.gmra.mxu0 %v1064
      %v1480 = vpop.f32.mrf.mxu0
      %v1481 = vadd.f32 0.0, %v1480
      %v1482 = vpop.f32.mrf.mxu0
      %v1483 = vadd.f32 0.0, %v1482
      %1484 = vmatmul.bf16.gmra.mxu0 %v1067
      %v1485 = vpop.f32.mrf.mxu0
      %v1486 = vadd.f32 0.0, %v1485
      %v1487 = vpop.f32.mrf.mxu0
      %v1488 = vadd.f32 0.0, %v1487
      %1489 = vmatmul.bf16.gmra.mxu0 %v1070
      %v1490 = vpop.f32.mrf.mxu0
      %v1491 = vadd.f32 0.0, %v1490
      %v1492 = vpop.f32.mrf.mxu0
      %v1493 = vadd.f32 0.0, %v1492
      %1494 = vmatmul.bf16.gmra.mxu0 %v1073
      %v1495 = vpop.f32.mrf.mxu0
      %v1496 = vadd.f32 0.0, %v1495
      %v1497 = vpop.f32.mrf.mxu0
      %v1498 = vadd.f32 0.0, %v1497
      %1499 = vmatmul.bf16.gmra.mxu0 %v1076
      %v1500 = vpop.f32.mrf.mxu0
      %v1501 = vadd.f32 0.0, %v1500
      %v1502 = vpop.f32.mrf.mxu0
      %v1503 = vadd.f32 0.0, %v1502
      %1504 = vmatmul.bf16.gmra.mxu0 %v1079
      %v1505 = vpop.f32.mrf.mxu0
      %v1506 = vadd.f32 0.0, %v1505
      %v1507 = vpop.f32.mrf.mxu0
      %v1508 = vadd.f32 0.0, %v1507
      %1509 = vmatmul.bf16.gmra.mxu0 %v1082
      %v1510 = vpop.f32.mrf.mxu0
      %v1511 = vadd.f32 0.0, %v1510
      %v1512 = vpop.f32.mrf.mxu0
      %v1513 = vadd.f32 0.0, %v1512
      %1514 = vmatmul.bf16.gmra.mxu0 %v1085
      %v1515 = vpop.f32.mrf.mxu0
      %v1516 = vadd.f32 0.0, %v1515
      %v1517 = vpop.f32.mrf.mxu0
      %v1518 = vadd.f32 0.0, %v1517
      %1519 = vmatmul.bf16.gmra.mxu0 %v1088
      %v1520 = vpop.f32.mrf.mxu0
      %v1521 = vadd.f32 0.0, %v1520
      %v1522 = vpop.f32.mrf.mxu0
      %v1523 = vadd.f32 0.0, %v1522
      %1524 = vmatmul.bf16.gmra.mxu0 %v1091
      %v1525 = vpop.f32.mrf.mxu0
      %v1526 = vadd.f32 0.0, %v1525
      %v1527 = vpop.f32.mrf.mxu0
      %v1528 = vadd.f32 0.0, %v1527
      %1529 = vmatmul.bf16.gmra.mxu0 %v1094
      %v1530 = vpop.f32.mrf.mxu0
      %v1531 = vadd.f32 0.0, %v1530
      %v1532 = vpop.f32.mrf.mxu0
      %v1533 = vadd.f32 0.0, %v1532
      %1534 = vmatmul.bf16.gmra.mxu0 %v1097
      %v1535 = vpop.f32.mrf.mxu0
      %v1536 = vadd.f32 0.0, %v1535
      %v1537 = vpop.f32.mrf.mxu0
      %v1538 = vadd.f32 0.0, %v1537
      %1539 = vmatmul.bf16.gmra.mxu0 %v1100
      %v1540 = vpop.f32.mrf.mxu0
      %v1541 = vadd.f32 0.0, %v1540
      %v1542 = vpop.f32.mrf.mxu0
      %v1543 = vadd.f32 0.0, %v1542
      %1544 = vmatmul.bf16.gmra.mxu0 %v1103
      %v1545 = vpop.f32.mrf.mxu0
      %v1546 = vadd.f32 0.0, %v1545
      %v1547 = vpop.f32.mrf.mxu0
      %v1548 = vadd.f32 0.0, %v1547
      %1549 = vmatmul.bf16.gmra.mxu0 %v1106
      %v1550 = vpop.f32.mrf.mxu0
      %v1551 = vadd.f32 0.0, %v1550
      %v1552 = vpop.f32.mrf.mxu0
      %v1553 = vadd.f32 0.0, %v1552
      %1554 = vmatmul.bf16.gmra.mxu0 %v1109
      %v1555 = vpop.f32.mrf.mxu0
      %v1556 = vadd.f32 0.0, %v1555
      %v1557 = vpop.f32.mrf.mxu0
      %v1558 = vadd.f32 0.0, %v1557
      %1559 = vmatmul.bf16.gmra.mxu0 %v1112
      %v1560 = vpop.f32.mrf.mxu0
      %v1561 = vadd.f32 0.0, %v1560
      %v1562 = vpop.f32.mrf.mxu0
      %v1563 = vadd.f32 0.0, %v1562
      %1564 = vmatmul.bf16.gmra.mxu0 %v1115
      %v1565 = vpop.f32.mrf.mxu0
      %v1566 = vadd.f32 0.0, %v1565
      %v1567 = vpop.f32.mrf.mxu0
      %v1568 = vadd.f32 0.0, %v1567
      %1569 = vmatmul.bf16.gmra.mxu0 %v1118
      %v1570 = vpop.f32.mrf.mxu0
      %v1571 = vadd.f32 0.0, %v1570
      %v1572 = vpop.f32.mrf.mxu0
      %v1573 = vadd.f32 0.0, %v1572
      %1574 = vmatmul.bf16.gmra.mxu0 %v1121
      %v1575 = vpop.f32.mrf.mxu0
      %v1576 = vadd.f32 0.0, %v1575
      %v1577 = vpop.f32.mrf.mxu0
      %v1578 = vadd.f32 0.0, %v1577
      %1579 = vmatmul.bf16.gmra.mxu0 %v1124
      %v1580 = vpop.f32.mrf.mxu0
      %v1581 = vadd.f32 0.0, %v1580
      %v1582 = vpop.f32.mrf.mxu0
      %v1583 = vadd.f32 0.0, %v1582
      %1584 = vmatmul.bf16.gmra.mxu0 %v1127
      %v1585 = vpop.f32.mrf.mxu0
      %v1586 = vadd.f32 0.0, %v1585
      %v1587 = vpop.f32.mrf.mxu0
      %v1588 = vadd.f32 0.0, %v1587
      %1589 = vmatmul.bf16.gmra.mxu0 %v1130
      %v1590 = vpop.f32.mrf.mxu0
      %v1591 = vadd.f32 0.0, %v1590
      %v1592 = vpop.f32.mrf.mxu0
      %v1593 = vadd.f32 0.0, %v1592
      %1594 = vmatmul.bf16.gmra.mxu0 %v1133
      %v1595 = vpop.f32.mrf.mxu0
      %v1596 = vadd.f32 0.0, %v1595
      %v1597 = vpop.f32.mrf.mxu0
      %v1598 = vadd.f32 0.0, %v1597
      %1599 = vmatmul.bf16.gmra.mxu0 %v1136
      %v1600 = vpop.f32.mrf.mxu0
      %v1601 = vadd.f32 0.0, %v1600
      %v1602 = vpop.f32.mrf.mxu0
      %v1603 = vadd.f32 0.0, %v1602
      %1604 = vmatmul.bf16.gmra.mxu0 %v1139
      %v1605 = vpop.f32.mrf.mxu0
      %v1606 = vadd.f32 0.0, %v1605
      %v1607 = vpop.f32.mrf.mxu0
      %v1608 = vadd.f32 0.0, %v1607
      %1609 = vmatmul.bf16.gmra.mxu0 %v1142
      %v1610 = vpop.f32.mrf.mxu0
      %v1611 = vadd.f32 0.0, %v1610
      %v1612 = vpop.f32.mrf.mxu0
      %v1613 = vadd.f32 0.0, %v1612
      %1614 = vmatmul.bf16.gmra.mxu0 %v1145
      %v1615 = vpop.f32.mrf.mxu0
      %v1616 = vadd.f32 0.0, %v1615
      %v1617 = vpop.f32.mrf.mxu0
      %v1618 = vadd.f32 0.0, %v1617
      %1619 = vmatmul.bf16.gmra.mxu0 %v1148
      %v1620 = vpop.f32.mrf.mxu0
      %v1621 = vadd.f32 0.0, %v1620
      %v1622 = vpop.f32.mrf.mxu0
      %v1623 = vadd.f32 0.0, %v1622
      %1624 = vmatmul.bf16.gmra.mxu0 %v1151
      %v1625 = vpop.f32.mrf.mxu0
      %v1626 = vadd.f32 0.0, %v1625
      %v1627 = vpop.f32.mrf.mxu0
      %v1628 = vadd.f32 0.0, %v1627
      %1629 = vmatmul.bf16.gmra.mxu0 %v1154
      %v1630 = vpop.f32.mrf.mxu0
      %v1631 = vadd.f32 0.0, %v1630
      %v1632 = vpop.f32.mrf.mxu0
      %v1633 = vadd.f32 0.0, %v1632
      %1634 = vmatmul.bf16.gmra.mxu0 %v1157
      %v1635 = vpop.f32.mrf.mxu0
      %v1636 = vadd.f32 0.0, %v1635
      %v1637 = vpop.f32.mrf.mxu0
      %v1638 = vadd.f32 0.0, %v1637
      %1639 = vmatmul.bf16.gmra.mxu0 %v1160
      %v1640 = vpop.f32.mrf.mxu0
      %v1641 = vadd.f32 0.0, %v1640
      %v1642 = vpop.f32.mrf.mxu0
      %v1643 = vadd.f32 0.0, %v1642
      %1644 = vmatmul.bf16.gmra.mxu0 %v1163
      %v1645 = vpop.f32.mrf.mxu0
      %v1646 = vadd.f32 0.0, %v1645
      %v1647 = vpop.f32.mrf.mxu0
      %v1648 = vadd.f32 0.0, %v1647
      %1649 = vmatmul.bf16.gmra.mxu0 %v1166
      %v1650 = vpop.f32.mrf.mxu0
      %v1651 = vadd.f32 0.0, %v1650
      %v1652 = vpop.f32.mrf.mxu0
      %v1653 = vadd.f32 0.0, %v1652
      %1654 = vmatmul.bf16.gmra.mxu0 %v1169
      %v1655 = vpop.f32.mrf.mxu0
      %v1656 = vadd.f32 0.0, %v1655
      %v1657 = vpop.f32.mrf.mxu0
      %v1658 = vadd.f32 0.0, %v1657
      %1659 = vmatmul.bf16.gmra.mxu0 %v1172
      %v1660 = vpop.f32.mrf.mxu0
      %v1661 = vadd.f32 0.0, %v1660
      %v1662 = vpop.f32.mrf.mxu0
      %v1663 = vadd.f32 0.0, %v1662
      %1664 = vmatmul.bf16.gmra.mxu0 %v1175
      %v1665 = vpop.f32.mrf.mxu0
      %v1666 = vadd.f32 0.0, %v1665
      %v1667 = vpop.f32.mrf.mxu0
      %v1668 = vadd.f32 0.0, %v1667
      %1669 = vmatmul.bf16.gmra.mxu0 %v1178
      %v1670 = vpop.f32.mrf.mxu0
      %v1671 = vadd.f32 0.0, %v1670
      %v1672 = vpop.f32.mrf.mxu0
      %v1673 = vadd.f32 0.0, %v1672
      %1674 = vmatmul.bf16.gmra.mxu0 %v1181
      %v1675 = vpop.f32.mrf.mxu0
      %v1676 = vadd.f32 0.0, %v1675
      %v1677 = vpop.f32.mrf.mxu0
      %v1678 = vadd.f32 0.0, %v1677
      %1679 = vmatmul.bf16.gmra.mxu0 %v1184
      %v1680 = vpop.f32.mrf.mxu0
      %v1681 = vadd.f32 0.0, %v1680
      %v1682 = vpop.f32.mrf.mxu0
      %v1683 = vadd.f32 0.0, %v1682
      %1684 = vmatmul.bf16.gmra.mxu0 %v1187
      %v1685 = vpop.f32.mrf.mxu0
      %v1686 = vadd.f32 0.0, %v1685
      %v1687 = vpop.f32.mrf.mxu0
      %v1688 = vadd.f32 0.0, %v1687
      %1689 = vmatmul.bf16.gmra.mxu0 %v1190
      %v1690 = vpop.f32.mrf.mxu0
      %v1691 = vadd.f32 0.0, %v1690
      %v1692 = vpop.f32.mrf.mxu0
      %v1693 = vadd.f32 0.0, %v1692
      %1694 = vdwg.mxu0
      %v1695 = vmax.f32 %v1206, %v1328
      %v1696 = vmax.f32 %v1208, %v1331
      %v1697 = vmax.f32 %v1211, %v1333
      %v1698 = vmax.f32 %v1213, %v1336
      %v1699 = vmax.f32 %v1216, %v1338
      %v1700 = vmax.f32 %v1218, %v1341
      %v1701 = vmax.f32 %v1221, %v1343
      %v1702 = vmax.f32 %v1223, %v1346
      %v1703 = vmax.f32 %v1226, %v1348
      %v1704 = vmax.f32 %v1228, %v1351
      %v1705 = vmax.f32 %v1231, %v1353
      %v1706 = vmax.f32 %v1233, %v1356
      %v1707 = vmax.f32 %v1236, %v1358
      %v1708 = vmax.f32 %v1238, %v1361
      %v1709 = vmax.f32 %v1241, %v1363
      %v1710 = vmax.f32 %v1243, %v1366
      %v1711 = vmax.f32 %v1246, %v1368
      %v1712 = vmax.f32 %v1248, %v1371
      %v1713 = vmax.f32 %v1251, %v1373
      %v1714 = vmax.f32 %v1253, %v1376
      %v1715 = vmax.f32 %v1256, %v1378
      %v1716 = vmax.f32 %v1258, %v1381
      %v1717 = vmax.f32 %v1261, %v1383
      %v1718 = vmax.f32 %v1263, %v1386
      %v1719 = vmax.f32 %v1266, %v1388
      %v1720 = vmax.f32 %v1268, %v1391
      %v1721 = vmax.f32 %v1271, %v1393
      %v1722 = vmax.f32 %v1273, %v1396
      %v1723 = vmax.f32 %v1276, %v1398
      %v1724 = vmax.f32 %v1278, %v1401
      %v1725 = vmax.f32 %v1281, %v1403
      %v1726 = vmax.f32 %v1283, %v1406
      %v1727 = vmax.f32 %v1286, %v1408
      %v1728 = vmax.f32 %v1288, %v1411
      %v1729 = vmax.f32 %v1291, %v1413
      %v1730 = vmax.f32 %v1293, %v1416
      %v1731 = vmax.f32 %v1296, %v1418
      %v1732 = vmax.f32 %v1298, %v1421
      %v1733 = vmax.f32 %v1301, %v1423
      %v1734 = vmax.f32 %v1303, %v1426
      %v1735 = vmax.f32 %v1306, %v1428
      %v1736 = vmax.f32 %v1308, %v1431
      %v1737 = vmax.f32 %v1311, %v1433
      %v1738 = vmax.f32 %v1313, %v1436
      %v1739 = vmax.f32 %v1316, %v1438
      %v1740 = vmax.f32 %v1318, %v1441
      %v1741 = vmax.f32 %v1321, %v1443
      %v1742 = vmax.f32 %v1323, %v1446
      %v1743 = vmax.f32 %v1326, %v1448
      %v1744 = vmax.f32 %v1451, %v1573
      %v1745 = vmax.f32 %v1453, %v1576
      %v1746 = vmax.f32 %v1456, %v1578
      %v1747 = vmax.f32 %v1458, %v1581
      %v1748 = vmax.f32 %v1461, %v1583
      %v1749 = vmax.f32 %v1463, %v1586
      %v1750 = vmax.f32 %v1466, %v1588
      %v1751 = vmax.f32 %v1468, %v1591
      %v1752 = vmax.f32 %v1471, %v1593
      %v1753 = vmax.f32 %v1473, %v1596
      %v1754 = vmax.f32 %v1476, %v1598
      %v1755 = vmax.f32 %v1478, %v1601
      %v1756 = vmax.f32 %v1481, %v1603
      %v1757 = vmax.f32 %v1483, %v1606
      %v1758 = vmax.f32 %v1486, %v1608
      %v1759 = vmax.f32 %v1488, %v1611
      %v1760 = vmax.f32 %v1491, %v1613
      %v1761 = vmax.f32 %v1493, %v1616
      %v1762 = vmax.f32 %v1496, %v1618
      %v1763 = vmax.f32 %v1498, %v1621
      %v1764 = vmax.f32 %v1501, %v1623
      %v1765 = vmax.f32 %v1503, %v1626
      %v1766 = vmax.f32 %v1506, %v1628
      %v1767 = vmax.f32 %v1508, %v1631
      %v1768 = vmax.f32 %v1511, %v1633
      %v1769 = vmax.f32 %v1513, %v1636
      %v1770 = vmax.f32 %v1516, %v1638
      %v1771 = vmax.f32 %v1518, %v1641
      %v1772 = vmax.f32 %v1521, %v1643
      %v1773 = vmax.f32 %v1523, %v1646
      %v1774 = vmax.f32 %v1526, %v1648
      %v1775 = vmax.f32 %v1528, %v1651
      %v1776 = vmax.f32 %v1531, %v1653
      %v1777 = vmax.f32 %v1533, %v1656
      %v1778 = vmax.f32 %v1536, %v1658
      %v1779 = vmax.f32 %v1538, %v1661
      %v1780 = vmax.f32 %v1541, %v1663
      %v1781 = vmax.f32 %v1543, %v1666
      %v1782 = vmax.f32 %v1546, %v1668
      %v1783 = vmax.f32 %v1548, %v1671
      %v1784 = vmax.f32 %v1551, %v1673
      %v1785 = vmax.f32 %v1553, %v1676
      %v1786 = vmax.f32 %v1556, %v1678
      %v1787 = vmax.f32 %v1558, %v1681
      %v1788 = vmax.f32 %v1561, %v1683
      %v1789 = vmax.f32 %v1563, %v1686
      %v1790 = vmax.f32 %v1566, %v1688
      %v1791 = vmax.f32 %v1568, %v1691
      %v1792 = vmax.f32 %v1571, %v1693
      %v1793 = vmax.f32 %v1695, %v1744
      %v1794 = vmax.f32 %v1696, %v1745
      %v1795 = vmax.f32 %v1697, %v1746
      %v1796 = vmax.f32 %v1698, %v1747
      %v1797 = vmax.f32 %v1699, %v1748
      %v1798 = vmax.f32 %v1700, %v1749
      %v1799 = vmax.f32 %v1701, %v1750
      %v1800 = vmax.f32 %v1702, %v1751
      %v1801 = vmax.f32 %v1703, %v1752
      %v1802 = vmax.f32 %v1704, %v1753
      %v1803 = vmax.f32 %v1705, %v1754
      %v1804 = vmax.f32 %v1706, %v1755
      %v1805 = vmax.f32 %v1707, %v1756
      %v1806 = vmax.f32 %v1708, %v1757
      %v1807 = vmax.f32 %v1709, %v1758
      %v1808 = vmax.f32 %v1710, %v1759
      %v1809 = vmax.f32 %v1711, %v1760
      %v1810 = vmax.f32 %v1712, %v1761
      %v1811 = vmax.f32 %v1713, %v1762
      %v1812 = vmax.f32 %v1714, %v1763
      %v1813 = vmax.f32 %v1715, %v1764
      %v1814 = vmax.f32 %v1716, %v1765
      %v1815 = vmax.f32 %v1717, %v1766
      %v1816 = vmax.f32 %v1718, %v1767
      %v1817 = vmax.f32 %v1719, %v1768
      %v1818 = vmax.f32 %v1720, %v1769
      %v1819 = vmax.f32 %v1721, %v1770
      %v1820 = vmax.f32 %v1722, %v1771
      %v1821 = vmax.f32 %v1723, %v1772
      %v1822 = vmax.f32 %v1724, %v1773
      %v1823 = vmax.f32 %v1725, %v1774
      %v1824 = vmax.f32 %v1726, %v1775
      %v1825 = vmax.f32 %v1727, %v1776
      %v1826 = vmax.f32 %v1728, %v1777
      %v1827 = vmax.f32 %v1729, %v1778
      %v1828 = vmax.f32 %v1730, %v1779
      %v1829 = vmax.f32 %v1731, %v1780
      %v1830 = vmax.f32 %v1732, %v1781
      %v1831 = vmax.f32 %v1733, %v1782
      %v1832 = vmax.f32 %v1734, %v1783
      %v1833 = vmax.f32 %v1735, %v1784
      %v1834 = vmax.f32 %v1736, %v1785
      %v1835 = vmax.f32 %v1737, %v1786
      %v1836 = vmax.f32 %v1738, %v1787
      %v1837 = vmax.f32 %v1739, %v1788
      %v1838 = vmax.f32 %v1740, %v1789
      %v1839 = vmax.f32 %v1741, %v1790
      %v1840 = vmax.f32 %v1742, %v1791
      %v1841 = vmax.f32 %v1743, %v1792
      %v1842 = vld [vmem:[%s2] sm:$0x1]
      %v1844 = vperm.slane %v1842, 0
      %v1846 = vadd.f32 %v1793, %v1844
      %v1847 = vadd.f32 %v1794, %v1844
      %v1848 = vadd.f32 %v1795, %v1844
      %v1849 = vadd.f32 %v1796, %v1844
      %v1850 = vadd.f32 %v1797, %v1844
      %v1851 = vadd.f32 %v1798, %v1844
      %v1852 = vadd.f32 %v1799, %v1844
      %v1853 = vadd.f32 %v1800, %v1844
      %v1854 = vadd.f32 %v1801, %v1844
      %v1855 = vadd.f32 %v1802, %v1844
      %v1856 = vadd.f32 %v1803, %v1844
      %v1857 = vadd.f32 %v1804, %v1844
      %v1858 = vadd.f32 %v1805, %v1844
      %v1859 = vadd.f32 %v1806, %v1844
      %v1860 = vadd.f32 %v1807, %v1844
      %v1861 = vadd.f32 %v1808, %v1844
      %v1862 = vadd.f32 %v1809, %v1844
      %v1863 = vadd.f32 %v1810, %v1844
      %v1864 = vadd.f32 %v1811, %v1844
      %v1865 = vadd.f32 %v1812, %v1844
      %v1866 = vadd.f32 %v1813, %v1844
      %v1867 = vadd.f32 %v1814, %v1844
      %v1868 = vadd.f32 %v1815, %v1844
      %v1869 = vadd.f32 %v1816, %v1844
      %v1870 = vadd.f32 %v1817, %v1844
      %v1871 = vadd.f32 %v1818, %v1844
      %v1872 = vadd.f32 %v1819, %v1844
      %v1873 = vadd.f32 %v1820, %v1844
      %v1874 = vadd.f32 %v1821, %v1844
      %v1875 = vadd.f32 %v1822, %v1844
      %v1876 = vadd.f32 %v1823, %v1844
      %v1877 = vadd.f32 %v1824, %v1844
      %v1878 = vadd.f32 %v1825, %v1844
      %v1879 = vadd.f32 %v1826, %v1844
      %v1880 = vadd.f32 %v1827, %v1844
      %v1881 = vadd.f32 %v1828, %v1844
      %v1882 = vadd.f32 %v1829, %v1844
      %v1883 = vadd.f32 %v1830, %v1844
      %v1884 = vadd.f32 %v1831, %v1844
      %v1885 = vadd.f32 %v1832, %v1844
      %v1886 = vadd.f32 %v1833, %v1844
      %v1887 = vadd.f32 %v1834, %v1844
      %v1888 = vadd.f32 %v1835, %v1844
      %v1889 = vadd.f32 %v1836, %v1844
      %v1890 = vadd.f32 %v1837, %v1844
      %v1891 = vadd.f32 %v1838, %v1844
      %v1892 = vadd.f32 %v1839, %v1844
      %v1893 = vadd.f32 %v1840, %v1844
      %v1894 = vadd.f32 %v1841, %v1844
      %v1895 = vmax.f32 %v1846, 0.0
      %v1896 = vmax.f32 %v1847, 0.0
      %v1897 = vmax.f32 %v1848, 0.0
      %v1898 = vmax.f32 %v1849, 0.0
      %v1899 = vmax.f32 %v1850, 0.0
      %v1900 = vmax.f32 %v1851, 0.0
      %v1901 = vmax.f32 %v1852, 0.0
      %v1902 = vmax.f32 %v1853, 0.0
      %v1903 = vmax.f32 %v1854, 0.0
      %v1904 = vmax.f32 %v1855, 0.0
      %v1905 = vmax.f32 %v1856, 0.0
      %v1906 = vmax.f32 %v1857, 0.0
      %v1907 = vmax.f32 %v1858, 0.0
      %v1908 = vmax.f32 %v1859, 0.0
      %v1909 = vmax.f32 %v1860, 0.0
      %v1910 = vmax.f32 %v1861, 0.0
      %v1911 = vmax.f32 %v1862, 0.0
      %v1912 = vmax.f32 %v1863, 0.0
      %v1913 = vmax.f32 %v1864, 0.0
      %v1914 = vmax.f32 %v1865, 0.0
      %v1915 = vmax.f32 %v1866, 0.0
      %v1916 = vmax.f32 %v1867, 0.0
      %v1917 = vmax.f32 %v1868, 0.0
      %v1918 = vmax.f32 %v1869, 0.0
      %v1919 = vmax.f32 %v1870, 0.0
      %v1920 = vmax.f32 %v1871, 0.0
      %v1921 = vmax.f32 %v1872, 0.0
      %v1922 = vmax.f32 %v1873, 0.0
      %v1923 = vmax.f32 %v1874, 0.0
      %v1924 = vmax.f32 %v1875, 0.0
      %v1925 = vmax.f32 %v1876, 0.0
      %v1926 = vmax.f32 %v1877, 0.0
      %v1927 = vmax.f32 %v1878, 0.0
      %v1928 = vmax.f32 %v1879, 0.0
      %v1929 = vmax.f32 %v1880, 0.0
      %v1930 = vmax.f32 %v1881, 0.0
      %v1931 = vmax.f32 %v1882, 0.0
      %v1932 = vmax.f32 %v1883, 0.0
      %v1933 = vmax.f32 %v1884, 0.0
      %v1934 = vmax.f32 %v1885, 0.0
      %v1935 = vmax.f32 %v1886, 0.0
      %v1936 = vmax.f32 %v1887, 0.0
      %v1937 = vmax.f32 %v1888, 0.0
      %v1938 = vmax.f32 %v1889, 0.0
      %v1939 = vmax.f32 %v1890, 0.0
      %v1940 = vmax.f32 %v1891, 0.0
      %v1941 = vmax.f32 %v1892, 0.0
      %v1942 = vmax.f32 %v1893, 0.0
      %v1943 = vmax.f32 %v1894, 0.0
      %v1944 = vpack.c.bf16 %v1895, %v1895
      %v1945 = vpack.c.bf16 %v1896, %v1896
      %v1946 = vpack.c.bf16 %v1897, %v1897
      %v1947 = vpack.c.bf16 %v1898, %v1898
      %v1948 = vpack.c.bf16 %v1899, %v1899
      %v1949 = vpack.c.bf16 %v1900, %v1900
      %v1950 = vpack.c.bf16 %v1901, %v1901
      %v1951 = vpack.c.bf16 %v1902, %v1902
      %v1952 = vpack.c.bf16 %v1903, %v1903
      %v1953 = vpack.c.bf16 %v1904, %v1904
      %v1954 = vpack.c.bf16 %v1905, %v1905
      %v1955 = vpack.c.bf16 %v1906, %v1906
      %v1956 = vpack.c.bf16 %v1907, %v1907
      %v1957 = vpack.c.bf16 %v1908, %v1908
      %v1958 = vpack.c.bf16 %v1909, %v1909
      %v1959 = vpack.c.bf16 %v1910, %v1910
      %v1960 = vpack.c.bf16 %v1911, %v1911
      %v1961 = vpack.c.bf16 %v1912, %v1912
      %v1962 = vpack.c.bf16 %v1913, %v1913
      %v1963 = vpack.c.bf16 %v1914, %v1914
      %v1964 = vpack.c.bf16 %v1915, %v1915
      %v1965 = vpack.c.bf16 %v1916, %v1916
      %v1966 = vpack.c.bf16 %v1917, %v1917
      %v1967 = vpack.c.bf16 %v1918, %v1918
      %v1968 = vpack.c.bf16 %v1919, %v1919
      %v1969 = vpack.c.bf16 %v1920, %v1920
      %v1970 = vpack.c.bf16 %v1921, %v1921
      %v1971 = vpack.c.bf16 %v1922, %v1922
      %v1972 = vpack.c.bf16 %v1923, %v1923
      %v1973 = vpack.c.bf16 %v1924, %v1924
      %v1974 = vpack.c.bf16 %v1925, %v1925
      %v1975 = vpack.c.bf16 %v1926, %v1926
      %v1976 = vpack.c.bf16 %v1927, %v1927
      %v1977 = vpack.c.bf16 %v1928, %v1928
      %v1978 = vpack.c.bf16 %v1929, %v1929
      %v1979 = vpack.c.bf16 %v1930, %v1930
      %v1980 = vpack.c.bf16 %v1931, %v1931
      %v1981 = vpack.c.bf16 %v1932, %v1932
      %v1982 = vpack.c.bf16 %v1933, %v1933
      %v1983 = vpack.c.bf16 %v1934, %v1934
      %v1984 = vpack.c.bf16 %v1935, %v1935
      %v1985 = vpack.c.bf16 %v1936, %v1936
      %v1986 = vpack.c.bf16 %v1937, %v1937
      %v1987 = vpack.c.bf16 %v1938, %v1938
      %v1988 = vpack.c.bf16 %v1939, %v1939
      %v1989 = vpack.c.bf16 %v1940, %v1940
      %v1990 = vpack.c.bf16 %v1941, %v1941
      %v1991 = vpack.c.bf16 %v1942, %v1942
      %v1992 = vpack.c.bf16 %v1943, %v1943
      %vm1993 = vcmask 125952
      %1994 = vst.msk [vmem:[%s172] sm:$0xf] %vm1993, %v1944
      %1995 = vst.msk [vmem:[%s172 + $0x4] sm:$0xf] %vm1993, %v1945
      %1996 = vst.msk [vmem:[%s172 + $0x8] sm:$0xf] %vm1993, %v1946
      %1997 = vst.msk [vmem:[%s172 + $0xc] sm:$0xf] %vm1993, %v1947
      %1998 = vst.msk [vmem:[%s172 + $0x10] sm:$0xf] %vm1993, %v1948
      %1999 = vst.msk [vmem:[%s172 + $0x14] sm:$0xf] %vm1993, %v1949
      %2000 = vst.msk [vmem:[%s172 + $0x18] sm:$0xf] %vm1993, %v1950
      %2001 = vst.msk [vmem:[%s172 + $0x1c] sm:$0xf] %vm1993, %v1951
      %2002 = vst.msk [vmem:[%s172 + $0x20] sm:$0xf] %vm1993, %v1952
      %2003 = vst.msk [vmem:[%s172 + $0x24] sm:$0xf] %vm1993, %v1953
      %2004 = vst.msk [vmem:[%s172 + $0x28] sm:$0xf] %vm1993, %v1954
      %2005 = vst.msk [vmem:[%s172 + $0x2c] sm:$0xf] %vm1993, %v1955
      %2006 = vst.msk [vmem:[%s172 + $0x30] sm:$0xf] %vm1993, %v1956
      %2007 = vst.msk [vmem:[%s172 + $0x34] sm:$0xf] %vm1993, %v1957
      %2008 = vst.msk [vmem:[%s172 + $0x38] sm:$0xf] %vm1993, %v1958
      %2009 = vst.msk [vmem:[%s172 + $0x3c] sm:$0xf] %vm1993, %v1959
      %2010 = vst.msk [vmem:[%s172 + $0x40] sm:$0xf] %vm1993, %v1960
      %2011 = vst.msk [vmem:[%s172 + $0x44] sm:$0xf] %vm1993, %v1961
      %2012 = vst.msk [vmem:[%s172 + $0x48] sm:$0xf] %vm1993, %v1962
      %2013 = vst.msk [vmem:[%s172 + $0x4c] sm:$0xf] %vm1993, %v1963
      %2014 = vst.msk [vmem:[%s172 + $0x50] sm:$0xf] %vm1993, %v1964
      %2015 = vst.msk [vmem:[%s172 + $0x54] sm:$0xf] %vm1993, %v1965
      %2016 = vst.msk [vmem:[%s172 + $0x58] sm:$0xf] %vm1993, %v1966
      %2017 = vst.msk [vmem:[%s172 + $0x5c] sm:$0xf] %vm1993, %v1967
      %2018 = vst.msk [vmem:[%s172 + $0x60] sm:$0xf] %vm1993, %v1968
      %2019 = vst.msk [vmem:[%s172 + $0x64] sm:$0xf] %vm1993, %v1969
      %2020 = vst.msk [vmem:[%s172 + $0x68] sm:$0xf] %vm1993, %v1970
      %2021 = vst.msk [vmem:[%s172 + $0x6c] sm:$0xf] %vm1993, %v1971
      %2022 = vst.msk [vmem:[%s172 + $0x70] sm:$0xf] %vm1993, %v1972
      %2023 = vst.msk [vmem:[%s172 + $0x74] sm:$0xf] %vm1993, %v1973
      %2024 = vst.msk [vmem:[%s172 + $0x78] sm:$0xf] %vm1993, %v1974
      %2025 = vst.msk [vmem:[%s172 + $0x7c] sm:$0xf] %vm1993, %v1975
      %2026 = vst.msk [vmem:[%s172 + $0x80] sm:$0xf] %vm1993, %v1976
      %2027 = vst.msk [vmem:[%s172 + $0x84] sm:$0xf] %vm1993, %v1977
      %2028 = vst.msk [vmem:[%s172 + $0x88] sm:$0xf] %vm1993, %v1978
      %2029 = vst.msk [vmem:[%s172 + $0x8c] sm:$0xf] %vm1993, %v1979
      %2030 = vst.msk [vmem:[%s172 + $0x90] sm:$0xf] %vm1993, %v1980
      %2031 = vst.msk [vmem:[%s172 + $0x94] sm:$0xf] %vm1993, %v1981
      %2032 = vst.msk [vmem:[%s172 + $0x98] sm:$0xf] %vm1993, %v1982
      %2033 = vst.msk [vmem:[%s172 + $0x9c] sm:$0xf] %vm1993, %v1983
      %2034 = vst.msk [vmem:[%s172 + $0xa0] sm:$0xf] %vm1993, %v1984
      %2035 = vst.msk [vmem:[%s172 + $0xa4] sm:$0xf] %vm1993, %v1985
      %2036 = vst.msk [vmem:[%s172 + $0xa8] sm:$0xf] %vm1993, %v1986
      %2037 = vst.msk [vmem:[%s172 + $0xac] sm:$0xf] %vm1993, %v1987
      %2038 = vst.msk [vmem:[%s172 + $0xb0] sm:$0xf] %vm1993, %v1988
      %2039 = vst.msk [vmem:[%s172 + $0xb4] sm:$0xf] %vm1993, %v1989
      %2040 = vst.msk [vmem:[%s172 + $0xb8] sm:$0xf] %vm1993, %v1990
      %2041 = vst.msk [vmem:[%s172 + $0xbc] sm:$0xf] %vm1993, %v1991
      %2042 = vst.msk [vmem:[%s172 + $0xc0] sm:$0xf] %vm1993, %v1992
      %s2043 = smul.u32 49, %s14
      %p2044 = scmp.lt.s32.totalorder %s2043, 97
      %s2045 = scalar_select %p2044, %s2043, 97
      %s2046 = smul.addr %s2045, 4
      %s2047 = scalar_lea.vmem %s3, %s2046
      // Predicated region
      $region33: #{convnet_dropout_forward.4} parent=31 // pred_check
        %p2048 = pneg %p100
      $region34: #{convnet_dropout_forward.4} parent=31 // pred_check_branch
        %2050 = sbr.rel (%p2048) target = $region36
      $region35: #{convnet_dropout_forward.4} parent=31 // pred_region
        %s2051 = smul.u32 49, %s14
      $region36: #{convnet_dropout_forward.4} parent=31 // pred_fallthru
        _
    $region32: #{convnet_dropout_forward.4} parent=5 // pred_fallthru
      _
    %p2052 = scmp.le.s32.totalorder 2, %s9
    // Predicated region
    $region37: #{convnet_dropout_forward.4} parent=5 // pred_check
      %p2053 = pneg %p2052
    $region38: #{convnet_dropout_forward.4} parent=5 // pred_check_branch
      %2055 = sbr.rel (%p2053) target = $region40
    $region39: #{convnet_dropout_forward.4} parent=5 // pred_region
      %s2056 = ssub.s32 %s9, 2
      // Predicated region
      $region41: #{convnet_dropout_forward.4} parent=39 // pred_check
        %p2057 = pneg %p106
      $region42: #{convnet_dropout_forward.4} parent=39 // pred_check_branch
        %2059 = sbr.rel (%p2057) target = $region44
      $region43: #{convnet_dropout_forward.4} parent=39 // pred_region
        %s2060 = smul.u32 49, %s15
        %p2061 = scmp.lt.s32.totalorder %s2060, 97
        %s2062 = scalar_select %p2061, %s2060, 97
        %s2063 = smul.addr %s2062, 4
        %s2064 = scalar_lea.vmem %s3, %s2063
      $region44: #{convnet_dropout_forward.4} parent=39 // pred_fallthru
        _
    $region40: #{convnet_dropout_forward.4} parent=5 // pred_fallthru
      _
  $region6: #{convnet_dropout_forward.4} parent=0 // loop_footer
    %s13 = sadd.s32 1, %s9
  $region7: #{convnet_dropout_forward.4} parent=0 // loop_footer_branch
    %8 = sbr.rel target = $region3
  $region8: #{convnet_dropout_forward.4} parent=0 // loop_exit
    _

// kernel: convnet_dropout_forward.5
$region0: #{convnet_dropout_forward.5}
  #allocation0 [shape = 'u32[]', space=smem, size = 0x4, offset = 0x4, fixed_abs, tag = 'smem constant byte address 0x4 - core index']
  #allocation1 [shape = 'u32[72,128]{1,0:T(1,128)}', space=vmem, size = 0x9000, scoped, tag = 'internal scratch']
  %s0 = inlined_call_operand.vmem [shape: bf16[16,784], index: 0, kind: input, shape index: {}]
  %s1 = inlined_call_operand.vmem [shape: bf16[784,128], index: 1, kind: input, shape index: {}]
  %s2 = inlined_call_operand.vmem [shape: f32[1,128], index: 2, kind: input, shape index: {}]
  %s3 = inlined_call_operand.vmem [shape: bf16[128,10], index: 3, kind: input, shape index: {}]
  %s4 = inlined_call_operand.vmem [shape: f32[1,10], index: 4, kind: input, shape index: {}]
  %s5 = inlined_call_operand.hbm [shape: f32[16,10], index: 5, kind: output, shape index: {}]
  %s6 = sld [smem:[#allocation0]]
  $region30: #{convnet_dropout_forward.5} parent=0
    _
  %s8 = ssub.s32 1, %s6
  %s9 = scalar_select 0, %s8, %s6
  $region1: #{convnet_dropout_forward.5} parent=0
    #allocation2 [shape = 'u8[8192]{0}', space=vmem, size = 0x2000, scoped, tag = 'output window, operand 0, single buffered']
    #allocation3 [shape = 's32[1]{0}', space=sflag, size = 0x4, scoped, tag = 'scoped memory for convnet_dropout_forward.5']
    %10 = vsyncpa [#allocation3], 0
    // Predicated region
    $region2: #{convnet_dropout_forward.5} parent=1 // pred_check
      _
    $region3: #{convnet_dropout_forward.5} parent=1 // pred_check_branch
      %12 = sbr.rel (0) target = $region5
    $region4: #{convnet_dropout_forward.5} parent=1 // pred_region
      _
    $region5: #{convnet_dropout_forward.5} parent=1 // pred_fallthru
      _
    // Predicated region
    $region6: #{convnet_dropout_forward.5} parent=1 // pred_check
      _
    $region7: #{convnet_dropout_forward.5} parent=1 // pred_check_branch
      %14 = sbr.rel (0) target = $region9
    $region8: #{convnet_dropout_forward.5} parent=1 // pred_region
      _
    $region9: #{convnet_dropout_forward.5} parent=1 // pred_fallthru
      _
    // Predicated region
    $region10: #{convnet_dropout_forward.5} parent=1 // pred_check
      _
    $region11: #{convnet_dropout_forward.5} parent=1 // pred_check_branch
      %16 = sbr.rel (0) target = $region13
    $region12: #{convnet_dropout_forward.5} parent=1 // pred_region
      _
    $region13: #{convnet_dropout_forward.5} parent=1 // pred_fallthru
      _
    // Predicated region
    $region14: #{convnet_dropout_forward.5} parent=1 // pred_check
      _
    $region15: #{convnet_dropout_forward.5} parent=1 // pred_check_branch
      %18 = sbr.rel (0) target = $region17
    $region16: #{convnet_dropout_forward.5} parent=1 // pred_region
      _
    $region17: #{convnet_dropout_forward.5} parent=1 // pred_fallthru
      _
    // Predicated region
    $region18: #{convnet_dropout_forward.5} parent=1 // pred_check
      _
    $region19: #{convnet_dropout_forward.5} parent=1 // pred_check_branch
      %20 = sbr.rel (0) target = $region21
    $region20: #{convnet_dropout_forward.5} parent=1 // pred_region
      _
    $region21: #{convnet_dropout_forward.5} parent=1 // pred_fallthru
      _
    %v22 = vld [vmem:[%s0] sm:$0xff]
    %v23 = vld [vmem:[%s0 + $0x8] sm:$0xff]
    %v24 = vld [vmem:[%s0 + $0x10] sm:$0xff]
    %v25 = vld [vmem:[%s0 + $0x18] sm:$0xf]
    %v26 = vld [vmem:[%s0 + $0x1c] sm:$0xff]
    %v27 = vld [vmem:[%s0 + $0x24] sm:$0xff]
    %v28 = vld [vmem:[%s0 + $0x2c] sm:$0xff]
    %v29 = vld [vmem:[%s0 + $0x34] sm:$0xf]
    %v30 = vld [vmem:[%s1] sm:$0xf]
    %v31 = vld [vmem:[%s1 + $0x4] sm:$0xf]
    %v32 = vld [vmem:[%s1 + $0x8] sm:$0xf]
    %v33 = vld [vmem:[%s1 + $0xc] sm:$0xf]
    %v34 = vld [vmem:[%s1 + $0x10] sm:$0xf]
    %v35 = vld [vmem:[%s1 + $0x14] sm:$0xf]
    %v36 = vld [vmem:[%s1 + $0x18] sm:$0xf]
    %v37 = vld [vmem:[%s1 + $0x1c] sm:$0xf]
    %v38 = vld [vmem:[%s1 + $0x20] sm:$0xf]
    %v39 = vld [vmem:[%s1 + $0x24] sm:$0xf]
    %v40 = vld [vmem:[%s1 + $0x28] sm:$0xf]
    %v41 = vld [vmem:[%s1 + $0x2c] sm:$0xf]
    %v42 = vld [vmem:[%s1 + $0x30] sm:$0xf]
    %v43 = vld [vmem:[%s1 + $0x34] sm:$0xf]
    %v44 = vld [vmem:[%s1 + $0x38] sm:$0xf]
    %v45 = vld [vmem:[%s1 + $0x3c] sm:$0xf]
    %v46 = vld [vmem:[%s1 + $0x40] sm:$0xf]
    %v47 = vld [vmem:[%s1 + $0x44] sm:$0xf]
    %v48 = vld [vmem:[%s1 + $0x48] sm:$0xf]
    %v49 = vld [vmem:[%s1 + $0x4c] sm:$0xf]
    %v50 = vld [vmem:[%s1 + $0x50] sm:$0xf]
    %v51 = vld [vmem:[%s1 + $0x54] sm:$0xf]
    %v52 = vld [vmem:[%s1 + $0x58] sm:$0xf]
    %v53 = vld [vmem:[%s1 + $0x5c] sm:$0xf]
    %v54 = vld [vmem:[%s1 + $0x60] sm:$0xf]
    %v55 = vld [vmem:[%s1 + $0x64] sm:$0xf]
    %v56 = vld [vmem:[%s1 + $0x68] sm:$0xf]
    %v57 = vld [vmem:[%s1 + $0x6c] sm:$0xf]
    %v58 = vld [vmem:[%s1 + $0x70] sm:$0xf]
    %v59 = vld [vmem:[%s1 + $0x74] sm:$0xf]
    %v60 = vld [vmem:[%s1 + $0x78] sm:$0xf]
    %v61 = vld [vmem:[%s1 + $0x7c] sm:$0xf]
    %v62 = vld [vmem:[%s1 + $0x80] sm:$0xf]
    %v63 = vld [vmem:[%s1 + $0x84] sm:$0xf]
    %v64 = vld [vmem:[%s1 + $0x88] sm:$0xf]
    %v65 = vld [vmem:[%s1 + $0x8c] sm:$0xf]
    %v66 = vld [vmem:[%s1 + $0x90] sm:$0xf]
    %v67 = vld [vmem:[%s1 + $0x94] sm:$0xf]
    %v68 = vld [vmem:[%s1 + $0x98] sm:$0xf]
    %v69 = vld [vmem:[%s1 + $0x9c] sm:$0xf]
    %v70 = vld [vmem:[%s1 + $0xa0] sm:$0xf]
    %v71 = vld [vmem:[%s1 + $0xa4] sm:$0xf]
    %v72 = vld [vmem:[%s1 + $0xa8] sm:$0xf]
    %v73 = vld [vmem:[%s1 + $0xac] sm:$0xf]
    %v74 = vld [vmem:[%s1 + $0xb0] sm:$0xf]
    %v75 = vld [vmem:[%s1 + $0xb4] sm:$0xf]
    %v76 = vld [vmem:[%s1 + $0xb8] sm:$0xf]
    %v77 = vld [vmem:[%s1 + $0xbc] sm:$0xf]
    %v78 = vld [vmem:[%s1 + $0xc0] sm:$0xf]
    %v79 = vld [vmem:[%s1 + $0xc4] sm:$0xf]
    %v80 = vld [vmem:[%s1 + $0xc8] sm:$0xf]
    %v81 = vld [vmem:[%s1 + $0xcc] sm:$0xf]
    %v82 = vld [vmem:[%s1 + $0xd0] sm:$0xf]
    %v83 = vld [vmem:[%s1 + $0xd4] sm:$0xf]
    %v84 = vld [vmem:[%s1 + $0xd8] sm:$0xf]
    %v85 = vld [vmem:[%s1 + $0xdc] sm:$0xf]
    %v86 = vld [vmem:[%s1 + $0xe0] sm:$0xf]
    %v87 = vld [vmem:[%s1 + $0xe4] sm:$0xf]
    %v88 = vld [vmem:[%s1 + $0xe8] sm:$0xf]
    %v89 = vld [vmem:[%s1 + $0xec] sm:$0xf]
    %v90 = vld [vmem:[%s1 + $0xf0] sm:$0xf]
    %v91 = vld [vmem:[%s1 + $0xf4] sm:$0xf]
    %v92 = vld [vmem:[%s1 + $0xf8] sm:$0xf]
    %v93 = vld [vmem:[%s1 + $0xfc] sm:$0xf]
    %v94 = vld [vmem:[%s1 + $0x100] sm:$0xf]
    %v95 = vld [vmem:[%s1 + $0x104] sm:$0xf]
    %v96 = vld [vmem:[%s1 + $0x108] sm:$0xf]
    %v97 = vld [vmem:[%s1 + $0x10c] sm:$0xf]
    %v98 = vld [vmem:[%s1 + $0x110] sm:$0xf]
    %v99 = vld [vmem:[%s1 + $0x114] sm:$0xf]
    %v100 = vld [vmem:[%s1 + $0x118] sm:$0xf]
    %v101 = vld [vmem:[%s1 + $0x11c] sm:$0xf]
    %v102 = vld [vmem:[%s1 + $0x120] sm:$0xf]
    %v103 = vld [vmem:[%s1 + $0x124] sm:$0xf]
    %v104 = vld [vmem:[%s1 + $0x128] sm:$0xf]
    %v105 = vld [vmem:[%s1 + $0x12c] sm:$0xf]
    %v106 = vld [vmem:[%s1 + $0x130] sm:$0xf]
    %v107 = vld [vmem:[%s1 + $0x134] sm:$0xf]
    %v108 = vld [vmem:[%s1 + $0x138] sm:$0xf]
    %v109 = vld [vmem:[%s1 + $0x13c] sm:$0xf]
    %v110 = vld [vmem:[%s1 + $0x140] sm:$0xf]
    %v111 = vld [vmem:[%s1 + $0x144] sm:$0xf]
    %v112 = vld [vmem:[%s1 + $0x148] sm:$0xf]
    %v113 = vld [vmem:[%s1 + $0x14c] sm:$0xf]
    %v114 = vld [vmem:[%s1 + $0x150] sm:$0xf]
    %v115 = vld [vmem:[%s1 + $0x154] sm:$0xf]
    %v116 = vld [vmem:[%s1 + $0x158] sm:$0xf]
    %v117 = vld [vmem:[%s1 + $0x15c] sm:$0xf]
    %v118 = vld [vmem:[%s1 + $0x160] sm:$0xf]
    %v119 = vld [vmem:[%s1 + $0x164] sm:$0xf]
    %v120 = vld [vmem:[%s1 + $0x168] sm:$0xf]
    %v121 = vld [vmem:[%s1 + $0x16c] sm:$0xf]
    %v122 = vld [vmem:[%s1 + $0x170] sm:$0xf]
    %v123 = vld [vmem:[%s1 + $0x174] sm:$0xf]
    %v124 = vld [vmem:[%s1 + $0x178] sm:$0xf]
    %v125 = vld [vmem:[%s1 + $0x17c] sm:$0xf]
    %v126 = vld [vmem:[%s1 + $0x180] sm:$0xf]
    %v127 = vld [vmem:[%s1 + $0x184] sm:$0xf]
    %v128 = vld [vmem:[%s2] sm:$0x1]
    %v130 = vperm.slane %v128, 0
    %v140 = vunpack.c.l.b16 %v22
    %v141 = vunpack.c.h.b16 %v22
    %v142 = vunpack.c.l.b16 %v23
    %v143 = vunpack.c.h.b16 %v23
    %v144 = vunpack.c.l.b16 %v24
    %v145 = vunpack.c.h.b16 %v24
    %v146 = vunpack.c.l.b16 %v25
    %v147 = vunpack.c.l.b16 %v26
    %v148 = vunpack.c.h.b16 %v26
    %v149 = vunpack.c.l.b16 %v27
    %v150 = vunpack.c.h.b16 %v27
    %v151 = vunpack.c.l.b16 %v28
    %v152 = vunpack.c.h.b16 %v28
    %v153 = vunpack.c.l.b16 %v29
    %v154 = vpack.c.b16 %v147, %v140
    %v155 = vpack.c.b16 %v148, %v141
    %v156 = vpack.c.b16 %v149, %v142
    %v157 = vpack.c.b16 %v150, %v143
    %v158 = vpack.c.b16 %v151, %v144
    %v159 = vpack.c.b16 %v152, %v145
    %v160 = vpack.c.b16 %v153, %v146
    %v265 = vunpack.c.l.b16 %v30
    %v266 = vunpack.c.l.b16 %v31
    %v267 = vunpack.c.l.b16 %v32
    %v268 = vunpack.c.l.b16 %v33
    %v269 = vunpack.c.l.b16 %v34
    %v270 = vunpack.c.l.b16 %v35
    %v271 = vunpack.c.l.b16 %v36
    %v272 = vunpack.c.l.b16 %v37
    %v273 = vunpack.c.l.b16 %v38
    %v274 = vunpack.c.l.b16 %v39
    %v275 = vunpack.c.l.b16 %v40
    %v276 = vunpack.c.l.b16 %v41
    %v277 = vunpack.c.l.b16 %v42
    %v278 = vunpack.c.l.b16 %v43
    %v279 = vunpack.c.l.b16 %v44
    %v280 = vunpack.c.l.b16 %v45
    %v281 = vunpack.c.l.b16 %v46
    %v282 = vunpack.c.l.b16 %v47
    %v283 = vunpack.c.l.b16 %v48
    %v284 = vunpack.c.l.b16 %v49
    %v285 = vunpack.c.l.b16 %v50
    %v286 = vunpack.c.l.b16 %v51
    %v287 = vunpack.c.l.b16 %v52
    %v288 = vunpack.c.l.b16 %v53
    %v289 = vunpack.c.l.b16 %v54
    %v290 = vunpack.c.l.b16 %v55
    %v291 = vunpack.c.l.b16 %v56
    %v292 = vunpack.c.l.b16 %v57
    %v293 = vunpack.c.l.b16 %v58
    %v294 = vunpack.c.l.b16 %v59
    %v295 = vunpack.c.l.b16 %v60
    %v296 = vunpack.c.l.b16 %v61
    %v297 = vunpack.c.l.b16 %v62
    %v298 = vunpack.c.l.b16 %v63
    %v299 = vunpack.c.l.b16 %v64
    %v300 = vunpack.c.l.b16 %v65
    %v301 = vunpack.c.l.b16 %v66
    %v302 = vunpack.c.l.b16 %v67
    %v303 = vunpack.c.l.b16 %v68
    %v304 = vunpack.c.l.b16 %v69
    %v305 = vunpack.c.l.b16 %v70
    %v306 = vunpack.c.l.b16 %v71
    %v307 = vunpack.c.l.b16 %v72
    %v308 = vunpack.c.l.b16 %v73
    %v309 = vunpack.c.l.b16 %v74
    %v310 = vunpack.c.l.b16 %v75
    %v311 = vunpack.c.l.b16 %v76
    %v312 = vunpack.c.l.b16 %v77
    %v313 = vunpack.c.l.b16 %v78
    %v314 = vunpack.c.l.b16 %v79
    %v315 = vunpack.c.l.b16 %v80
    %v316 = vunpack.c.l.b16 %v81
    %v317 = vunpack.c.l.b16 %v82
    %v318 = vunpack.c.l.b16 %v83
    %v319 = vunpack.c.l.b16 %v84
    %v320 = vunpack.c.l.b16 %v85
    %v321 = vunpack.c.l.b16 %v86
    %v322 = vunpack.c.l.b16 %v87
    %v323 = vunpack.c.l.b16 %v88
    %v324 = vunpack.c.l.b16 %v89
    %v325 = vunpack.c.l.b16 %v90
    %v326 = vunpack.c.l.b16 %v91
    %v327 = vunpack.c.l.b16 %v92
    %v328 = vunpack.c.l.b16 %v93
    %v329 = vunpack.c.l.b16 %v94
    %v330 = vunpack.c.l.b16 %v95
    %v331 = vunpack.c.l.b16 %v96
    %v332 = vunpack.c.l.b16 %v97
    %v333 = vunpack.c.l.b16 %v98
    %v334 = vunpack.c.l.b16 %v99
    %v335 = vunpack.c.l.b16 %v100
    %v336 = vunpack.c.l.b16 %v101
    %v337 = vunpack.c.l.b16 %v102
    %v338 = vunpack.c.l.b16 %v103
    %v339 = vunpack.c.l.b16 %v104
    %v340 = vunpack.c.l.b16 %v105
    %v341 = vunpack.c.l.b16 %v106
    %v342 = vunpack.c.l.b16 %v107
    %v343 = vunpack.c.l.b16 %v108
    %v344 = vunpack.c.l.b16 %v109
    %v345 = vunpack.c.l.b16 %v110
    %v346 = vunpack.c.l.b16 %v111
    %v347 = vunpack.c.l.b16 %v112
    %v348 = vunpack.c.l.b16 %v113
    %v349 = vunpack.c.l.b16 %v114
    %v350 = vunpack.c.l.b16 %v115
    %v351 = vunpack.c.l.b16 %v116
    %v352 = vunpack.c.l.b16 %v117
    %v353 = vunpack.c.l.b16 %v118
    %v354 = vunpack.c.l.b16 %v119
    %v355 = vunpack.c.l.b16 %v120
    %v356 = vunpack.c.l.b16 %v121
    %v357 = vunpack.c.l.b16 %v122
    %v358 = vunpack.c.l.b16 %v123
    %v359 = vunpack.c.l.b16 %v124
    %v360 = vunpack.c.l.b16 %v125
    %v361 = vunpack.c.l.b16 %v126
    %v362 = vunpack.c.l.b16 %v127
    %v363 = vpack.c.b16 %v266, %v265
    %v364 = vpack.c.b16 %v268, %v267
    %v365 = vpack.c.b16 %v270, %v269
    %v366 = vpack.c.b16 %v272, %v271
    %v367 = vpack.c.b16 %v274, %v273
    %v368 = vpack.c.b16 %v276, %v275
    %v369 = vpack.c.b16 %v278, %v277
    %v370 = vpack.c.b16 %v280, %v279
    %v371 = vpack.c.b16 %v282, %v281
    %v372 = vpack.c.b16 %v284, %v283
    %v373 = vpack.c.b16 %v286, %v285
    %v374 = vpack.c.b16 %v288, %v287
    %v375 = vpack.c.b16 %v290, %v289
    %v376 = vpack.c.b16 %v292, %v291
    %v377 = vpack.c.b16 %v294, %v293
    %v378 = vpack.c.b16 %v296, %v295
    %v379 = vpack.c.b16 %v298, %v297
    %v380 = vpack.c.b16 %v300, %v299
    %v381 = vpack.c.b16 %v302, %v301
    %v382 = vpack.c.b16 %v304, %v303
    %v383 = vpack.c.b16 %v306, %v305
    %v384 = vpack.c.b16 %v308, %v307
    %v385 = vpack.c.b16 %v310, %v309
    %v386 = vpack.c.b16 %v312, %v311
    %v387 = vpack.c.b16 %v314, %v313
    %v388 = vpack.c.b16 %v316, %v315
    %v389 = vpack.c.b16 %v318, %v317
    %v390 = vpack.c.b16 %v320, %v319
    %v391 = vpack.c.b16 %v322, %v321
    %v392 = vpack.c.b16 %v324, %v323
    %v393 = vpack.c.b16 %v326, %v325
    %v394 = vpack.c.b16 %v328, %v327
    %v395 = vpack.c.b16 %v330, %v329
    %v396 = vpack.c.b16 %v332, %v331
    %v397 = vpack.c.b16 %v334, %v333
    %v398 = vpack.c.b16 %v336, %v335
    %v399 = vpack.c.b16 %v338, %v337
    %v400 = vpack.c.b16 %v340, %v339
    %v401 = vpack.c.b16 %v342, %v341
    %v402 = vpack.c.b16 %v344, %v343
    %v403 = vpack.c.b16 %v346, %v345
    %v404 = vpack.c.b16 %v348, %v347
    %v405 = vpack.c.b16 %v350, %v349
    %v406 = vpack.c.b16 %v352, %v351
    %v407 = vpack.c.b16 %v354, %v353
    %v408 = vpack.c.b16 %v356, %v355
    %v409 = vpack.c.b16 %v358, %v357
    %v410 = vpack.c.b16 %v360, %v359
    %v411 = vpack.c.b16 %v362, %v361
    %vm461 = vcmask 130048
    %v463 = vsel %vm461, %v160, 0
    %465 = vmatpush.bf16.msra.mxu0 %v370
    %466 = vmatpush.bf16.msra.mxu0 %v369
    %467 = vmatpush.bf16.msra.mxu0 %v368
    %468 = vmatpush.bf16.msra.mxu0 %v367
    %469 = vmatpush.bf16.msra.mxu0 %v366
    %470 = vmatpush.bf16.msra.mxu0 %v365
    %471 = vmatpush.bf16.msra.mxu0 %v364
    %472 = vmatpush.bf16.msra.mxu0 %v363
    %473 = vmatmul.bf16.gmra.mxu0 %v154
    %v474 = vpop.f32.mrf.mxu0
    %v475 = vadd.f32 %v130, %v474
    %v476 = vpop.f32.mrf.mxu0
    %v477 = vadd.f32 %v130, %v476
    %478 = vdwg.mxu0
    %479 = vmatpush.bf16.msra.mxu0 %v378
    %480 = vmatpush.bf16.msra.mxu0 %v377
    %481 = vmatpush.bf16.msra.mxu0 %v376
    %482 = vmatpush.bf16.msra.mxu0 %v375
    %483 = vmatpush.bf16.msra.mxu0 %v374
    %484 = vmatpush.bf16.msra.mxu0 %v373
    %485 = vmatpush.bf16.msra.mxu0 %v372
    %486 = vmatpush.bf16.msra.mxu0 %v371
    %487 = vmatmul.bf16.gmra.mxu0 %v155
    %v488 = vpop.f32.mrf.mxu0
    %v489 = vadd.f32 %v475, %v488
    %v490 = vpop.f32.mrf.mxu0
    %v491 = vadd.f32 %v477, %v490
    %492 = vdwg.mxu0
    %493 = vmatpush.bf16.msra.mxu0 %v386
    %494 = vmatpush.bf16.msra.mxu0 %v385
    %495 = vmatpush.bf16.msra.mxu0 %v384
    %496 = vmatpush.bf16.msra.mxu0 %v383
    %497 = vmatpush.bf16.msra.mxu0 %v382
    %498 = vmatpush.bf16.msra.mxu0 %v381
    %499 = vmatpush.bf16.msra.mxu0 %v380
    %500 = vmatpush.bf16.msra.mxu0 %v379
    %501 = vmatmul.bf16.gmra.mxu0 %v156
    %v502 = vpop.f32.mrf.mxu0
    %v503 = vadd.f32 %v489, %v502
    %v504 = vpop.f32.mrf.mxu0
    %v505 = vadd.f32 %v491, %v504
    %506 = vdwg.mxu0
    %507 = vmatpush.bf16.msra.mxu0 %v394
    %508 = vmatpush.bf16.msra.mxu0 %v393
    %509 = vmatpush.bf16.msra.mxu0 %v392
    %510 = vmatpush.bf16.msra.mxu0 %v391
    %511 = vmatpush.bf16.msra.mxu0 %v390
    %512 = vmatpush.bf16.msra.mxu0 %v389
    %513 = vmatpush.bf16.msra.mxu0 %v388
    %514 = vmatpush.bf16.msra.mxu0 %v387
    %515 = vmatmul.bf16.gmra.mxu0 %v157
    %v516 = vpop.f32.mrf.mxu0
    %v517 = vadd.f32 %v503, %v516
    %v518 = vpop.f32.mrf.mxu0
    %v519 = vadd.f32 %v505, %v518
    %520 = vdwg.mxu0
    %521 = vmatpush.bf16.msra.mxu0 %v402
    %522 = vmatpush.bf16.msra.mxu0 %v401
    %523 = vmatpush.bf16.msra.mxu0 %v400
    %524 = vmatpush.bf16.msra.mxu0 %v399
    %525 = vmatpush.bf16.msra.mxu0 %v398
    %526 = vmatpush.bf16.msra.mxu0 %v397
    %527 = vmatpush.bf16.msra.mxu0 %v396
    %528 = vmatpush.bf16.msra.mxu0 %v395
    %529 = vmatmul.bf16.gmra.mxu0 %v158
    %v530 = vpop.f32.mrf.mxu0
    %v531 = vadd.f32 %v517, %v530
    %v532 = vpop.f32.mrf.mxu0
    %v533 = vadd.f32 %v519, %v532
    %534 = vdwg.mxu0
    %535 = vmatpush.bf16.msra.mxu0 %v410
    %536 = vmatpush.bf16.msra.mxu0 %v409
    %537 = vmatpush.bf16.msra.mxu0 %v408
    %538 = vmatpush.bf16.msra.mxu0 %v407
    %539 = vmatpush.bf16.msra.mxu0 %v406
    %540 = vmatpush.bf16.msra.mxu0 %v405
    %541 = vmatpush.bf16.msra.mxu0 %v404
    %542 = vmatpush.bf16.msra.mxu0 %v403
    %543 = vmatmul.bf16.gmra.mxu0 %v159
    %v544 = vpop.f32.mrf.mxu0
    %v545 = vadd.f32 %v531, %v544
    %v546 = vpop.f32.mrf.mxu0
    %v547 = vadd.f32 %v533, %v546
    %548 = vdwg.mxu0
    %549 = vmatpush.bf16.msra.mxu0 0
    %550 = vmatpush.bf16.msra.mxu0 0
    %551 = vmatpush.bf16.msra.mxu0 0
    %552 = vmatpush.bf16.msra.mxu0 0
    %553 = vmatpush.bf16.msra.mxu0 0
    %554 = vmatpush.bf16.msra.mxu0 0
    %555 = vmatpush.bf16.msra.mxu0 0
    %556 = vmatpush.bf16.msra.mxu0 %v411
    %557 = vmatmul.bf16.gmra.mxu0 %v463
    %v558 = vpop.f32.mrf.mxu0
    %v559 = vadd.f32 %v545, %v558
    %v560 = vpop.f32.mrf.mxu0
    %v561 = vadd.f32 %v547, %v560
    %562 = vdwg.mxu0
    %v563 = vmax.f32 %v559, 0.0
    %v564 = vmax.f32 %v561, 0.0
    %v565 = vpack.c.bf16 %v564, %v563
    %v566 = vld [vmem:[%s3] sm:$0xf]
    %v567 = vld [vmem:[%s3 + $0x4] sm:$0xf]
    %v568 = vld [vmem:[%s3 + $0x8] sm:$0xf]
    %v569 = vld [vmem:[%s3 + $0xc] sm:$0xf]
    %v570 = vld [vmem:[%s3 + $0x10] sm:$0xf]
    %v571 = vld [vmem:[%s3 + $0x14] sm:$0xf]
    %v572 = vld [vmem:[%s3 + $0x18] sm:$0xf]
    %v573 = vld [vmem:[%s3 + $0x1c] sm:$0xf]
    %v574 = vld [vmem:[%s3 + $0x20] sm:$0xf]
    %v575 = vld [vmem:[%s3 + $0x24] sm:$0xf]
    %v576 = vld [vmem:[%s3 + $0x28] sm:$0xf]
    %v577 = vld [vmem:[%s3 + $0x2c] sm:$0xf]
    %v578 = vld [vmem:[%s3 + $0x30] sm:$0xf]
    %v579 = vld [vmem:[%s3 + $0x34] sm:$0xf]
    %v580 = vld [vmem:[%s3 + $0x38] sm:$0xf]
    %v581 = vld [vmem:[%s3 + $0x3c] sm:$0xf]
    %v582 = vld [vmem:[%s4] sm:$0x1]
    %v584 = vperm.slane %v582, 0
    %v602 = vunpack.c.l.b16 %v566
    %v603 = vunpack.c.l.b16 %v567
    %v604 = vunpack.c.l.b16 %v568
    %v605 = vunpack.c.l.b16 %v569
    %v606 = vunpack.c.l.b16 %v570
    %v607 = vunpack.c.l.b16 %v571
    %v608 = vunpack.c.l.b16 %v572
    %v609 = vunpack.c.l.b16 %v573
    %v610 = vunpack.c.l.b16 %v574
    %v611 = vunpack.c.l.b16 %v575
    %v612 = vunpack.c.l.b16 %v576
    %v613 = vunpack.c.l.b16 %v577
    %v614 = vunpack.c.l.b16 %v578
    %v615 = vunpack.c.l.b16 %v579
    %v616 = vunpack.c.l.b16 %v580
    %v617 = vunpack.c.l.b16 %v581
    %v618 = vpack.c.b16 %v603, %v602
    %v619 = vpack.c.b16 %v605, %v604
    %v620 = vpack.c.b16 %v607, %v606
    %v621 = vpack.c.b16 %v609, %v608
    %v622 = vpack.c.b16 %v611, %v610
    %v623 = vpack.c.b16 %v613, %v612
    %v624 = vpack.c.b16 %v615, %v614
    %v625 = vpack.c.b16 %v617, %v616
    %634 = vmatpush.bf16.msra.mxu0 %v625
    %635 = vmatpush.bf16.msra.mxu0 %v624
    %636 = vmatpush.bf16.msra.mxu0 %v623
    %637 = vmatpush.bf16.msra.mxu0 %v622
    %638 = vmatpush.bf16.msra.mxu0 %v621
    %639 = vmatpush.bf16.msra.mxu0 %v620
    %640 = vmatpush.bf16.msra.mxu0 %v619
    %641 = vmatpush.bf16.msra.mxu0 %v618
    %642 = vmatmul.bf16.gmra.mxu0 %v565
    %v643 = vpop.f32.mrf.mxu0
    %v644 = vadd.f32 %v584, %v643
    %v645 = vpop.f32.mrf.mxu0
    %v646 = vadd.f32 %v584, %v645
    %647 = vdwg.mxu0
    %vm648 = vcmask 80896
    %v649 = vsel %vm648, %v644, -inf
    %650 = vmax.xlane.f32.xlu0 %v649
    %v651 = vpop.xlane.xlu0 %650
    %v652 = vsel %vm648, %v646, -inf
    %653 = vmax.xlane.f32.xlu0 %v652
    %v654 = vpop.xlane.xlu0 %653
    %v655 = vsub.f32 %v644, %v651
    %v656 = vsub.f32 %v646, %v654
    %v657 = vmul.f32 %v655, 1.442695
    %v658 = vpow.pop %v657
    %v659 = vmul.f32 %v656, 1.442695
    %v660 = vpow.pop %v659
    %v661 = vsel %vm648, %v658, 0.0
    %662 = vadd.xlane.f32.xlu0 %v661
    %v663 = vpop.xlane.xlu0 %662
    %v664 = vsel %vm648, %v660, 0.0
    %665 = vadd.xlane.f32.xlu0 %v664
    %v666 = vpop.xlane.xlu0 %665
    %v667 = vlog2.pop %v663
    %v668 = vmul.f32 %v667, 0.6931472
    %v669 = vlog2.pop %v666
    %v670 = vmul.f32 %v669, 0.6931472
    %v671 = vadd.f32 %v651, %v668
    %v672 = vadd.f32 %v654, %v670
    %v673 = vsub.f32 %v644, %v671
    %v674 = vsub.f32 %v646, %v672
    %675 = vst.msk [vmem:[#allocation2] sm:$0xff] %vm648, %v673
    %676 = vst.msk [vmem:[#allocation2 + $0x8] sm:$0xff] %vm648, %v674
    // Predicated region
    $region22: #{convnet_dropout_forward.5} parent=1 // pred_check
      _
    $region23: #{convnet_dropout_forward.5} parent=1 // pred_check_branch
      %678 = sbr.rel (0) target = $region25
    $region24: #{convnet_dropout_forward.5} parent=1 // pred_region
      %680 = vsyncadd [#allocation3], 0
      %s681 = sshll.u32 [#allocation2], 4
      %s682 = int_to_ptr.vmem [resolvable:$true] %s681
      %s683 = sshll.u32 %s5, 4
      %s684 = int_to_ptr.hbm [resolvable:$true] %s683
      %689 = dma.vmem_to_hbm [thread:$0]  %s682, 256, %s684, [#allocation3], 128, 128, 8
    $region25: #{convnet_dropout_forward.5} parent=1 // pred_fallthru
      _
    // Predicated region
    $region26: #{convnet_dropout_forward.5} parent=1 // pred_check
      _
    $region27: #{convnet_dropout_forward.5} parent=1 // pred_check_branch
      %691 = sbr.rel (0) target = $region29
    $region28: #{convnet_dropout_forward.5} parent=1 // pred_region
      %693 = dma.done [#allocation3], 256
    $region29: #{convnet_dropout_forward.5} parent=1 // pred_fallthru
      _
    %694 = vsyncpa [#allocation3], 1

</llo_original>
